<compile_context>
chip_gen: v6e
topology: v6e:2x2x1
jax: 0.10.0
libtpu: 0.0.40
codegen_flags: <defaults>
</compile_context>

<pallas_src>
import functools

import jax
import jax.numpy as jnp
from jax import lax
from jax.experimental import pallas as pl
from jax.experimental.pallas import tpu as pltpu


# --------------------------------------------------------------------------------------
# Generation-aware knobs + helpers
# --------------------------------------------------------------------------------------
def _round_up(n, m):
    return ((n + m - 1) // m) * m


def _tpu_vmem_capacity_bytes():
    try:
        info = pltpu.get_tpu_info()
        cap = getattr(info, "vmem_capacity_bytes", None)
        if cap:
            return int(cap)
    except Exception:
        pass
    return None


_VMEM_CAP = _tpu_vmem_capacity_bytes()
_BIG_VMEM = (_VMEM_CAP is None) or (_VMEM_CAP >= 100 * 1024 * 1024)
if _VMEM_CAP is None:
    _VMEM_LIMIT = 48 * 1024 * 1024
else:
    _VMEM_LIMIT = max(32 * 1024 * 1024, min(96 * 1024 * 1024, _VMEM_CAP // 2))
_ROW_TILE_CAP = 1024 if _BIG_VMEM else 512          # v5e/v6e: big tiles; v7x: 512


def _cp(*sem):
    return pltpu.CompilerParams(dimension_semantics=sem, vmem_limit_bytes=_VMEM_LIMIT)


def _pick_tile(n, cap):
    """Row-tile (multiple of 8, <= cap) + padded length it divides (minimal padding)."""
    n8 = _round_up(n, 8)
    if n8 <= cap:
        return n8, n8
    if n % 8 == 0:                                  # prefer an exact divisor (no padding)
        d = (cap // 8) * 8
        while d >= 128:
            if n % d == 0:
                return d, n
            d -= 8
    nt = -(-n // cap)
    t = _round_up(-(-n // nt), 8)
    return t, nt * t


def _softmax_last(x):
    m = jnp.max(x, axis=-1, keepdims=True)
    e = jnp.exp(x - m)
    return e / jnp.sum(e, axis=-1, keepdims=True)


# --------------------------------------------------------------------------------------
# Kernel 1: generic fused multi-input 1x1 conv (channel concat fused into the matmul)
#           grid = (batch, row-tiles); bf16 MXU dots, f32 accumulation, per-batch bias.
# --------------------------------------------------------------------------------------
def _conv1x1_multi_kernel(*refs, n_in, act):
    xs = refs[:n_in]
    ws = refs[n_in:2 * n_in]
    b_ref = refs[2 * n_in]
    o_ref = refs[2 * n_in + 1]
    acc = None
    for i in range(n_in):
        x = xs[i][0]
        w_full = ws[i][...]
        if x.shape[-1] == 1:                         # rank-1 channel (e.g. corr mask)
            term = x.astype(jnp.float32) * w_full.astype(jnp.float32)
        else:
            term = jnp.dot(x, w_full, preferred_element_type=jnp.float32)
        acc = term if acc is None else acc + term
    acc = acc + b_ref[0]
    if act == "relu":
        acc = jnp.maximum(acc, 0.0)
    elif act == "sigmoid":
        acc = jax.nn.sigmoid(acc)
    o_ref[0] = acc.astype(o_ref.dtype)


def conv1x1_multi(xs, ws, b=None, act=None, out_dtype=jnp.bfloat16):
    """xs: list of (B,H,W,Ci); ws: list of (Ci,F). b: None, (F,) or per-batch (B,F)."""
    B, H, W, _ = xs[0].shape
    F = ws[0].shape[1]
    HW = H * W
    tr, HWp = _pick_tile(HW, _ROW_TILE_CAP)
    xs_flat = []
    for x in xs:
        Ci = x.shape[-1]
        xf = x.reshape(B, HW, Ci).astype(jnp.bfloat16)
        if HWp != HW:
            xf = jnp.pad(xf, ((0, 0), (0, HWp - HW), (0, 0)))
        xs_flat.append(xf)
    ws_b = [w.astype(jnp.bfloat16) for w in ws]
    if b is None:
        bb = jnp.zeros((B, 1, F), jnp.float32)
    else:
        b = jnp.asarray(b, jnp.float32)
        bb = (jnp.broadcast_to(b.reshape(1, 1, F), (B, 1, F)) if b.ndim == 1
              else b.reshape(B, 1, F))
    n = len(xs_flat)

    in_specs = [pl.BlockSpec((1, tr, x.shape[-1]), lambda bi, r: (bi, r, 0))
                for x in xs_flat]
    in_specs += [pl.BlockSpec(tuple(w.shape), lambda bi, r: (0, 0)) for w in ws_b]
    in_specs += [pl.BlockSpec((1, 1, F), lambda bi, r: (bi, 0, 0))]

    out = pl.pallas_call(
        functools.partial(_conv1x1_multi_kernel, n_in=n, act=act),
        out_shape=jax.ShapeDtypeStruct((B, HWp, F), out_dtype),
        grid=(B, HWp // tr),
        in_specs=in_specs,
        out_specs=pl.BlockSpec((1, tr, F), lambda bi, r: (bi, r, 0)),
        compiler_params=_cp("parallel", "parallel"),
    )(*xs_flat, *ws_b, bb)
    if HWp != HW:
        out = out[:, :HW]
    return out.reshape(B, H, W, F)


# --------------------------------------------------------------------------------------
# Kernel 2: 3x3 same-pad conv — dx taps folded into channels host-side, 3 sublane-aligned
#           dy taps in-kernel; optional fused 1x1 post-projection (cls_meta) or residual.
# --------------------------------------------------------------------------------------
def _conv3x3_kernel(*refs, taps, act, has_post, has_res):
    i = 0
    x_ref = refs[i]; i += 1
    w_ref = refs[i]; i += 1
    b_ref = refs[i]; i += 1
    pw_ref = pb_ref = r_ref = None
    if has_post:
        pw_ref = refs[i]; i += 1
        pb_ref = refs[i]; i += 1
    if has_res:
        r_ref = refs[i]; i += 1
    o_ref = refs[i]
    M = o_ref.shape[1]

    acc = jnp.dot(x_ref[0, taps[0]:taps[0] + M, :], w_ref[0],
                  preferred_element_type=jnp.float32)
    for k in (1, 2):
        acc = acc + jnp.dot(x_ref[0, taps[k]:taps[k] + M, :], w_ref[k],
                            preferred_element_type=jnp.float32)
    acc = acc + b_ref[...]
    if act == "relu":
        acc = jnp.maximum(acc, 0.0)
    if has_post:
        acc = jnp.dot(acc.astype(jnp.bfloat16), pw_ref[...],
                      preferred_element_type=jnp.float32) + pb_ref[...]
    if has_res:
        acc = acc + r_ref[0].astype(jnp.float32)
    o_ref[0] = acc.astype(o_ref.dtype)


def conv3x3(x, w, b=None, act="relu", post_w=None, post_b=None, residual=None,
            out_dtype=jnp.bfloat16):
    """x: (B,H,W,C) NHWC, w: (3,3,C,F) HWIO."""
    B, H, W, C = x.shape
    F = w.shape[-1]
    M = H * W
    xp = jnp.pad(x.astype(jnp.bfloat16), ((0, 0), (1, 1), (1, 1), (0, 0)))
    # fold the 3 width (dx) taps into the channel axis -> remaining dy taps are row
    # offsets {0, W, 2W} in the flattened layout (sublane-aligned when W % 8 == 0).
    x3 = jnp.concatenate([xp[:, :, 0:W, :], xp[:, :, 1:W + 1, :], xp[:, :, 2:W + 2, :]],
                         axis=-1).reshape(B, (H + 2) * W, 3 * C)
    w3 = w.reshape(3, 3 * C, F).astype(jnp.bfloat16)
    b_arr = (jnp.zeros((1, F), jnp.float32) if b is None
             else jnp.asarray(b, jnp.float32).reshape(1, F))
    taps = (0, W, 2 * W)
    has_post = post_w is not None
    has_res = residual is not None
    cout = post_w.shape[1] if has_post else F

    in_specs = [pl.BlockSpec((1, (H + 2) * W, 3 * C), lambda bi: (bi, 0, 0)),
                pl.BlockSpec((3, 3 * C, F), lambda bi: (0, 0, 0)),
                pl.BlockSpec((1, F), lambda bi: (0, 0))]
    args = [x3, w3, b_arr]
    if has_post:
        pw = post_w.astype(jnp.bfloat16)
        pb = (jnp.zeros((1, cout), jnp.float32) if post_b is None
              else jnp.asarray(post_b, jnp.float32).reshape(1, cout))
        in_specs += [pl.BlockSpec((F, cout), lambda bi: (0, 0)),
                     pl.BlockSpec((1, cout), lambda bi: (0, 0))]
        args += [pw, pb]
    if has_res:
        res = residual.reshape(B, M, cout).astype(jnp.bfloat16)
        in_specs += [pl.BlockSpec((1, M, cout), lambda bi: (bi, 0, 0))]
        args += [res]

    out = pl.pallas_call(
        functools.partial(_conv3x3_kernel, taps=taps, act=act,
                          has_post=has_post, has_res=has_res),
        out_shape=jax.ShapeDtypeStruct((B, M, cout), out_dtype),
        grid=(B,),
        in_specs=in_specs,
        out_specs=pl.BlockSpec((1, M, cout), lambda bi: (bi, 0, 0)),
        compiler_params=_cp("parallel"),
    )(*args)
    return out.reshape(B, H, W, cout)


# --------------------------------------------------------------------------------------
# Kernel 3: down_supp 1x1 conv (concat fused) + Weighted_GAP + GAM pooling, one pass
# --------------------------------------------------------------------------------------
def _down_supp_fused_kernel(x3_ref, x2_ref, w3_ref, w2_ref, md_ref, mn_ref,
                            o_ref, fsd_ref, msd_ref, fsn_ref,
                            fsd_s, msd_s, fsn_s):
    r = pl.program_id(1)

    @pl.when(r == 0)
    def _():
        fsd_s[...] = jnp.zeros_like(fsd_s)
        msd_s[...] = jnp.zeros_like(msd_s)
        fsn_s[...] = jnp.zeros_like(fsn_s)

    y = jnp.dot(x3_ref[0], w3_ref[...], preferred_element_type=jnp.float32)
    y = y + jnp.dot(x2_ref[0], w2_ref[...], preferred_element_type=jnp.float32)
    y = jnp.maximum(y, 0.0)                          # ReLU (Dropout2d -> identity)
    o_ref[0] = y.astype(o_ref.dtype)

    md = md_ref[0]                                   # (tr, 1) bilinear-resized mask
    mn = mn_ref[0]                                   # (tr, 1) nearest-resized mask
    fsd_s[...] += jnp.sum(y * md, axis=0, keepdims=True)
    msd_s[...] += jnp.sum(md, axis=0, keepdims=True)
    fsn_s[...] += jnp.sum(y * mn, axis=0, keepdims=True)

    @pl.when(r == pl.num_programs(1) - 1)
    def _():
        fsd_ref[0] = fsd_s[...]
        msd_ref[0] = msd_s[...]
        fsn_ref[0] = fsn_s[...]


def down_supp_fused(f3, f2, mask_down, mask_near, w3, w2):
    """Returns (supp_feat (B,H,W,rd) bf16, Weighted_GAP prototype (B,rd), GAM att (B,rd))."""
    B, H, W, C3 = f3.shape
    C2 = f2.shape[-1]
    rd = w3.shape[1]
    HW = H * W
    tr, HWp = _pick_tile(HW, _ROW_TILE_CAP)
    x3 = f3.reshape(B, HW, C3).astype(jnp.bfloat16)
    x2 = f2.reshape(B, HW, C2).astype(jnp.bfloat16)
    md = mask_down.reshape(B, HW, 1).astype(jnp.float32)
    mn = mask_near.reshape(B, HW, 1).astype(jnp.float32)
    if HWp != HW:
        pad = ((0, 0), (0, HWp - HW), (0, 0))
        x3 = jnp.pad(x3, pad)
        x2 = jnp.pad(x2, pad)
        md = jnp.pad(md, pad)
        mn = jnp.pad(mn, pad)

    out, fsd, msd, fsn = pl.pallas_call(
        _down_supp_fused_kernel,
        out_shape=(jax.ShapeDtypeStruct((B, HWp, rd), jnp.bfloat16),
                   jax.ShapeDtypeStruct((B, 1, rd), jnp.float32),
                   jax.ShapeDtypeStruct((B, 1, 1), jnp.float32),
                   jax.ShapeDtypeStruct((B, 1, rd), jnp.float32)),
        grid=(B, HWp // tr),
        in_specs=[pl.BlockSpec((1, tr, C3), lambda b, r: (b, r, 0)),
                  pl.BlockSpec((1, tr, C2), lambda b, r: (b, r, 0)),
                  pl.BlockSpec((C3, rd), lambda b, r: (0, 0)),
                  pl.BlockSpec((C2, rd), lambda b, r: (0, 0)),
                  pl.BlockSpec((1, tr, 1), lambda b, r: (b, r, 0)),
                  pl.BlockSpec((1, tr, 1), lambda b, r: (b, r, 0))],
        out_specs=(pl.BlockSpec((1, tr, rd), lambda b, r: (b, r, 0)),
                   pl.BlockSpec((1, 1, rd), lambda b, r: (b, 0, 0)),
                   pl.BlockSpec((1, 1, 1), lambda b, r: (b, 0, 0)),
                   pl.BlockSpec((1, 1, rd), lambda b, r: (b, 0, 0))),
        scratch_shapes=[pltpu.VMEM((1, rd), jnp.float32),
                        pltpu.VMEM((1, 1), jnp.float32),
                        pltpu.VMEM((1, rd), jnp.float32)],
        compiler_params=_cp("parallel", "arbitrary"),
    )(x3, x2, w3.astype(jnp.bfloat16), w2.astype(jnp.bfloat16), md, mn)

    supp_feat = out[:, :HW].reshape(B, H, W, rd)
    supp_pro = fsd[:, 0] / (msd[:, 0] + 0.0005)            # Weighted_GAP  (B, rd)
    att = fsn[:, 0] / float(HW)                            # adaptive_avg_pool (B, rd)
    return supp_feat, supp_pro, att


# --------------------------------------------------------------------------------------
# Kernel 4: GAM gate MLP fused (conv1x1 -> ReLU -> conv1x1 -> Sigmoid) — one launch
# --------------------------------------------------------------------------------------
def _gate_kernel(att_ref, w1_ref, b1_ref, w2_ref, b2_ref, o_ref):
    hdd = jnp.dot(att_ref[...], w1_ref[...], preferred_element_type=jnp.float32) + b1_ref[...]
    hdd = jnp.maximum(hdd, 0.0)
    hdd = jnp.dot(hdd, w2_ref[...], preferred_element_type=jnp.float32) + b2_ref[...]
    o_ref[...] = jax.nn.sigmoid(hdd)                       # Dropout -> identity


def gate_fused(att, w1, b1, w2, b2):
    B, rd = att.shape
    Bp = _round_up(B, 8)
    a = att.astype(jnp.float32)
    if Bp != B:
        a = jnp.pad(a, ((0, Bp - B), (0, 0)))
    out = pl.pallas_call(
        _gate_kernel,
        out_shape=jax.ShapeDtypeStruct((Bp, rd), jnp.float32),
        grid=(1,),
        in_specs=[pl.BlockSpec((Bp, rd), lambda i: (0, 0)),
                  pl.BlockSpec((rd, rd), lambda i: (0, 0)),
                  pl.BlockSpec((1, rd), lambda i: (0, 0)),
                  pl.BlockSpec((rd, rd), lambda i: (0, 0)),
                  pl.BlockSpec((1, rd), lambda i: (0, 0))],
        out_specs=pl.BlockSpec((Bp, rd), lambda i: (0, 0)),
        compiler_params=_cp("arbitrary"),
    )(a, w1.astype(jnp.float32), jnp.asarray(b1, jnp.float32).reshape(1, rd),
      w2.astype(jnp.float32), jnp.asarray(b2, jnp.float32).reshape(1, rd))
    return out[:B]


# --------------------------------------------------------------------------------------
# Kernel 5: chunk-pipelined gram matrices + Frobenius norm of normalized diff (f32)
#           hot loop = two MXU dots only; normalize/Frobenius once per batch at the end.
# --------------------------------------------------------------------------------------
def _gram_frob_kernel(q_ref, s_ref, o_ref, gq_s, gs_s, *, eps):
    r = pl.program_id(1)

    @pl.when(r == 0)
    def _():
        gq_s[...] = jnp.zeros_like(gq_s)
        gs_s[...] = jnp.zeros_like(gs_s)

    dn = (((0,), (0,)), ((), ()))                     # contract spatial chunk -> (C, C)
    gq_s[...] += lax.dot_general(q_ref[0], q_ref[0], dn, preferred_element_type=jnp.float32)
    gs_s[...] += lax.dot_general(s_ref[0], s_ref[0], dn, preferred_element_type=jnp.float32)

    @pl.when(r == pl.num_programs(1) - 1)
    def _():
        C = gq_s.shape[0]
        eye = (lax.broadcasted_iota(jnp.int32, (C, C), 0)
               == lax.broadcasted_iota(jnp.int32, (C, C), 1)).astype(jnp.float32)

        def normalize(g):
            d_col = jnp.sqrt(jnp.sum(g * eye, axis=1, keepdims=True))   # (C, 1)
            d_row = jnp.sqrt(jnp.sum(g * eye, axis=0, keepdims=True))   # (1, C)
            return g / (d_col * d_row + eps)          # matches torch: eps on the norm product

        d = normalize(gq_s[...]) - normalize(gs_s[...])
        o_ref[0] = jnp.sqrt(jnp.sum(d * d, axis=(0, 1), keepdims=True))


def gram_frobenius_diff(q_slab, s_slab, eps=1e-7):
    """q_slab, s_slab: (B, HW, C) channels-last.  Returns ||Gq_n - Gs_n||_F per batch."""
    B, N, C = q_slab.shape
    tn, Np = _pick_tile(N, 512)
    qf = q_slab.astype(jnp.float32)
    sf = s_slab.astype(jnp.float32)
    if Np != N:
        qf = jnp.pad(qf, ((0, 0), (0, Np - N), (0, 0)))
        sf = jnp.pad(sf, ((0, 0), (0, Np - N), (0, 0)))
    out = pl.pallas_call(
        functools.partial(_gram_frob_kernel, eps=eps),
        out_shape=jax.ShapeDtypeStruct((B, 1, 1), jnp.float32),
        grid=(B, Np // tn),
        in_specs=[pl.BlockSpec((1, tn, C), lambda b, r: (b, r, 0)),
                  pl.BlockSpec((1, tn, C), lambda b, r: (b, r, 0))],
        out_specs=pl.BlockSpec((1, 1, 1), lambda b, r: (b, 0, 0)),
        scratch_shapes=[pltpu.VMEM((C, C), jnp.float32),
                        pltpu.VMEM((C, C), jnp.float32)],
        compiler_params=_cp("parallel", "arbitrary"),
    )(qf, sf)
    return out[:, 0, 0]


# --------------------------------------------------------------------------------------
# Kernel 6: cosine-similarity correlation, tiled over Nq / Ns with online running max.
#           All norms precomputed host-side; inner loop = one MXU dot + one max.
# --------------------------------------------------------------------------------------
def _cos_corr_kernel(q_ref, qn_ref, s_ref, sn_ref, o_ref, mx_ref, *, eps):
    ki = pl.program_id(2)

    @pl.when(ki == 0)
    def _():
        mx_ref[...] = jnp.full_like(mx_ref, -jnp.inf)

    sim = lax.dot_general(s_ref[0], q_ref[0], (((1,), (1,)), ((), ())),
                          preferred_element_type=jnp.float32)          # (ts, tq)
    sim = sim / (sn_ref[0] * qn_ref[0] + eps)                          # (ts,1)*(1,tq)
    mx_ref[...] = jnp.maximum(mx_ref[...], jnp.max(sim, axis=0, keepdims=True))

    @pl.when(ki == pl.num_programs(2) - 1)
    def _():
        o_ref[0] = mx_ref[...]


def cosine_corr(q_nhwc, s_nhwc, eps=1e-7):
    """q/s: (B,H,W,C) NHWC.  Returns min-max-normalized max-similarity map (B,Hq,Wq,1)."""
    B, Hq, Wq, C = q_nhwc.shape
    Hs, Ws = s_nhwc.shape[1], s_nhwc.shape[2]
    Nq, Ns = Hq * Wq, Hs * Ws
    tq_cap = 1024 if _BIG_VMEM else 512
    q = q_nhwc.reshape(B, Nq, C)
    s = s_nhwc.reshape(B, Ns, C)
    tq, Nqp = _pick_tile(Nq, tq_cap)
    ts, Nsp = _pick_tile(Ns, 512)
    if Nqp != Nq:
        q = jnp.pad(q, ((0, 0), (0, Nqp - Nq), (0, 0)))                # zero pad (dropped)
    if Nsp != Ns:
        s = jnp.pad(s, ((0, 0), (0, Nsp - Ns), (0, 0)), mode="edge")   # edge pad keeps max
    qn = jnp.sqrt(jnp.sum(q.astype(jnp.float32) ** 2, axis=-1)).reshape(B, 1, Nqp)
    sn = jnp.sqrt(jnp.sum(s.astype(jnp.float32) ** 2, axis=-1)).reshape(B, Nsp, 1)
    qb = q.astype(jnp.bfloat16)
    sb = s.astype(jnp.bfloat16)

    out = pl.pallas_call(
        functools.partial(_cos_corr_kernel, eps=eps),
        out_shape=jax.ShapeDtypeStruct((B, 1, Nqp), jnp.float32),
        grid=(B, Nqp // tq, Nsp // ts),
        in_specs=[pl.BlockSpec((1, tq, C), lambda b, qi, ki: (b, qi, 0)),
                  pl.BlockSpec((1, 1, tq), lambda b, qi, ki: (b, 0, qi)),
                  pl.BlockSpec((1, ts, C), lambda b, qi, ki: (b, ki, 0)),
                  pl.BlockSpec((1, ts, 1), lambda b, qi, ki: (b, ki, 0))],
        out_specs=pl.BlockSpec((1, 1, tq), lambda b, qi, ki: (b, 0, qi)),
        scratch_shapes=[pltpu.VMEM((1, tq), jnp.float32)],
        compiler_params=_cp("parallel", "parallel", "arbitrary"),
    )(qb, qn, sb, sn)

    sim = out[:, 0, :Nq]                                               # (B, Nq)
    mn = jnp.min(sim, axis=1, keepdims=True)
    mx = jnp.max(sim, axis=1, keepdims=True)
    sim = (sim - mn) / (mx - mn + eps)
    return sim.reshape(B, Hq, Wq, 1)


# --------------------------------------------------------------------------------------
# Kernel 7: fused epilogue: softmax(meta/base) + gram_merge + cls_merge + argmax
# --------------------------------------------------------------------------------------
def _epilogue_kernel(gm_ref, cm_ref, est_ref, meta_ref, base_ref, o_ref):
    b = pl.program_id(0)
    meta = _softmax_last(meta_ref[0].astype(jnp.float32))       # (tr, 2)
    base = _softmax_last(base_ref[0].astype(jnp.float32))       # (tr, NB+1)
    meta_bg = meta[:, 0:1]
    meta_fg = meta[:, 1:2]
    base_map = jnp.sum(base[:, 1:], axis=-1, keepdims=True)
    est = est_ref[b]
    g0, g1 = gm_ref[0], gm_ref[1]
    c0, c1 = cm_ref[0], cm_ref[1]
    bg = g0 * meta_bg + g1 * est                                # gram_merge
    fg = g0 * meta_fg + g1 * est
    merge_bg = c0 * bg + c1 * base_map                          # cls_merge
    o_ref[0] = (fg > merge_bg).astype(jnp.int32)                # argmax over [merge_bg, fg]


def fused_epilogue(meta_out, base_out, est_val, gram_merge_w, cls_merge_w):
    B, H, W, _ = meta_out.shape
    NB1 = base_out.shape[-1]
    HW = H * W
    tr, HWp = _pick_tile(HW, _ROW_TILE_CAP)
    meta = meta_out.reshape(B, HW, 2).astype(jnp.float32)
    base = base_out.reshape(B, HW, NB1).astype(jnp.float32)
    if HWp != HW:
        meta = jnp.pad(meta, ((0, 0), (0, HWp - HW), (0, 0)))
        base = jnp.pad(base, ((0, 0), (0, HWp - HW), (0, 0)))
    out = pl.pallas_call(
        _epilogue_kernel,
        out_shape=jax.ShapeDtypeStruct((B, HWp, 1), jnp.int32),
        grid=(B, HWp // tr),
        in_specs=[pl.BlockSpec(memory_space=pltpu.MemorySpace.SMEM),
                  pl.BlockSpec(memory_space=pltpu.MemorySpace.SMEM),
                  pl.BlockSpec(memory_space=pltpu.MemorySpace.SMEM),
                  pl.BlockSpec((1, tr, 2), lambda b, r: (b, r, 0)),
                  pl.BlockSpec((1, tr, NB1), lambda b, r: (b, r, 0))],
        out_specs=pl.BlockSpec((1, tr, 1), lambda b, r: (b, r, 0)),
        compiler_params=_cp("parallel", "parallel"),
    )(gram_merge_w.astype(jnp.float32), cls_merge_w.astype(jnp.float32),
      est_val.astype(jnp.float32), meta, base)
    return out[:, :HW, 0].reshape(B, H, W)


# --------------------------------------------------------------------------------------
# Glue: resize helpers matching PyTorch semantics (gathers hoisted & reused)
# --------------------------------------------------------------------------------------
def resize_bilinear_align_corners(x, out_h, out_w):
    B, H, W, C = x.shape
    if (H, W) == (out_h, out_w):
        return x
    ys = jnp.linspace(0.0, H - 1.0, out_h)
    xs = jnp.linspace(0.0, W - 1.0, out_w)
    y0 = jnp.floor(ys).astype(jnp.int32)
    x0 = jnp.floor(xs).astype(jnp.int32)
    y1 = jnp.minimum(y0 + 1, H - 1)
    x1 = jnp.minimum(x0 + 1, W - 1)
    wy = (ys - y0.astype(jnp.float32))[None, :, None, None]
    wx = (xs - x0.astype(jnp.float32))[None, None, :, None]
    g0 = x[:, y0]
    g1 = x[:, y1]
    top = g0[:, :, x0] * (1 - wx) + g0[:, :, x1] * wx
    bot = g1[:, :, x0] * (1 - wx) + g1[:, :, x1] * wx
    return top * (1 - wy) + bot * wy


def resize_nearest(x, out_h, out_w):
    B, H, W, C = x.shape
    if (H, W) == (out_h, out_w):
        return x
    yi = jnp.clip(jnp.floor(jnp.arange(out_h) * (H / out_h)).astype(jnp.int32), 0, H - 1)
    xi = jnp.clip(jnp.floor(jnp.arange(out_w) * (W / out_w)).astype(jnp.int32), 0, W - 1)
    return x[:, yi][:, :, xi]


# --------------------------------------------------------------------------------------
# Parameters
# --------------------------------------------------------------------------------------
def init_params(key, C2, C3, C4, reduce_dim, base_classes, classes=2, hyper_ch=64):
    fea_dim = C3 + C2
    ks = jax.random.split(key, 12)

    def nrm(k, shape):
        return jax.random.normal(k, shape, jnp.float32) * 0.05

    p = {}
    p["down_query_w"] = nrm(ks[0], (fea_dim, reduce_dim))
    p["down_supp_w"] = nrm(ks[1], (fea_dim, reduce_dim))
    p["gate_w1"] = nrm(ks[2], (reduce_dim, reduce_dim))
    p["gate_b1"] = jnp.zeros((reduce_dim,), jnp.float32)
    p["gate_w2"] = nrm(ks[3], (reduce_dim, reduce_dim))
    p["gate_b2"] = jnp.zeros((reduce_dim,), jnp.float32)
    merge_in = reduce_dim * 2 + hyper_ch + 1 + reduce_dim
    p["init_merge_w"] = nrm(ks[4], (merge_in, reduce_dim))
    p["aspp_w"] = nrm(ks[5], (reduce_dim, reduce_dim * 5))
    p["aspp_b"] = jnp.zeros((reduce_dim * 5,), jnp.float32)
    p["res1_w"] = nrm(ks[6], (reduce_dim * 5, reduce_dim))
    p["res2_w1"] = nrm(ks[7], (3, 3, reduce_dim, reduce_dim))
    p["res2_w2"] = nrm(ks[8], (3, 3, reduce_dim, reduce_dim))
    p["cls_w1"] = nrm(ks[9], (3, 3, reduce_dim, reduce_dim))
    p["cls_w2"] = nrm(ks[10], (reduce_dim, classes))
    p["cls_b2"] = jnp.zeros((classes,), jnp.float32)
    p["gram_merge_w"] = jnp.array([[1.0], [0.0]], jnp.float32)  # fixed init as in module
    p["cls_merge_w"] = jnp.array([[1.0], [0.0]], jnp.float32)   # fixed init as in module
    p["base_w"] = nrm(ks[11], (C4, base_classes + 1))
    p["base_b"] = jnp.zeros((base_classes + 1,), jnp.float32)
    return p


# --------------------------------------------------------------------------------------
# OneModel.forward (class_idx=None, zoom_factor=1, nshot=1, resnet50 branch)
# --------------------------------------------------------------------------------------
def one_model_forward(params, q_l2, q_l3, q_l4, s_l2, s_l3, s_l4, s_y):
    B, h, w, C2 = q_l2.shape
    C3 = q_l3.shape[-1]
    rd = params["down_query_w"].shape[1]
    shot = s_y.shape[1]

    # ---- query branch: down_query(cat[layer3, layer2]) — concat fused in the 1x1 kernel
    w_dq = params["down_query_w"]
    query_feat = conv1x1_multi([q_l3, q_l2], [w_dq[:C3], w_dq[C3:]], act="relu")

    w_ds = params["down_supp_w"]
    supp_pro_list, mask_list, final_supp_list, supp_feat_l2_list = [], [], [], []
    gams = 0.0
    for i in range(shot):
        mask = (s_y[:, i] == 1).astype(jnp.float32)[..., None]             # (B, Him, Wim, 1)
        mask_list.append(mask)
        final_supp_list.append(s_l4[:, i])
        supp_feat_l2_list.append(s_l2[:, i])
        mask_down = resize_bilinear_align_corners(mask, h, w)
        mask_near = resize_nearest(mask, h, w)
        # down_supp conv (concat fused) + Weighted_GAP + GAM pooling in one pass
        supp_feat, supp_pro, att = down_supp_fused(
            s_l3[:, i], s_l2[:, i], mask_down, mask_near, w_ds[:C3], w_ds[C3:])
        supp_pro_list.append(supp_pro)
        g = gate_fused(att, params["gate_w1"], params["gate_b1"],
                       params["gate_w2"], params["gate_b2"])
        gams = gams + g[:, None, None, :] * supp_feat.astype(jnp.float32)
        # TODO(synk): mask_feature + Correlation.multilayer_correlation omitted (ragged indexing).
    gam = gams / shot

    # ---- gram-based estimation value (chunk-pipelined fused gram + Frobenius kernel)
    norm_max = float(C2)                                  # ||ones(C,C)||_F = C
    q2_slab = q_l2.reshape(B, h * w, C2)
    est_vals = [gram_frobenius_diff(q2_slab, s_item.reshape(B, h * w, C2)) / norm_max
                for s_item in supp_feat_l2_list]
    est_val_total = jnp.stack(est_vals, axis=1)                             # (B, shot)
    if shot > 1:
        # TODO(synk): kshot_rw re-weighting (sort/gather + 1x1 convs) not implemented.
        raise NotImplementedError("nshot > 1 path not implemented")
    weight_soft = jnp.ones_like(est_val_total)
    est_val = jnp.sum(weight_soft * est_val_total, axis=1)                  # (B,)

    # ---- cosine-similarity correlation mask on layer-4 features (tiled online-max kernel)
    h4, w4 = q_l4.shape[1], q_l4.shape[2]
    corr_list = []
    for i in range(shot):
        tmp_mask = resize_bilinear_align_corners(mask_list[i], h4, w4)
        corr = cosine_corr(q_l4, final_supp_list[i] * tmp_mask)             # (B, h4, w4, 1)
        corr = resize_bilinear_align_corners(corr, h, w)
        corr_list.append(corr[..., 0])
    corr_stack = jnp.stack(corr_list, axis=-1)                              # (B, h, w, shot)
    corr_query_mask = jnp.sum(corr_stack * weight_soft[:, None, None, :],
                              axis=-1, keepdims=True)

    # ---- prototype merge + init_merge (concat fused; zero hyper_final channels dropped)
    supp_pro_stack = jnp.stack(supp_pro_list, axis=1)                       # (B, shot, rd)
    supp_pro = jnp.sum(supp_pro_stack * weight_soft[:, :, None], axis=1)    # (B, rd)
    w_im = params["init_merge_w"]
    w_im_q = w_im[0:rd]                                                     # query_feat rows
    w_im_p = w_im[rd:2 * rd]                                                # prototype rows
    # TODO(synk): hyper_final rows (w_im[2rd:2rd+64]) skipped — the Correlation path is
    #             unavailable so those 64 input channels are identically zero.
    w_im_c = w_im[2 * rd + 64:2 * rd + 65]                                  # corr-mask row
    w_im_g = w_im[2 * rd + 65:]                                             # gam rows
    proto_bias = jnp.dot(supp_pro.astype(jnp.float32), w_im_p.astype(jnp.float32))
    merge_feat = conv1x1_multi([query_feat, gam, corr_query_mask],
                               [w_im_q, w_im_g, w_im_c],
                               b=proto_bias, act="relu")

    # TODO(synk): learner_base (PSPNet ppm+cls) unavailable -> 1x1-conv classifier stand-in.
    base_out = conv1x1_multi([q_l4], [params["base_w"]], b=params["base_b"],
                             out_dtype=jnp.float32)

    # TODO(synk): ASPP definition unavailable -> 1x1-conv stand-in producing 5*reduce_dim ch.
    query_meta = conv1x1_multi([merge_feat], [params["aspp_w"]], b=params["aspp_b"],
                               act="relu")
    query_meta = conv1x1_multi([query_meta], [params["res1_w"]], act="relu")  # res1_meta
    res2 = conv3x3(query_meta, params["res2_w1"], act="relu")                 # res2_meta
    query_meta = conv3x3(res2, params["res2_w2"], act="relu",
                         residual=query_meta)                                 # fused skip add
    # cls_meta: 3x3 conv + relu (dropout -> id) with the final 1x1 classifier fused in-kernel
    meta_out = conv3x3(query_meta, params["cls_w1"], act="relu",
                       post_w=params["cls_w2"], post_b=params["cls_b2"],
                       out_dtype=jnp.float32)                                 # (B, h, w, 2)

    # zoom_factor == 1 -> no upsampling; class_idx is None -> per-pixel argmax (fused epilogue).
    return fused_epilogue(meta_out, base_out, est_val,
                          params["gram_merge_w"][:, 0], params["cls_merge_w"][:, 0])


# --------------------------------------------------------------------------------------
if __name__ == "__main__":
    key = jax.random.PRNGKey(0)
    B, shot = 2, 1
    C2, C3, C4 = 16, 32, 32        # scaled-down layer2 / layer3 / layer4 channel dims
    reduce_dim = 32
    H_im = W_im = 32               # image-resolution mask
    h = w = 8                      # backbone feature resolution (stride-8, dilated resnet)
    base_classes = 15              # pascal

    ks = jax.random.split(key, 8)
    q_l2 = jax.random.normal(ks[0], (B, h, w, C2), jnp.float32)
    q_l3 = jax.random.normal(ks[1], (B, h, w, C3), jnp.float32)
    q_l4 = jax.random.normal(ks[2], (B, h, w, C4), jnp.float32)
    s_l2 = jax.random.normal(ks[3], (B, shot, h, w, C2), jnp.float32)
    s_l3 = jax.random.normal(ks[4], (B, shot, h, w, C3), jnp.float32)
    s_l4 = jax.random.normal(ks[5], (B, shot, h, w, C4), jnp.float32)
    s_y = jax.random.bernoulli(ks[6], 0.5, (B, shot, H_im, W_im)).astype(jnp.float32)

    params = init_params(ks[7], C2=C2, C3=C3, C4=C4,
                         reduce_dim=reduce_dim, base_classes=base_classes)

    fwd = jax.jit(one_model_forward)
    out = fwd(params, q_l2, q_l3, q_l4, s_l2, s_l3, s_l4, s_y)
    out = jax.block_until_ready(out)
    assert out.shape == (B, h, w), out.shape
    print("KERNEL_OK")
</pallas_src>

<mosaic_0001>
module attributes {stable_mosaic.version = 11 : i64} {
  func.func @_down_supp_fused_kernel(%arg0: i32, %arg1: i32, %arg2: memref<1x64x32xbf16, #tpu.memory_space<vmem>>, %arg3: memref<1x64x16xbf16, #tpu.memory_space<vmem>>, %arg4: memref<32x32xbf16, #tpu.memory_space<vmem>>, %arg5: memref<16x32xbf16, #tpu.memory_space<vmem>>, %arg6: memref<1x64x1xf32, #tpu.memory_space<vmem>>, %arg7: memref<1x64x1xf32, #tpu.memory_space<vmem>>, %arg8: memref<1x64x32xbf16, #tpu.memory_space<vmem>>, %arg9: memref<1x1x32xf32, #tpu.memory_space<vmem>>, %arg10: memref<1x1x1xf32, #tpu.memory_space<vmem>>, %arg11: memref<1x1x32xf32, #tpu.memory_space<vmem>>, %arg12: memref<1x32xf32, #tpu.memory_space<vmem>>, %arg13: memref<1x1xf32, #tpu.memory_space<vmem>>, %arg14: memref<1x32xf32, #tpu.memory_space<vmem>>) attributes {dimension_semantics = [#tpu.dimension_semantics<parallel>, #tpu.dimension_semantics<arbitrary>], iteration_bounds = array<i64: 2, 1>, scalar_prefetch = 0 : i64, scratch_operands = 3 : i64, tpu.core_type = #tpu.core_type<tc>, window_params = [{transform_indices = @transform_0, window_bounds = array<i64: 1, 64, 32>}, {transform_indices = @transform_1, window_bounds = array<i64: 1, 64, 16>}, {pipeline_mode = #tpu.pipeline_mode<synchronous>, transform_indices = @transform_2, window_bounds = array<i64: 32, 32>}, {pipeline_mode = #tpu.pipeline_mode<synchronous>, transform_indices = @transform_3, window_bounds = array<i64: 16, 32>}, {transform_indices = @transform_4, window_bounds = array<i64: 1, 64, 1>}, {transform_indices = @transform_5, window_bounds = array<i64: 1, 64, 1>}, {transform_indices = @transform_6, window_bounds = array<i64: 1, 64, 32>}, {transform_indices = @transform_7, window_bounds = array<i64: 1, 1, 32>}, {transform_indices = @transform_8, window_bounds = array<i64: 1, 1, 1>}, {transform_indices = @transform_9, window_bounds = array<i64: 1, 1, 32>}]} {
    %c0_i32 = arith.constant 0 : i32
    %0 = arith.cmpi eq, %arg1, %c0_i32 : i32
    %1 = arith.extui %0 : i1 to i32
    %c0_i32_0 = arith.constant 0 : i32
    %2 = arith.cmpi ne, %1, %c0_i32_0 : i32
    scf.if %2 {
      %cst_38 = arith.constant 0.000000e+00 : f32
      %44 = vector.broadcast %cst_38 : f32 to vector<1x32xf32>
      %c0_39 = arith.constant 0 : index
      %c0_40 = arith.constant 0 : index
      %45 = vector.load %arg12[%c0_39, %c0_40] : memref<1x32xf32, #tpu.memory_space<vmem>>, vector<1x32xf32>
      tpu.vector_store %arg12[%c0_39, %c0_40], %44 {strides = array<i32>} : memref<1x32xf32, #tpu.memory_space<vmem>>, vector<1x32xf32>,
      %cst_41 = arith.constant 0.000000e+00 : f32
      %46 = vector.broadcast %cst_41 : f32 to vector<1x1xf32>
      %c0_42 = arith.constant 0 : index
      %c0_43 = arith.constant 0 : index
      %47 = vector.load %arg13[%c0_42, %c0_43] : memref<1x1xf32, #tpu.memory_space<vmem>>, vector<1x1xf32>
      tpu.vector_store %arg13[%c0_42, %c0_43], %46 {strides = array<i32>} : memref<1x1xf32, #tpu.memory_space<vmem>>, vector<1x1xf32>,
      %cst_44 = arith.constant 0.000000e+00 : f32
      %48 = vector.broadcast %cst_44 : f32 to vector<1x32xf32>
      %c0_45 = arith.constant 0 : index
      %c0_46 = arith.constant 0 : index
      %49 = vector.load %arg14[%c0_45, %c0_46] : memref<1x32xf32, #tpu.memory_space<vmem>>, vector<1x32xf32>
      tpu.vector_store %arg14[%c0_45, %c0_46], %48 {strides = array<i32>} : memref<1x32xf32, #tpu.memory_space<vmem>>, vector<1x32xf32>,
    } else {
    }
    %c0 = arith.constant 0 : index
    %c0_1 = arith.constant 0 : index
    %c0_2 = arith.constant 0 : index
    %3 = vector.load %arg2[%c0, %c0_1, %c0_2] : memref<1x64x32xbf16, #tpu.memory_space<vmem>>, vector<1x64x32xbf16>
    %4 = vector.shape_cast %3 : vector<1x64x32xbf16> to vector<64x32xbf16>
    %c0_3 = arith.constant 0 : index
    %c0_4 = arith.constant 0 : index
    %5 = vector.load %arg4[%c0_3, %c0_4] : memref<32x32xbf16, #tpu.memory_space<vmem>>, vector<32x32xbf16>
    %cst = arith.constant dense<0.000000e+00> : vector<64x32xf32>
    %6 = tpu.matmul %4, %5, %cst {dimension_numbers = #tpu.dot_dimension_numbers<[1], [0], [0], [1], [0, 0, 1, 1], [], []>} : vector<64x32xbf16>, vector<32x32xbf16>, vector<64x32xf32> -> vector<64x32xf32>
    %c0_5 = arith.constant 0 : index
    %c0_6 = arith.constant 0 : index
    %c0_7 = arith.constant 0 : index
    %7 = vector.load %arg3[%c0_5, %c0_6, %c0_7] : memref<1x64x16xbf16, #tpu.memory_space<vmem>>, vector<1x64x16xbf16>
    %8 = vector.shape_cast %7 : vector<1x64x16xbf16> to vector<64x16xbf16>
    %c0_8 = arith.constant 0 : index
    %c0_9 = arith.constant 0 : index
    %9 = vector.load %arg5[%c0_8, %c0_9] : memref<16x32xbf16, #tpu.memory_space<vmem>>, vector<16x32xbf16>
    %cst_10 = arith.constant dense<0.000000e+00> : vector<64x32xf32>
    %10 = tpu.matmul %8, %9, %cst_10 {dimension_numbers = #tpu.dot_dimension_numbers<[1], [0], [0], [1], [0, 0, 1, 1], [], []>} : vector<64x16xbf16>, vector<16x32xbf16>, vector<64x32xf32> -> vector<64x32xf32>
    %11 = arith.addf %6, %10 : vector<64x32xf32>
    %cst_11 = arith.constant 0.000000e+00 : f32
    %12 = vector.broadcast %cst_11 : f32 to vector<64x32xf32>
    %13 = arith.maximumf %11, %12 : vector<64x32xf32>
    %14 = arith.truncf %13 : vector<64x32xf32> to vector<64x32xbf16>
    %c0_12 = arith.constant 0 : index
    %c0_13 = arith.constant 0 : index
    %c0_14 = arith.constant 0 : index
    %15 = vector.load %arg8[%c0_12, %c0_13, %c0_14] : memref<1x64x32xbf16, #tpu.memory_space<vmem>>, vector<1x64x32xbf16>
    %16 = vector.shape_cast %15 : vector<1x64x32xbf16> to vector<64x32xbf16>
    %17 = vector.shape_cast %14 : vector<64x32xbf16> to vector<1x64x32xbf16>
    tpu.vector_store %arg8[%c0_12, %c0_13, %c0_14], %17 {strides = array<i32>} : memref<1x64x32xbf16, #tpu.memory_space<vmem>>, vector<1x64x32xbf16>,
    %c0_15 = arith.constant 0 : index
    %c0_16 = arith.constant 0 : index
    %c0_17 = arith.constant 0 : index
    %18 = vector.load %arg6[%c0_15, %c0_16, %c0_17] : memref<1x64x1xf32, #tpu.memory_space<vmem>>, vector<1x64x1xf32>
    %19 = vector.shape_cast %18 : vector<1x64x1xf32> to vector<64x1xf32>
    %c0_18 = arith.constant 0 : index
    %c0_19 = arith.constant 0 : index
    %c0_20 = arith.constant 0 : index
    %20 = vector.load %arg7[%c0_18, %c0_19, %c0_20] : memref<1x64x1xf32, #tpu.memory_space<vmem>>, vector<1x64x1xf32>
    %21 = vector.shape_cast %20 : vector<1x64x1xf32> to vector<64x1xf32>
    %c0_21 = arith.constant 0 : index
    %c0_22 = arith.constant 0 : index
    %22 = vector.load %arg12[%c0_21, %c0_22] : memref<1x32xf32, #tpu.memory_space<vmem>>, vector<1x32xf32>
    %23 = vector.broadcast %19 : vector<64x1xf32> to vector<64x32xf32>
    %24 = arith.mulf %13, %23 : vector<64x32xf32>
    %cst_23 = arith.constant dense<0.000000e+00> : vector<32xf32>
    %25 = vector.multi_reduction <add>, %24, %cst_23 [0] : vector<64x32xf32> to vector<32xf32>
    %26 = vector.shape_cast %25 : vector<32xf32> to vector<1x32xf32>
    %27 = arith.addf %22, %26 : vector<1x32xf32>
    %c0_24 = arith.constant 0 : index
    %c0_25 = arith.constant 0 : index
    %28 = vector.load %arg12[%c0_24, %c0_25] : memref<1x32xf32, #tpu.memory_space<vmem>>, vector<1x32xf32>
    tpu.vector_store %arg12[%c0_24, %c0_25], %27 {strides = array<i32>} : memref<1x32xf32, #tpu.memory_space<vmem>>, vector<1x32xf32>,
    %c0_26 = arith.constant 0 : index
    %c0_27 = arith.constant 0 : index
    %29 = vector.load %arg13[%c0_26, %c0_27] : memref<1x1xf32, #tpu.memory_space<vmem>>, vector<1x1xf32>
    %cst_28 = arith.constant dense<0.000000e+00> : vector<1xf32>
    %30 = vector.multi_reduction <add>, %19, %cst_28 [0] : vector<64x1xf32> to vector<1xf32>
    %31 = vector.shape_cast %30 : vector<1xf32> to vector<1x1xf32>
    %32 = arith.addf %29, %31 : vector<1x1xf32>
    %c0_29 = arith.constant 0 : index
    %c0_30 = arith.constant 0 : index
    %33 = vector.load %arg13[%c0_29, %c0_30] : memref<1x1xf32, #tpu.memory_space<vmem>>, vector<1x1xf32>
    tpu.vector_store %arg13[%c0_29, %c0_30], %32 {strides = array<i32>} : memref<1x1xf32, #tpu.memory_space<vmem>>, vector<1x1xf32>,
    %c0_31 = arith.constant 0 : index
    %c0_32 = arith.constant 0 : index
    %34 = vector.load %arg14[%c0_31, %c0_32] : memref<1x32xf32, #tpu.memory_space<vmem>>, vector<1x32xf32>
    %35 = vector.broadcast %21 : vector<64x1xf32> to vector<64x32xf32>
    %36 = arith.mulf %13, %35 : vector<64x32xf32>
    %cst_33 = arith.constant dense<0.000000e+00> : vector<32xf32>
    %37 = vector.multi_reduction <add>, %36, %cst_33 [0] : vector<64x32xf32> to vector<32xf32>
    %38 = vector.shape_cast %37 : vector<32xf32> to vector<1x32xf32>
    %39 = arith.addf %34, %38 : vector<1x32xf32>
    %c0_34 = arith.constant 0 : index
    %c0_35 = arith.constant 0 : index
    %40 = vector.load %arg14[%c0_34, %c0_35] : memref<1x32xf32, #tpu.memory_space<vmem>>, vector<1x32xf32>
    tpu.vector_store %arg14[%c0_34, %c0_35], %39 {strides = array<i32>} : memref<1x32xf32, #tpu.memory_space<vmem>>, vector<1x32xf32>,
    %c0_i32_36 = arith.constant 0 : i32
    %41 = arith.cmpi eq, %arg1, %c0_i32_36 : i32
    %42 = arith.extui %41 : i1 to i32
    %c0_i32_37 = arith.constant 0 : i32
    %43 = arith.cmpi ne, %42, %c0_i32_37 : i32
    scf.if %43 {
      %c0_38 = arith.constant 0 : index
      %c0_39 = arith.constant 0 : index
      %44 = vector.load %arg12[%c0_38, %c0_39] : memref<1x32xf32, #tpu.memory_space<vmem>>, vector<1x32xf32>
      %c0_40 = arith.constant 0 : index
      %c0_41 = arith.constant 0 : index
      %c0_42 = arith.constant 0 : index
      %45 = vector.load %arg9[%c0_40, %c0_41, %c0_42] : memref<1x1x32xf32, #tpu.memory_space<vmem>>, vector<1x1x32xf32>
      %46 = vector.shape_cast %45 : vector<1x1x32xf32> to vector<1x32xf32>
      %47 = vector.shape_cast %44 : vector<1x32xf32> to vector<1x1x32xf32>
      tpu.vector_store %arg9[%c0_40, %c0_41, %c0_42], %47 {strides = array<i32>} : memref<1x1x32xf32, #tpu.memory_space<vmem>>, vector<1x1x32xf32>,
      %c0_43 = arith.constant 0 : index
      %c0_44 = arith.constant 0 : index
      %48 = vector.load %arg13[%c0_43, %c0_44] : memref<1x1xf32, #tpu.memory_space<vmem>>, vector<1x1xf32>
      %c0_45 = arith.constant 0 : index
      %c0_46 = arith.constant 0 : index
      %c0_47 = arith.constant 0 : index
      %49 = vector.load %arg10[%c0_45, %c0_46, %c0_47] : memref<1x1x1xf32, #tpu.memory_space<vmem>>, vector<1x1x1xf32>
      %50 = vector.shape_cast %49 : vector<1x1x1xf32> to vector<1x1xf32>
      %51 = vector.shape_cast %48 : vector<1x1xf32> to vector<1x1x1xf32>
      tpu.vector_store %arg10[%c0_45, %c0_46, %c0_47], %51 {strides = array<i32>} : memref<1x1x1xf32, #tpu.memory_space<vmem>>, vector<1x1x1xf32>,
      %c0_48 = arith.constant 0 : index
      %c0_49 = arith.constant 0 : index
      %52 = vector.load %arg14[%c0_48, %c0_49] : memref<1x32xf32, #tpu.memory_space<vmem>>, vector<1x32xf32>
      %c0_50 = arith.constant 0 : index
      %c0_51 = arith.constant 0 : index
      %c0_52 = arith.constant 0 : index
      %53 = vector.load %arg11[%c0_50, %c0_51, %c0_52] : memref<1x1x32xf32, #tpu.memory_space<vmem>>, vector<1x1x32xf32>
      %54 = vector.shape_cast %53 : vector<1x1x32xf32> to vector<1x32xf32>
      %55 = vector.shape_cast %52 : vector<1x32xf32> to vector<1x1x32xf32>
      tpu.vector_store %arg11[%c0_50, %c0_51, %c0_52], %55 {strides = array<i32>} : memref<1x1x32xf32, #tpu.memory_space<vmem>>, vector<1x1x32xf32>,
    } else {
    }
    return
  }
  func.func @transform_0(%arg0: i32, %arg1: i32) -> (i32, i32, i32) {
    %c0_i32 = arith.constant 0 : i32
    %c0_i32_0 = arith.constant 0 : i32
    return %arg0, %arg1, %c0_i32 : i32, i32, i32
  }
  func.func @transform_1(%arg0: i32, %arg1: i32) -> (i32, i32, i32) {
    %c0_i32 = arith.constant 0 : i32
    %c0_i32_0 = arith.constant 0 : i32
    return %arg0, %arg1, %c0_i32 : i32, i32, i32
  }
  func.func @transform_2(%arg0: i32, %arg1: i32) -> (i32, i32) {
    %c0_i32 = arith.constant 0 : i32
    %c0_i32_0 = arith.constant 0 : i32
    %c0_i32_1 = arith.constant 0 : i32
    return %c0_i32, %c0_i32_0 : i32, i32
  }
  func.func @transform_3(%arg0: i32, %arg1: i32) -> (i32, i32) {
    %c0_i32 = arith.constant 0 : i32
    %c0_i32_0 = arith.constant 0 : i32
    %c0_i32_1 = arith.constant 0 : i32
    return %c0_i32, %c0_i32_0 : i32, i32
  }
  func.func @transform_4(%arg0: i32, %arg1: i32) -> (i32, i32, i32) {
    %c0_i32 = arith.constant 0 : i32
    %c0_i32_0 = arith.constant 0 : i32
    return %arg0, %arg1, %c0_i32 : i32, i32, i32
  }
  func.func @transform_5(%arg0: i32, %arg1: i32) -> (i32, i32, i32) {
    %c0_i32 = arith.constant 0 : i32
    %c0_i32_0 = arith.constant 0 : i32
    return %arg0, %arg1, %c0_i32 : i32, i32, i32
  }
  func.func @transform_6(%arg0: i32, %arg1: i32) -> (i32, i32, i32) {
    %c0_i32 = arith.constant 0 : i32
    %c0_i32_0 = arith.constant 0 : i32
    return %arg0, %arg1, %c0_i32 : i32, i32, i32
  }
  func.func @transform_7(%arg0: i32, %arg1: i32) -> (i32, i32, i32) {
    %c0_i32 = arith.constant 0 : i32
    %c0_i32_0 = arith.constant 0 : i32
    %c0_i32_1 = arith.constant 0 : i32
    return %arg0, %c0_i32, %c0_i32_0 : i32, i32, i32
  }
  func.func @transform_8(%arg0: i32, %arg1: i32) -> (i32, i32, i32) {
    %c0_i32 = arith.constant 0 : i32
    %c0_i32_0 = arith.constant 0 : i32
    %c0_i32_1 = arith.constant 0 : i32
    return %arg0, %c0_i32, %c0_i32_0 : i32, i32, i32
  }
  func.func @transform_9(%arg0: i32, %arg1: i32) -> (i32, i32, i32) {
    %c0_i32 = arith.constant 0 : i32
    %c0_i32_0 = arith.constant 0 : i32
    %c0_i32_1 = arith.constant 0 : i32
    return %arg0, %c0_i32, %c0_i32_0 : i32, i32, i32
  }
}

module attributes {stable_mosaic.version = 11 : i64} {
  func.func @_cos_corr_kernel(%arg0: i32, %arg1: i32, %arg2: i32, %arg3: memref<1x64x32xbf16, #tpu.memory_space<vmem>>, %arg4: memref<1x1x64xf32, #tpu.memory_space<vmem>>, %arg5: memref<1x64x32xbf16, #tpu.memory_space<vmem>>, %arg6: memref<1x64x1xf32, #tpu.memory_space<vmem>>, %arg7: memref<1x1x64xf32, #tpu.memory_space<vmem>>, %arg8: memref<1x64xf32, #tpu.memory_space<vmem>>) attributes {dimension_semantics = [#tpu.dimension_semantics<parallel>, #tpu.dimension_semantics<parallel>, #tpu.dimension_semantics<arbitrary>], iteration_bounds = array<i64: 2, 1, 1>, scalar_prefetch = 0 : i64, scratch_operands = 1 : i64, tpu.core_type = #tpu.core_type<tc>, window_params = [{transform_indices = @transform_0, window_bounds = array<i64: 1, 64, 32>}, {transform_indices = @transform_1, window_bounds = array<i64: 1, 1, 64>}, {transform_indices = @transform_2, window_bounds = array<i64: 1, 64, 32>}, {transform_indices = @transform_3, window_bounds = array<i64: 1, 64, 1>}, {transform_indices = @transform_4, window_bounds = array<i64: 1, 1, 64>}]} {
    %c0_i32 = arith.constant 0 : i32
    %0 = arith.cmpi eq, %arg2, %c0_i32 : i32
    %1 = arith.extui %0 : i1 to i32
    %c0_i32_0 = arith.constant 0 : i32
    %2 = arith.cmpi ne, %1, %c0_i32_0 : i32
    scf.if %2 {
      %cst_20 = arith.constant 0xFF800000 : f32
      %26 = vector.broadcast %cst_20 : f32 to vector<1x64xf32>
      %c0_21 = arith.constant 0 : index
      %c0_22 = arith.constant 0 : index
      %27 = vector.load %arg8[%c0_21, %c0_22] : memref<1x64xf32, #tpu.memory_space<vmem>>, vector<1x64xf32>
      tpu.vector_store %arg8[%c0_21, %c0_22], %26 {strides = array<i32>} : memref<1x64xf32, #tpu.memory_space<vmem>>, vector<1x64xf32>,
    } else {
    }
    %c0 = arith.constant 0 : index
    %c0_1 = arith.constant 0 : index
    %c0_2 = arith.constant 0 : index
    %3 = vector.load %arg5[%c0, %c0_1, %c0_2] : memref<1x64x32xbf16, #tpu.memory_space<vmem>>, vector<1x64x32xbf16>
    %4 = vector.shape_cast %3 : vector<1x64x32xbf16> to vector<64x32xbf16>
    %c0_3 = arith.constant 0 : index
    %c0_4 = arith.constant 0 : index
    %c0_5 = arith.constant 0 : index
    %5 = vector.load %arg3[%c0_3, %c0_4, %c0_5] : memref<1x64x32xbf16, #tpu.memory_space<vmem>>, vector<1x64x32xbf16>
    %6 = vector.shape_cast %5 : vector<1x64x32xbf16> to vector<64x32xbf16>
    %cst = arith.constant dense<0.000000e+00> : vector<64x64xf32>
    %7 = tpu.matmul %4, %6, %cst {dimension_numbers = #tpu.dot_dimension_numbers<[1], [1], [0], [0], [0, 0, 1, 0], [], []>} : vector<64x32xbf16>, vector<64x32xbf16>, vector<64x64xf32> -> vector<64x64xf32>
    %c0_6 = arith.constant 0 : index
    %c0_7 = arith.constant 0 : index
    %c0_8 = arith.constant 0 : index
    %8 = vector.load %arg6[%c0_6, %c0_7, %c0_8] : memref<1x64x1xf32, #tpu.memory_space<vmem>>, vector<1x64x1xf32>
    %9 = vector.shape_cast %8 : vector<1x64x1xf32> to vector<64x1xf32>
    %c0_9 = arith.constant 0 : index
    %c0_10 = arith.constant 0 : index
    %c0_11 = arith.constant 0 : index
    %10 = vector.load %arg4[%c0_9, %c0_10, %c0_11] : memref<1x1x64xf32, #tpu.memory_space<vmem>>, vector<1x1x64xf32>
    %11 = vector.shape_cast %10 : vector<1x1x64xf32> to vector<1x64xf32>
    %12 = vector.broadcast %9 : vector<64x1xf32> to vector<64x64xf32>
    %13 = vector.broadcast %11 : vector<1x64xf32> to vector<64x64xf32>
    %14 = arith.mulf %12, %13 : vector<64x64xf32>
    %cst_12 = arith.constant 1.000000e-07 : f32
    %15 = vector.broadcast %cst_12 : f32 to vector<64x64xf32>
    %16 = arith.addf %14, %15 : vector<64x64xf32>
    %17 = arith.divf %7, %16 : vector<64x64xf32>
    %c0_13 = arith.constant 0 : index
    %c0_14 = arith.constant 0 : index
    %18 = vector.load %arg8[%c0_13, %c0_14] : memref<1x64xf32, #tpu.memory_space<vmem>>, vector<1x64xf32>
    %cst_15 = arith.constant dense<0xFF800000> : vector<64xf32>
    %19 = vector.multi_reduction <maximumf>, %17, %cst_15 [0] : vector<64x64xf32> to vector<64xf32>
    %20 = vector.shape_cast %19 : vector<64xf32> to vector<1x64xf32>
    %21 = arith.maximumf %18, %20 : vector<1x64xf32>
    %c0_16 = arith.constant 0 : index
    %c0_17 = arith.constant 0 : index
    %22 = vector.load %arg8[%c0_16, %c0_17] : memref<1x64xf32, #tpu.memory_space<vmem>>, vector<1x64xf32>
    tpu.vector_store %arg8[%c0_16, %c0_17], %21 {strides = array<i32>} : memref<1x64xf32, #tpu.memory_space<vmem>>, vector<1x64xf32>,
    %c0_i32_18 = arith.constant 0 : i32
    %23 = arith.cmpi eq, %arg2, %c0_i32_18 : i32
    %24 = arith.extui %23 : i1 to i32
    %c0_i32_19 = arith.constant 0 : i32
    %25 = arith.cmpi ne, %24, %c0_i32_19 : i32
    scf.if %25 {
      %c0_20 = arith.constant 0 : index
      %c0_21 = arith.constant 0 : index
      %26 = vector.load %arg8[%c0_20, %c0_21] : memref<1x64xf32, #tpu.memory_space<vmem>>, vector<1x64xf32>
      %c0_22 = arith.constant 0 : index
      %c0_23 = arith.constant 0 : index
      %c0_24 = arith.constant 0 : index
      %27 = vector.load %arg7[%c0_22, %c0_23, %c0_24] : memref<1x1x64xf32, #tpu.memory_space<vmem>>, vector<1x1x64xf32>
      %28 = vector.shape_cast %27 : vector<1x1x64xf32> to vector<1x64xf32>
      %29 = vector.shape_cast %26 : vector<1x64xf32> to vector<1x1x64xf32>
      tpu.vector_store %arg7[%c0_22, %c0_23, %c0_24], %29 {strides = array<i32>} : memref<1x1x64xf32, #tpu.memory_space<vmem>>, vector<1x1x64xf32>,
    } else {
    }
    return
  }
  func.func @transform_0(%arg0: i32, %arg1: i32, %arg2: i32) -> (i32, i32, i32) {
    %c0_i32 = arith.constant 0 : i32
    %c0_i32_0 = arith.constant 0 : i32
    return %arg0, %arg1, %c0_i32 : i32, i32, i32
  }
  func.func @transform_1(%arg0: i32, %arg1: i32, %arg2: i32) -> (i32, i32, i32) {
    %c0_i32 = arith.constant 0 : i32
    %c0_i32_0 = arith.constant 0 : i32
    return %arg0, %c0_i32, %arg1 : i32, i32, i32
  }
  func.func @transform_2(%arg0: i32, %arg1: i32, %arg2: i32) -> (i32, i32, i32) {
    %c0_i32 = arith.constant 0 : i32
    %c0_i32_0 = arith.constant 0 : i32
    return %arg0, %arg2, %c0_i32 : i32, i32, i32
  }
  func.func @transform_3(%arg0: i32, %arg1: i32, %arg2: i32) -> (i32, i32, i32) {
    %c0_i32 = arith.constant 0 : i32
    %c0_i32_0 = arith.constant 0 : i32
    return %arg0, %arg2, %c0_i32 : i32, i32, i32
  }
  func.func @transform_4(%arg0: i32, %arg1: i32, %arg2: i32) -> (i32, i32, i32) {
    %c0_i32 = arith.constant 0 : i32
    %c0_i32_0 = arith.constant 0 : i32
    return %arg0, %c0_i32, %arg1 : i32, i32, i32
  }
}

module attributes {stable_mosaic.version = 11 : i64} {
  func.func @_gate_kernel(%arg0: i32, %arg1: memref<8x32xf32, #tpu.memory_space<vmem>>, %arg2: memref<32x32xf32, #tpu.memory_space<vmem>>, %arg3: memref<1x32xf32, #tpu.memory_space<vmem>>, %arg4: memref<32x32xf32, #tpu.memory_space<vmem>>, %arg5: memref<1x32xf32, #tpu.memory_space<vmem>>, %arg6: memref<8x32xf32, #tpu.memory_space<vmem>>) attributes {dimension_semantics = [#tpu.dimension_semantics<arbitrary>], iteration_bounds = array<i64: 1>, scalar_prefetch = 0 : i64, scratch_operands = 0 : i64, tpu.core_type = #tpu.core_type<tc>, window_params = [{pipeline_mode = #tpu.pipeline_mode<synchronous>, transform_indices = @transform_0, window_bounds = array<i64: 8, 32>}, {pipeline_mode = #tpu.pipeline_mode<synchronous>, transform_indices = @transform_1, window_bounds = array<i64: 32, 32>}, {pipeline_mode = #tpu.pipeline_mode<synchronous>, transform_indices = @transform_2, window_bounds = array<i64: 1, 32>}, {pipeline_mode = #tpu.pipeline_mode<synchronous>, transform_indices = @transform_3, window_bounds = array<i64: 32, 32>}, {pipeline_mode = #tpu.pipeline_mode<synchronous>, transform_indices = @transform_4, window_bounds = array<i64: 1, 32>}, {pipeline_mode = #tpu.pipeline_mode<synchronous>, transform_indices = @transform_5, window_bounds = array<i64: 8, 32>}]} {
    %c0 = arith.constant 0 : index
    %c0_0 = arith.constant 0 : index
    %0 = vector.load %arg1[%c0, %c0_0] : memref<8x32xf32, #tpu.memory_space<vmem>>, vector<8x32xf32>
    %c0_1 = arith.constant 0 : index
    %c0_2 = arith.constant 0 : index
    %1 = vector.load %arg2[%c0_1, %c0_2] : memref<32x32xf32, #tpu.memory_space<vmem>>, vector<32x32xf32>
    %cst = arith.constant dense<0.000000e+00> : vector<8x32xf32>
    %2 = tpu.matmul %0, %1, %cst {dimension_numbers = #tpu.dot_dimension_numbers<[1], [0], [0], [1], [0, 0, 1, 1], [], []>} : vector<8x32xf32>, vector<32x32xf32>, vector<8x32xf32> -> vector<8x32xf32>
    %c0_3 = arith.constant 0 : index
    %c0_4 = arith.constant 0 : index
    %3 = vector.load %arg3[%c0_3, %c0_4] : memref<1x32xf32, #tpu.memory_space<vmem>>, vector<1x32xf32>
    %4 = vector.broadcast %3 : vector<1x32xf32> to vector<8x32xf32>
    %5 = arith.addf %2, %4 : vector<8x32xf32>
    %cst_5 = arith.constant 0.000000e+00 : f32
    %6 = vector.broadcast %cst_5 : f32 to vector<8x32xf32>
    %7 = arith.maximumf %5, %6 : vector<8x32xf32>
    %c0_6 = arith.constant 0 : index
    %c0_7 = arith.constant 0 : index
    %8 = vector.load %arg4[%c0_6, %c0_7] : memref<32x32xf32, #tpu.memory_space<vmem>>, vector<32x32xf32>
    %cst_8 = arith.constant dense<0.000000e+00> : vector<8x32xf32>
    %9 = tpu.matmul %7, %8, %cst_8 {dimension_numbers = #tpu.dot_dimension_numbers<[1], [0], [0], [1], [0, 0, 1, 1], [], []>} : vector<8x32xf32>, vector<32x32xf32>, vector<8x32xf32> -> vector<8x32xf32>
    %c0_9 = arith.constant 0 : index
    %c0_10 = arith.constant 0 : index
    %10 = vector.load %arg5[%c0_9, %c0_10] : memref<1x32xf32, #tpu.memory_space<vmem>>, vector<1x32xf32>
    %11 = vector.broadcast %10 : vector<1x32xf32> to vector<8x32xf32>
    %12 = arith.addf %9, %11 : vector<8x32xf32>
    %13 = arith.negf %12 : vector<8x32xf32>
    %14 = math.exp %13 : vector<8x32xf32>
    %cst_11 = arith.constant 1.000000e+00 : f32
    %15 = vector.broadcast %cst_11 : f32 to vector<8x32xf32>
    %16 = arith.addf %15, %14 : vector<8x32xf32>
    %17 = arith.divf %15, %16 : vector<8x32xf32>
    %c0_12 = arith.constant 0 : index
    %c0_13 = arith.constant 0 : index
    %18 = vector.load %arg6[%c0_12, %c0_13] : memref<8x32xf32, #tpu.memory_space<vmem>>, vector<8x32xf32>
    tpu.vector_store %arg6[%c0_12, %c0_13], %17 {strides = array<i32>} : memref<8x32xf32, #tpu.memory_space<vmem>>, vector<8x32xf32>,
    return
  }
  func.func @transform_0(%arg0: i32) -> (i32, i32) {
    %c0_i32 = arith.constant 0 : i32
    %c0_i32_0 = arith.constant 0 : i32
    %c0_i32_1 = arith.constant 0 : i32
    return %c0_i32, %c0_i32_0 : i32, i32
  }
  func.func @transform_1(%arg0: i32) -> (i32, i32) {
    %c0_i32 = arith.constant 0 : i32
    %c0_i32_0 = arith.constant 0 : i32
    %c0_i32_1 = arith.constant 0 : i32
    return %c0_i32, %c0_i32_0 : i32, i32
  }
  func.func @transform_2(%arg0: i32) -> (i32, i32) {
    %c0_i32 = arith.constant 0 : i32
    %c0_i32_0 = arith.constant 0 : i32
    %c0_i32_1 = arith.constant 0 : i32
    return %c0_i32, %c0_i32_0 : i32, i32
  }
  func.func @transform_3(%arg0: i32) -> (i32, i32) {
    %c0_i32 = arith.constant 0 : i32
    %c0_i32_0 = arith.constant 0 : i32
    %c0_i32_1 = arith.constant 0 : i32
    return %c0_i32, %c0_i32_0 : i32, i32
  }
  func.func @transform_4(%arg0: i32) -> (i32, i32) {
    %c0_i32 = arith.constant 0 : i32
    %c0_i32_0 = arith.constant 0 : i32
    %c0_i32_1 = arith.constant 0 : i32
    return %c0_i32, %c0_i32_0 : i32, i32
  }
  func.func @transform_5(%arg0: i32) -> (i32, i32) {
    %c0_i32 = arith.constant 0 : i32
    %c0_i32_0 = arith.constant 0 : i32
    %c0_i32_1 = arith.constant 0 : i32
    return %c0_i32, %c0_i32_0 : i32, i32
  }
}

module attributes {stable_mosaic.version = 11 : i64} {
  func.func @_conv1x1_multi_kernel(%arg0: i32, %arg1: i32, %arg2: memref<1x64x32xbf16, #tpu.memory_space<vmem>>, %arg3: memref<1x64x16xbf16, #tpu.memory_space<vmem>>, %arg4: memref<32x32xbf16, #tpu.memory_space<vmem>>, %arg5: memref<16x32xbf16, #tpu.memory_space<vmem>>, %arg6: memref<1x1x32xf32, #tpu.memory_space<vmem>>, %arg7: memref<1x64x32xbf16, #tpu.memory_space<vmem>>) attributes {dimension_semantics = [#tpu.dimension_semantics<parallel>, #tpu.dimension_semantics<parallel>], iteration_bounds = array<i64: 2, 1>, scalar_prefetch = 0 : i64, scratch_operands = 0 : i64, tpu.core_type = #tpu.core_type<tc>, window_params = [{transform_indices = @transform_0, window_bounds = array<i64: 1, 64, 32>}, {transform_indices = @transform_1, window_bounds = array<i64: 1, 64, 16>}, {pipeline_mode = #tpu.pipeline_mode<synchronous>, transform_indices = @transform_2, window_bounds = array<i64: 32, 32>}, {pipeline_mode = #tpu.pipeline_mode<synchronous>, transform_indices = @transform_3, window_bounds = array<i64: 16, 32>}, {transform_indices = @transform_4, window_bounds = array<i64: 1, 1, 32>}, {transform_indices = @transform_5, window_bounds = array<i64: 1, 64, 32>}]} {
    %c0 = arith.constant 0 : index
    %c0_0 = arith.constant 0 : index
    %c0_1 = arith.constant 0 : index
    %0 = vector.load %arg2[%c0, %c0_0, %c0_1] : memref<1x64x32xbf16, #tpu.memory_space<vmem>>, vector<1x64x32xbf16>
    %1 = vector.shape_cast %0 : vector<1x64x32xbf16> to vector<64x32xbf16>
    %c0_2 = arith.constant 0 : index
    %c0_3 = arith.constant 0 : index
    %2 = vector.load %arg4[%c0_2, %c0_3] : memref<32x32xbf16, #tpu.memory_space<vmem>>, vector<32x32xbf16>
    %cst = arith.constant dense<0.000000e+00> : vector<64x32xf32>
    %3 = tpu.matmul %1, %2, %cst {dimension_numbers = #tpu.dot_dimension_numbers<[1], [0], [0], [1], [0, 0, 1, 1], [], []>} : vector<64x32xbf16>, vector<32x32xbf16>, vector<64x32xf32> -> vector<64x32xf32>
    %c0_4 = arith.constant 0 : index
    %c0_5 = arith.constant 0 : index
    %c0_6 = arith.constant 0 : index
    %4 = vector.load %arg3[%c0_4, %c0_5, %c0_6] : memref<1x64x16xbf16, #tpu.memory_space<vmem>>, vector<1x64x16xbf16>
    %5 = vector.shape_cast %4 : vector<1x64x16xbf16> to vector<64x16xbf16>
    %c0_7 = arith.constant 0 : index
    %c0_8 = arith.constant 0 : index
    %6 = vector.load %arg5[%c0_7, %c0_8] : memref<16x32xbf16, #tpu.memory_space<vmem>>, vector<16x32xbf16>
    %cst_9 = arith.constant dense<0.000000e+00> : vector<64x32xf32>
    %7 = tpu.matmul %5, %6, %cst_9 {dimension_numbers = #tpu.dot_dimension_numbers<[1], [0], [0], [1], [0, 0, 1, 1], [], []>} : vector<64x16xbf16>, vector<16x32xbf16>, vector<64x32xf32> -> vector<64x32xf32>
    %8 = arith.addf %3, %7 : vector<64x32xf32>
    %c0_10 = arith.constant 0 : index
    %c0_11 = arith.constant 0 : index
    %c0_12 = arith.constant 0 : index
    %9 = vector.load %arg6[%c0_10, %c0_11, %c0_12] : memref<1x1x32xf32, #tpu.memory_space<vmem>>, vector<1x1x32xf32>
    %10 = vector.shape_cast %9 : vector<1x1x32xf32> to vector<1x32xf32>
    %11 = vector.broadcast %10 : vector<1x32xf32> to vector<64x32xf32>
    %12 = arith.addf %8, %11 : vector<64x32xf32>
    %cst_13 = arith.constant 0.000000e+00 : f32
    %13 = vector.broadcast %cst_13 : f32 to vector<64x32xf32>
    %14 = arith.maximumf %12, %13 : vector<64x32xf32>
    %15 = arith.truncf %14 : vector<64x32xf32> to vector<64x32xbf16>
    %c0_14 = arith.constant 0 : index
    %c0_15 = arith.constant 0 : index
    %c0_16 = arith.constant 0 : index
    %16 = vector.load %arg7[%c0_14, %c0_15, %c0_16] : memref<1x64x32xbf16, #tpu.memory_space<vmem>>, vector<1x64x32xbf16>
    %17 = vector.shape_cast %16 : vector<1x64x32xbf16> to vector<64x32xbf16>
    %18 = vector.shape_cast %15 : vector<64x32xbf16> to vector<1x64x32xbf16>
    tpu.vector_store %arg7[%c0_14, %c0_15, %c0_16], %18 {strides = array<i32>} : memref<1x64x32xbf16, #tpu.memory_space<vmem>>, vector<1x64x32xbf16>,
    return
  }
  func.func @transform_0(%arg0: i32, %arg1: i32) -> (i32, i32, i32) {
    %c0_i32 = arith.constant 0 : i32
    %c0_i32_0 = arith.constant 0 : i32
    return %arg0, %arg1, %c0_i32 : i32, i32, i32
  }
  func.func @transform_1(%arg0: i32, %arg1: i32) -> (i32, i32, i32) {
    %c0_i32 = arith.constant 0 : i32
    %c0_i32_0 = arith.constant 0 : i32
    return %arg0, %arg1, %c0_i32 : i32, i32, i32
  }
  func.func @transform_2(%arg0: i32, %arg1: i32) -> (i32, i32) {
    %c0_i32 = arith.constant 0 : i32
    %c0_i32_0 = arith.constant 0 : i32
    %c0_i32_1 = arith.constant 0 : i32
    return %c0_i32, %c0_i32_0 : i32, i32
  }
  func.func @transform_3(%arg0: i32, %arg1: i32) -> (i32, i32) {
    %c0_i32 = arith.constant 0 : i32
    %c0_i32_0 = arith.constant 0 : i32
    %c0_i32_1 = arith.constant 0 : i32
    return %c0_i32, %c0_i32_0 : i32, i32
  }
  func.func @transform_4(%arg0: i32, %arg1: i32) -> (i32, i32, i32) {
    %c0_i32 = arith.constant 0 : i32
    %c0_i32_0 = arith.constant 0 : i32
    %c0_i32_1 = arith.constant 0 : i32
    return %arg0, %c0_i32, %c0_i32_0 : i32, i32, i32
  }
  func.func @transform_5(%arg0: i32, %arg1: i32) -> (i32, i32, i32) {
    %c0_i32 = arith.constant 0 : i32
    %c0_i32_0 = arith.constant 0 : i32
    return %arg0, %arg1, %c0_i32 : i32, i32, i32
  }
}

module attributes {stable_mosaic.version = 11 : i64} {
  func.func @_conv1x1_multi_kernel(%arg0: i32, %arg1: i32, %arg2: memref<1x64x32xbf16, #tpu.memory_space<vmem>>, %arg3: memref<1x64x32xbf16, #tpu.memory_space<vmem>>, %arg4: memref<1x64x1xbf16, #tpu.memory_space<vmem>>, %arg5: memref<32x32xbf16, #tpu.memory_space<vmem>>, %arg6: memref<32x32xbf16, #tpu.memory_space<vmem>>, %arg7: memref<1x32xbf16, #tpu.memory_space<vmem>>, %arg8: memref<1x1x32xf32, #tpu.memory_space<vmem>>, %arg9: memref<1x64x32xbf16, #tpu.memory_space<vmem>>) attributes {dimension_semantics = [#tpu.dimension_semantics<parallel>, #tpu.dimension_semantics<parallel>], iteration_bounds = array<i64: 2, 1>, scalar_prefetch = 0 : i64, scratch_operands = 0 : i64, tpu.core_type = #tpu.core_type<tc>, window_params = [{transform_indices = @transform_0, window_bounds = array<i64: 1, 64, 32>}, {transform_indices = @transform_1, window_bounds = array<i64: 1, 64, 32>}, {transform_indices = @transform_2, window_bounds = array<i64: 1, 64, 1>}, {pipeline_mode = #tpu.pipeline_mode<synchronous>, transform_indices = @transform_3, window_bounds = array<i64: 32, 32>}, {pipeline_mode = #tpu.pipeline_mode<synchronous>, transform_indices = @transform_4, window_bounds = array<i64: 32, 32>}, {pipeline_mode = #tpu.pipeline_mode<synchronous>, transform_indices = @transform_5, window_bounds = array<i64: 1, 32>}, {transform_indices = @transform_6, window_bounds = array<i64: 1, 1, 32>}, {transform_indices = @transform_7, window_bounds = array<i64: 1, 64, 32>}]} {
    %c0 = arith.constant 0 : index
    %c0_0 = arith.constant 0 : index
    %c0_1 = arith.constant 0 : index
    %0 = vector.load %arg2[%c0, %c0_0, %c0_1] : memref<1x64x32xbf16, #tpu.memory_space<vmem>>, vector<1x64x32xbf16>
    %1 = vector.shape_cast %0 : vector<1x64x32xbf16> to vector<64x32xbf16>
    %c0_2 = arith.constant 0 : index
    %c0_3 = arith.constant 0 : index
    %2 = vector.load %arg5[%c0_2, %c0_3] : memref<32x32xbf16, #tpu.memory_space<vmem>>, vector<32x32xbf16>
    %cst = arith.constant dense<0.000000e+00> : vector<64x32xf32>
    %3 = tpu.matmul %1, %2, %cst {dimension_numbers = #tpu.dot_dimension_numbers<[1], [0], [0], [1], [0, 0, 1, 1], [], []>} : vector<64x32xbf16>, vector<32x32xbf16>, vector<64x32xf32> -> vector<64x32xf32>
    %c0_4 = arith.constant 0 : index
    %c0_5 = arith.constant 0 : index
    %c0_6 = arith.constant 0 : index
    %4 = vector.load %arg3[%c0_4, %c0_5, %c0_6] : memref<1x64x32xbf16, #tpu.memory_space<vmem>>, vector<1x64x32xbf16>
    %5 = vector.shape_cast %4 : vector<1x64x32xbf16> to vector<64x32xbf16>
    %c0_7 = arith.constant 0 : index
    %c0_8 = arith.constant 0 : index
    %6 = vector.load %arg6[%c0_7, %c0_8] : memref<32x32xbf16, #tpu.memory_space<vmem>>, vector<32x32xbf16>
    %cst_9 = arith.constant dense<0.000000e+00> : vector<64x32xf32>
    %7 = tpu.matmul %5, %6, %cst_9 {dimension_numbers = #tpu.dot_dimension_numbers<[1], [0], [0], [1], [0, 0, 1, 1], [], []>} : vector<64x32xbf16>, vector<32x32xbf16>, vector<64x32xf32> -> vector<64x32xf32>
    %8 = arith.addf %3, %7 : vector<64x32xf32>
    %c0_10 = arith.constant 0 : index
    %c0_11 = arith.constant 0 : index
    %c0_12 = arith.constant 0 : index
    %9 = vector.load %arg4[%c0_10, %c0_11, %c0_12] : memref<1x64x1xbf16, #tpu.memory_space<vmem>>, vector<1x64x1xbf16>
    %10 = vector.shape_cast %9 : vector<1x64x1xbf16> to vector<64x1xbf16>
    %c0_13 = arith.constant 0 : index
    %c0_14 = arith.constant 0 : index
    %11 = vector.load %arg7[%c0_13, %c0_14] : memref<1x32xbf16, #tpu.memory_space<vmem>>, vector<1x32xbf16>
    %12 = arith.extf %10 : vector<64x1xbf16> to vector<64x1xf32>
    %13 = arith.extf %11 : vector<1x32xbf16> to vector<1x32xf32>
    %14 = vector.broadcast %12 : vector<64x1xf32> to vector<64x32xf32>
    %15 = vector.broadcast %13 : vector<1x32xf32> to vector<64x32xf32>
    %16 = arith.mulf %14, %15 : vector<64x32xf32>
    %17 = arith.addf %8, %16 : vector<64x32xf32>
    %c0_15 = arith.constant 0 : index
    %c0_16 = arith.constant 0 : index
    %c0_17 = arith.constant 0 : index
    %18 = vector.load %arg8[%c0_15, %c0_16, %c0_17] : memref<1x1x32xf32, #tpu.memory_space<vmem>>, vector<1x1x32xf32>
    %19 = vector.shape_cast %18 : vector<1x1x32xf32> to vector<1x32xf32>
    %20 = vector.broadcast %19 : vector<1x32xf32> to vector<64x32xf32>
    %21 = arith.addf %17, %20 : vector<64x32xf32>
    %cst_18 = arith.constant 0.000000e+00 : f32
    %22 = vector.broadcast %cst_18 : f32 to vector<64x32xf32>
    %23 = arith.maximumf %21, %22 : vector<64x32xf32>
    %24 = arith.truncf %23 : vector<64x32xf32> to vector<64x32xbf16>
    %c0_19 = arith.constant 0 : index
    %c0_20 = arith.constant 0 : index
    %c0_21 = arith.constant 0 : index
    %25 = vector.load %arg9[%c0_19, %c0_20, %c0_21] : memref<1x64x32xbf16, #tpu.memory_space<vmem>>, vector<1x64x32xbf16>
    %26 = vector.shape_cast %25 : vector<1x64x32xbf16> to vector<64x32xbf16>
    %27 = vector.shape_cast %24 : vector<64x32xbf16> to vector<1x64x32xbf16>
    tpu.vector_store %arg9[%c0_19, %c0_20, %c0_21], %27 {strides = array<i32>} : memref<1x64x32xbf16, #tpu.memory_space<vmem>>, vector<1x64x32xbf16>,
    return
  }
  func.func @transform_0(%arg0: i32, %arg1: i32) -> (i32, i32, i32) {
    %c0_i32 = arith.constant 0 : i32
    %c0_i32_0 = arith.constant 0 : i32
    return %arg0, %arg1, %c0_i32 : i32, i32, i32
  }
  func.func @transform_1(%arg0: i32, %arg1: i32) -> (i32, i32, i32) {
    %c0_i32 = arith.constant 0 : i32
    %c0_i32_0 = arith.constant 0 : i32
    return %arg0, %arg1, %c0_i32 : i32, i32, i32
  }
  func.func @transform_2(%arg0: i32, %arg1: i32) -> (i32, i32, i32) {
    %c0_i32 = arith.constant 0 : i32
    %c0_i32_0 = arith.constant 0 : i32
    return %arg0, %arg1, %c0_i32 : i32, i32, i32
  }
  func.func @transform_3(%arg0: i32, %arg1: i32) -> (i32, i32) {
    %c0_i32 = arith.constant 0 : i32
    %c0_i32_0 = arith.constant 0 : i32
    %c0_i32_1 = arith.constant 0 : i32
    return %c0_i32, %c0_i32_0 : i32, i32
  }
  func.func @transform_4(%arg0: i32, %arg1: i32) -> (i32, i32) {
    %c0_i32 = arith.constant 0 : i32
    %c0_i32_0 = arith.constant 0 : i32
    %c0_i32_1 = arith.constant 0 : i32
    return %c0_i32, %c0_i32_0 : i32, i32
  }
  func.func @transform_5(%arg0: i32, %arg1: i32) -> (i32, i32) {
    %c0_i32 = arith.constant 0 : i32
    %c0_i32_0 = arith.constant 0 : i32
    %c0_i32_1 = arith.constant 0 : i32
    return %c0_i32, %c0_i32_0 : i32, i32
  }
  func.func @transform_6(%arg0: i32, %arg1: i32) -> (i32, i32, i32) {
    %c0_i32 = arith.constant 0 : i32
    %c0_i32_0 = arith.constant 0 : i32
    %c0_i32_1 = arith.constant 0 : i32
    return %arg0, %c0_i32, %c0_i32_0 : i32, i32, i32
  }
  func.func @transform_7(%arg0: i32, %arg1: i32) -> (i32, i32, i32) {
    %c0_i32 = arith.constant 0 : i32
    %c0_i32_0 = arith.constant 0 : i32
    return %arg0, %arg1, %c0_i32 : i32, i32, i32
  }
}

module attributes {stable_mosaic.version = 11 : i64} {
  func.func @_conv1x1_multi_kernel(%arg0: i32, %arg1: i32, %arg2: memref<1x64x32xbf16, #tpu.memory_space<vmem>>, %arg3: memref<32x160xbf16, #tpu.memory_space<vmem>>, %arg4: memref<1x1x160xf32, #tpu.memory_space<vmem>>, %arg5: memref<1x64x160xbf16, #tpu.memory_space<vmem>>) attributes {dimension_semantics = [#tpu.dimension_semantics<parallel>, #tpu.dimension_semantics<parallel>], iteration_bounds = array<i64: 2, 1>, scalar_prefetch = 0 : i64, scratch_operands = 0 : i64, tpu.core_type = #tpu.core_type<tc>, window_params = [{transform_indices = @transform_0, window_bounds = array<i64: 1, 64, 32>}, {pipeline_mode = #tpu.pipeline_mode<synchronous>, transform_indices = @transform_1, window_bounds = array<i64: 32, 160>}, {transform_indices = @transform_2, window_bounds = array<i64: 1, 1, 160>}, {transform_indices = @transform_3, window_bounds = array<i64: 1, 64, 160>}]} {
    %c0 = arith.constant 0 : index
    %c0_0 = arith.constant 0 : index
    %c0_1 = arith.constant 0 : index
    %0 = vector.load %arg2[%c0, %c0_0, %c0_1] : memref<1x64x32xbf16, #tpu.memory_space<vmem>>, vector<1x64x32xbf16>
    %1 = vector.shape_cast %0 : vector<1x64x32xbf16> to vector<64x32xbf16>
    %c0_2 = arith.constant 0 : index
    %c0_3 = arith.constant 0 : index
    %2 = vector.load %arg3[%c0_2, %c0_3] : memref<32x160xbf16, #tpu.memory_space<vmem>>, vector<32x160xbf16>
    %cst = arith.constant dense<0.000000e+00> : vector<64x160xf32>
    %3 = tpu.matmul %1, %2, %cst {dimension_numbers = #tpu.dot_dimension_numbers<[1], [0], [0], [1], [0, 0, 1, 1], [], []>} : vector<64x32xbf16>, vector<32x160xbf16>, vector<64x160xf32> -> vector<64x160xf32>
    %c0_4 = arith.constant 0 : index
    %c0_5 = arith.constant 0 : index
    %c0_6 = arith.constant 0 : index
    %4 = vector.load %arg4[%c0_4, %c0_5, %c0_6] : memref<1x1x160xf32, #tpu.memory_space<vmem>>, vector<1x1x160xf32>
    %5 = vector.shape_cast %4 : vector<1x1x160xf32> to vector<1x160xf32>
    %6 = vector.broadcast %5 : vector<1x160xf32> to vector<64x160xf32>
    %7 = arith.addf %3, %6 : vector<64x160xf32>
    %cst_7 = arith.constant 0.000000e+00 : f32
    %8 = vector.broadcast %cst_7 : f32 to vector<64x160xf32>
    %9 = arith.maximumf %7, %8 : vector<64x160xf32>
    %10 = arith.truncf %9 : vector<64x160xf32> to vector<64x160xbf16>
    %c0_8 = arith.constant 0 : index
    %c0_9 = arith.constant 0 : index
    %c0_10 = arith.constant 0 : index
    %11 = vector.load %arg5[%c0_8, %c0_9, %c0_10] : memref<1x64x160xbf16, #tpu.memory_space<vmem>>, vector<1x64x160xbf16>
    %12 = vector.shape_cast %11 : vector<1x64x160xbf16> to vector<64x160xbf16>
    %13 = vector.shape_cast %10 : vector<64x160xbf16> to vector<1x64x160xbf16>
    tpu.vector_store %arg5[%c0_8, %c0_9, %c0_10], %13 {strides = array<i32>} : memref<1x64x160xbf16, #tpu.memory_space<vmem>>, vector<1x64x160xbf16>,
    return
  }
  func.func @transform_0(%arg0: i32, %arg1: i32) -> (i32, i32, i32) {
    %c0_i32 = arith.constant 0 : i32
    %c0_i32_0 = arith.constant 0 : i32
    return %arg0, %arg1, %c0_i32 : i32, i32, i32
  }
  func.func @transform_1(%arg0: i32, %arg1: i32) -> (i32, i32) {
    %c0_i32 = arith.constant 0 : i32
    %c0_i32_0 = arith.constant 0 : i32
    %c0_i32_1 = arith.constant 0 : i32
    return %c0_i32, %c0_i32_0 : i32, i32
  }
  func.func @transform_2(%arg0: i32, %arg1: i32) -> (i32, i32, i32) {
    %c0_i32 = arith.constant 0 : i32
    %c0_i32_0 = arith.constant 0 : i32
    %c0_i32_1 = arith.constant 0 : i32
    return %arg0, %c0_i32, %c0_i32_0 : i32, i32, i32
  }
  func.func @transform_3(%arg0: i32, %arg1: i32) -> (i32, i32, i32) {
    %c0_i32 = arith.constant 0 : i32
    %c0_i32_0 = arith.constant 0 : i32
    return %arg0, %arg1, %c0_i32 : i32, i32, i32
  }
}

module attributes {stable_mosaic.version = 11 : i64} {
  func.func @_conv1x1_multi_kernel(%arg0: i32, %arg1: i32, %arg2: memref<1x64x160xbf16, #tpu.memory_space<vmem>>, %arg3: memref<160x32xbf16, #tpu.memory_space<vmem>>, %arg4: memref<1x1x32xf32, #tpu.memory_space<vmem>>, %arg5: memref<1x64x32xbf16, #tpu.memory_space<vmem>>) attributes {dimension_semantics = [#tpu.dimension_semantics<parallel>, #tpu.dimension_semantics<parallel>], iteration_bounds = array<i64: 2, 1>, scalar_prefetch = 0 : i64, scratch_operands = 0 : i64, tpu.core_type = #tpu.core_type<tc>, window_params = [{transform_indices = @transform_0, window_bounds = array<i64: 1, 64, 160>}, {pipeline_mode = #tpu.pipeline_mode<synchronous>, transform_indices = @transform_1, window_bounds = array<i64: 160, 32>}, {transform_indices = @transform_2, window_bounds = array<i64: 1, 1, 32>}, {transform_indices = @transform_3, window_bounds = array<i64: 1, 64, 32>}]} {
    %c0 = arith.constant 0 : index
    %c0_0 = arith.constant 0 : index
    %c0_1 = arith.constant 0 : index
    %0 = vector.load %arg2[%c0, %c0_0, %c0_1] : memref<1x64x160xbf16, #tpu.memory_space<vmem>>, vector<1x64x160xbf16>
    %1 = vector.shape_cast %0 : vector<1x64x160xbf16> to vector<64x160xbf16>
    %c0_2 = arith.constant 0 : index
    %c0_3 = arith.constant 0 : index
    %2 = vector.load %arg3[%c0_2, %c0_3] : memref<160x32xbf16, #tpu.memory_space<vmem>>, vector<160x32xbf16>
    %cst = arith.constant dense<0.000000e+00> : vector<64x32xf32>
    %3 = tpu.matmul %1, %2, %cst {dimension_numbers = #tpu.dot_dimension_numbers<[1], [0], [0], [1], [0, 0, 1, 1], [], []>} : vector<64x160xbf16>, vector<160x32xbf16>, vector<64x32xf32> -> vector<64x32xf32>
    %c0_4 = arith.constant 0 : index
    %c0_5 = arith.constant 0 : index
    %c0_6 = arith.constant 0 : index
    %4 = vector.load %arg4[%c0_4, %c0_5, %c0_6] : memref<1x1x32xf32, #tpu.memory_space<vmem>>, vector<1x1x32xf32>
    %5 = vector.shape_cast %4 : vector<1x1x32xf32> to vector<1x32xf32>
    %6 = vector.broadcast %5 : vector<1x32xf32> to vector<64x32xf32>
    %7 = arith.addf %3, %6 : vector<64x32xf32>
    %cst_7 = arith.constant 0.000000e+00 : f32
    %8 = vector.broadcast %cst_7 : f32 to vector<64x32xf32>
    %9 = arith.maximumf %7, %8 : vector<64x32xf32>
    %10 = arith.truncf %9 : vector<64x32xf32> to vector<64x32xbf16>
    %c0_8 = arith.constant 0 : index
    %c0_9 = arith.constant 0 : index
    %c0_10 = arith.constant 0 : index
    %11 = vector.load %arg5[%c0_8, %c0_9, %c0_10] : memref<1x64x32xbf16, #tpu.memory_space<vmem>>, vector<1x64x32xbf16>
    %12 = vector.shape_cast %11 : vector<1x64x32xbf16> to vector<64x32xbf16>
    %13 = vector.shape_cast %10 : vector<64x32xbf16> to vector<1x64x32xbf16>
    tpu.vector_store %arg5[%c0_8, %c0_9, %c0_10], %13 {strides = array<i32>} : memref<1x64x32xbf16, #tpu.memory_space<vmem>>, vector<1x64x32xbf16>,
    return
  }
  func.func @transform_0(%arg0: i32, %arg1: i32) -> (i32, i32, i32) {
    %c0_i32 = arith.constant 0 : i32
    %c0_i32_0 = arith.constant 0 : i32
    return %arg0, %arg1, %c0_i32 : i32, i32, i32
  }
  func.func @transform_1(%arg0: i32, %arg1: i32) -> (i32, i32) {
    %c0_i32 = arith.constant 0 : i32
    %c0_i32_0 = arith.constant 0 : i32
    %c0_i32_1 = arith.constant 0 : i32
    return %c0_i32, %c0_i32_0 : i32, i32
  }
  func.func @transform_2(%arg0: i32, %arg1: i32) -> (i32, i32, i32) {
    %c0_i32 = arith.constant 0 : i32
    %c0_i32_0 = arith.constant 0 : i32
    %c0_i32_1 = arith.constant 0 : i32
    return %arg0, %c0_i32, %c0_i32_0 : i32, i32, i32
  }
  func.func @transform_3(%arg0: i32, %arg1: i32) -> (i32, i32, i32) {
    %c0_i32 = arith.constant 0 : i32
    %c0_i32_0 = arith.constant 0 : i32
    return %arg0, %arg1, %c0_i32 : i32, i32, i32
  }
}

module attributes {stable_mosaic.version = 11 : i64} {
  func.func @_conv3x3_kernel(%arg0: i32, %arg1: memref<1x80x96xbf16, #tpu.memory_space<vmem>>, %arg2: memref<3x96x32xbf16, #tpu.memory_space<vmem>>, %arg3: memref<1x32xf32, #tpu.memory_space<vmem>>, %arg4: memref<1x64x32xbf16, #tpu.memory_space<vmem>>) attributes {dimension_semantics = [#tpu.dimension_semantics<parallel>], iteration_bounds = array<i64: 2>, scalar_prefetch = 0 : i64, scratch_operands = 0 : i64, tpu.core_type = #tpu.core_type<tc>, window_params = [{transform_indices = @transform_0, window_bounds = array<i64: 1, 80, 96>}, {pipeline_mode = #tpu.pipeline_mode<synchronous>, transform_indices = @transform_1, window_bounds = array<i64: 3, 96, 32>}, {pipeline_mode = #tpu.pipeline_mode<synchronous>, transform_indices = @transform_2, window_bounds = array<i64: 1, 32>}, {transform_indices = @transform_3, window_bounds = array<i64: 1, 64, 32>}]} {
    %c0 = arith.constant 0 : index
    %c0_0 = arith.constant 0 : index
    %c0_1 = arith.constant 0 : index
    %0 = vector.load %arg1[%c0, %c0_0, %c0_1] : memref<1x80x96xbf16, #tpu.memory_space<vmem>>, vector<1x64x96xbf16>
    %1 = vector.shape_cast %0 : vector<1x64x96xbf16> to vector<64x96xbf16>
    %c0_2 = arith.constant 0 : index
    %c0_3 = arith.constant 0 : index
    %c0_4 = arith.constant 0 : index
    %2 = vector.load %arg2[%c0_2, %c0_3, %c0_4] : memref<3x96x32xbf16, #tpu.memory_space<vmem>>, vector<1x96x32xbf16>
    %3 = vector.shape_cast %2 : vector<1x96x32xbf16> to vector<96x32xbf16>
    %cst = arith.constant dense<0.000000e+00> : vector<64x32xf32>
    %4 = tpu.matmul %1, %3, %cst {dimension_numbers = #tpu.dot_dimension_numbers<[1], [0], [0], [1], [0, 0, 1, 1], [], []>} : vector<64x96xbf16>, vector<96x32xbf16>, vector<64x32xf32> -> vector<64x32xf32>
    %c0_5 = arith.constant 0 : index
    %c8 = arith.constant 8 : index
    %c0_6 = arith.constant 0 : index
    %5 = vector.load %arg1[%c0_5, %c8, %c0_6] : memref<1x80x96xbf16, #tpu.memory_space<vmem>>, vector<1x64x96xbf16>
    %6 = vector.shape_cast %5 : vector<1x64x96xbf16> to vector<64x96xbf16>
    %c1 = arith.constant 1 : index
    %c0_7 = arith.constant 0 : index
    %c0_8 = arith.constant 0 : index
    %7 = vector.load %arg2[%c1, %c0_7, %c0_8] : memref<3x96x32xbf16, #tpu.memory_space<vmem>>, vector<1x96x32xbf16>
    %8 = vector.shape_cast %7 : vector<1x96x32xbf16> to vector<96x32xbf16>
    %cst_9 = arith.constant dense<0.000000e+00> : vector<64x32xf32>
    %9 = tpu.matmul %6, %8, %cst_9 {dimension_numbers = #tpu.dot_dimension_numbers<[1], [0], [0], [1], [0, 0, 1, 1], [], []>} : vector<64x96xbf16>, vector<96x32xbf16>, vector<64x32xf32> -> vector<64x32xf32>
    %10 = arith.addf %4, %9 : vector<64x32xf32>
    %c0_10 = arith.constant 0 : index
    %c16 = arith.constant 16 : index
    %c0_11 = arith.constant 0 : index
    %11 = vector.load %arg1[%c0_10, %c16, %c0_11] : memref<1x80x96xbf16, #tpu.memory_space<vmem>>, vector<1x64x96xbf16>
    %12 = vector.shape_cast %11 : vector<1x64x96xbf16> to vector<64x96xbf16>
    %c2 = arith.constant 2 : index
    %c0_12 = arith.constant 0 : index
    %c0_13 = arith.constant 0 : index
    %13 = vector.load %arg2[%c2, %c0_12, %c0_13] : memref<3x96x32xbf16, #tpu.memory_space<vmem>>, vector<1x96x32xbf16>
    %14 = vector.shape_cast %13 : vector<1x96x32xbf16> to vector<96x32xbf16>
    %cst_14 = arith.constant dense<0.000000e+00> : vector<64x32xf32>
    %15 = tpu.matmul %12, %14, %cst_14 {dimension_numbers = #tpu.dot_dimension_numbers<[1], [0], [0], [1], [0, 0, 1, 1], [], []>} : vector<64x96xbf16>, vector<96x32xbf16>, vector<64x32xf32> -> vector<64x32xf32>
    %16 = arith.addf %10, %15 : vector<64x32xf32>
    %c0_15 = arith.constant 0 : index
    %c0_16 = arith.constant 0 : index
    %17 = vector.load %arg3[%c0_15, %c0_16] : memref<1x32xf32, #tpu.memory_space<vmem>>, vector<1x32xf32>
    %18 = vector.broadcast %17 : vector<1x32xf32> to vector<64x32xf32>
    %19 = arith.addf %16, %18 : vector<64x32xf32>
    %cst_17 = arith.constant 0.000000e+00 : f32
    %20 = vector.broadcast %cst_17 : f32 to vector<64x32xf32>
    %21 = arith.maximumf %19, %20 : vector<64x32xf32>
    %22 = arith.truncf %21 : vector<64x32xf32> to vector<64x32xbf16>
    %c0_18 = arith.constant 0 : index
    %c0_19 = arith.constant 0 : index
    %c0_20 = arith.constant 0 : index
    %23 = vector.load %arg4[%c0_18, %c0_19, %c0_20] : memref<1x64x32xbf16, #tpu.memory_space<vmem>>, vector<1x64x32xbf16>
    %24 = vector.shape_cast %23 : vector<1x64x32xbf16> to vector<64x32xbf16>
    %25 = vector.shape_cast %22 : vector<64x32xbf16> to vector<1x64x32xbf16>
    tpu.vector_store %arg4[%c0_18, %c0_19, %c0_20], %25 {strides = array<i32>} : memref<1x64x32xbf16, #tpu.memory_space<vmem>>, vector<1x64x32xbf16>,
    return
  }
  func.func @transform_0(%arg0: i32) -> (i32, i32, i32) {
    %c0_i32 = arith.constant 0 : i32
    %c0_i32_0 = arith.constant 0 : i32
    %c0_i32_1 = arith.constant 0 : i32
    return %arg0, %c0_i32, %c0_i32_0 : i32, i32, i32
  }
  func.func @transform_1(%arg0: i32) -> (i32, i32, i32) {
    %c0_i32 = arith.constant 0 : i32
    %c0_i32_0 = arith.constant 0 : i32
    %c0_i32_1 = arith.constant 0 : i32
    %c0_i32_2 = arith.constant 0 : i32
    return %c0_i32, %c0_i32_0, %c0_i32_1 : i32, i32, i32
  }
  func.func @transform_2(%arg0: i32) -> (i32, i32) {
    %c0_i32 = arith.constant 0 : i32
    %c0_i32_0 = arith.constant 0 : i32
    %c0_i32_1 = arith.constant 0 : i32
    return %c0_i32, %c0_i32_0 : i32, i32
  }
  func.func @transform_3(%arg0: i32) -> (i32, i32, i32) {
    %c0_i32 = arith.constant 0 : i32
    %c0_i32_0 = arith.constant 0 : i32
    %c0_i32_1 = arith.constant 0 : i32
    return %arg0, %c0_i32, %c0_i32_0 : i32, i32, i32
  }
}

module attributes {stable_mosaic.version = 11 : i64} {
  func.func @_conv3x3_kernel(%arg0: i32, %arg1: memref<1x80x96xbf16, #tpu.memory_space<vmem>>, %arg2: memref<3x96x32xbf16, #tpu.memory_space<vmem>>, %arg3: memref<1x32xf32, #tpu.memory_space<vmem>>, %arg4: memref<1x64x32xbf16, #tpu.memory_space<vmem>>, %arg5: memref<1x64x32xbf16, #tpu.memory_space<vmem>>) attributes {dimension_semantics = [#tpu.dimension_semantics<parallel>], iteration_bounds = array<i64: 2>, scalar_prefetch = 0 : i64, scratch_operands = 0 : i64, tpu.core_type = #tpu.core_type<tc>, window_params = [{transform_indices = @transform_0, window_bounds = array<i64: 1, 80, 96>}, {pipeline_mode = #tpu.pipeline_mode<synchronous>, transform_indices = @transform_1, window_bounds = array<i64: 3, 96, 32>}, {pipeline_mode = #tpu.pipeline_mode<synchronous>, transform_indices = @transform_2, window_bounds = array<i64: 1, 32>}, {transform_indices = @transform_3, window_bounds = array<i64: 1, 64, 32>}, {transform_indices = @transform_4, window_bounds = array<i64: 1, 64, 32>}]} {
    %c0 = arith.constant 0 : index
    %c0_0 = arith.constant 0 : index
    %c0_1 = arith.constant 0 : index
    %0 = vector.load %arg1[%c0, %c0_0, %c0_1] : memref<1x80x96xbf16, #tpu.memory_space<vmem>>, vector<1x64x96xbf16>
    %1 = vector.shape_cast %0 : vector<1x64x96xbf16> to vector<64x96xbf16>
    %c0_2 = arith.constant 0 : index
    %c0_3 = arith.constant 0 : index
    %c0_4 = arith.constant 0 : index
    %2 = vector.load %arg2[%c0_2, %c0_3, %c0_4] : memref<3x96x32xbf16, #tpu.memory_space<vmem>>, vector<1x96x32xbf16>
    %3 = vector.shape_cast %2 : vector<1x96x32xbf16> to vector<96x32xbf16>
    %cst = arith.constant dense<0.000000e+00> : vector<64x32xf32>
    %4 = tpu.matmul %1, %3, %cst {dimension_numbers = #tpu.dot_dimension_numbers<[1], [0], [0], [1], [0, 0, 1, 1], [], []>} : vector<64x96xbf16>, vector<96x32xbf16>, vector<64x32xf32> -> vector<64x32xf32>
    %c0_5 = arith.constant 0 : index
    %c8 = arith.constant 8 : index
    %c0_6 = arith.constant 0 : index
    %5 = vector.load %arg1[%c0_5, %c8, %c0_6] : memref<1x80x96xbf16, #tpu.memory_space<vmem>>, vector<1x64x96xbf16>
    %6 = vector.shape_cast %5 : vector<1x64x96xbf16> to vector<64x96xbf16>
    %c1 = arith.constant 1 : index
    %c0_7 = arith.constant 0 : index
    %c0_8 = arith.constant 0 : index
    %7 = vector.load %arg2[%c1, %c0_7, %c0_8] : memref<3x96x32xbf16, #tpu.memory_space<vmem>>, vector<1x96x32xbf16>
    %8 = vector.shape_cast %7 : vector<1x96x32xbf16> to vector<96x32xbf16>
    %cst_9 = arith.constant dense<0.000000e+00> : vector<64x32xf32>
    %9 = tpu.matmul %6, %8, %cst_9 {dimension_numbers = #tpu.dot_dimension_numbers<[1], [0], [0], [1], [0, 0, 1, 1], [], []>} : vector<64x96xbf16>, vector<96x32xbf16>, vector<64x32xf32> -> vector<64x32xf32>
    %10 = arith.addf %4, %9 : vector<64x32xf32>
    %c0_10 = arith.constant 0 : index
    %c16 = arith.constant 16 : index
    %c0_11 = arith.constant 0 : index
    %11 = vector.load %arg1[%c0_10, %c16, %c0_11] : memref<1x80x96xbf16, #tpu.memory_space<vmem>>, vector<1x64x96xbf16>
    %12 = vector.shape_cast %11 : vector<1x64x96xbf16> to vector<64x96xbf16>
    %c2 = arith.constant 2 : index
    %c0_12 = arith.constant 0 : index
    %c0_13 = arith.constant 0 : index
    %13 = vector.load %arg2[%c2, %c0_12, %c0_13] : memref<3x96x32xbf16, #tpu.memory_space<vmem>>, vector<1x96x32xbf16>
    %14 = vector.shape_cast %13 : vector<1x96x32xbf16> to vector<96x32xbf16>
    %cst_14 = arith.constant dense<0.000000e+00> : vector<64x32xf32>
    %15 = tpu.matmul %12, %14, %cst_14 {dimension_numbers = #tpu.dot_dimension_numbers<[1], [0], [0], [1], [0, 0, 1, 1], [], []>} : vector<64x96xbf16>, vector<96x32xbf16>, vector<64x32xf32> -> vector<64x32xf32>
    %16 = arith.addf %10, %15 : vector<64x32xf32>
    %c0_15 = arith.constant 0 : index
    %c0_16 = arith.constant 0 : index
    %17 = vector.load %arg3[%c0_15, %c0_16] : memref<1x32xf32, #tpu.memory_space<vmem>>, vector<1x32xf32>
    %18 = vector.broadcast %17 : vector<1x32xf32> to vector<64x32xf32>
    %19 = arith.addf %16, %18 : vector<64x32xf32>
    %cst_17 = arith.constant 0.000000e+00 : f32
    %20 = vector.broadcast %cst_17 : f32 to vector<64x32xf32>
    %21 = arith.maximumf %19, %20 : vector<64x32xf32>
    %c0_18 = arith.constant 0 : index
    %c0_19 = arith.constant 0 : index
    %c0_20 = arith.constant 0 : index
    %22 = vector.load %arg4[%c0_18, %c0_19, %c0_20] : memref<1x64x32xbf16, #tpu.memory_space<vmem>>, vector<1x64x32xbf16>
    %23 = vector.shape_cast %22 : vector<1x64x32xbf16> to vector<64x32xbf16>
    %24 = arith.extf %23 : vector<64x32xbf16> to vector<64x32xf32>
    %25 = arith.addf %21, %24 : vector<64x32xf32>
    %26 = arith.truncf %25 : vector<64x32xf32> to vector<64x32xbf16>
    %c0_21 = arith.constant 0 : index
    %c0_22 = arith.constant 0 : index
    %c0_23 = arith.constant 0 : index
    %27 = vector.load %arg5[%c0_21, %c0_22, %c0_23] : memref<1x64x32xbf16, #tpu.memory_space<vmem>>, vector<1x64x32xbf16>
    %28 = vector.shape_cast %27 : vector<1x64x32xbf16> to vector<64x32xbf16>
    %29 = vector.shape_cast %26 : vector<64x32xbf16> to vector<1x64x32xbf16>
    tpu.vector_store %arg5[%c0_21, %c0_22, %c0_23], %29 {strides = array<i32>} : memref<1x64x32xbf16, #tpu.memory_space<vmem>>, vector<1x64x32xbf16>,
    return
  }
  func.func @transform_0(%arg0: i32) -> (i32, i32, i32) {
    %c0_i32 = arith.constant 0 : i32
    %c0_i32_0 = arith.constant 0 : i32
    %c0_i32_1 = arith.constant 0 : i32
    return %arg0, %c0_i32, %c0_i32_0 : i32, i32, i32
  }
  func.func @transform_1(%arg0: i32) -> (i32, i32, i32) {
    %c0_i32 = arith.constant 0 : i32
    %c0_i32_0 = arith.constant 0 : i32
    %c0_i32_1 = arith.constant 0 : i32
    %c0_i32_2 = arith.constant 0 : i32
    return %c0_i32, %c0_i32_0, %c0_i32_1 : i32, i32, i32
  }
  func.func @transform_2(%arg0: i32) -> (i32, i32) {
    %c0_i32 = arith.constant 0 : i32
    %c0_i32_0 = arith.constant 0 : i32
    %c0_i32_1 = arith.constant 0 : i32
    return %c0_i32, %c0_i32_0 : i32, i32
  }
  func.func @transform_3(%arg0: i32) -> (i32, i32, i32) {
    %c0_i32 = arith.constant 0 : i32
    %c0_i32_0 = arith.constant 0 : i32
    %c0_i32_1 = arith.constant 0 : i32
    return %arg0, %c0_i32, %c0_i32_0 : i32, i32, i32
  }
  func.func @transform_4(%arg0: i32) -> (i32, i32, i32) {
    %c0_i32 = arith.constant 0 : i32
    %c0_i32_0 = arith.constant 0 : i32
    %c0_i32_1 = arith.constant 0 : i32
    return %arg0, %c0_i32, %c0_i32_0 : i32, i32, i32
  }
}

module attributes {stable_mosaic.version = 11 : i64} {
  func.func @_conv3x3_kernel(%arg0: i32, %arg1: memref<1x80x96xbf16, #tpu.memory_space<vmem>>, %arg2: memref<3x96x32xbf16, #tpu.memory_space<vmem>>, %arg3: memref<1x32xf32, #tpu.memory_space<vmem>>, %arg4: memref<32x2xbf16, #tpu.memory_space<vmem>>, %arg5: memref<1x2xf32, #tpu.memory_space<vmem>>, %arg6: memref<1x64x2xf32, #tpu.memory_space<vmem>>) attributes {dimension_semantics = [#tpu.dimension_semantics<parallel>], iteration_bounds = array<i64: 2>, scalar_prefetch = 0 : i64, scratch_operands = 0 : i64, tpu.core_type = #tpu.core_type<tc>, window_params = [{transform_indices = @transform_0, window_bounds = array<i64: 1, 80, 96>}, {pipeline_mode = #tpu.pipeline_mode<synchronous>, transform_indices = @transform_1, window_bounds = array<i64: 3, 96, 32>}, {pipeline_mode = #tpu.pipeline_mode<synchronous>, transform_indices = @transform_2, window_bounds = array<i64: 1, 32>}, {pipeline_mode = #tpu.pipeline_mode<synchronous>, transform_indices = @transform_3, window_bounds = array<i64: 32, 2>}, {pipeline_mode = #tpu.pipeline_mode<synchronous>, transform_indices = @transform_4, window_bounds = array<i64: 1, 2>}, {transform_indices = @transform_5, window_bounds = array<i64: 1, 64, 2>}]} {
    %c0 = arith.constant 0 : index
    %c0_0 = arith.constant 0 : index
    %c0_1 = arith.constant 0 : index
    %0 = vector.load %arg1[%c0, %c0_0, %c0_1] : memref<1x80x96xbf16, #tpu.memory_space<vmem>>, vector<1x64x96xbf16>
    %1 = vector.shape_cast %0 : vector<1x64x96xbf16> to vector<64x96xbf16>
    %c0_2 = arith.constant 0 : index
    %c0_3 = arith.constant 0 : index
    %c0_4 = arith.constant 0 : index
    %2 = vector.load %arg2[%c0_2, %c0_3, %c0_4] : memref<3x96x32xbf16, #tpu.memory_space<vmem>>, vector<1x96x32xbf16>
    %3 = vector.shape_cast %2 : vector<1x96x32xbf16> to vector<96x32xbf16>
    %cst = arith.constant dense<0.000000e+00> : vector<64x32xf32>
    %4 = tpu.matmul %1, %3, %cst {dimension_numbers = #tpu.dot_dimension_numbers<[1], [0], [0], [1], [0, 0, 1, 1], [], []>} : vector<64x96xbf16>, vector<96x32xbf16>, vector<64x32xf32> -> vector<64x32xf32>
    %c0_5 = arith.constant 0 : index
    %c8 = arith.constant 8 : index
    %c0_6 = arith.constant 0 : index
    %5 = vector.load %arg1[%c0_5, %c8, %c0_6] : memref<1x80x96xbf16, #tpu.memory_space<vmem>>, vector<1x64x96xbf16>
    %6 = vector.shape_cast %5 : vector<1x64x96xbf16> to vector<64x96xbf16>
    %c1 = arith.constant 1 : index
    %c0_7 = arith.constant 0 : index
    %c0_8 = arith.constant 0 : index
    %7 = vector.load %arg2[%c1, %c0_7, %c0_8] : memref<3x96x32xbf16, #tpu.memory_space<vmem>>, vector<1x96x32xbf16>
    %8 = vector.shape_cast %7 : vector<1x96x32xbf16> to vector<96x32xbf16>
    %cst_9 = arith.constant dense<0.000000e+00> : vector<64x32xf32>
    %9 = tpu.matmul %6, %8, %cst_9 {dimension_numbers = #tpu.dot_dimension_numbers<[1], [0], [0], [1], [0, 0, 1, 1], [], []>} : vector<64x96xbf16>, vector<96x32xbf16>, vector<64x32xf32> -> vector<64x32xf32>
    %10 = arith.addf %4, %9 : vector<64x32xf32>
    %c0_10 = arith.constant 0 : index
    %c16 = arith.constant 16 : index
    %c0_11 = arith.constant 0 : index
    %11 = vector.load %arg1[%c0_10, %c16, %c0_11] : memref<1x80x96xbf16, #tpu.memory_space<vmem>>, vector<1x64x96xbf16>
    %12 = vector.shape_cast %11 : vector<1x64x96xbf16> to vector<64x96xbf16>
    %c2 = arith.constant 2 : index
    %c0_12 = arith.constant 0 : index
    %c0_13 = arith.constant 0 : index
    %13 = vector.load %arg2[%c2, %c0_12, %c0_13] : memref<3x96x32xbf16, #tpu.memory_space<vmem>>, vector<1x96x32xbf16>
    %14 = vector.shape_cast %13 : vector<1x96x32xbf16> to vector<96x32xbf16>
    %cst_14 = arith.constant dense<0.000000e+00> : vector<64x32xf32>
    %15 = tpu.matmul %12, %14, %cst_14 {dimension_numbers = #tpu.dot_dimension_numbers<[1], [0], [0], [1], [0, 0, 1, 1], [], []>} : vector<64x96xbf16>, vector<96x32xbf16>, vector<64x32xf32> -> vector<64x32xf32>
    %16 = arith.addf %10, %15 : vector<64x32xf32>
    %c0_15 = arith.constant 0 : index
    %c0_16 = arith.constant 0 : index
    %17 = vector.load %arg3[%c0_15, %c0_16] : memref<1x32xf32, #tpu.memory_space<vmem>>, vector<1x32xf32>
    %18 = vector.broadcast %17 : vector<1x32xf32> to vector<64x32xf32>
    %19 = arith.addf %16, %18 : vector<64x32xf32>
    %cst_17 = arith.constant 0.000000e+00 : f32
    %20 = vector.broadcast %cst_17 : f32 to vector<64x32xf32>
    %21 = arith.maximumf %19, %20 : vector<64x32xf32>
    %22 = arith.truncf %21 : vector<64x32xf32> to vector<64x32xbf16>
    %c0_18 = arith.constant 0 : index
    %c0_19 = arith.constant 0 : index
    %23 = vector.load %arg4[%c0_18, %c0_19] : memref<32x2xbf16, #tpu.memory_space<vmem>>, vector<32x2xbf16>
    %cst_20 = arith.constant dense<0.000000e+00> : vector<64x2xf32>
    %24 = tpu.matmul %22, %23, %cst_20 {dimension_numbers = #tpu.dot_dimension_numbers<[1], [0], [0], [1], [0, 0, 1, 1], [], []>} : vector<64x32xbf16>, vector<32x2xbf16>, vector<64x2xf32> -> vector<64x2xf32>
    %c0_21 = arith.constant 0 : index
    %c0_22 = arith.constant 0 : index
    %25 = vector.load %arg5[%c0_21, %c0_22] : memref<1x2xf32, #tpu.memory_space<vmem>>, vector<1x2xf32>
    %26 = vector.broadcast %25 : vector<1x2xf32> to vector<64x2xf32>
    %27 = arith.addf %24, %26 : vector<64x2xf32>
    %c0_23 = arith.constant 0 : index
    %c0_24 = arith.constant 0 : index
    %c0_25 = arith.constant 0 : index
    %28 = vector.load %arg6[%c0_23, %c0_24, %c0_25] : memref<1x64x2xf32, #tpu.memory_space<vmem>>, vector<1x64x2xf32>
    %29 = vector.shape_cast %28 : vector<1x64x2xf32> to vector<64x2xf32>
    %30 = vector.shape_cast %27 : vector<64x2xf32> to vector<1x64x2xf32>
    tpu.vector_store %arg6[%c0_23, %c0_24, %c0_25], %30 {strides = array<i32>} : memref<1x64x2xf32, #tpu.memory_space<vmem>>, vector<1x64x2xf32>,
    return
  }
  func.func @transform_0(%arg0: i32) -> (i32, i32, i32) {
    %c0_i32 = arith.constant 0 : i32
    %c0_i32_0 = arith.constant 0 : i32
    %c0_i32_1 = arith.constant 0 : i32
    return %arg0, %c0_i32, %c0_i32_0 : i32, i32, i32
  }
  func.func @transform_1(%arg0: i32) -> (i32, i32, i32) {
    %c0_i32 = arith.constant 0 : i32
    %c0_i32_0 = arith.constant 0 : i32
    %c0_i32_1 = arith.constant 0 : i32
    %c0_i32_2 = arith.constant 0 : i32
    return %c0_i32, %c0_i32_0, %c0_i32_1 : i32, i32, i32
  }
  func.func @transform_2(%arg0: i32) -> (i32, i32) {
    %c0_i32 = arith.constant 0 : i32
    %c0_i32_0 = arith.constant 0 : i32
    %c0_i32_1 = arith.constant 0 : i32
    return %c0_i32, %c0_i32_0 : i32, i32
  }
  func.func @transform_3(%arg0: i32) -> (i32, i32) {
    %c0_i32 = arith.constant 0 : i32
    %c0_i32_0 = arith.constant 0 : i32
    %c0_i32_1 = arith.constant 0 : i32
    return %c0_i32, %c0_i32_0 : i32, i32
  }
  func.func @transform_4(%arg0: i32) -> (i32, i32) {
    %c0_i32 = arith.constant 0 : i32
    %c0_i32_0 = arith.constant 0 : i32
    %c0_i32_1 = arith.constant 0 : i32
    return %c0_i32, %c0_i32_0 : i32, i32
  }
  func.func @transform_5(%arg0: i32) -> (i32, i32, i32) {
    %c0_i32 = arith.constant 0 : i32
    %c0_i32_0 = arith.constant 0 : i32
    %c0_i32_1 = arith.constant 0 : i32
    return %arg0, %c0_i32, %c0_i32_0 : i32, i32, i32
  }
}

module attributes {stable_mosaic.version = 11 : i64} {
  func.func @_conv1x1_multi_kernel(%arg0: i32, %arg1: i32, %arg2: memref<1x64x32xbf16, #tpu.memory_space<vmem>>, %arg3: memref<32x16xbf16, #tpu.memory_space<vmem>>, %arg4: memref<1x1x16xf32, #tpu.memory_space<vmem>>, %arg5: memref<1x64x16xf32, #tpu.memory_space<vmem>>) attributes {dimension_semantics = [#tpu.dimension_semantics<parallel>, #tpu.dimension_semantics<parallel>], iteration_bounds = array<i64: 2, 1>, scalar_prefetch = 0 : i64, scratch_operands = 0 : i64, tpu.core_type = #tpu.core_type<tc>, window_params = [{transform_indices = @transform_0, window_bounds = array<i64: 1, 64, 32>}, {pipeline_mode = #tpu.pipeline_mode<synchronous>, transform_indices = @transform_1, window_bounds = array<i64: 32, 16>}, {transform_indices = @transform_2, window_bounds = array<i64: 1, 1, 16>}, {transform_indices = @transform_3, window_bounds = array<i64: 1, 64, 16>}]} {
    %c0 = arith.constant 0 : index
    %c0_0 = arith.constant 0 : index
    %c0_1 = arith.constant 0 : index
    %0 = vector.load %arg2[%c0, %c0_0, %c0_1] : memref<1x64x32xbf16, #tpu.memory_space<vmem>>, vector<1x64x32xbf16>
    %1 = vector.shape_cast %0 : vector<1x64x32xbf16> to vector<64x32xbf16>
    %c0_2 = arith.constant 0 : index
    %c0_3 = arith.constant 0 : index
    %2 = vector.load %arg3[%c0_2, %c0_3] : memref<32x16xbf16, #tpu.memory_space<vmem>>, vector<32x16xbf16>
    %cst = arith.constant dense<0.000000e+00> : vector<64x16xf32>
    %3 = tpu.matmul %1, %2, %cst {dimension_numbers = #tpu.dot_dimension_numbers<[1], [0], [0], [1], [0, 0, 1, 1], [], []>} : vector<64x32xbf16>, vector<32x16xbf16>, vector<64x16xf32> -> vector<64x16xf32>
    %c0_4 = arith.constant 0 : index
    %c0_5 = arith.constant 0 : index
    %c0_6 = arith.constant 0 : index
    %4 = vector.load %arg4[%c0_4, %c0_5, %c0_6] : memref<1x1x16xf32, #tpu.memory_space<vmem>>, vector<1x1x16xf32>
    %5 = vector.shape_cast %4 : vector<1x1x16xf32> to vector<1x16xf32>
    %6 = vector.broadcast %5 : vector<1x16xf32> to vector<64x16xf32>
    %7 = arith.addf %3, %6 : vector<64x16xf32>
    %c0_7 = arith.constant 0 : index
    %c0_8 = arith.constant 0 : index
    %c0_9 = arith.constant 0 : index
    %8 = vector.load %arg5[%c0_7, %c0_8, %c0_9] : memref<1x64x16xf32, #tpu.memory_space<vmem>>, vector<1x64x16xf32>
    %9 = vector.shape_cast %8 : vector<1x64x16xf32> to vector<64x16xf32>
    %10 = vector.shape_cast %7 : vector<64x16xf32> to vector<1x64x16xf32>
    tpu.vector_store %arg5[%c0_7, %c0_8, %c0_9], %10 {strides = array<i32>} : memref<1x64x16xf32, #tpu.memory_space<vmem>>, vector<1x64x16xf32>,
    return
  }
  func.func @transform_0(%arg0: i32, %arg1: i32) -> (i32, i32, i32) {
    %c0_i32 = arith.constant 0 : i32
    %c0_i32_0 = arith.constant 0 : i32
    return %arg0, %arg1, %c0_i32 : i32, i32, i32
  }
  func.func @transform_1(%arg0: i32, %arg1: i32) -> (i32, i32) {
    %c0_i32 = arith.constant 0 : i32
    %c0_i32_0 = arith.constant 0 : i32
    %c0_i32_1 = arith.constant 0 : i32
    return %c0_i32, %c0_i32_0 : i32, i32
  }
  func.func @transform_2(%arg0: i32, %arg1: i32) -> (i32, i32, i32) {
    %c0_i32 = arith.constant 0 : i32
    %c0_i32_0 = arith.constant 0 : i32
    %c0_i32_1 = arith.constant 0 : i32
    return %arg0, %c0_i32, %c0_i32_0 : i32, i32, i32
  }
  func.func @transform_3(%arg0: i32, %arg1: i32) -> (i32, i32, i32) {
    %c0_i32 = arith.constant 0 : i32
    %c0_i32_0 = arith.constant 0 : i32
    return %arg0, %arg1, %c0_i32 : i32, i32, i32
  }
}

module attributes {stable_mosaic.version = 11 : i64} {
  func.func @_gram_frob_kernel(%arg0: i32, %arg1: i32, %arg2: memref<1x64x16xf32, #tpu.memory_space<vmem>>, %arg3: memref<1x64x16xf32, #tpu.memory_space<vmem>>, %arg4: memref<1x1x1xf32, #tpu.memory_space<vmem>>, %arg5: memref<16x16xf32, #tpu.memory_space<vmem>>, %arg6: memref<16x16xf32, #tpu.memory_space<vmem>>) attributes {dimension_semantics = [#tpu.dimension_semantics<parallel>, #tpu.dimension_semantics<arbitrary>], iteration_bounds = array<i64: 2, 1>, scalar_prefetch = 0 : i64, scratch_operands = 2 : i64, tpu.core_type = #tpu.core_type<tc>, window_params = [{transform_indices = @transform_0, window_bounds = array<i64: 1, 64, 16>}, {transform_indices = @transform_1, window_bounds = array<i64: 1, 64, 16>}, {transform_indices = @transform_2, window_bounds = array<i64: 1, 1, 1>}]} {
    %c0_i32 = arith.constant 0 : i32
    %0 = arith.cmpi eq, %arg1, %c0_i32 : i32
    %1 = arith.extui %0 : i1 to i32
    %c0_i32_0 = arith.constant 0 : i32
    %2 = arith.cmpi ne, %1, %c0_i32_0 : i32
    scf.if %2 {
      %cst_23 = arith.constant 0.000000e+00 : f32
      %22 = vector.broadcast %cst_23 : f32 to vector<16x16xf32>
      %c0_24 = arith.constant 0 : index
      %c0_25 = arith.constant 0 : index
      %23 = vector.load %arg5[%c0_24, %c0_25] : memref<16x16xf32, #tpu.memory_space<vmem>>, vector<16x16xf32>
      tpu.vector_store %arg5[%c0_24, %c0_25], %22 {strides = array<i32>} : memref<16x16xf32, #tpu.memory_space<vmem>>, vector<16x16xf32>,
      %cst_26 = arith.constant 0.000000e+00 : f32
      %24 = vector.broadcast %cst_26 : f32 to vector<16x16xf32>
      %c0_27 = arith.constant 0 : index
      %c0_28 = arith.constant 0 : index
      %25 = vector.load %arg6[%c0_27, %c0_28] : memref<16x16xf32, #tpu.memory_space<vmem>>, vector<16x16xf32>
      tpu.vector_store %arg6[%c0_27, %c0_28], %24 {strides = array<i32>} : memref<16x16xf32, #tpu.memory_space<vmem>>, vector<16x16xf32>,
    } else {
    }
    %c0 = arith.constant 0 : index
    %c0_1 = arith.constant 0 : index
    %3 = vector.load %arg5[%c0, %c0_1] : memref<16x16xf32, #tpu.memory_space<vmem>>, vector<16x16xf32>
    %c0_2 = arith.constant 0 : index
    %c0_3 = arith.constant 0 : index
    %c0_4 = arith.constant 0 : index
    %4 = vector.load %arg2[%c0_2, %c0_3, %c0_4] : memref<1x64x16xf32, #tpu.memory_space<vmem>>, vector<1x64x16xf32>
    %5 = vector.shape_cast %4 : vector<1x64x16xf32> to vector<64x16xf32>
    %c0_5 = arith.constant 0 : index
    %c0_6 = arith.constant 0 : index
    %c0_7 = arith.constant 0 : index
    %6 = vector.load %arg2[%c0_5, %c0_6, %c0_7] : memref<1x64x16xf32, #tpu.memory_space<vmem>>, vector<1x64x16xf32>
    %7 = vector.shape_cast %6 : vector<1x64x16xf32> to vector<64x16xf32>
    %cst = arith.constant dense<0.000000e+00> : vector<16x16xf32>
    %8 = tpu.matmul %5, %7, %cst {dimension_numbers = #tpu.dot_dimension_numbers<[0], [0], [1], [1], [0, 1, 1, 1], [], []>} : vector<64x16xf32>, vector<64x16xf32>, vector<16x16xf32> -> vector<16x16xf32>
    %9 = arith.addf %3, %8 : vector<16x16xf32>
    %c0_8 = arith.constant 0 : index
    %c0_9 = arith.constant 0 : index
    %10 = vector.load %arg5[%c0_8, %c0_9] : memref<16x16xf32, #tpu.memory_space<vmem>>, vector<16x16xf32>
    tpu.vector_store %arg5[%c0_8, %c0_9], %9 {strides = array<i32>} : memref<16x16xf32, #tpu.memory_space<vmem>>, vector<16x16xf32>,
    %c0_10 = arith.constant 0 : index
    %c0_11 = arith.constant 0 : index
    %11 = vector.load %arg6[%c0_10, %c0_11] : memref<16x16xf32, #tpu.memory_space<vmem>>, vector<16x16xf32>
    %c0_12 = arith.constant 0 : index
    %c0_13 = arith.constant 0 : index
    %c0_14 = arith.constant 0 : index
    %12 = vector.load %arg3[%c0_12, %c0_13, %c0_14] : memref<1x64x16xf32, #tpu.memory_space<vmem>>, vector<1x64x16xf32>
    %13 = vector.shape_cast %12 : vector<1x64x16xf32> to vector<64x16xf32>
    %c0_15 = arith.constant 0 : index
    %c0_16 = arith.constant 0 : index
    %c0_17 = arith.constant 0 : index
    %14 = vector.load %arg3[%c0_15, %c0_16, %c0_17] : memref<1x64x16xf32, #tpu.memory_space<vmem>>, vector<1x64x16xf32>
    %15 = vector.shape_cast %14 : vector<1x64x16xf32> to vector<64x16xf32>
    %cst_18 = arith.constant dense<0.000000e+00> : vector<16x16xf32>
    %16 = tpu.matmul %13, %15, %cst_18 {dimension_numbers = #tpu.dot_dimension_numbers<[0], [0], [1], [1], [0, 1, 1, 1], [], []>} : vector<64x16xf32>, vector<64x16xf32>, vector<16x16xf32> -> vector<16x16xf32>
    %17 = arith.addf %11, %16 : vector<16x16xf32>
    %c0_19 = arith.constant 0 : index
    %c0_20 = arith.constant 0 : index
    %18 = vector.load %arg6[%c0_19, %c0_20] : memref<16x16xf32, #tpu.memory_space<vmem>>, vector<16x16xf32>
    tpu.vector_store %arg6[%c0_19, %c0_20], %17 {strides = array<i32>} : memref<16x16xf32, #tpu.memory_space<vmem>>, vector<16x16xf32>,
    %c0_i32_21 = arith.constant 0 : i32
    %19 = arith.cmpi eq, %arg1, %c0_i32_21 : i32
    %20 = arith.extui %19 : i1 to i32
    %c0_i32_22 = arith.constant 0 : i32
    %21 = arith.cmpi ne, %20, %c0_i32_22 : i32
    scf.if %21 {
      %22 = tpu.iota {dimensions = array<i32: 0>} : vector<16x16xi32>
      %23 = tpu.iota {dimensions = array<i32: 1>} : vector<16x16xi32>
      %24 = arith.cmpi eq, %22, %23 : vector<16x16xi32>
      %25 = arith.extui %24 : vector<16x16xi1> to vector<16x16xi32>
      %26 = arith.sitofp %25 : vector<16x16xi32> to vector<16x16xf32>
      %c0_23 = arith.constant 0 : index
      %c0_24 = arith.constant 0 : index
      %27 = vector.load %arg5[%c0_23, %c0_24] : memref<16x16xf32, #tpu.memory_space<vmem>>, vector<16x16xf32>
      %28 = arith.mulf %27, %26 : vector<16x16xf32>
      %cst_25 = arith.constant dense<0.000000e+00> : vector<16xf32>
      %29 = vector.multi_reduction <add>, %28, %cst_25 [1] : vector<16x16xf32> to vector<16xf32>
      %30 = vector.shape_cast %29 : vector<16xf32> to vector<16x1xf32>
      %31 = math.sqrt %30 : vector<16x1xf32>
      %32 = arith.mulf %27, %26 : vector<16x16xf32>
      %cst_26 = arith.constant dense<0.000000e+00> : vector<16xf32>
      %33 = vector.multi_reduction <add>, %32, %cst_26 [0] : vector<16x16xf32> to vector<16xf32>
      %34 = vector.shape_cast %33 : vector<16xf32> to vector<1x16xf32>
      %35 = math.sqrt %34 : vector<1x16xf32>
      %36 = vector.broadcast %31 : vector<16x1xf32> to vector<16x16xf32>
      %37 = vector.broadcast %35 : vector<1x16xf32> to vector<16x16xf32>
      %38 = arith.mulf %36, %37 : vector<16x16xf32>
      %cst_27 = arith.constant 1.000000e-07 : f32
      %39 = vector.broadcast %cst_27 : f32 to vector<16x16xf32>
      %40 = arith.addf %38, %39 : vector<16x16xf32>
      %41 = arith.divf %27, %40 : vector<16x16xf32>
      %c0_28 = arith.constant 0 : index
      %c0_29 = arith.constant 0 : index
      %42 = vector.load %arg6[%c0_28, %c0_29] : memref<16x16xf32, #tpu.memory_space<vmem>>, vector<16x16xf32>
      %43 = arith.mulf %42, %26 : vector<16x16xf32>
      %cst_30 = arith.constant dense<0.000000e+00> : vector<16xf32>
      %44 = vector.multi_reduction <add>, %43, %cst_30 [1] : vector<16x16xf32> to vector<16xf32>
      %45 = vector.shape_cast %44 : vector<16xf32> to vector<16x1xf32>
      %46 = math.sqrt %45 : vector<16x1xf32>
      %47 = arith.mulf %42, %26 : vector<16x16xf32>
      %cst_31 = arith.constant dense<0.000000e+00> : vector<16xf32>
      %48 = vector.multi_reduction <add>, %47, %cst_31 [0] : vector<16x16xf32> to vector<16xf32>
      %49 = vector.shape_cast %48 : vector<16xf32> to vector<1x16xf32>
      %50 = math.sqrt %49 : vector<1x16xf32>
      %51 = vector.broadcast %46 : vector<16x1xf32> to vector<16x16xf32>
      %52 = vector.broadcast %50 : vector<1x16xf32> to vector<16x16xf32>
      %53 = arith.mulf %51, %52 : vector<16x16xf32>
      %cst_32 = arith.constant 1.000000e-07 : f32
      %54 = vector.broadcast %cst_32 : f32 to vector<16x16xf32>
      %55 = arith.addf %53, %54 : vector<16x16xf32>
      %56 = arith.divf %42, %55 : vector<16x16xf32>
      %57 = arith.subf %41, %56 : vector<16x16xf32>
      %58 = arith.mulf %57, %57 : vector<16x16xf32>
      %59 = vector.shape_cast %58 : vector<16x16xf32> to vector<1x16x16xf32>
      %cst_33 = arith.constant dense<0.000000e+00> : vector<1xf32>
      %60 = vector.multi_reduction <add>, %59, %cst_33 [1, 2] : vector<1x16x16xf32> to vector<1xf32>
      %61 = vector.shape_cast %60 : vector<1xf32> to vector<1x1x1xf32>
      %62 = vector.extract %61[0, 0, 0] : f32 from vector<1x1x1xf32>
      %63 = vector.broadcast %62 : f32 to vector<1x1xf32>
      %64 = math.sqrt %63 : vector<1x1xf32>
      %c0_34 = arith.constant 0 : index
      %c0_35 = arith.constant 0 : index
      %c0_36 = arith.constant 0 : index
      %65 = vector.load %arg4[%c0_34, %c0_35, %c0_36] : memref<1x1x1xf32, #tpu.memory_space<vmem>>, vector<1x1x1xf32>
      %66 = vector.shape_cast %65 : vector<1x1x1xf32> to vector<1x1xf32>
      %67 = vector.shape_cast %64 : vector<1x1xf32> to vector<1x1x1xf32>
      tpu.vector_store %arg4[%c0_34, %c0_35, %c0_36], %67 {strides = array<i32>} : memref<1x1x1xf32, #tpu.memory_space<vmem>>, vector<1x1x1xf32>,
    } else {
    }
    return
  }
  func.func @transform_0(%arg0: i32, %arg1: i32) -> (i32, i32, i32) {
    %c0_i32 = arith.constant 0 : i32
    %c0_i32_0 = arith.constant 0 : i32
    return %arg0, %arg1, %c0_i32 : i32, i32, i32
  }
  func.func @transform_1(%arg0: i32, %arg1: i32) -> (i32, i32, i32) {
    %c0_i32 = arith.constant 0 : i32
    %c0_i32_0 = arith.constant 0 : i32
    return %arg0, %arg1, %c0_i32 : i32, i32, i32
  }
  func.func @transform_2(%arg0: i32, %arg1: i32) -> (i32, i32, i32) {
    %c0_i32 = arith.constant 0 : i32
    %c0_i32_0 = arith.constant 0 : i32
    %c0_i32_1 = arith.constant 0 : i32
    return %arg0, %c0_i32, %c0_i32_0 : i32, i32, i32
  }
}

module attributes {stable_mosaic.version = 11 : i64} {
  func.func @_epilogue_kernel(%arg0: i32, %arg1: i32, %arg2: memref<2xf32, #tpu.memory_space<smem>>, %arg3: memref<2xf32, #tpu.memory_space<smem>>, %arg4: memref<2xf32, #tpu.memory_space<smem>>, %arg5: memref<1x64x2xf32, #tpu.memory_space<vmem>>, %arg6: memref<1x64x16xf32, #tpu.memory_space<vmem>>, %arg7: memref<1x64x1xi32, #tpu.memory_space<vmem>>) attributes {dimension_semantics = [#tpu.dimension_semantics<parallel>, #tpu.dimension_semantics<parallel>], iteration_bounds = array<i64: 2, 1>, scalar_prefetch = 0 : i64, scratch_operands = 0 : i64, tpu.core_type = #tpu.core_type<tc>, window_params = [{transform_indices = @transform_0, window_bounds = array<i64: 2>}, {transform_indices = @transform_1, window_bounds = array<i64: 2>}, {transform_indices = @transform_2, window_bounds = array<i64: 2>}, {transform_indices = @transform_3, window_bounds = array<i64: 1, 64, 2>}, {transform_indices = @transform_4, window_bounds = array<i64: 1, 64, 16>}, {transform_indices = @transform_5, window_bounds = array<i64: 1, 64, 1>}]} {
    %c0 = arith.constant 0 : index
    %c0_0 = arith.constant 0 : index
    %c0_1 = arith.constant 0 : index
    %0 = vector.load %arg5[%c0, %c0_0, %c0_1] : memref<1x64x2xf32, #tpu.memory_space<vmem>>, vector<1x64x2xf32>
    %1 = vector.shape_cast %0 : vector<1x64x2xf32> to vector<64x2xf32>
    %cst = arith.constant dense<0xFF800000> : vector<64xf32>
    %2 = vector.multi_reduction <maximumf>, %1, %cst [1] : vector<64x2xf32> to vector<64xf32>
    %3 = vector.shape_cast %2 : vector<64xf32> to vector<64x1xf32>
    %4 = vector.broadcast %3 : vector<64x1xf32> to vector<64x2xf32>
    %5 = arith.subf %1, %4 : vector<64x2xf32>
    %6 = math.exp %5 : vector<64x2xf32>
    %cst_2 = arith.constant dense<0.000000e+00> : vector<64xf32>
    %7 = vector.multi_reduction <add>, %6, %cst_2 [1] : vector<64x2xf32> to vector<64xf32>
    %8 = vector.shape_cast %7 : vector<64xf32> to vector<64x1xf32>
    %9 = vector.broadcast %8 : vector<64x1xf32> to vector<64x2xf32>
    %10 = arith.divf %6, %9 : vector<64x2xf32>
    %c0_3 = arith.constant 0 : index
    %c0_4 = arith.constant 0 : index
    %c0_5 = arith.constant 0 : index
    %11 = vector.load %arg6[%c0_3, %c0_4, %c0_5] : memref<1x64x16xf32, #tpu.memory_space<vmem>>, vector<1x64x16xf32>
    %12 = vector.shape_cast %11 : vector<1x64x16xf32> to vector<64x16xf32>
    %cst_6 = arith.constant dense<0xFF800000> : vector<64xf32>
    %13 = vector.multi_reduction <maximumf>, %12, %cst_6 [1] : vector<64x16xf32> to vector<64xf32>
    %14 = vector.shape_cast %13 : vector<64xf32> to vector<64x1xf32>
    %15 = vector.broadcast %14 : vector<64x1xf32> to vector<64x16xf32>
    %16 = arith.subf %12, %15 : vector<64x16xf32>
    %17 = math.exp %16 : vector<64x16xf32>
    %cst_7 = arith.constant dense<0.000000e+00> : vector<64xf32>
    %18 = vector.multi_reduction <add>, %17, %cst_7 [1] : vector<64x16xf32> to vector<64xf32>
    %19 = vector.shape_cast %18 : vector<64xf32> to vector<64x1xf32>
    %20 = vector.broadcast %19 : vector<64x1xf32> to vector<64x16xf32>
    %21 = arith.divf %17, %20 : vector<64x16xf32>
    %22 = vector.extract_strided_slice %10 {offsets = [0, 0], sizes = [64, 1], strides = [1, 1]} : vector<64x2xf32> to vector<64x1xf32>
    %23 = vector.extract_strided_slice %10 {offsets = [0, 1], sizes = [64, 1], strides = [1, 1]} : vector<64x2xf32> to vector<64x1xf32>
    %24 = vector.extract_strided_slice %21 {offsets = [0, 1], sizes = [64, 15], strides = [1, 1]} : vector<64x16xf32> to vector<64x15xf32>
    %cst_8 = arith.constant dense<0.000000e+00> : vector<64xf32>
    %25 = vector.multi_reduction <add>, %24, %cst_8 [1] : vector<64x15xf32> to vector<64xf32>
    %26 = vector.shape_cast %25 : vector<64xf32> to vector<64x1xf32>
    %27 = arith.index_cast %arg0 : i32 to index
    %28 = memref.load %arg4[%27] : memref<2xf32, #tpu.memory_space<smem>>
    %c0_9 = arith.constant 0 : index
    %29 = memref.load %arg2[%c0_9] : memref<2xf32, #tpu.memory_space<smem>>
    %c1 = arith.constant 1 : index
    %30 = memref.load %arg2[%c1] : memref<2xf32, #tpu.memory_space<smem>>
    %c0_10 = arith.constant 0 : index
    %31 = memref.load %arg3[%c0_10] : memref<2xf32, #tpu.memory_space<smem>>
    %c1_11 = arith.constant 1 : index
    %32 = memref.load %arg3[%c1_11] : memref<2xf32, #tpu.memory_space<smem>>
    %33 = vector.broadcast %29 : f32 to vector<64x1xf32>
    %34 = arith.mulf %33, %22 : vector<64x1xf32>
    %35 = arith.mulf %30, %28 : f32
    %36 = vector.broadcast %35 : f32 to vector<64x1xf32>
    %37 = arith.addf %34, %36 : vector<64x1xf32>
    %38 = vector.broadcast %29 : f32 to vector<64x1xf32>
    %39 = arith.mulf %38, %23 : vector<64x1xf32>
    %40 = arith.mulf %30, %28 : f32
    %41 = vector.broadcast %40 : f32 to vector<64x1xf32>
    %42 = arith.addf %39, %41 : vector<64x1xf32>
    %43 = vector.broadcast %31 : f32 to vector<64x1xf32>
    %44 = arith.mulf %43, %37 : vector<64x1xf32>
    %45 = vector.broadcast %32 : f32 to vector<64x1xf32>
    %46 = arith.mulf %45, %26 : vector<64x1xf32>
    %47 = arith.addf %44, %46 : vector<64x1xf32>
    %48 = arith.cmpf ogt, %42, %47 : vector<64x1xf32>
    %49 = arith.extui %48 : vector<64x1xi1> to vector<64x1xi32>
    %c0_12 = arith.constant 0 : index
    %c0_13 = arith.constant 0 : index
    %c0_14 = arith.constant 0 : index
    %50 = vector.load %arg7[%c0_12, %c0_13, %c0_14] : memref<1x64x1xi32, #tpu.memory_space<vmem>>, vector<1x64x1xi32>
    %51 = vector.shape_cast %50 : vector<1x64x1xi32> to vector<64x1xi32>
    %52 = vector.shape_cast %49 : vector<64x1xi32> to vector<1x64x1xi32>
    tpu.vector_store %arg7[%c0_12, %c0_13, %c0_14], %52 {strides = array<i32>} : memref<1x64x1xi32, #tpu.memory_space<vmem>>, vector<1x64x1xi32>,
    return
  }
  func.func @transform_0(%arg0: i32, %arg1: i32) -> i32 {
    %c0_i32 = arith.constant 0 : i32
    %c0_i32_0 = arith.constant 0 : i32
    return %c0_i32 : i32
  }
  func.func @transform_1(%arg0: i32, %arg1: i32) -> i32 {
    %c0_i32 = arith.constant 0 : i32
    %c0_i32_0 = arith.constant 0 : i32
    return %c0_i32 : i32
  }
  func.func @transform_2(%arg0: i32, %arg1: i32) -> i32 {
    %c0_i32 = arith.constant 0 : i32
    %c0_i32_0 = arith.constant 0 : i32
    return %c0_i32 : i32
  }
  func.func @transform_3(%arg0: i32, %arg1: i32) -> (i32, i32, i32) {
    %c0_i32 = arith.constant 0 : i32
    %c0_i32_0 = arith.constant 0 : i32
    return %arg0, %arg1, %c0_i32 : i32, i32, i32
  }
  func.func @transform_4(%arg0: i32, %arg1: i32) -> (i32, i32, i32) {
    %c0_i32 = arith.constant 0 : i32
    %c0_i32_0 = arith.constant 0 : i32
    return %arg0, %arg1, %c0_i32 : i32, i32, i32
  }
  func.func @transform_5(%arg0: i32, %arg1: i32) -> (i32, i32, i32) {
    %c0_i32 = arith.constant 0 : i32
    %c0_i32_0 = arith.constant 0 : i32
    return %arg0, %arg1, %c0_i32 : i32, i32, i32
  }
}

</mosaic_0001>

<llo_original>
// kernel: one_model_forward.14
$region0: #{one_model_forward.14}
  #allocation0 [shape = 'u32[]', space=smem, size = 0x4, offset = 0x4, fixed_abs, tag = 'smem constant byte address 0x4 - core index']
  #allocation1 [shape = 'u32[144,128]{1,0:T(1,128)}', space=vmem, size = 0x12000, scoped, tag = 'internal scratch']
  #allocation2 [shape = 'f32[1,32]{1,0:T(1,128)}', space=vmem, size = 0x200, scoped, tag = 'scratch operand']
  #allocation3 [shape = 'f32[1,1]{1,0:T(1,128)}', space=vmem, size = 0x200, scoped, tag = 'scratch operand']
  #allocation4 [shape = 'f32[1,32]{1,0:T(1,128)}', space=vmem, size = 0x200, scoped, tag = 'scratch operand']
  %s0 = inlined_call_operand.vmem [shape: bf16[2,64,32], index: 0, kind: input, shape index: {}]
  %s1 = inlined_call_operand.vmem [shape: bf16[2,64,16], index: 1, kind: input, shape index: {}]
  %s2 = inlined_call_operand.vmem [shape: bf16[32,32], index: 2, kind: input, shape index: {}]
  %s3 = inlined_call_operand.vmem [shape: bf16[16,32], index: 3, kind: input, shape index: {}]
  %s4 = inlined_call_operand.vmem [shape: f32[2,64,1], index: 4, kind: input, shape index: {}]
  %s5 = inlined_call_operand.vmem [shape: f32[2,64,1], index: 5, kind: input, shape index: {}]
  %s6 = inlined_call_operand.vmem [shape: bf16[2,64,32], index: 6, kind: output, shape index: {0}]
  %s7 = inlined_call_operand.vmem [shape: f32[2,1,32], index: 7, kind: output, shape index: {1}]
  %s8 = inlined_call_operand.vmem [shape: f32[2,1,1], index: 8, kind: output, shape index: {2}]
  %s9 = inlined_call_operand.vmem [shape: f32[2,1,32], index: 9, kind: output, shape index: {3}]
  %10 = xla_tuple %s6, %s7, %s8, %s9
  %s11 = sld [smem:[#allocation0]]
  $region89: #{one_model_forward.14} parent=0
    _
  %s13 = ssub.s32 1, %s11
  %s14 = scalar_select 0, %s13, %s11
  loop: start=0, step=1, limit=4
  $region2: #{one_model_forward.14} parent=0 // loop_pre_header
    _
  $region3: #{one_model_forward.14} parent=0 // loop_header
    %s16 = sphi 0, %s20
    %p17 = scmp.ge.s32.totalorder %s16, 4
    %s23 = sphi 0, %s35
    %s24 = sphi 0, %s31
    %s25 = sphi 0, %s23
    %s26 = sphi 0, %s24
    %s27 = sphi 0, %s25
    %s28 = sphi 0, %s26
    %s40 = sphi 0, %s42
    %s43 = sphi 0, %s40
    %s44 = sphi 0, %s43
    %s60 = sphi 0, %s44
    %s68 = sphi 0, %s70
    %s71 = sphi 0, %s68
    %s72 = sphi 0, %s71
    %s88 = sphi 0, %s72
    %s92 = sphi 0, %s92
    %s94 = sphi 0, %s92
    %s95 = sphi 0, %s94
    %s109 = sphi 0, %s95
    %s113 = sphi 0, %s113
    %s115 = sphi 0, %s113
    %s116 = sphi 0, %s115
    %s130 = sphi 0, %s116
    %s138 = sphi 0, %s140
    %s141 = sphi 0, %s138
    %s142 = sphi 0, %s141
    %s158 = sphi 0, %s142
    %s166 = sphi 0, %s168
    %s169 = sphi 0, %s166
    %s170 = sphi 0, %s169
    %s186 = sphi 0, %s170
    %s194 = sphi 0, %s196
    %s197 = sphi 0, %s194
    %s198 = sphi 0, %s197
    %s214 = sphi 0, %s198
    %s220 = sphi 0, %s222
    %s223 = sphi 0, %s220
    %s224 = sphi 0, %s223
    %s240 = sphi 0, %s224
    %s246 = sphi 0, %s248
    %s249 = sphi 0, %s246
    %s250 = sphi 0, %s249
    %s266 = sphi 0, %s250
    %s272 = sphi 0, %s274
    %s275 = sphi 0, %s272
    %s276 = sphi 0, %s275
    %s292 = sphi 0, %s276
  $region4: #{one_model_forward.14} parent=0 // loop_header_branch
    %19 = sbr.rel (%p17) target = $region8
  $region5: #{one_model_forward.14} parent=0 // loop_body
    %s21 = ssub.s32 %s16, 1
    %s22 = ssub.s32 %s16, 2
    %s29 = sadd.s32 1, %s24
    %p30 = scmp.ge.s32.totalorder %s29, 1
    %s31 = scalar_select %p30, 0, %s29
    %s32 = sadd.s32 1, %s23
    %s33 = scalar_select %p30, %s32, %s23
    %p34 = scmp.ge.s32.totalorder %s33, 2
    %s35 = scalar_select %p34, 0, %s33
    %s36 = ssub.s32 %s23, %s35
    %s37 = ssub.s32 %s24, %s31
    %s38 = sor.u32 %s36, %s37
    %p39 = scmp.eq.s32.totalorder %s38, 0
    %s41 = sadd.s32 %s40, 1
    %s42 = scalar_select %p39, %s40, %s41
    %p45 = pneg %p39
    %p46 = scmp.eq.s32.totalorder %s16, 1
    %p47 = por %p45, %p46
    %p48 = scmp.ne.s32.totalorder %s40, %s43
    %p49 = scmp.eq.s32.totalorder %s16, 0
    %p50 = por %p48, %p49
    %p51 = scmp.ne.s32.totalorder %s40, %s43
    %p52 = scmp.eq.s32.totalorder %s21, 1
    %p53 = por %p51, %p52
    %p54 = scmp.ne.s32.totalorder %s43, %s44
    %p55 = scmp.eq.s32.totalorder %s21, 0
    %p56 = por %p54, %p55
    %p57 = scmp.ne.s32.totalorder %s43, %s44
    %p58 = scmp.eq.s32.totalorder %s22, 1
    %p59 = por %p57, %p58
    %p61 = scmp.ne.s32.totalorder %s44, %s60
    %p62 = scmp.eq.s32.totalorder %s22, 0
    %p63 = por %p61, %p62
    %s64 = ssub.s32 %s23, %s35
    %s65 = ssub.s32 %s24, %s31
    %s66 = sor.u32 %s64, %s65
    %p67 = scmp.eq.s32.totalorder %s66, 0
    %s69 = sadd.s32 %s68, 1
    %s70 = scalar_select %p67, %s68, %s69
    %p73 = pneg %p67
    %p74 = scmp.eq.s32.totalorder %s16, 1
    %p75 = por %p73, %p74
    %p76 = scmp.ne.s32.totalorder %s68, %s71
    %p77 = scmp.eq.s32.totalorder %s16, 0
    %p78 = por %p76, %p77
    %p79 = scmp.ne.s32.totalorder %s68, %s71
    %p80 = scmp.eq.s32.totalorder %s21, 1
    %p81 = por %p79, %p80
    %p82 = scmp.ne.s32.totalorder %s71, %s72
    %p83 = scmp.eq.s32.totalorder %s21, 0
    %p84 = por %p82, %p83
    %p85 = scmp.ne.s32.totalorder %s71, %s72
    %p86 = scmp.eq.s32.totalorder %s22, 1
    %p87 = por %p85, %p86
    %p89 = scmp.ne.s32.totalorder %s72, %s88
    %p90 = scmp.eq.s32.totalorder %s22, 0
    %p91 = por %p89, %p90
    %s93 = sadd.s32 %s92, 1
    %p96 = scmp.eq.s32.totalorder %s16, 1
    %p97 = scmp.ne.s32.totalorder %s92, %s94
    %p98 = scmp.eq.s32.totalorder %s16, 0
    %p99 = por %p97, %p98
    %p100 = scmp.ne.s32.totalorder %s92, %s94
    %p101 = scmp.eq.s32.totalorder %s21, 1
    %p102 = por %p100, %p101
    %p103 = scmp.ne.s32.totalorder %s94, %s95
    %p104 = scmp.eq.s32.totalorder %s21, 0
    %p105 = por %p103, %p104
    %p106 = scmp.ne.s32.totalorder %s94, %s95
    %p107 = scmp.eq.s32.totalorder %s22, 1
    %p108 = por %p106, %p107
    %p110 = scmp.ne.s32.totalorder %s95, %s109
    %p111 = scmp.eq.s32.totalorder %s22, 0
    %p112 = por %p110, %p111
    %s114 = sadd.s32 %s113, 1
    %p117 = scmp.eq.s32.totalorder %s16, 1
    %p118 = scmp.ne.s32.totalorder %s113, %s115
    %p119 = scmp.eq.s32.totalorder %s16, 0
    %p120 = por %p118, %p119
    %p121 = scmp.ne.s32.totalorder %s113, %s115
    %p122 = scmp.eq.s32.totalorder %s21, 1
    %p123 = por %p121, %p122
    %p124 = scmp.ne.s32.totalorder %s115, %s116
    %p125 = scmp.eq.s32.totalorder %s21, 0
    %p126 = por %p124, %p125
    %p127 = scmp.ne.s32.totalorder %s115, %s116
    %p128 = scmp.eq.s32.totalorder %s22, 1
    %p129 = por %p127, %p128
    %p131 = scmp.ne.s32.totalorder %s116, %s130
    %p132 = scmp.eq.s32.totalorder %s22, 0
    %p133 = por %p131, %p132
    %s134 = ssub.s32 %s23, %s35
    %s135 = ssub.s32 %s24, %s31
    %s136 = sor.u32 %s134, %s135
    %p137 = scmp.eq.s32.totalorder %s136, 0
    %s139 = sadd.s32 %s138, 1
    %s140 = scalar_select %p137, %s138, %s139
    %p143 = pneg %p137
    %p144 = scmp.eq.s32.totalorder %s16, 1
    %p145 = por %p143, %p144
    %p146 = scmp.ne.s32.totalorder %s138, %s141
    %p147 = scmp.eq.s32.totalorder %s16, 0
    %p148 = por %p146, %p147
    %p149 = scmp.ne.s32.totalorder %s138, %s141
    %p150 = scmp.eq.s32.totalorder %s21, 1
    %p151 = por %p149, %p150
    %p152 = scmp.ne.s32.totalorder %s141, %s142
    %p153 = scmp.eq.s32.totalorder %s21, 0
    %p154 = por %p152, %p153
    %p155 = scmp.ne.s32.totalorder %s141, %s142
    %p156 = scmp.eq.s32.totalorder %s22, 1
    %p157 = por %p155, %p156
    %p159 = scmp.ne.s32.totalorder %s142, %s158
    %p160 = scmp.eq.s32.totalorder %s22, 0
    %p161 = por %p159, %p160
    %s162 = ssub.s32 %s23, %s35
    %s163 = ssub.s32 %s24, %s31
    %s164 = sor.u32 %s162, %s163
    %p165 = scmp.eq.s32.totalorder %s164, 0
    %s167 = sadd.s32 %s166, 1
    %s168 = scalar_select %p165, %s166, %s167
    %p171 = pneg %p165
    %p172 = scmp.eq.s32.totalorder %s16, 1
    %p173 = por %p171, %p172
    %p174 = scmp.ne.s32.totalorder %s166, %s169
    %p175 = scmp.eq.s32.totalorder %s16, 0
    %p176 = por %p174, %p175
    %p177 = scmp.ne.s32.totalorder %s166, %s169
    %p178 = scmp.eq.s32.totalorder %s21, 1
    %p179 = por %p177, %p178
    %p180 = scmp.ne.s32.totalorder %s169, %s170
    %p181 = scmp.eq.s32.totalorder %s21, 0
    %p182 = por %p180, %p181
    %p183 = scmp.ne.s32.totalorder %s169, %s170
    %p184 = scmp.eq.s32.totalorder %s22, 1
    %p185 = por %p183, %p184
    %p187 = scmp.ne.s32.totalorder %s170, %s186
    %p188 = scmp.eq.s32.totalorder %s22, 0
    %p189 = por %p187, %p188
    %s190 = ssub.s32 %s23, %s35
    %s191 = ssub.s32 %s24, %s31
    %s192 = sor.u32 %s190, %s191
    %p193 = scmp.eq.s32.totalorder %s192, 0
    %s195 = sadd.s32 %s194, 1
    %s196 = scalar_select %p193, %s194, %s195
    %p199 = pneg %p193
    %p200 = scmp.eq.s32.totalorder %s16, 1
    %p201 = por %p199, %p200
    %p202 = scmp.ne.s32.totalorder %s194, %s197
    %p203 = scmp.eq.s32.totalorder %s16, 0
    %p204 = por %p202, %p203
    %p205 = scmp.ne.s32.totalorder %s194, %s197
    %p206 = scmp.eq.s32.totalorder %s21, 1
    %p207 = por %p205, %p206
    %p208 = scmp.ne.s32.totalorder %s197, %s198
    %p209 = scmp.eq.s32.totalorder %s21, 0
    %p210 = por %p208, %p209
    %p211 = scmp.ne.s32.totalorder %s197, %s198
    %p212 = scmp.eq.s32.totalorder %s22, 1
    %p213 = por %p211, %p212
    %p215 = scmp.ne.s32.totalorder %s198, %s214
    %p216 = scmp.eq.s32.totalorder %s22, 0
    %p217 = por %p215, %p216
    %s218 = ssub.s32 %s23, %s35
    %p219 = scmp.eq.s32.totalorder %s218, 0
    %s221 = sadd.s32 %s220, 1
    %s222 = scalar_select %p219, %s220, %s221
    %p225 = pneg %p219
    %p226 = scmp.eq.s32.totalorder %s16, 1
    %p227 = por %p225, %p226
    %p228 = scmp.ne.s32.totalorder %s220, %s223
    %p229 = scmp.eq.s32.totalorder %s16, 0
    %p230 = por %p228, %p229
    %p231 = scmp.ne.s32.totalorder %s220, %s223
    %p232 = scmp.eq.s32.totalorder %s21, 1
    %p233 = por %p231, %p232
    %p234 = scmp.ne.s32.totalorder %s223, %s224
    %p235 = scmp.eq.s32.totalorder %s21, 0
    %p236 = por %p234, %p235
    %p237 = scmp.ne.s32.totalorder %s223, %s224
    %p238 = scmp.eq.s32.totalorder %s22, 1
    %p239 = por %p237, %p238
    %p241 = scmp.ne.s32.totalorder %s224, %s240
    %p242 = scmp.eq.s32.totalorder %s22, 0
    %p243 = por %p241, %p242
    %s244 = ssub.s32 %s23, %s35
    %p245 = scmp.eq.s32.totalorder %s244, 0
    %s247 = sadd.s32 %s246, 1
    %s248 = scalar_select %p245, %s246, %s247
    %p251 = pneg %p245
    %p252 = scmp.eq.s32.totalorder %s16, 1
    %p253 = por %p251, %p252
    %p254 = scmp.ne.s32.totalorder %s246, %s249
    %p255 = scmp.eq.s32.totalorder %s16, 0
    %p256 = por %p254, %p255
    %p257 = scmp.ne.s32.totalorder %s246, %s249
    %p258 = scmp.eq.s32.totalorder %s21, 1
    %p259 = por %p257, %p258
    %p260 = scmp.ne.s32.totalorder %s249, %s250
    %p261 = scmp.eq.s32.totalorder %s21, 0
    %p262 = por %p260, %p261
    %p263 = scmp.ne.s32.totalorder %s249, %s250
    %p264 = scmp.eq.s32.totalorder %s22, 1
    %p265 = por %p263, %p264
    %p267 = scmp.ne.s32.totalorder %s250, %s266
    %p268 = scmp.eq.s32.totalorder %s22, 0
    %p269 = por %p267, %p268
    %s270 = ssub.s32 %s23, %s35
    %p271 = scmp.eq.s32.totalorder %s270, 0
    %s273 = sadd.s32 %s272, 1
    %s274 = scalar_select %p271, %s272, %s273
    %p277 = pneg %p271
    %p278 = scmp.eq.s32.totalorder %s16, 1
    %p279 = por %p277, %p278
    %p280 = scmp.ne.s32.totalorder %s272, %s275
    %p281 = scmp.eq.s32.totalorder %s16, 0
    %p282 = por %p280, %p281
    %p283 = scmp.ne.s32.totalorder %s272, %s275
    %p284 = scmp.eq.s32.totalorder %s21, 1
    %p285 = por %p283, %p284
    %p286 = scmp.ne.s32.totalorder %s275, %s276
    %p287 = scmp.eq.s32.totalorder %s21, 0
    %p288 = por %p286, %p287
    %p289 = scmp.ne.s32.totalorder %s275, %s276
    %p290 = scmp.eq.s32.totalorder %s22, 1
    %p291 = por %p289, %p290
    %p293 = scmp.ne.s32.totalorder %s276, %s292
    %p294 = scmp.eq.s32.totalorder %s22, 0
    %p295 = por %p293, %p294
    %p296 = scmp.le.s32.totalorder 1, %s16
    %p297 = scmp.lt.s32.totalorder %s16, 3
    %p298 = pnand %p296, %p297
    %p299 = pneg %p298
    // Predicated region
    $region9: #{one_model_forward.14} parent=5 // pred_check
      _
    $region10: #{one_model_forward.14} parent=5 // pred_check_branch
      %301 = sbr.rel (%p298) target = $region12
    $region11: #{one_model_forward.14} parent=5 // pred_region
      %s302 = ssub.s32 %s16, 1
      // Predicated region
      $region13: #{one_model_forward.14} parent=11 // pred_check
        %p303 = pneg %p105
      $region14: #{one_model_forward.14} parent=11 // pred_check_branch
        %305 = sbr.rel (%p303) target = $region16
      $region15: #{one_model_forward.14} parent=11 // pred_region
        _
      $region16: #{one_model_forward.14} parent=11 // pred_fallthru
        _
      // Predicated region
      $region17: #{one_model_forward.14} parent=11 // pred_check
        %p306 = pneg %p126
      $region18: #{one_model_forward.14} parent=11 // pred_check_branch
        %308 = sbr.rel (%p306) target = $region20
      $region19: #{one_model_forward.14} parent=11 // pred_region
        _
      $region20: #{one_model_forward.14} parent=11 // pred_fallthru
        _
    $region12: #{one_model_forward.14} parent=5 // pred_fallthru
      _
    %p309 = scmp.lt.s32.totalorder %s16, 2
    // Predicated region
    $region21: #{one_model_forward.14} parent=5 // pred_check
      %p310 = pneg %p309
    $region22: #{one_model_forward.14} parent=5 // pred_check_branch
      %312 = sbr.rel (%p310) target = $region24
    $region23: #{one_model_forward.14} parent=5 // pred_region
      // Predicated region
      $region25: #{one_model_forward.14} parent=23 // pred_check
        %p313 = pneg %p50
      $region26: #{one_model_forward.14} parent=23 // pred_check_branch
        %315 = sbr.rel (%p313) target = $region28
      $region27: #{one_model_forward.14} parent=23 // pred_region
        %s316 = smul.u32 8, %s24
        %p317 = scmp.lt.s32.totalorder %s23, 1
        %s318 = scalar_select %p317, %s23, 1
        %p319 = scmp.lt.s32.totalorder %s316, 7
        %s320 = scalar_select %p319, %s316, 7
        %s321 = smul.addr %s318, 8
        %s322 = sadd.s32 %s320, %s321
        %s323 = smul.addr %s322, 4
        %s324 = scalar_lea.vmem %s0, %s323
        %s325 = smul.u32 8, %s24
      $region28: #{one_model_forward.14} parent=23 // pred_fallthru
        _
      // Predicated region
      $region29: #{one_model_forward.14} parent=23 // pred_check
        %p326 = pneg %p78
      $region30: #{one_model_forward.14} parent=23 // pred_check_branch
        %328 = sbr.rel (%p326) target = $region32
      $region31: #{one_model_forward.14} parent=23 // pred_region
        %s329 = smul.u32 8, %s24
        %p330 = scmp.lt.s32.totalorder %s23, 1
        %s331 = scalar_select %p330, %s23, 1
        %p332 = scmp.lt.s32.totalorder %s329, 7
        %s333 = scalar_select %p332, %s329, 7
        %s334 = smul.addr %s331, 8
        %s335 = sadd.s32 %s333, %s334
        %s336 = smul.addr %s335, 4
        %s337 = scalar_lea.vmem %s1, %s336
        %s338 = smul.u32 8, %s24
      $region32: #{one_model_forward.14} parent=23 // pred_fallthru
        _
      // Predicated region
      $region33: #{one_model_forward.14} parent=23 // pred_check
        %p339 = pneg %p148
      $region34: #{one_model_forward.14} parent=23 // pred_check_branch
        %341 = sbr.rel (%p339) target = $region36
      $region35: #{one_model_forward.14} parent=23 // pred_region
        %s342 = smul.u32 8, %s24
        %p343 = scmp.lt.s32.totalorder %s23, 1
        %s344 = scalar_select %p343, %s23, 1
        %p345 = scmp.lt.s32.totalorder %s342, 7
        %s346 = scalar_select %p345, %s342, 7
        %s347 = smul.addr %s344, 8
        %s348 = sadd.s32 %s346, %s347
        %s349 = smul.addr %s348, 8
        %s350 = scalar_lea.vmem %s4, %s349
        %s351 = smul.u32 8, %s24
      $region36: #{one_model_forward.14} parent=23 // pred_fallthru
        _
      // Predicated region
      $region37: #{one_model_forward.14} parent=23 // pred_check
        %p352 = pneg %p176
      $region38: #{one_model_forward.14} parent=23 // pred_check_branch
        %354 = sbr.rel (%p352) target = $region40
      $region39: #{one_model_forward.14} parent=23 // pred_region
        %s355 = smul.u32 8, %s24
        %p356 = scmp.lt.s32.totalorder %s23, 1
        %s357 = scalar_select %p356, %s23, 1
        %p358 = scmp.lt.s32.totalorder %s355, 7
        %s359 = scalar_select %p358, %s355, 7
        %s360 = smul.addr %s357, 8
        %s361 = sadd.s32 %s359, %s360
        %s362 = smul.addr %s361, 8
        %s363 = scalar_lea.vmem %s5, %s362
        %s364 = smul.u32 8, %s24
      $region40: #{one_model_forward.14} parent=23 // pred_fallthru
        _
    $region24: #{one_model_forward.14} parent=5 // pred_fallthru
      _
    %p365 = scmp.le.s32.totalorder 1, %s16
    %p366 = scmp.lt.s32.totalorder %s16, 3
    %p367 = pnand %p365, %p366
    %p368 = pneg %p367
    // Predicated region
    $region41: #{one_model_forward.14} parent=5 // pred_check
      _
    $region42: #{one_model_forward.14} parent=5 // pred_check_branch
      %370 = sbr.rel (%p367) target = $region44
    $region43: #{one_model_forward.14} parent=5 // pred_region
      %s371 = ssub.s32 %s16, 1
      %s372 = smul.u32 8, %s26
      %p373 = scmp.lt.s32.totalorder %s25, 1
      %s374 = scalar_select %p373, %s25, 1
      %p375 = scmp.lt.s32.totalorder %s372, 7
      %s376 = scalar_select %p375, %s372, 7
      %s377 = smul.addr %s374, 8
      %s378 = sadd.s32 %s376, %s377
      %s379 = smul.addr %s378, 4
      %s380 = scalar_lea.vmem %s0, %s379
      %p381 = pneg %p56
      %p382 = pneg %p53
      %s383 = smul.u32 8, %s26
      %p384 = scmp.lt.s32.totalorder %s25, 1
      %s385 = scalar_select %p384, %s25, 1
      %p386 = scmp.lt.s32.totalorder %s383, 7
      %s387 = scalar_select %p386, %s383, 7
      %s388 = smul.addr %s385, 8
      %s389 = sadd.s32 %s387, %s388
      %s390 = smul.addr %s389, 4
      %s391 = scalar_lea.vmem %s1, %s390
      %p392 = pneg %p84
      %p393 = pneg %p81
      %p394 = pneg %p105
      %p395 = pneg %p102
      %p396 = pneg %p126
      %p397 = pneg %p123
      %s398 = smul.u32 8, %s26
      %p399 = scmp.lt.s32.totalorder %s25, 1
      %s400 = scalar_select %p399, %s25, 1
      %p401 = scmp.lt.s32.totalorder %s398, 7
      %s402 = scalar_select %p401, %s398, 7
      %s403 = smul.addr %s400, 8
      %s404 = sadd.s32 %s402, %s403
      %s405 = smul.addr %s404, 8
      %s406 = scalar_lea.vmem %s4, %s405
      %p407 = pneg %p154
      %p408 = pneg %p151
      %s409 = smul.u32 8, %s26
      %p410 = scmp.lt.s32.totalorder %s25, 1
      %s411 = scalar_select %p410, %s25, 1
      %p412 = scmp.lt.s32.totalorder %s409, 7
      %s413 = scalar_select %p412, %s409, 7
      %s414 = smul.addr %s411, 8
      %s415 = sadd.s32 %s413, %s414
      %s416 = smul.addr %s415, 8
      %s417 = scalar_lea.vmem %s5, %s416
      %p418 = pneg %p182
      %p419 = pneg %p179
      %p420 = pneg %p210
      %p421 = pneg %p207
      %s422 = smul.u32 8, %s26
      %p423 = scmp.lt.s32.totalorder %s25, 1
      %s424 = scalar_select %p423, %s25, 1
      %p425 = scmp.lt.s32.totalorder %s422, 7
      %s426 = scalar_select %p425, %s422, 7
      %s427 = smul.addr %s424, 8
      %s428 = sadd.s32 %s426, %s427
      %s429 = smul.addr %s428, 4
      %s430 = scalar_lea.vmem %s6, %s429
      %p431 = pneg %p236
      %p432 = pneg %p233
      %p433 = scmp.lt.s32.totalorder %s25, 1
      %s434 = scalar_select %p433, %s25, 1
      %s435 = scalar_lea.vmem %s7, %s434
      %p436 = pneg %p262
      %p437 = pneg %p259
      %p438 = scmp.lt.s32.totalorder %s25, 1
      %s439 = scalar_select %p438, %s25, 1
      %s440 = scalar_lea.vmem %s8, %s439
      %p441 = pneg %p288
      %p442 = pneg %p285
      %p443 = scmp.lt.s32.totalorder %s25, 1
      %s444 = scalar_select %p443, %s25, 1
      %s445 = scalar_lea.vmem %s9, %s444
      %s446 = smul.u32 8, %s26
      %p447 = scmp.lt.s32.totalorder %s25, 1
      %s448 = scalar_select %p447, %s25, 1
      %p449 = scmp.lt.s32.totalorder %s446, 7
      %s450 = scalar_select %p449, %s446, 7
      %s451 = smul.addr %s448, 8
      %s452 = sadd.s32 %s450, %s451
      %s453 = smul.addr %s452, 4
      %s454 = scalar_lea.vmem %s0, %s453
      %s455 = smul.u32 8, %s26
      %s456 = smul.u32 8, %s26
      %p457 = scmp.lt.s32.totalorder %s25, 1
      %s458 = scalar_select %p457, %s25, 1
      %p459 = scmp.lt.s32.totalorder %s456, 7
      %s460 = scalar_select %p459, %s456, 7
      %s461 = smul.addr %s458, 8
      %s462 = sadd.s32 %s460, %s461
      %s463 = smul.addr %s462, 4
      %s464 = scalar_lea.vmem %s1, %s463
      %s465 = smul.u32 8, %s26
      %s466 = smul.u32 8, %s26
      %p467 = scmp.lt.s32.totalorder %s25, 1
      %s468 = scalar_select %p467, %s25, 1
      %p469 = scmp.lt.s32.totalorder %s466, 7
      %s470 = scalar_select %p469, %s466, 7
      %s471 = smul.addr %s468, 8
      %s472 = sadd.s32 %s470, %s471
      %s473 = smul.addr %s472, 8
      %s474 = scalar_lea.vmem %s4, %s473
      %s475 = smul.u32 8, %s26
      %s476 = smul.u32 8, %s26
      %p477 = scmp.lt.s32.totalorder %s25, 1
      %s478 = scalar_select %p477, %s25, 1
      %p479 = scmp.lt.s32.totalorder %s476, 7
      %s480 = scalar_select %p479, %s476, 7
      %s481 = smul.addr %s478, 8
      %s482 = sadd.s32 %s480, %s481
      %s483 = smul.addr %s482, 8
      %s484 = scalar_lea.vmem %s5, %s483
      %s485 = smul.u32 8, %s26
      %s486 = smul.u32 8, %s26
      %p487 = scmp.lt.s32.totalorder %s25, 1
      %s488 = scalar_select %p487, %s25, 1
      %p489 = scmp.lt.s32.totalorder %s486, 7
      %s490 = scalar_select %p489, %s486, 7
      %s491 = smul.addr %s488, 8
      %s492 = sadd.s32 %s490, %s491
      %s493 = smul.addr %s492, 4
      %s494 = scalar_lea.vmem %s6, %s493
      %s495 = smul.u32 8, %s26
      %p496 = scmp.lt.s32.totalorder %s25, 1
      %s497 = scalar_select %p496, %s25, 1
      %s498 = scalar_lea.vmem %s7, %s497
      %p499 = scmp.lt.s32.totalorder %s25, 1
      %s500 = scalar_select %p499, %s25, 1
      %s501 = scalar_lea.vmem %s8, %s500
      %p502 = scmp.lt.s32.totalorder %s25, 1
      %s503 = scalar_select %p502, %s25, 1
      %s504 = scalar_lea.vmem %s9, %s503
      %p506 = scmp.eq.s32.totalorder %s26, 0
      // Predicated region
      $region45: #{one_model_forward.14} parent=43 // pred_check
        %p507 = pneg %p506
      $region46: #{one_model_forward.14} parent=43 // pred_check_branch
        %509 = sbr.rel (%p507) target = $region48
      $region47: #{one_model_forward.14} parent=43 // pred_region
        %vm510 = vcmask 253952
        %511 = vst.msk [vmem:[#allocation2] sm:$0x1] %vm510, 0.0
        %vm512 = vcmask 0
        %513 = vst.msk [vmem:[#allocation3] sm:$0x1] %vm512, 0.0
        %514 = vst.msk [vmem:[#allocation4] sm:$0x1] %vm510, 0.0
      $region48: #{one_model_forward.14} parent=43 // pred_fallthru
        _
      %v515 = vld [vmem:[%s454] sm:$0xf]
      %v516 = vld [vmem:[%s454 + $0x4] sm:$0xf]
      %v517 = vld [vmem:[%s454 + $0x8] sm:$0xf]
      %v518 = vld [vmem:[%s454 + $0xc] sm:$0xf]
      %v519 = vld [vmem:[%s454 + $0x10] sm:$0xf]
      %v520 = vld [vmem:[%s454 + $0x14] sm:$0xf]
      %v521 = vld [vmem:[%s454 + $0x18] sm:$0xf]
      %v522 = vld [vmem:[%s454 + $0x1c] sm:$0xf]
      %v523 = vld [vmem:[%s2] sm:$0xf]
      %v524 = vld [vmem:[%s2 + $0x4] sm:$0xf]
      %v525 = vld [vmem:[%s2 + $0x8] sm:$0xf]
      %v526 = vld [vmem:[%s2 + $0xc] sm:$0xf]
      %v527 = vld [vmem:[%s464] sm:$0xf]
      %v528 = vld [vmem:[%s464 + $0x4] sm:$0xf]
      %v529 = vld [vmem:[%s464 + $0x8] sm:$0xf]
      %v530 = vld [vmem:[%s464 + $0xc] sm:$0xf]
      %v531 = vld [vmem:[%s464 + $0x10] sm:$0xf]
      %v532 = vld [vmem:[%s464 + $0x14] sm:$0xf]
      %v533 = vld [vmem:[%s464 + $0x18] sm:$0xf]
      %v534 = vld [vmem:[%s464 + $0x1c] sm:$0xf]
      %v535 = vld [vmem:[%s3] sm:$0xf]
      %v536 = vld [vmem:[%s3 + $0x4] sm:$0xf]
      %v545 = vunpack.c.l.b16 %v527
      %v546 = vunpack.c.l.b16 %v528
      %v547 = vunpack.c.l.b16 %v529
      %v548 = vunpack.c.l.b16 %v530
      %v549 = vunpack.c.l.b16 %v531
      %v550 = vunpack.c.l.b16 %v532
      %v551 = vunpack.c.l.b16 %v533
      %v552 = vunpack.c.l.b16 %v534
      %v553 = vpack.c.b16 %v546, %v545
      %v554 = vpack.c.b16 %v548, %v547
      %v555 = vpack.c.b16 %v550, %v549
      %v556 = vpack.c.b16 %v552, %v551
      %v559 = vunpack.c.l.b16 %v535
      %v560 = vunpack.c.l.b16 %v536
      %v561 = vpack.c.b16 %v560, %v559
      %vm563 = vcmask 130048
      %v565 = vsel %vm563, %v553, 0
      %v568 = vsel %vm563, %v554, 0
      %v571 = vsel %vm563, %v555, 0
      %v574 = vsel %vm563, %v556, 0
      %576 = vmatprep.subr.bf16.mxu0 0
      %577 = vmatpush1.bf16.msra.mxu0 0
      %578 = vmatprep.subr.bf16.mxu0 0
      %579 = vmatpush1.bf16.msra.mxu0 0
      %580 = vmatprep.subr.bf16.mxu0 0
      %581 = vmatpush1.bf16.msra.mxu0 0
      %582 = vmatprep.subr.bf16.mxu0 0
      %583 = vmatpush1.bf16.msra.mxu0 0
      %584 = vmatprep.subr.bf16.mxu0 0
      %585 = vmatpush1.bf16.msra.mxu0 0
      %586 = vmatprep.subr.bf16.mxu0 0
      %587 = vmatpush1.bf16.msra.mxu0 0
      %588 = vmatprep.subr.bf16.mxu0 0
      %589 = vmatpush1.bf16.msra.mxu0 0
      %590 = vmatprep.subr.bf16.mxu0 0
      %591 = vmatpush1.bf16.msra.mxu0 %v561
      %592 = vmatprep.subr.bf16.mxu0 0
      %593 = vmatpush2.bf16.msra.mxu0 0
      %594 = vmatprep.subr.bf16.mxu0 0
      %595 = vmatpush2.bf16.msra.mxu0 0
      %596 = vmatprep.subr.bf16.mxu0 0
      %597 = vmatpush2.bf16.msra.mxu0 0
      %598 = vmatprep.subr.bf16.mxu0 0
      %599 = vmatpush2.bf16.msra.mxu0 0
      %600 = vmatprep.subr.bf16.mxu0 0
      %601 = vmatpush2.bf16.msra.mxu0 0
      %602 = vmatprep.subr.bf16.mxu0 0
      %603 = vmatpush2.bf16.msra.mxu0 0
      %604 = vmatprep.subr.bf16.mxu0 0
      %605 = vmatpush2.bf16.msra.mxu0 0
      %606 = vmatprep.subr.bf16.mxu0 0
      %607 = vmatpush2.bf16.msra.mxu0 0
      %608 = vmatprep.mubr.bf16.mxu0 0
      %609 = vmatmul.mubr.bf16.gmra.mxu0 %v565
      %v610 = vpop.f32.mrf.mxu0
      %v611 = vadd.f32 0.0, %v610
      %v612 = vpop.f32.mrf.mxu0
      %v613 = vpop.f32.mrf.mxu0
      %v614 = vadd.f32 0.0, %v613
      %v615 = vpop.f32.mrf.mxu0
      %616 = vmatprep.mubr.bf16.mxu0 0
      %617 = vmatmul.mubr.bf16.gmra.mxu0 %v568
      %v618 = vpop.f32.mrf.mxu0
      %v619 = vadd.f32 0.0, %v618
      %v620 = vpop.f32.mrf.mxu0
      %v621 = vpop.f32.mrf.mxu0
      %v622 = vadd.f32 0.0, %v621
      %v623 = vpop.f32.mrf.mxu0
      %624 = vmatprep.mubr.bf16.mxu0 0
      %625 = vmatmul.mubr.bf16.gmra.mxu0 %v571
      %v626 = vpop.f32.mrf.mxu0
      %v627 = vadd.f32 0.0, %v626
      %v628 = vpop.f32.mrf.mxu0
      %v629 = vpop.f32.mrf.mxu0
      %v630 = vadd.f32 0.0, %v629
      %v631 = vpop.f32.mrf.mxu0
      %632 = vmatprep.mubr.bf16.mxu0 0
      %633 = vmatmul.mubr.bf16.gmra.mxu0 %v574
      %v634 = vpop.f32.mrf.mxu0
      %v635 = vadd.f32 0.0, %v634
      %v636 = vpop.f32.mrf.mxu0
      %v637 = vpop.f32.mrf.mxu0
      %v638 = vadd.f32 0.0, %v637
      %v639 = vpop.f32.mrf.mxu0
      %640 = vdwg.mxu0
      %v649 = vunpack.c.l.b16 %v515
      %v650 = vunpack.c.l.b16 %v516
      %v651 = vunpack.c.l.b16 %v517
      %v652 = vunpack.c.l.b16 %v518
      %v653 = vunpack.c.l.b16 %v519
      %v654 = vunpack.c.l.b16 %v520
      %v655 = vunpack.c.l.b16 %v521
      %v656 = vunpack.c.l.b16 %v522
      %v657 = vpack.c.b16 %v650, %v649
      %v658 = vpack.c.b16 %v652, %v651
      %v659 = vpack.c.b16 %v654, %v653
      %v660 = vpack.c.b16 %v656, %v655
      %v665 = vunpack.c.l.b16 %v523
      %v666 = vunpack.c.l.b16 %v524
      %v667 = vunpack.c.l.b16 %v525
      %v668 = vunpack.c.l.b16 %v526
      %v669 = vpack.c.b16 %v666, %v665
      %v670 = vpack.c.b16 %v668, %v667
      %vm673 = vcmask 261120
      %v675 = vsel %vm673, %v657, 0
      %v678 = vsel %vm673, %v658, 0
      %v681 = vsel %vm673, %v659, 0
      %v684 = vsel %vm673, %v660, 0
      %686 = vmatprep.subr.bf16.mxu0 0
      %687 = vmatpush1.bf16.msra.mxu0 0
      %688 = vmatprep.subr.bf16.mxu0 0
      %689 = vmatpush1.bf16.msra.mxu0 0
      %690 = vmatprep.subr.bf16.mxu0 0
      %691 = vmatpush1.bf16.msra.mxu0 0
      %692 = vmatprep.subr.bf16.mxu0 0
      %693 = vmatpush1.bf16.msra.mxu0 0
      %694 = vmatprep.subr.bf16.mxu0 0
      %695 = vmatpush1.bf16.msra.mxu0 0
      %696 = vmatprep.subr.bf16.mxu0 0
      %697 = vmatpush1.bf16.msra.mxu0 0
      %698 = vmatprep.subr.bf16.mxu0 0
      %699 = vmatpush1.bf16.msra.mxu0 %v670
      %700 = vmatprep.subr.bf16.mxu0 0
      %701 = vmatpush1.bf16.msra.mxu0 %v669
      %702 = vmatprep.subr.bf16.mxu0 0
      %703 = vmatpush2.bf16.msra.mxu0 0
      %704 = vmatprep.subr.bf16.mxu0 0
      %705 = vmatpush2.bf16.msra.mxu0 0
      %706 = vmatprep.subr.bf16.mxu0 0
      %707 = vmatpush2.bf16.msra.mxu0 0
      %708 = vmatprep.subr.bf16.mxu0 0
      %709 = vmatpush2.bf16.msra.mxu0 0
      %710 = vmatprep.subr.bf16.mxu0 0
      %711 = vmatpush2.bf16.msra.mxu0 0
      %712 = vmatprep.subr.bf16.mxu0 0
      %713 = vmatpush2.bf16.msra.mxu0 0
      %714 = vmatprep.subr.bf16.mxu0 0
      %715 = vmatpush2.bf16.msra.mxu0 0
      %716 = vmatprep.subr.bf16.mxu0 0
      %717 = vmatpush2.bf16.msra.mxu0 0
      %718 = vmatprep.mubr.bf16.mxu0 0
      %719 = vmatmul.mubr.bf16.gmra.mxu0 %v675
      %v720 = vpop.f32.mrf.mxu0
      %v721 = vadd.f32 %v611, %v720
      %v722 = vpop.f32.mrf.mxu0
      %v723 = vpop.f32.mrf.mxu0
      %v724 = vadd.f32 %v614, %v723
      %v725 = vpop.f32.mrf.mxu0
      %726 = vmatprep.mubr.bf16.mxu0 0
      %727 = vmatmul.mubr.bf16.gmra.mxu0 %v678
      %v728 = vpop.f32.mrf.mxu0
      %v729 = vadd.f32 %v619, %v728
      %v730 = vpop.f32.mrf.mxu0
      %v731 = vpop.f32.mrf.mxu0
      %v732 = vadd.f32 %v622, %v731
      %v733 = vpop.f32.mrf.mxu0
      %734 = vmatprep.mubr.bf16.mxu0 0
      %735 = vmatmul.mubr.bf16.gmra.mxu0 %v681
      %v736 = vpop.f32.mrf.mxu0
      %v737 = vadd.f32 %v627, %v736
      %v738 = vpop.f32.mrf.mxu0
      %v739 = vpop.f32.mrf.mxu0
      %v740 = vadd.f32 %v630, %v739
      %v741 = vpop.f32.mrf.mxu0
      %742 = vmatprep.mubr.bf16.mxu0 0
      %743 = vmatmul.mubr.bf16.gmra.mxu0 %v684
      %v744 = vpop.f32.mrf.mxu0
      %v745 = vadd.f32 %v635, %v744
      %v746 = vpop.f32.mrf.mxu0
      %v747 = vpop.f32.mrf.mxu0
      %v748 = vadd.f32 %v638, %v747
      %v749 = vpop.f32.mrf.mxu0
      %750 = vdwg.mxu0
      %v751 = vmax.f32 %v721, 0.0
      %v752 = vmax.f32 %v724, 0.0
      %v753 = vmax.f32 %v729, 0.0
      %v754 = vmax.f32 %v732, 0.0
      %v755 = vmax.f32 %v737, 0.0
      %v756 = vmax.f32 %v740, 0.0
      %v757 = vmax.f32 %v745, 0.0
      %v758 = vmax.f32 %v748, 0.0
      %v759 = vpack.c.bf16 %v752, %v751
      %v760 = vpack.c.bf16 %v754, %v753
      %v761 = vpack.c.bf16 %v756, %v755
      %v762 = vpack.c.bf16 %v758, %v757
      %v767 = vunpack.c.l.b16 %v759
      %v768 = vunpack.c.h.b16 %v759
      %v769 = vunpack.c.l.b16 %v760
      %v770 = vunpack.c.h.b16 %v760
      %v771 = vunpack.c.l.b16 %v761
      %v772 = vunpack.c.h.b16 %v761
      %v773 = vunpack.c.l.b16 %v762
      %v774 = vunpack.c.h.b16 %v762
      %v775 = vpack.c.b16 %v767, %v767
      %v776 = vpack.c.b16 %v768, %v768
      %v777 = vpack.c.b16 %v769, %v769
      %v778 = vpack.c.b16 %v770, %v770
      %v779 = vpack.c.b16 %v771, %v771
      %v780 = vpack.c.b16 %v772, %v772
      %v781 = vpack.c.b16 %v773, %v773
      %v782 = vpack.c.b16 %v774, %v774
      %vm791 = vcmask 257024
      %792 = vst.msk [vmem:[%s494] sm:$0xf] %vm791, %v775
      %793 = vst.msk [vmem:[%s494 + $0x4] sm:$0xf] %vm791, %v776
      %794 = vst.msk [vmem:[%s494 + $0x8] sm:$0xf] %vm791, %v777
      %795 = vst.msk [vmem:[%s494 + $0xc] sm:$0xf] %vm791, %v778
      %796 = vst.msk [vmem:[%s494 + $0x10] sm:$0xf] %vm791, %v779
      %797 = vst.msk [vmem:[%s494 + $0x14] sm:$0xf] %vm791, %v780
      %798 = vst.msk [vmem:[%s494 + $0x18] sm:$0xf] %vm791, %v781
      %799 = vst.msk [vmem:[%s494 + $0x1c] sm:$0xf] %vm791, %v782
      %v800 = vld [vmem:[%s474] sm:$0xff]
      %v801 = vld [vmem:[%s474 + $0x8] sm:$0xff]
      %v802 = vld [vmem:[%s474 + $0x10] sm:$0xff]
      %v803 = vld [vmem:[%s474 + $0x18] sm:$0xff]
      %v804 = vld [vmem:[%s474 + $0x20] sm:$0xff]
      %v805 = vld [vmem:[%s474 + $0x28] sm:$0xff]
      %v806 = vld [vmem:[%s474 + $0x30] sm:$0xff]
      %v807 = vld [vmem:[%s474 + $0x38] sm:$0xff]
      %v808 = vld [vmem:[%s484] sm:$0xff]
      %v809 = vld [vmem:[%s484 + $0x8] sm:$0xff]
      %v810 = vld [vmem:[%s484 + $0x10] sm:$0xff]
      %v811 = vld [vmem:[%s484 + $0x18] sm:$0xff]
      %v812 = vld [vmem:[%s484 + $0x20] sm:$0xff]
      %v813 = vld [vmem:[%s484 + $0x28] sm:$0xff]
      %v814 = vld [vmem:[%s484 + $0x30] sm:$0xff]
      %v815 = vld [vmem:[%s484 + $0x38] sm:$0xff]
      %v816 = vld [vmem:[#allocation2] sm:$0x1]
      %818 = vset.pattern.permute.xlu0 0
      %819 = vperm.xlu0 %818, %v800
      %v820 = vpop.permute.xlu0 %819
      %823 = vset.pattern.permute.xlu0 0
      %824 = vperm.xlu0 %823, %v801
      %v825 = vpop.permute.xlu0 %824
      %828 = vset.pattern.permute.xlu0 0
      %829 = vperm.xlu0 %828, %v802
      %v830 = vpop.permute.xlu0 %829
      %833 = vset.pattern.permute.xlu0 0
      %834 = vperm.xlu0 %833, %v803
      %v835 = vpop.permute.xlu0 %834
      %838 = vset.pattern.permute.xlu0 0
      %839 = vperm.xlu0 %838, %v804
      %v840 = vpop.permute.xlu0 %839
      %843 = vset.pattern.permute.xlu0 0
      %844 = vperm.xlu0 %843, %v805
      %v845 = vpop.permute.xlu0 %844
      %848 = vset.pattern.permute.xlu0 0
      %849 = vperm.xlu0 %848, %v806
      %v850 = vpop.permute.xlu0 %849
      %853 = vset.pattern.permute.xlu0 0
      %854 = vperm.xlu0 %853, %v807
      %v855 = vpop.permute.xlu0 %854
      %v857 = vmul.f32 %v751, %v820
      %v858 = vmul.f32 %v752, %v825
      %v859 = vmul.f32 %v753, %v830
      %v860 = vmul.f32 %v754, %v835
      %v861 = vmul.f32 %v755, %v840
      %v862 = vmul.f32 %v756, %v845
      %v863 = vmul.f32 %v757, %v850
      %v864 = vmul.f32 %v758, %v855
      %v865 = vsel %vm673, %v857, 0.0
      %v866 = vsel %vm673, %v858, 0.0
      %v867 = vadd.f32 %v865, %v866
      %v868 = vsel %vm673, %v859, 0.0
      %v869 = vadd.f32 %v867, %v868
      %v870 = vsel %vm673, %v860, 0.0
      %v871 = vadd.f32 %v869, %v870
      %v872 = vsel %vm673, %v861, 0.0
      %v873 = vadd.f32 %v871, %v872
      %v874 = vsel %vm673, %v862, 0.0
      %v875 = vadd.f32 %v873, %v874
      %v876 = vsel %vm673, %v863, 0.0
      %v877 = vadd.f32 %v875, %v876
      %v878 = vsel %vm673, %v864, 0.0
      %v879 = vadd.f32 %v877, %v878
      %v880 = vrot.slane %v879, 4
      %v881 = vadd.f32 %v879, %v880
      %v882 = vrot.slane %v881, 2
      %v883 = vadd.f32 %v881, %v882
      %v884 = vrot.slane %v883, 1
      %v885 = vadd.f32 %v883, %v884
      %v886 = vadd.f32 %v816, %v885
      %vm887 = vcmask 253952
      %888 = vst.msk [vmem:[#allocation2] sm:$0x1] %vm887, %v886
      %v889 = vld [vmem:[#allocation3] sm:$0x1]
      %vm890 = vcmask 7168
      %v891 = vsel %vm890, %v800, 0.0
      %v892 = vsel %vm890, %v801, 0.0
      %v893 = vadd.f32 %v891, %v892
      %v894 = vsel %vm890, %v802, 0.0
      %v895 = vadd.f32 %v893, %v894
      %v896 = vsel %vm890, %v803, 0.0
      %v897 = vadd.f32 %v895, %v896
      %v898 = vsel %vm890, %v804, 0.0
      %v899 = vadd.f32 %v897, %v898
      %v900 = vsel %vm890, %v805, 0.0
      %v901 = vadd.f32 %v899, %v900
      %v902 = vsel %vm890, %v806, 0.0
      %v903 = vadd.f32 %v901, %v902
      %v904 = vsel %vm890, %v807, 0.0
      %v905 = vadd.f32 %v903, %v904
      %v906 = vrot.slane %v905, 4
      %v907 = vadd.f32 %v905, %v906
      %v908 = vrot.slane %v907, 2
      %v909 = vadd.f32 %v907, %v908
      %v910 = vrot.slane %v909, 1
      %v911 = vadd.f32 %v909, %v910
      %v912 = vadd.f32 %v889, %v911
      %vm913 = vcmask 0
      %914 = vst.msk [vmem:[#allocation3] sm:$0x1] %vm913, %v912
      %v915 = vld [vmem:[#allocation4] sm:$0x1]
      %917 = vset.pattern.permute.xlu0 0
      %918 = vperm.xlu0 %917, %v808
      %v919 = vpop.permute.xlu0 %918
      %922 = vset.pattern.permute.xlu0 0
      %923 = vperm.xlu0 %922, %v809
      %v924 = vpop.permute.xlu0 %923
      %927 = vset.pattern.permute.xlu0 0
      %928 = vperm.xlu0 %927, %v810
      %v929 = vpop.permute.xlu0 %928
      %932 = vset.pattern.permute.xlu0 0
      %933 = vperm.xlu0 %932, %v811
      %v934 = vpop.permute.xlu0 %933
      %937 = vset.pattern.permute.xlu0 0
      %938 = vperm.xlu0 %937, %v812
      %v939 = vpop.permute.xlu0 %938
      %942 = vset.pattern.permute.xlu0 0
      %943 = vperm.xlu0 %942, %v813
      %v944 = vpop.permute.xlu0 %943
      %947 = vset.pattern.permute.xlu0 0
      %948 = vperm.xlu0 %947, %v814
      %v949 = vpop.permute.xlu0 %948
      %952 = vset.pattern.permute.xlu0 0
      %953 = vperm.xlu0 %952, %v815
      %v954 = vpop.permute.xlu0 %953
      %v956 = vmul.f32 %v751, %v919
      %v957 = vmul.f32 %v752, %v924
      %v958 = vmul.f32 %v753, %v929
      %v959 = vmul.f32 %v754, %v934
      %v960 = vmul.f32 %v755, %v939
      %v961 = vmul.f32 %v756, %v944
      %v962 = vmul.f32 %v757, %v949
      %v963 = vmul.f32 %v758, %v954
      %v964 = vsel %vm673, %v956, 0.0
      %v965 = vsel %vm673, %v957, 0.0
      %v966 = vadd.f32 %v964, %v965
      %v967 = vsel %vm673, %v958, 0.0
      %v968 = vadd.f32 %v966, %v967
      %v969 = vsel %vm673, %v959, 0.0
      %v970 = vadd.f32 %v968, %v969
      %v971 = vsel %vm673, %v960, 0.0
      %v972 = vadd.f32 %v970, %v971
      %v973 = vsel %vm673, %v961, 0.0
      %v974 = vadd.f32 %v972, %v973
      %v975 = vsel %vm673, %v962, 0.0
      %v976 = vadd.f32 %v974, %v975
      %v977 = vsel %vm673, %v963, 0.0
      %v978 = vadd.f32 %v976, %v977
      %v979 = vrot.slane %v978, 4
      %v980 = vadd.f32 %v978, %v979
      %v981 = vrot.slane %v980, 2
      %v982 = vadd.f32 %v980, %v981
      %v983 = vrot.slane %v982, 1
      %v984 = vadd.f32 %v982, %v983
      %v985 = vadd.f32 %v915, %v984
      %986 = vst.msk [vmem:[#allocation4] sm:$0x1] %vm887, %v985
      // Predicated region
      $region49: #{one_model_forward.14} parent=43 // pred_check
        %p987 = pneg %p506
      $region50: #{one_model_forward.14} parent=43 // pred_check_branch
        %989 = sbr.rel (%p987) target = $region52
      $region51: #{one_model_forward.14} parent=43 // pred_region
        %v990 = vld [vmem:[#allocation2] sm:$0x1]
        %991 = vst.msk [vmem:[%s498] sm:$0x1] %vm887, %v990
        %v992 = vld [vmem:[#allocation3] sm:$0x1]
        %993 = vst.msk [vmem:[%s501] sm:$0x1] %vm913, %v992
        %v994 = vld [vmem:[#allocation4] sm:$0x1]
        %995 = vst.msk [vmem:[%s504] sm:$0x1] %vm887, %v994
      $region52: #{one_model_forward.14} parent=43 // pred_fallthru
        _
      %s996 = smul.u32 8, %s26
      %p997 = scmp.lt.s32.totalorder %s25, 1
      %s998 = scalar_select %p997, %s25, 1
      %p999 = scmp.lt.s32.totalorder %s996, 7
      %s1000 = scalar_select %p999, %s996, 7
      %s1001 = smul.addr %s998, 8
      %s1002 = sadd.s32 %s1000, %s1001
      %s1003 = smul.addr %s1002, 4
      %s1004 = scalar_lea.vmem %s6, %s1003
      %p1005 = scmp.lt.s32.totalorder %s25, 1
      %s1006 = scalar_select %p1005, %s25, 1
      %s1007 = scalar_lea.vmem %s7, %s1006
      %p1008 = scmp.lt.s32.totalorder %s25, 1
      %s1009 = scalar_select %p1008, %s25, 1
      %s1010 = scalar_lea.vmem %s8, %s1009
      %p1011 = scmp.lt.s32.totalorder %s25, 1
      %s1012 = scalar_select %p1011, %s25, 1
      %s1013 = scalar_lea.vmem %s9, %s1012
      // Predicated region
      $region53: #{one_model_forward.14} parent=43 // pred_check
        %p1014 = pneg %p207
      $region54: #{one_model_forward.14} parent=43 // pred_check_branch
        %1016 = sbr.rel (%p1014) target = $region56
      $region55: #{one_model_forward.14} parent=43 // pred_region
        %s1017 = smul.u32 8, %s26
      $region56: #{one_model_forward.14} parent=43 // pred_fallthru
        _
      // Predicated region
      $region57: #{one_model_forward.14} parent=43 // pred_check
        %p1018 = pneg %p233
      $region58: #{one_model_forward.14} parent=43 // pred_check_branch
        %1020 = sbr.rel (%p1018) target = $region60
      $region59: #{one_model_forward.14} parent=43 // pred_region
        _
      $region60: #{one_model_forward.14} parent=43 // pred_fallthru
        _
      // Predicated region
      $region61: #{one_model_forward.14} parent=43 // pred_check
        %p1021 = pneg %p259
      $region62: #{one_model_forward.14} parent=43 // pred_check_branch
        %1023 = sbr.rel (%p1021) target = $region64
      $region63: #{one_model_forward.14} parent=43 // pred_region
        _
      $region64: #{one_model_forward.14} parent=43 // pred_fallthru
        _
      // Predicated region
      $region65: #{one_model_forward.14} parent=43 // pred_check
        %p1024 = pneg %p285
      $region66: #{one_model_forward.14} parent=43 // pred_check_branch
        %1026 = sbr.rel (%p1024) target = $region68
      $region67: #{one_model_forward.14} parent=43 // pred_region
        _
      $region68: #{one_model_forward.14} parent=43 // pred_fallthru
        _
    $region44: #{one_model_forward.14} parent=5 // pred_fallthru
      _
    %p1027 = scmp.le.s32.totalorder 2, %s16
    // Predicated region
    $region69: #{one_model_forward.14} parent=5 // pred_check
      %p1028 = pneg %p1027
    $region70: #{one_model_forward.14} parent=5 // pred_check_branch
      %1030 = sbr.rel (%p1028) target = $region72
    $region71: #{one_model_forward.14} parent=5 // pred_region
      %s1031 = ssub.s32 %s16, 2
      // Predicated region
      $region73: #{one_model_forward.14} parent=71 // pred_check
        %p1032 = pneg %p213
      $region74: #{one_model_forward.14} parent=71 // pred_check_branch
        %1034 = sbr.rel (%p1032) target = $region76
      $region75: #{one_model_forward.14} parent=71 // pred_region
        %s1035 = smul.u32 8, %s28
        %p1036 = scmp.lt.s32.totalorder %s27, 1
        %s1037 = scalar_select %p1036, %s27, 1
        %p1038 = scmp.lt.s32.totalorder %s1035, 7
        %s1039 = scalar_select %p1038, %s1035, 7
        %s1040 = smul.addr %s1037, 8
        %s1041 = sadd.s32 %s1039, %s1040
        %s1042 = smul.addr %s1041, 4
        %s1043 = scalar_lea.vmem %s6, %s1042
      $region76: #{one_model_forward.14} parent=71 // pred_fallthru
        _
      // Predicated region
      $region77: #{one_model_forward.14} parent=71 // pred_check
        %p1044 = pneg %p239
      $region78: #{one_model_forward.14} parent=71 // pred_check_branch
        %1046 = sbr.rel (%p1044) target = $region80
      $region79: #{one_model_forward.14} parent=71 // pred_region
        %p1047 = scmp.lt.s32.totalorder %s27, 1
        %s1048 = scalar_select %p1047, %s27, 1
        %s1049 = scalar_lea.vmem %s7, %s1048
      $region80: #{one_model_forward.14} parent=71 // pred_fallthru
        _
      // Predicated region
      $region81: #{one_model_forward.14} parent=71 // pred_check
        %p1050 = pneg %p265
      $region82: #{one_model_forward.14} parent=71 // pred_check_branch
        %1052 = sbr.rel (%p1050) target = $region84
      $region83: #{one_model_forward.14} parent=71 // pred_region
        %p1053 = scmp.lt.s32.totalorder %s27, 1
        %s1054 = scalar_select %p1053, %s27, 1
        %s1055 = scalar_lea.vmem %s8, %s1054
      $region84: #{one_model_forward.14} parent=71 // pred_fallthru
        _
      // Predicated region
      $region85: #{one_model_forward.14} parent=71 // pred_check
        %p1056 = pneg %p291
      $region86: #{one_model_forward.14} parent=71 // pred_check_branch
        %1058 = sbr.rel (%p1056) target = $region88
      $region87: #{one_model_forward.14} parent=71 // pred_region
        %p1059 = scmp.lt.s32.totalorder %s27, 1
        %s1060 = scalar_select %p1059, %s27, 1
        %s1061 = scalar_lea.vmem %s9, %s1060
      $region88: #{one_model_forward.14} parent=71 // pred_fallthru
        _
    $region72: #{one_model_forward.14} parent=5 // pred_fallthru
      _
  $region6: #{one_model_forward.14} parent=0 // loop_footer
    %s20 = sadd.s32 1, %s16
  $region7: #{one_model_forward.14} parent=0 // loop_footer_branch
    %15 = sbr.rel target = $region3
  $region8: #{one_model_forward.14} parent=0 // loop_exit
    _

// kernel: one_model_forward.17
$region0: #{one_model_forward.17}
  #allocation0 [shape = 'u32[]', space=smem, size = 0x4, offset = 0x4, fixed_abs, tag = 'smem constant byte address 0x4 - core index']
  #allocation1 [shape = 'u32[144,128]{1,0:T(1,128)}', space=vmem, size = 0x12000, scoped, tag = 'internal scratch']
  #allocation2 [shape = 'f32[1,64]{1,0:T(1,128)}', space=vmem, size = 0x200, scoped, tag = 'scratch operand']
  %s0 = inlined_call_operand.vmem [shape: bf16[2,64,32], index: 0, kind: input, shape index: {}]
  %s1 = inlined_call_operand.vmem [shape: f32[2,1,64], index: 1, kind: input, shape index: {}]
  %s2 = inlined_call_operand.vmem [shape: bf16[2,64,32], index: 2, kind: input, shape index: {}]
  %s3 = inlined_call_operand.vmem [shape: f32[2,64,1], index: 3, kind: input, shape index: {}]
  %s4 = inlined_call_operand.vmem [shape: f32[2,1,64], index: 4, kind: output, shape index: {}]
  %s5 = sld [smem:[#allocation0]]
  $region57: #{one_model_forward.17} parent=0
    _
  %s7 = ssub.s32 1, %s5
  %s8 = scalar_select 0, %s7, %s5
  loop: start=0, step=1, limit=4
  $region2: #{one_model_forward.17} parent=0 // loop_pre_header
    _
  $region3: #{one_model_forward.17} parent=0 // loop_header
    %s10 = sphi 0, %s14
    %p11 = scmp.ge.s32.totalorder %s10, 4
    %s17 = sphi 0, %s36
    %s18 = sphi 0, %s32
    %s19 = sphi 0, %s28
    %s20 = sphi 0, %s17
    %s21 = sphi 0, %s18
    %s22 = sphi 0, %s19
    %s23 = sphi 0, %s20
    %s24 = sphi 0, %s21
    %s25 = sphi 0, %s22
    %s41 = sphi 0, %s43
    %s44 = sphi 0, %s41
    %s45 = sphi 0, %s44
    %s61 = sphi 0, %s45
    %s69 = sphi 0, %s71
    %s72 = sphi 0, %s69
    %s73 = sphi 0, %s72
    %s89 = sphi 0, %s73
    %s97 = sphi 0, %s99
    %s100 = sphi 0, %s97
    %s101 = sphi 0, %s100
    %s117 = sphi 0, %s101
    %s125 = sphi 0, %s127
    %s128 = sphi 0, %s125
    %s129 = sphi 0, %s128
    %s145 = sphi 0, %s129
    %s153 = sphi 0, %s155
    %s156 = sphi 0, %s153
    %s157 = sphi 0, %s156
    %s173 = sphi 0, %s157
  $region4: #{one_model_forward.17} parent=0 // loop_header_branch
    %13 = sbr.rel (%p11) target = $region8
  $region5: #{one_model_forward.17} parent=0 // loop_body
    %s15 = ssub.s32 %s10, 1
    %s16 = ssub.s32 %s10, 2
    %s26 = sadd.s32 1, %s19
    %p27 = scmp.ge.s32.totalorder %s26, 1
    %s28 = scalar_select %p27, 0, %s26
    %s29 = sadd.s32 1, %s18
    %s30 = scalar_select %p27, %s29, %s18
    %p31 = scmp.ge.s32.totalorder %s30, 1
    %s32 = scalar_select %p31, 0, %s30
    %s33 = sadd.s32 1, %s17
    %s34 = scalar_select %p31, %s33, %s17
    %p35 = scmp.ge.s32.totalorder %s34, 2
    %s36 = scalar_select %p35, 0, %s34
    %s37 = ssub.s32 %s17, %s36
    %s38 = ssub.s32 %s18, %s32
    %s39 = sor.u32 %s37, %s38
    %p40 = scmp.eq.s32.totalorder %s39, 0
    %s42 = sadd.s32 %s41, 1
    %s43 = scalar_select %p40, %s41, %s42
    %p46 = pneg %p40
    %p47 = scmp.eq.s32.totalorder %s10, 1
    %p48 = por %p46, %p47
    %p49 = scmp.ne.s32.totalorder %s41, %s44
    %p50 = scmp.eq.s32.totalorder %s10, 0
    %p51 = por %p49, %p50
    %p52 = scmp.ne.s32.totalorder %s41, %s44
    %p53 = scmp.eq.s32.totalorder %s15, 1
    %p54 = por %p52, %p53
    %p55 = scmp.ne.s32.totalorder %s44, %s45
    %p56 = scmp.eq.s32.totalorder %s15, 0
    %p57 = por %p55, %p56
    %p58 = scmp.ne.s32.totalorder %s44, %s45
    %p59 = scmp.eq.s32.totalorder %s16, 1
    %p60 = por %p58, %p59
    %p62 = scmp.ne.s32.totalorder %s45, %s61
    %p63 = scmp.eq.s32.totalorder %s16, 0
    %p64 = por %p62, %p63
    %s65 = ssub.s32 %s17, %s36
    %s66 = ssub.s32 %s18, %s32
    %s67 = sor.u32 %s65, %s66
    %p68 = scmp.eq.s32.totalorder %s67, 0
    %s70 = sadd.s32 %s69, 1
    %s71 = scalar_select %p68, %s69, %s70
    %p74 = pneg %p68
    %p75 = scmp.eq.s32.totalorder %s10, 1
    %p76 = por %p74, %p75
    %p77 = scmp.ne.s32.totalorder %s69, %s72
    %p78 = scmp.eq.s32.totalorder %s10, 0
    %p79 = por %p77, %p78
    %p80 = scmp.ne.s32.totalorder %s69, %s72
    %p81 = scmp.eq.s32.totalorder %s15, 1
    %p82 = por %p80, %p81
    %p83 = scmp.ne.s32.totalorder %s72, %s73
    %p84 = scmp.eq.s32.totalorder %s15, 0
    %p85 = por %p83, %p84
    %p86 = scmp.ne.s32.totalorder %s72, %s73
    %p87 = scmp.eq.s32.totalorder %s16, 1
    %p88 = por %p86, %p87
    %p90 = scmp.ne.s32.totalorder %s73, %s89
    %p91 = scmp.eq.s32.totalorder %s16, 0
    %p92 = por %p90, %p91
    %s93 = ssub.s32 %s17, %s36
    %s94 = ssub.s32 %s19, %s28
    %s95 = sor.u32 %s93, %s94
    %p96 = scmp.eq.s32.totalorder %s95, 0
    %s98 = sadd.s32 %s97, 1
    %s99 = scalar_select %p96, %s97, %s98
    %p102 = pneg %p96
    %p103 = scmp.eq.s32.totalorder %s10, 1
    %p104 = por %p102, %p103
    %p105 = scmp.ne.s32.totalorder %s97, %s100
    %p106 = scmp.eq.s32.totalorder %s10, 0
    %p107 = por %p105, %p106
    %p108 = scmp.ne.s32.totalorder %s97, %s100
    %p109 = scmp.eq.s32.totalorder %s15, 1
    %p110 = por %p108, %p109
    %p111 = scmp.ne.s32.totalorder %s100, %s101
    %p112 = scmp.eq.s32.totalorder %s15, 0
    %p113 = por %p111, %p112
    %p114 = scmp.ne.s32.totalorder %s100, %s101
    %p115 = scmp.eq.s32.totalorder %s16, 1
    %p116 = por %p114, %p115
    %p118 = scmp.ne.s32.totalorder %s101, %s117
    %p119 = scmp.eq.s32.totalorder %s16, 0
    %p120 = por %p118, %p119
    %s121 = ssub.s32 %s17, %s36
    %s122 = ssub.s32 %s19, %s28
    %s123 = sor.u32 %s121, %s122
    %p124 = scmp.eq.s32.totalorder %s123, 0
    %s126 = sadd.s32 %s125, 1
    %s127 = scalar_select %p124, %s125, %s126
    %p130 = pneg %p124
    %p131 = scmp.eq.s32.totalorder %s10, 1
    %p132 = por %p130, %p131
    %p133 = scmp.ne.s32.totalorder %s125, %s128
    %p134 = scmp.eq.s32.totalorder %s10, 0
    %p135 = por %p133, %p134
    %p136 = scmp.ne.s32.totalorder %s125, %s128
    %p137 = scmp.eq.s32.totalorder %s15, 1
    %p138 = por %p136, %p137
    %p139 = scmp.ne.s32.totalorder %s128, %s129
    %p140 = scmp.eq.s32.totalorder %s15, 0
    %p141 = por %p139, %p140
    %p142 = scmp.ne.s32.totalorder %s128, %s129
    %p143 = scmp.eq.s32.totalorder %s16, 1
    %p144 = por %p142, %p143
    %p146 = scmp.ne.s32.totalorder %s129, %s145
    %p147 = scmp.eq.s32.totalorder %s16, 0
    %p148 = por %p146, %p147
    %s149 = ssub.s32 %s17, %s36
    %s150 = ssub.s32 %s18, %s32
    %s151 = sor.u32 %s149, %s150
    %p152 = scmp.eq.s32.totalorder %s151, 0
    %s154 = sadd.s32 %s153, 1
    %s155 = scalar_select %p152, %s153, %s154
    %p158 = pneg %p152
    %p159 = scmp.eq.s32.totalorder %s10, 1
    %p160 = por %p158, %p159
    %p161 = scmp.ne.s32.totalorder %s153, %s156
    %p162 = scmp.eq.s32.totalorder %s10, 0
    %p163 = por %p161, %p162
    %p164 = scmp.ne.s32.totalorder %s153, %s156
    %p165 = scmp.eq.s32.totalorder %s15, 1
    %p166 = por %p164, %p165
    %p167 = scmp.ne.s32.totalorder %s156, %s157
    %p168 = scmp.eq.s32.totalorder %s15, 0
    %p169 = por %p167, %p168
    %p170 = scmp.ne.s32.totalorder %s156, %s157
    %p171 = scmp.eq.s32.totalorder %s16, 1
    %p172 = por %p170, %p171
    %p174 = scmp.ne.s32.totalorder %s157, %s173
    %p175 = scmp.eq.s32.totalorder %s16, 0
    %p176 = por %p174, %p175
    %p177 = scmp.le.s32.totalorder 1, %s10
    %p178 = scmp.lt.s32.totalorder %s10, 3
    %p179 = pnand %p177, %p178
    %p180 = pneg %p179
    // Predicated region
    $region9: #{one_model_forward.17} parent=5 // pred_check
      _
    $region10: #{one_model_forward.17} parent=5 // pred_check_branch
      %182 = sbr.rel (%p179) target = $region12
    $region11: #{one_model_forward.17} parent=5 // pred_region
      %s183 = ssub.s32 %s10, 1
    $region12: #{one_model_forward.17} parent=5 // pred_fallthru
      _
    %p184 = scmp.lt.s32.totalorder %s10, 2
    // Predicated region
    $region13: #{one_model_forward.17} parent=5 // pred_check
      %p185 = pneg %p184
    $region14: #{one_model_forward.17} parent=5 // pred_check_branch
      %187 = sbr.rel (%p185) target = $region16
    $region15: #{one_model_forward.17} parent=5 // pred_region
      // Predicated region
      $region17: #{one_model_forward.17} parent=15 // pred_check
        %p188 = pneg %p51
      $region18: #{one_model_forward.17} parent=15 // pred_check_branch
        %190 = sbr.rel (%p188) target = $region20
      $region19: #{one_model_forward.17} parent=15 // pred_region
        %s191 = smul.u32 8, %s18
        %p192 = scmp.lt.s32.totalorder %s17, 1
        %s193 = scalar_select %p192, %s17, 1
        %p194 = scmp.lt.s32.totalorder %s191, 7
        %s195 = scalar_select %p194, %s191, 7
        %s196 = smul.addr %s193, 8
        %s197 = sadd.s32 %s195, %s196
        %s198 = smul.addr %s197, 4
        %s199 = scalar_lea.vmem %s0, %s198
        %s200 = smul.u32 8, %s18
      $region20: #{one_model_forward.17} parent=15 // pred_fallthru
        _
      // Predicated region
      $region21: #{one_model_forward.17} parent=15 // pred_check
        %p201 = pneg %p79
      $region22: #{one_model_forward.17} parent=15 // pred_check_branch
        %203 = sbr.rel (%p201) target = $region24
      $region23: #{one_model_forward.17} parent=15 // pred_region
        %p204 = scmp.lt.s32.totalorder %s17, 1
        %s205 = scalar_select %p204, %s17, 1
        %p206 = scmp.lt.s32.totalorder %s18, 0
        %s207 = scalar_select %p206, %s18, 0
        %s208 = sadd.s32 %s207, %s205
        %s209 = scalar_lea.vmem %s1, %s208
      $region24: #{one_model_forward.17} parent=15 // pred_fallthru
        _
      // Predicated region
      $region25: #{one_model_forward.17} parent=15 // pred_check
        %p210 = pneg %p107
      $region26: #{one_model_forward.17} parent=15 // pred_check_branch
        %212 = sbr.rel (%p210) target = $region28
      $region27: #{one_model_forward.17} parent=15 // pred_region
        %s213 = smul.u32 8, %s19
        %p214 = scmp.lt.s32.totalorder %s17, 1
        %s215 = scalar_select %p214, %s17, 1
        %p216 = scmp.lt.s32.totalorder %s213, 7
        %s217 = scalar_select %p216, %s213, 7
        %s218 = smul.addr %s215, 8
        %s219 = sadd.s32 %s217, %s218
        %s220 = smul.addr %s219, 4
        %s221 = scalar_lea.vmem %s2, %s220
        %s222 = smul.u32 8, %s19
      $region28: #{one_model_forward.17} parent=15 // pred_fallthru
        _
      // Predicated region
      $region29: #{one_model_forward.17} parent=15 // pred_check
        %p223 = pneg %p135
      $region30: #{one_model_forward.17} parent=15 // pred_check_branch
        %225 = sbr.rel (%p223) target = $region32
      $region31: #{one_model_forward.17} parent=15 // pred_region
        %s226 = smul.u32 8, %s19
        %p227 = scmp.lt.s32.totalorder %s17, 1
        %s228 = scalar_select %p227, %s17, 1
        %p229 = scmp.lt.s32.totalorder %s226, 7
        %s230 = scalar_select %p229, %s226, 7
        %s231 = smul.addr %s228, 8
        %s232 = sadd.s32 %s230, %s231
        %s233 = smul.addr %s232, 8
        %s234 = scalar_lea.vmem %s3, %s233
        %s235 = smul.u32 8, %s19
      $region32: #{one_model_forward.17} parent=15 // pred_fallthru
        _
    $region16: #{one_model_forward.17} parent=5 // pred_fallthru
      _
    %p236 = scmp.le.s32.totalorder 1, %s10
    %p237 = scmp.lt.s32.totalorder %s10, 3
    %p238 = pnand %p236, %p237
    %p239 = pneg %p238
    // Predicated region
    $region33: #{one_model_forward.17} parent=5 // pred_check
      _
    $region34: #{one_model_forward.17} parent=5 // pred_check_branch
      %241 = sbr.rel (%p238) target = $region36
    $region35: #{one_model_forward.17} parent=5 // pred_region
      %s242 = ssub.s32 %s10, 1
      %s243 = smul.u32 8, %s21
      %p244 = scmp.lt.s32.totalorder %s20, 1
      %s245 = scalar_select %p244, %s20, 1
      %p246 = scmp.lt.s32.totalorder %s243, 7
      %s247 = scalar_select %p246, %s243, 7
      %s248 = smul.addr %s245, 8
      %s249 = sadd.s32 %s247, %s248
      %s250 = smul.addr %s249, 4
      %s251 = scalar_lea.vmem %s0, %s250
      %p252 = pneg %p57
      %p253 = pneg %p54
      %p254 = scmp.lt.s32.totalorder %s20, 1
      %s255 = scalar_select %p254, %s20, 1
      %p256 = scmp.lt.s32.totalorder %s21, 0
      %s257 = scalar_select %p256, %s21, 0
      %s258 = sadd.s32 %s257, %s255
      %s259 = scalar_lea.vmem %s1, %s258
      %p260 = pneg %p85
      %p261 = pneg %p82
      %s262 = smul.u32 8, %s22
      %p263 = scmp.lt.s32.totalorder %s20, 1
      %s264 = scalar_select %p263, %s20, 1
      %p265 = scmp.lt.s32.totalorder %s262, 7
      %s266 = scalar_select %p265, %s262, 7
      %s267 = smul.addr %s264, 8
      %s268 = sadd.s32 %s266, %s267
      %s269 = smul.addr %s268, 4
      %s270 = scalar_lea.vmem %s2, %s269
      %p271 = pneg %p113
      %p272 = pneg %p110
      %s273 = smul.u32 8, %s22
      %p274 = scmp.lt.s32.totalorder %s20, 1
      %s275 = scalar_select %p274, %s20, 1
      %p276 = scmp.lt.s32.totalorder %s273, 7
      %s277 = scalar_select %p276, %s273, 7
      %s278 = smul.addr %s275, 8
      %s279 = sadd.s32 %s277, %s278
      %s280 = smul.addr %s279, 8
      %s281 = scalar_lea.vmem %s3, %s280
      %p282 = pneg %p141
      %p283 = pneg %p138
      %p284 = pneg %p169
      %p285 = pneg %p166
      %p286 = scmp.lt.s32.totalorder %s20, 1
      %s287 = scalar_select %p286, %s20, 1
      %p288 = scmp.lt.s32.totalorder %s21, 0
      %s289 = scalar_select %p288, %s21, 0
      %s290 = sadd.s32 %s289, %s287
      %s291 = scalar_lea.vmem %s4, %s290
      %s292 = smul.u32 8, %s21
      %p293 = scmp.lt.s32.totalorder %s20, 1
      %s294 = scalar_select %p293, %s20, 1
      %p295 = scmp.lt.s32.totalorder %s292, 7
      %s296 = scalar_select %p295, %s292, 7
      %s297 = smul.addr %s294, 8
      %s298 = sadd.s32 %s296, %s297
      %s299 = smul.addr %s298, 4
      %s300 = scalar_lea.vmem %s0, %s299
      %s301 = smul.u32 8, %s21
      %p302 = scmp.lt.s32.totalorder %s20, 1
      %s303 = scalar_select %p302, %s20, 1
      %p304 = scmp.lt.s32.totalorder %s21, 0
      %s305 = scalar_select %p304, %s21, 0
      %s306 = sadd.s32 %s305, %s303
      %s307 = scalar_lea.vmem %s1, %s306
      %s308 = smul.u32 8, %s22
      %p309 = scmp.lt.s32.totalorder %s20, 1
      %s310 = scalar_select %p309, %s20, 1
      %p311 = scmp.lt.s32.totalorder %s308, 7
      %s312 = scalar_select %p311, %s308, 7
      %s313 = smul.addr %s310, 8
      %s314 = sadd.s32 %s312, %s313
      %s315 = smul.addr %s314, 4
      %s316 = scalar_lea.vmem %s2, %s315
      %s317 = smul.u32 8, %s22
      %s318 = smul.u32 8, %s22
      %p319 = scmp.lt.s32.totalorder %s20, 1
      %s320 = scalar_select %p319, %s20, 1
      %p321 = scmp.lt.s32.totalorder %s318, 7
      %s322 = scalar_select %p321, %s318, 7
      %s323 = smul.addr %s320, 8
      %s324 = sadd.s32 %s322, %s323
      %s325 = smul.addr %s324, 8
      %s326 = scalar_lea.vmem %s3, %s325
      %s327 = smul.u32 8, %s22
      %p328 = scmp.lt.s32.totalorder %s20, 1
      %s329 = scalar_select %p328, %s20, 1
      %p330 = scmp.lt.s32.totalorder %s21, 0
      %s331 = scalar_select %p330, %s21, 0
      %s332 = sadd.s32 %s331, %s329
      %s333 = scalar_lea.vmem %s4, %s332
      %p335 = scmp.eq.s32.totalorder %s22, 0
      // Predicated region
      $region37: #{one_model_forward.17} parent=35 // pred_check
        %p336 = pneg %p335
      $region38: #{one_model_forward.17} parent=35 // pred_check_branch
        %338 = sbr.rel (%p336) target = $region40
      $region39: #{one_model_forward.17} parent=35 // pred_region
        %vm339 = vcmask 516096
        %340 = vst.msk [vmem:[#allocation2] sm:$0x1] %vm339, -inf
      $region40: #{one_model_forward.17} parent=35 // pred_fallthru
        _
      %v341 = vld [vmem:[%s316] sm:$0xf]
      %v342 = vld [vmem:[%s316 + $0x4] sm:$0xf]
      %v343 = vld [vmem:[%s316 + $0x8] sm:$0xf]
      %v344 = vld [vmem:[%s316 + $0xc] sm:$0xf]
      %v345 = vld [vmem:[%s316 + $0x10] sm:$0xf]
      %v346 = vld [vmem:[%s316 + $0x14] sm:$0xf]
      %v347 = vld [vmem:[%s316 + $0x18] sm:$0xf]
      %v348 = vld [vmem:[%s316 + $0x1c] sm:$0xf]
      %v349 = vld [vmem:[%s300] sm:$0xf]
      %v350 = vld [vmem:[%s300 + $0x4] sm:$0xf]
      %v351 = vld [vmem:[%s300 + $0x8] sm:$0xf]
      %v352 = vld [vmem:[%s300 + $0xc] sm:$0xf]
      %v353 = vld [vmem:[%s300 + $0x10] sm:$0xf]
      %v354 = vld [vmem:[%s300 + $0x14] sm:$0xf]
      %v355 = vld [vmem:[%s300 + $0x18] sm:$0xf]
      %v356 = vld [vmem:[%s300 + $0x1c] sm:$0xf]
      %v365 = vunpack.c.l.b16 %v341
      %v366 = vunpack.c.l.b16 %v342
      %v367 = vunpack.c.l.b16 %v343
      %v368 = vunpack.c.l.b16 %v344
      %v369 = vunpack.c.l.b16 %v345
      %v370 = vunpack.c.l.b16 %v346
      %v371 = vunpack.c.l.b16 %v347
      %v372 = vunpack.c.l.b16 %v348
      %v373 = vpack.c.b16 %v366, %v365
      %v374 = vpack.c.b16 %v368, %v367
      %v375 = vpack.c.b16 %v370, %v369
      %v376 = vpack.c.b16 %v372, %v371
      %v385 = vunpack.c.l.b16 %v349
      %v386 = vunpack.c.l.b16 %v350
      %v387 = vunpack.c.l.b16 %v351
      %v388 = vunpack.c.l.b16 %v352
      %v389 = vunpack.c.l.b16 %v353
      %v390 = vunpack.c.l.b16 %v354
      %v391 = vunpack.c.l.b16 %v355
      %v392 = vunpack.c.l.b16 %v356
      %v393 = vpack.c.b16 %v386, %v385
      %v394 = vpack.c.b16 %v388, %v387
      %v395 = vpack.c.b16 %v390, %v389
      %v396 = vpack.c.b16 %v392, %v391
      %vm397 = vcmask 261120
      %v399 = vsel %vm397, %v373, 0
      %v402 = vsel %vm397, %v374, 0
      %v405 = vsel %vm397, %v375, 0
      %v408 = vsel %vm397, %v376, 0
      %v411 = vsel %vm397, %v393, 0
      %v414 = vsel %vm397, %v394, 0
      %v417 = vsel %vm397, %v395, 0
      %v420 = vsel %vm397, %v396, 0
      %422 = vmatprep.subr.bf16.mxu0 0
      %423 = vmatpush1.bf16.xpose.msra.mxu0 0
      %424 = vmatprep.subr.bf16.mxu0 0
      %425 = vmatpush1.bf16.xpose.msra.mxu0 0
      %426 = vmatprep.subr.bf16.mxu0 0
      %427 = vmatpush1.bf16.xpose.msra.mxu0 0
      %428 = vmatprep.subr.bf16.mxu0 0
      %429 = vmatpush1.bf16.xpose.msra.mxu0 0
      %430 = vmatprep.subr.bf16.mxu0 0
      %431 = vmatpush1.bf16.xpose.msra.mxu0 %v420
      %432 = vmatprep.subr.bf16.mxu0 0
      %433 = vmatpush1.bf16.xpose.msra.mxu0 %v417
      %434 = vmatprep.subr.bf16.mxu0 0
      %435 = vmatpush1.bf16.xpose.msra.mxu0 %v414
      %436 = vmatprep.subr.bf16.mxu0 0
      %437 = vmatpush1.bf16.xpose.msra.mxu0 %v411
      %438 = vmatprep.subr.bf16.mxu0 0
      %439 = vmatpush2.bf16.xpose.msra.mxu0 0
      %440 = vmatprep.subr.bf16.mxu0 0
      %441 = vmatpush2.bf16.xpose.msra.mxu0 0
      %442 = vmatprep.subr.bf16.mxu0 0
      %443 = vmatpush2.bf16.xpose.msra.mxu0 0
      %444 = vmatprep.subr.bf16.mxu0 0
      %445 = vmatpush2.bf16.xpose.msra.mxu0 0
      %446 = vmatprep.subr.bf16.mxu0 0
      %447 = vmatpush2.bf16.xpose.msra.mxu0 0
      %448 = vmatprep.subr.bf16.mxu0 0
      %449 = vmatpush2.bf16.xpose.msra.mxu0 0
      %450 = vmatprep.subr.bf16.mxu0 0
      %451 = vmatpush2.bf16.xpose.msra.mxu0 0
      %452 = vmatprep.subr.bf16.mxu0 0
      %453 = vmatpush2.bf16.xpose.msra.mxu0 0
      %454 = vmatprep.mubr.bf16.mxu0 0
      %455 = vmatmul.mubr.bf16.gmra.mxu0 %v399
      %v456 = vpop.f32.mrf.mxu0
      %v457 = vadd.f32 0.0, %v456
      %v458 = vpop.f32.mrf.mxu0
      %v459 = vpop.f32.mrf.mxu0
      %v460 = vadd.f32 0.0, %v459
      %v461 = vpop.f32.mrf.mxu0
      %462 = vmatprep.mubr.bf16.mxu0 0
      %463 = vmatmul.mubr.bf16.gmra.mxu0 %v402
      %v464 = vpop.f32.mrf.mxu0
      %v465 = vadd.f32 0.0, %v464
      %v466 = vpop.f32.mrf.mxu0
      %v467 = vpop.f32.mrf.mxu0
      %v468 = vadd.f32 0.0, %v467
      %v469 = vpop.f32.mrf.mxu0
      %470 = vmatprep.mubr.bf16.mxu0 0
      %471 = vmatmul.mubr.bf16.gmra.mxu0 %v405
      %v472 = vpop.f32.mrf.mxu0
      %v473 = vadd.f32 0.0, %v472
      %v474 = vpop.f32.mrf.mxu0
      %v475 = vpop.f32.mrf.mxu0
      %v476 = vadd.f32 0.0, %v475
      %v477 = vpop.f32.mrf.mxu0
      %478 = vmatprep.mubr.bf16.mxu0 0
      %479 = vmatmul.mubr.bf16.gmra.mxu0 %v408
      %v480 = vpop.f32.mrf.mxu0
      %v481 = vadd.f32 0.0, %v480
      %v482 = vpop.f32.mrf.mxu0
      %v483 = vpop.f32.mrf.mxu0
      %v484 = vadd.f32 0.0, %v483
      %v485 = vpop.f32.mrf.mxu0
      %486 = vdwg.mxu0
      %v487 = vld [vmem:[%s326] sm:$0xff]
      %v488 = vld [vmem:[%s326 + $0x8] sm:$0xff]
      %v489 = vld [vmem:[%s326 + $0x10] sm:$0xff]
      %v490 = vld [vmem:[%s326 + $0x18] sm:$0xff]
      %v491 = vld [vmem:[%s326 + $0x20] sm:$0xff]
      %v492 = vld [vmem:[%s326 + $0x28] sm:$0xff]
      %v493 = vld [vmem:[%s326 + $0x30] sm:$0xff]
      %v494 = vld [vmem:[%s326 + $0x38] sm:$0xff]
      %v495 = vld [vmem:[%s307] sm:$0x1]
      %497 = vset.pattern.permute.xlu0 0
      %498 = vperm.xlu0 %497, %v487
      %v499 = vpop.permute.xlu0 %498
      %502 = vset.pattern.permute.xlu0 0
      %503 = vperm.xlu0 %502, %v488
      %v504 = vpop.permute.xlu0 %503
      %507 = vset.pattern.permute.xlu0 0
      %508 = vperm.xlu0 %507, %v489
      %v509 = vpop.permute.xlu0 %508
      %512 = vset.pattern.permute.xlu0 0
      %513 = vperm.xlu0 %512, %v490
      %v514 = vpop.permute.xlu0 %513
      %517 = vset.pattern.permute.xlu0 0
      %518 = vperm.xlu0 %517, %v491
      %v519 = vpop.permute.xlu0 %518
      %522 = vset.pattern.permute.xlu0 0
      %523 = vperm.xlu0 %522, %v492
      %v524 = vpop.permute.xlu0 %523
      %527 = vset.pattern.permute.xlu0 0
      %528 = vperm.xlu0 %527, %v493
      %v529 = vpop.permute.xlu0 %528
      %532 = vset.pattern.permute.xlu0 0
      %533 = vperm.xlu0 %532, %v494
      %v534 = vpop.permute.xlu0 %533
      %v537 = vlaneseq
      %v538 = vshrl.u32 %v537, 7
      %v539 = vsub.s32 0, %v538
      %v540 = vrot.slane %v495, %v539
      %v542 = vmul.f32 %v499, %v540
      %v543 = vmul.f32 %v504, %v540
      %v544 = vmul.f32 %v509, %v540
      %v545 = vmul.f32 %v514, %v540
      %v546 = vmul.f32 %v519, %v540
      %v547 = vmul.f32 %v524, %v540
      %v548 = vmul.f32 %v529, %v540
      %v549 = vmul.f32 %v534, %v540
      %v550 = vadd.f32 %v542, 1e-07
      %v551 = vadd.f32 %v543, 1e-07
      %v552 = vadd.f32 %v544, 1e-07
      %v553 = vadd.f32 %v545, 1e-07
      %v554 = vadd.f32 %v546, 1e-07
      %v555 = vadd.f32 %v547, 1e-07
      %v556 = vadd.f32 %v548, 1e-07
      %v557 = vadd.f32 %v549, 1e-07
      %v558 = vrcp.pop %v550
      %v559 = vmul.f32 %v457, %v558
      %v560 = vrcp.pop %v551
      %v561 = vmul.f32 %v460, %v560
      %v562 = vrcp.pop %v552
      %v563 = vmul.f32 %v465, %v562
      %v564 = vrcp.pop %v553
      %v565 = vmul.f32 %v468, %v564
      %v566 = vrcp.pop %v554
      %v567 = vmul.f32 %v473, %v566
      %v568 = vrcp.pop %v555
      %v569 = vmul.f32 %v476, %v568
      %v570 = vrcp.pop %v556
      %v571 = vmul.f32 %v481, %v570
      %v572 = vrcp.pop %v557
      %v573 = vmul.f32 %v484, %v572
      %v574 = vld [vmem:[#allocation2] sm:$0x1]
      %vm575 = vcmask 523264
      %v576 = vsel %vm575, %v559, -inf
      %v577 = vsel %vm575, %v561, -inf
      %v578 = vsel %vm575, %v563, -inf
      %v579 = vsel %vm575, %v565, -inf
      %v580 = vsel %vm575, %v567, -inf
      %v581 = vmax.f32 %v576, %v580
      %v582 = vsel %vm575, %v569, -inf
      %v583 = vmax.f32 %v577, %v582
      %v584 = vsel %vm575, %v571, -inf
      %v585 = vmax.f32 %v578, %v584
      %v586 = vsel %vm575, %v573, -inf
      %v587 = vmax.f32 %v579, %v586
      %v588 = vmax.f32 %v581, %v583
      %v589 = vmax.f32 %v585, %v587
      %v590 = vmax.f32 %v588, %v589
      %v591 = vrot.slane %v590, 4
      %v592 = vmax.f32 %v590, %v591
      %v593 = vrot.slane %v592, 2
      %v594 = vmax.f32 %v592, %v593
      %v595 = vrot.slane %v594, 1
      %v596 = vmax.f32 %v594, %v595
      %v597 = vmax.f32 %v574, %v596
      %vm598 = vcmask 516096
      %599 = vst.msk [vmem:[#allocation2] sm:$0x1] %vm598, %v597
      // Predicated region
      $region41: #{one_model_forward.17} parent=35 // pred_check
        %p600 = pneg %p335
      $region42: #{one_model_forward.17} parent=35 // pred_check_branch
        %602 = sbr.rel (%p600) target = $region44
      $region43: #{one_model_forward.17} parent=35 // pred_region
        %v603 = vld [vmem:[#allocation2] sm:$0x1]
        %604 = vst.msk [vmem:[%s333] sm:$0x1] %vm598, %v603
      $region44: #{one_model_forward.17} parent=35 // pred_fallthru
        _
      %p605 = scmp.lt.s32.totalorder %s20, 1
      %s606 = scalar_select %p605, %s20, 1
      %p607 = scmp.lt.s32.totalorder %s21, 0
      %s608 = scalar_select %p607, %s21, 0
      %s609 = sadd.s32 %s608, %s606
      %s610 = scalar_lea.vmem %s4, %s609
      // Predicated region
      $region45: #{one_model_forward.17} parent=35 // pred_check
        %p611 = pneg %p166
      $region46: #{one_model_forward.17} parent=35 // pred_check_branch
        %613 = sbr.rel (%p611) target = $region48
      $region47: #{one_model_forward.17} parent=35 // pred_region
        _
      $region48: #{one_model_forward.17} parent=35 // pred_fallthru
        _
    $region36: #{one_model_forward.17} parent=5 // pred_fallthru
      _
    %p614 = scmp.le.s32.totalorder 2, %s10
    // Predicated region
    $region49: #{one_model_forward.17} parent=5 // pred_check
      %p615 = pneg %p614
    $region50: #{one_model_forward.17} parent=5 // pred_check_branch
      %617 = sbr.rel (%p615) target = $region52
    $region51: #{one_model_forward.17} parent=5 // pred_region
      %s618 = ssub.s32 %s10, 2
      // Predicated region
      $region53: #{one_model_forward.17} parent=51 // pred_check
        %p619 = pneg %p172
      $region54: #{one_model_forward.17} parent=51 // pred_check_branch
        %621 = sbr.rel (%p619) target = $region56
      $region55: #{one_model_forward.17} parent=51 // pred_region
        %p622 = scmp.lt.s32.totalorder %s23, 1
        %s623 = scalar_select %p622, %s23, 1
        %p624 = scmp.lt.s32.totalorder %s24, 0
        %s625 = scalar_select %p624, %s24, 0
        %s626 = sadd.s32 %s625, %s623
        %s627 = scalar_lea.vmem %s4, %s626
      $region56: #{one_model_forward.17} parent=51 // pred_fallthru
        _
    $region52: #{one_model_forward.17} parent=5 // pred_fallthru
      _
  $region6: #{one_model_forward.17} parent=0 // loop_footer
    %s14 = sadd.s32 1, %s10
  $region7: #{one_model_forward.17} parent=0 // loop_footer_branch
    %9 = sbr.rel target = $region3
  $region8: #{one_model_forward.17} parent=0 // loop_exit
    _

// kernel: one_model_forward.15
$region0: #{one_model_forward.15}
  #allocation0 [shape = 'u32[]', space=smem, size = 0x4, offset = 0x4, fixed_abs, tag = 'smem constant byte address 0x4 - core index']
  #allocation1 [shape = 'u32[144,128]{1,0:T(1,128)}', space=vmem, size = 0x12000, scoped, tag = 'internal scratch']
  %s0 = inlined_call_operand.vmem [shape: f32[8,32], index: 0, kind: input, shape index: {}]
  %s1 = inlined_call_operand.vmem [shape: f32[32,32], index: 1, kind: input, shape index: {}]
  %s2 = inlined_call_operand.vmem [shape: f32[1,32], index: 2, kind: input, shape index: {}]
  %s3 = inlined_call_operand.vmem [shape: f32[32,32], index: 3, kind: input, shape index: {}]
  %s4 = inlined_call_operand.vmem [shape: f32[1,32], index: 4, kind: input, shape index: {}]
  %s5 = inlined_call_operand.vmem [shape: f32[8,32], index: 5, kind: output, shape index: {}]
  %s6 = sld [smem:[#allocation0]]
  $region30: #{one_model_forward.15} parent=0
    _
  %s8 = ssub.s32 1, %s6
  %s9 = scalar_select 0, %s8, %s6
  // Predicated region
  $region2: #{one_model_forward.15} parent=0 // pred_check
    _
  $region3: #{one_model_forward.15} parent=0 // pred_check_branch
    %11 = sbr.rel (0) target = $region5
  $region4: #{one_model_forward.15} parent=0 // pred_region
    _
  $region5: #{one_model_forward.15} parent=0 // pred_fallthru
    _
  // Predicated region
  $region6: #{one_model_forward.15} parent=0 // pred_check
    _
  $region7: #{one_model_forward.15} parent=0 // pred_check_branch
    %13 = sbr.rel (0) target = $region9
  $region8: #{one_model_forward.15} parent=0 // pred_region
    _
  $region9: #{one_model_forward.15} parent=0 // pred_fallthru
    _
  // Predicated region
  $region10: #{one_model_forward.15} parent=0 // pred_check
    _
  $region11: #{one_model_forward.15} parent=0 // pred_check_branch
    %15 = sbr.rel (0) target = $region13
  $region12: #{one_model_forward.15} parent=0 // pred_region
    _
  $region13: #{one_model_forward.15} parent=0 // pred_fallthru
    _
  // Predicated region
  $region14: #{one_model_forward.15} parent=0 // pred_check
    _
  $region15: #{one_model_forward.15} parent=0 // pred_check_branch
    %17 = sbr.rel (0) target = $region17
  $region16: #{one_model_forward.15} parent=0 // pred_region
    _
  $region17: #{one_model_forward.15} parent=0 // pred_fallthru
    _
  // Predicated region
  $region18: #{one_model_forward.15} parent=0 // pred_check
    _
  $region19: #{one_model_forward.15} parent=0 // pred_check_branch
    %19 = sbr.rel (0) target = $region21
  $region20: #{one_model_forward.15} parent=0 // pred_region
    _
  $region21: #{one_model_forward.15} parent=0 // pred_fallthru
    _
  %v20 = vld [vmem:[%s0] sm:$0xff]
  %v21 = vld [vmem:[%s1] sm:$0xff]
  %v22 = vld [vmem:[%s1 + $0x8] sm:$0xff]
  %v23 = vld [vmem:[%s1 + $0x10] sm:$0xff]
  %v24 = vld [vmem:[%s1 + $0x18] sm:$0xff]
  %v25 = vld [vmem:[%s2] sm:$0x1]
  %v27 = vlaneseq
  %v28 = vshrl.u32 %v27, 7
  %v29 = vsub.s32 0, %v28
  %v30 = vrot.slane %v25, %v29
  %vm32 = vcmask 261120
  %v34 = vsel %vm32, %v20, 0
  %36 = vmatprep.subr.mxu0 0.0
  %37 = vmatpush1.msra.mxu0 0.0
  %38 = vmatprep.subr.mxu0 0.0
  %39 = vmatpush1.msra.mxu0 0.0
  %40 = vmatprep.subr.mxu0 0.0
  %41 = vmatpush1.msra.mxu0 0.0
  %42 = vmatprep.subr.mxu0 0.0
  %43 = vmatpush1.msra.mxu0 0.0
  %44 = vmatprep.subr.mxu0 0.0
  %45 = vmatpush1.msra.mxu0 0.0
  %46 = vmatprep.subr.mxu0 0.0
  %47 = vmatpush1.msra.mxu0 0.0
  %48 = vmatprep.subr.mxu0 0.0
  %49 = vmatpush1.msra.mxu0 0.0
  %50 = vmatprep.subr.mxu0 0.0
  %51 = vmatpush1.msra.mxu0 0.0
  %52 = vmatprep.subr.mxu0 0.0
  %53 = vmatpush1.msra.mxu0 0.0
  %54 = vmatprep.subr.mxu0 0.0
  %55 = vmatpush1.msra.mxu0 0.0
  %56 = vmatprep.subr.mxu0 0.0
  %57 = vmatpush1.msra.mxu0 0.0
  %58 = vmatprep.subr.mxu0 0.0
  %59 = vmatpush1.msra.mxu0 0.0
  %60 = vmatprep.subr.mxu0 0.0
  %61 = vmatpush1.msra.mxu0 %v24
  %62 = vmatprep.subr.mxu0 0.0
  %63 = vmatpush1.msra.mxu0 %v23
  %64 = vmatprep.subr.mxu0 0.0
  %65 = vmatpush1.msra.mxu0 %v22
  %66 = vmatprep.subr.mxu0 0.0
  %67 = vmatpush1.msra.mxu0 %v21
  %68 = vmatprep.subr.mxu0 0.0
  %69 = vmatpush2.msra.mxu0 0.0
  %70 = vmatprep.subr.mxu0 0.0
  %71 = vmatpush2.msra.mxu0 0.0
  %72 = vmatprep.subr.mxu0 0.0
  %73 = vmatpush2.msra.mxu0 0.0
  %74 = vmatprep.subr.mxu0 0.0
  %75 = vmatpush2.msra.mxu0 0.0
  %76 = vmatprep.subr.mxu0 0.0
  %77 = vmatpush2.msra.mxu0 0.0
  %78 = vmatprep.subr.mxu0 0.0
  %79 = vmatpush2.msra.mxu0 0.0
  %80 = vmatprep.subr.mxu0 0.0
  %81 = vmatpush2.msra.mxu0 0.0
  %82 = vmatprep.subr.mxu0 0.0
  %83 = vmatpush2.msra.mxu0 0.0
  %84 = vmatprep.subr.mxu0 0.0
  %85 = vmatpush2.msra.mxu0 0.0
  %86 = vmatprep.subr.mxu0 0.0
  %87 = vmatpush2.msra.mxu0 0.0
  %88 = vmatprep.subr.mxu0 0.0
  %89 = vmatpush2.msra.mxu0 0.0
  %90 = vmatprep.subr.mxu0 0.0
  %91 = vmatpush2.msra.mxu0 0.0
  %92 = vmatprep.subr.mxu0 0.0
  %93 = vmatpush2.msra.mxu0 0.0
  %94 = vmatprep.subr.mxu0 0.0
  %95 = vmatpush2.msra.mxu0 0.0
  %96 = vmatprep.subr.mxu0 0.0
  %97 = vmatpush2.msra.mxu0 0.0
  %98 = vmatprep.subr.mxu0 0.0
  %99 = vmatpush2.msra.mxu0 0.0
  %100 = vmatprep.mubr.f32.mxu0 0.0
  %101 = vmatmul.mubr.f32.gmra.mxu0 %v34
  %v102 = vpop.f32.mrf.mxu0
  %v103 = vadd.f32 %v30, %v102
  %v104 = vpop.f32.mrf.mxu0
  %105 = vdwg.mxu0
  %v106 = vmax.f32 %v103, 0.0
  %v107 = vld [vmem:[%s3] sm:$0xff]
  %v108 = vld [vmem:[%s3 + $0x8] sm:$0xff]
  %v109 = vld [vmem:[%s3 + $0x10] sm:$0xff]
  %v110 = vld [vmem:[%s3 + $0x18] sm:$0xff]
  %v111 = vld [vmem:[%s4] sm:$0x1]
  %v113 = vlaneseq
  %v114 = vshrl.u32 %v113, 7
  %v115 = vsub.s32 0, %v114
  %v116 = vrot.slane %v111, %v115
  %v119 = vsel %vm32, %v106, 0
  %121 = vmatprep.subr.mxu0 0.0
  %122 = vmatpush1.msra.mxu0 0.0
  %123 = vmatprep.subr.mxu0 0.0
  %124 = vmatpush1.msra.mxu0 0.0
  %125 = vmatprep.subr.mxu0 0.0
  %126 = vmatpush1.msra.mxu0 0.0
  %127 = vmatprep.subr.mxu0 0.0
  %128 = vmatpush1.msra.mxu0 0.0
  %129 = vmatprep.subr.mxu0 0.0
  %130 = vmatpush1.msra.mxu0 0.0
  %131 = vmatprep.subr.mxu0 0.0
  %132 = vmatpush1.msra.mxu0 0.0
  %133 = vmatprep.subr.mxu0 0.0
  %134 = vmatpush1.msra.mxu0 0.0
  %135 = vmatprep.subr.mxu0 0.0
  %136 = vmatpush1.msra.mxu0 0.0
  %137 = vmatprep.subr.mxu0 0.0
  %138 = vmatpush1.msra.mxu0 0.0
  %139 = vmatprep.subr.mxu0 0.0
  %140 = vmatpush1.msra.mxu0 0.0
  %141 = vmatprep.subr.mxu0 0.0
  %142 = vmatpush1.msra.mxu0 0.0
  %143 = vmatprep.subr.mxu0 0.0
  %144 = vmatpush1.msra.mxu0 0.0
  %145 = vmatprep.subr.mxu0 0.0
  %146 = vmatpush1.msra.mxu0 %v110
  %147 = vmatprep.subr.mxu0 0.0
  %148 = vmatpush1.msra.mxu0 %v109
  %149 = vmatprep.subr.mxu0 0.0
  %150 = vmatpush1.msra.mxu0 %v108
  %151 = vmatprep.subr.mxu0 0.0
  %152 = vmatpush1.msra.mxu0 %v107
  %153 = vmatprep.subr.mxu0 0.0
  %154 = vmatpush2.msra.mxu0 0.0
  %155 = vmatprep.subr.mxu0 0.0
  %156 = vmatpush2.msra.mxu0 0.0
  %157 = vmatprep.subr.mxu0 0.0
  %158 = vmatpush2.msra.mxu0 0.0
  %159 = vmatprep.subr.mxu0 0.0
  %160 = vmatpush2.msra.mxu0 0.0
  %161 = vmatprep.subr.mxu0 0.0
  %162 = vmatpush2.msra.mxu0 0.0
  %163 = vmatprep.subr.mxu0 0.0
  %164 = vmatpush2.msra.mxu0 0.0
  %165 = vmatprep.subr.mxu0 0.0
  %166 = vmatpush2.msra.mxu0 0.0
  %167 = vmatprep.subr.mxu0 0.0
  %168 = vmatpush2.msra.mxu0 0.0
  %169 = vmatprep.subr.mxu0 0.0
  %170 = vmatpush2.msra.mxu0 0.0
  %171 = vmatprep.subr.mxu0 0.0
  %172 = vmatpush2.msra.mxu0 0.0
  %173 = vmatprep.subr.mxu0 0.0
  %174 = vmatpush2.msra.mxu0 0.0
  %175 = vmatprep.subr.mxu0 0.0
  %176 = vmatpush2.msra.mxu0 0.0
  %177 = vmatprep.subr.mxu0 0.0
  %178 = vmatpush2.msra.mxu0 0.0
  %179 = vmatprep.subr.mxu0 0.0
  %180 = vmatpush2.msra.mxu0 0.0
  %181 = vmatprep.subr.mxu0 0.0
  %182 = vmatpush2.msra.mxu0 0.0
  %183 = vmatprep.subr.mxu0 0.0
  %184 = vmatpush2.msra.mxu0 0.0
  %185 = vmatprep.mubr.f32.mxu0 0.0
  %186 = vmatmul.mubr.f32.gmra.mxu0 %v119
  %v187 = vpop.f32.mrf.mxu0
  %v188 = vadd.f32 %v116, %v187
  %v189 = vpop.f32.mrf.mxu0
  %190 = vdwg.mxu0
  %v191 = vxor.u32 %v188, 2147483648
  %v192 = vmul.f32 %v191, 1.442695
  %v193 = vpow.pop %v192
  %v194 = vadd.f32 %v193, 1.0
  %v195 = vrcp.pop %v194
  %v196 = vmul.f32 1.0, %v195
  %197 = vst.msk [vmem:[%s5] sm:$0xff] %vm32, %v196
  // Predicated region
  $region22: #{one_model_forward.15} parent=0 // pred_check
    _
  $region23: #{one_model_forward.15} parent=0 // pred_check_branch
    %199 = sbr.rel (0) target = $region25
  $region24: #{one_model_forward.15} parent=0 // pred_region
    _
  $region25: #{one_model_forward.15} parent=0 // pred_fallthru
    _
  // Predicated region
  $region26: #{one_model_forward.15} parent=0 // pred_check
    _
  $region27: #{one_model_forward.15} parent=0 // pred_check_branch
    %201 = sbr.rel (0) target = $region29
  $region28: #{one_model_forward.15} parent=0 // pred_region
    _
  $region29: #{one_model_forward.15} parent=0 // pred_fallthru
    _

// kernel: one_model_forward.20
$region0: #{one_model_forward.20}
  #allocation0 [shape = 'u32[]', space=smem, size = 0x4, offset = 0x4, fixed_abs, tag = 'smem constant byte address 0x4 - core index']
  #allocation1 [shape = 'u32[144,128]{1,0:T(1,128)}', space=vmem, size = 0x12000, scoped, tag = 'internal scratch']
  %s0 = inlined_call_operand.vmem [shape: bf16[2,64,32], index: 0, kind: input, shape index: {}]
  %s1 = inlined_call_operand.vmem [shape: bf16[32,160], index: 1, kind: input, shape index: {}]
  %s2 = inlined_call_operand.vmem [shape: f32[2,1,160], index: 2, kind: input, shape index: {}]
  %s3 = inlined_call_operand.vmem [shape: bf16[2,64,160], index: 3, kind: output, shape index: {}]
  %s4 = sld [smem:[#allocation0]]
  $region45: #{one_model_forward.20} parent=0
    _
  %s6 = ssub.s32 1, %s4
  %s7 = scalar_select 0, %s6, %s4
  loop: start=0, step=1, limit=4
  $region2: #{one_model_forward.20} parent=0 // loop_pre_header
    _
  $region3: #{one_model_forward.20} parent=0 // loop_header
    %s9 = sphi 0, %s13
    %p10 = scmp.ge.s32.totalorder %s9, 4
    %s16 = sphi 0, %s28
    %s17 = sphi 0, %s24
    %s18 = sphi 0, %s16
    %s19 = sphi 0, %s17
    %s20 = sphi 0, %s18
    %s21 = sphi 0, %s19
    %s33 = sphi 0, %s35
    %s36 = sphi 0, %s33
    %s37 = sphi 0, %s36
    %s53 = sphi 0, %s37
    %s57 = sphi 0, %s57
    %s59 = sphi 0, %s57
    %s60 = sphi 0, %s59
    %s74 = sphi 0, %s60
    %s80 = sphi 0, %s82
    %s83 = sphi 0, %s80
    %s84 = sphi 0, %s83
    %s100 = sphi 0, %s84
    %s108 = sphi 0, %s110
    %s111 = sphi 0, %s108
    %s112 = sphi 0, %s111
    %s128 = sphi 0, %s112
  $region4: #{one_model_forward.20} parent=0 // loop_header_branch
    %12 = sbr.rel (%p10) target = $region8
  $region5: #{one_model_forward.20} parent=0 // loop_body
    %s14 = ssub.s32 %s9, 1
    %s15 = ssub.s32 %s9, 2
    %s22 = sadd.s32 1, %s17
    %p23 = scmp.ge.s32.totalorder %s22, 1
    %s24 = scalar_select %p23, 0, %s22
    %s25 = sadd.s32 1, %s16
    %s26 = scalar_select %p23, %s25, %s16
    %p27 = scmp.ge.s32.totalorder %s26, 2
    %s28 = scalar_select %p27, 0, %s26
    %s29 = ssub.s32 %s16, %s28
    %s30 = ssub.s32 %s17, %s24
    %s31 = sor.u32 %s29, %s30
    %p32 = scmp.eq.s32.totalorder %s31, 0
    %s34 = sadd.s32 %s33, 1
    %s35 = scalar_select %p32, %s33, %s34
    %p38 = pneg %p32
    %p39 = scmp.eq.s32.totalorder %s9, 1
    %p40 = por %p38, %p39
    %p41 = scmp.ne.s32.totalorder %s33, %s36
    %p42 = scmp.eq.s32.totalorder %s9, 0
    %p43 = por %p41, %p42
    %p44 = scmp.ne.s32.totalorder %s33, %s36
    %p45 = scmp.eq.s32.totalorder %s14, 1
    %p46 = por %p44, %p45
    %p47 = scmp.ne.s32.totalorder %s36, %s37
    %p48 = scmp.eq.s32.totalorder %s14, 0
    %p49 = por %p47, %p48
    %p50 = scmp.ne.s32.totalorder %s36, %s37
    %p51 = scmp.eq.s32.totalorder %s15, 1
    %p52 = por %p50, %p51
    %p54 = scmp.ne.s32.totalorder %s37, %s53
    %p55 = scmp.eq.s32.totalorder %s15, 0
    %p56 = por %p54, %p55
    %s58 = sadd.s32 %s57, 1
    %p61 = scmp.eq.s32.totalorder %s9, 1
    %p62 = scmp.ne.s32.totalorder %s57, %s59
    %p63 = scmp.eq.s32.totalorder %s9, 0
    %p64 = por %p62, %p63
    %p65 = scmp.ne.s32.totalorder %s57, %s59
    %p66 = scmp.eq.s32.totalorder %s14, 1
    %p67 = por %p65, %p66
    %p68 = scmp.ne.s32.totalorder %s59, %s60
    %p69 = scmp.eq.s32.totalorder %s14, 0
    %p70 = por %p68, %p69
    %p71 = scmp.ne.s32.totalorder %s59, %s60
    %p72 = scmp.eq.s32.totalorder %s15, 1
    %p73 = por %p71, %p72
    %p75 = scmp.ne.s32.totalorder %s60, %s74
    %p76 = scmp.eq.s32.totalorder %s15, 0
    %p77 = por %p75, %p76
    %s78 = ssub.s32 %s16, %s28
    %p79 = scmp.eq.s32.totalorder %s78, 0
    %s81 = sadd.s32 %s80, 1
    %s82 = scalar_select %p79, %s80, %s81
    %p85 = pneg %p79
    %p86 = scmp.eq.s32.totalorder %s9, 1
    %p87 = por %p85, %p86
    %p88 = scmp.ne.s32.totalorder %s80, %s83
    %p89 = scmp.eq.s32.totalorder %s9, 0
    %p90 = por %p88, %p89
    %p91 = scmp.ne.s32.totalorder %s80, %s83
    %p92 = scmp.eq.s32.totalorder %s14, 1
    %p93 = por %p91, %p92
    %p94 = scmp.ne.s32.totalorder %s83, %s84
    %p95 = scmp.eq.s32.totalorder %s14, 0
    %p96 = por %p94, %p95
    %p97 = scmp.ne.s32.totalorder %s83, %s84
    %p98 = scmp.eq.s32.totalorder %s15, 1
    %p99 = por %p97, %p98
    %p101 = scmp.ne.s32.totalorder %s84, %s100
    %p102 = scmp.eq.s32.totalorder %s15, 0
    %p103 = por %p101, %p102
    %s104 = ssub.s32 %s16, %s28
    %s105 = ssub.s32 %s17, %s24
    %s106 = sor.u32 %s104, %s105
    %p107 = scmp.eq.s32.totalorder %s106, 0
    %s109 = sadd.s32 %s108, 1
    %s110 = scalar_select %p107, %s108, %s109
    %p113 = pneg %p107
    %p114 = scmp.eq.s32.totalorder %s9, 1
    %p115 = por %p113, %p114
    %p116 = scmp.ne.s32.totalorder %s108, %s111
    %p117 = scmp.eq.s32.totalorder %s9, 0
    %p118 = por %p116, %p117
    %p119 = scmp.ne.s32.totalorder %s108, %s111
    %p120 = scmp.eq.s32.totalorder %s14, 1
    %p121 = por %p119, %p120
    %p122 = scmp.ne.s32.totalorder %s111, %s112
    %p123 = scmp.eq.s32.totalorder %s14, 0
    %p124 = por %p122, %p123
    %p125 = scmp.ne.s32.totalorder %s111, %s112
    %p126 = scmp.eq.s32.totalorder %s15, 1
    %p127 = por %p125, %p126
    %p129 = scmp.ne.s32.totalorder %s112, %s128
    %p130 = scmp.eq.s32.totalorder %s15, 0
    %p131 = por %p129, %p130
    %p132 = scmp.le.s32.totalorder 1, %s9
    %p133 = scmp.lt.s32.totalorder %s9, 3
    %p134 = pnand %p132, %p133
    %p135 = pneg %p134
    // Predicated region
    $region9: #{one_model_forward.20} parent=5 // pred_check
      _
    $region10: #{one_model_forward.20} parent=5 // pred_check_branch
      %137 = sbr.rel (%p134) target = $region12
    $region11: #{one_model_forward.20} parent=5 // pred_region
      %s138 = ssub.s32 %s9, 1
      // Predicated region
      $region13: #{one_model_forward.20} parent=11 // pred_check
        %p139 = pneg %p70
      $region14: #{one_model_forward.20} parent=11 // pred_check_branch
        %141 = sbr.rel (%p139) target = $region16
      $region15: #{one_model_forward.20} parent=11 // pred_region
        _
      $region16: #{one_model_forward.20} parent=11 // pred_fallthru
        _
    $region12: #{one_model_forward.20} parent=5 // pred_fallthru
      _
    %p142 = scmp.lt.s32.totalorder %s9, 2
    // Predicated region
    $region17: #{one_model_forward.20} parent=5 // pred_check
      %p143 = pneg %p142
    $region18: #{one_model_forward.20} parent=5 // pred_check_branch
      %145 = sbr.rel (%p143) target = $region20
    $region19: #{one_model_forward.20} parent=5 // pred_region
      // Predicated region
      $region21: #{one_model_forward.20} parent=19 // pred_check
        %p146 = pneg %p43
      $region22: #{one_model_forward.20} parent=19 // pred_check_branch
        %148 = sbr.rel (%p146) target = $region24
      $region23: #{one_model_forward.20} parent=19 // pred_region
        %s149 = smul.u32 8, %s17
        %p150 = scmp.lt.s32.totalorder %s16, 1
        %s151 = scalar_select %p150, %s16, 1
        %p152 = scmp.lt.s32.totalorder %s149, 7
        %s153 = scalar_select %p152, %s149, 7
        %s154 = smul.addr %s151, 8
        %s155 = sadd.s32 %s153, %s154
        %s156 = smul.addr %s155, 4
        %s157 = scalar_lea.vmem %s0, %s156
        %s158 = smul.u32 8, %s17
      $region24: #{one_model_forward.20} parent=19 // pred_fallthru
        _
      // Predicated region
      $region25: #{one_model_forward.20} parent=19 // pred_check
        %p159 = pneg %p90
      $region26: #{one_model_forward.20} parent=19 // pred_check_branch
        %161 = sbr.rel (%p159) target = $region28
      $region27: #{one_model_forward.20} parent=19 // pred_region
        %p162 = scmp.lt.s32.totalorder %s16, 1
        %s163 = scalar_select %p162, %s16, 1
        %s164 = smul.addr %s163, 2
        %s165 = scalar_lea.vmem %s2, %s164
      $region28: #{one_model_forward.20} parent=19 // pred_fallthru
        _
    $region20: #{one_model_forward.20} parent=5 // pred_fallthru
      _
    %p166 = scmp.le.s32.totalorder 1, %s9
    %p167 = scmp.lt.s32.totalorder %s9, 3
    %p168 = pnand %p166, %p167
    %p169 = pneg %p168
    // Predicated region
    $region29: #{one_model_forward.20} parent=5 // pred_check
      _
    $region30: #{one_model_forward.20} parent=5 // pred_check_branch
      %171 = sbr.rel (%p168) target = $region32
    $region31: #{one_model_forward.20} parent=5 // pred_region
      %s172 = ssub.s32 %s9, 1
      %s173 = smul.u32 8, %s19
      %p174 = scmp.lt.s32.totalorder %s18, 1
      %s175 = scalar_select %p174, %s18, 1
      %p176 = scmp.lt.s32.totalorder %s173, 7
      %s177 = scalar_select %p176, %s173, 7
      %s178 = smul.addr %s175, 8
      %s179 = sadd.s32 %s177, %s178
      %s180 = smul.addr %s179, 4
      %s181 = scalar_lea.vmem %s0, %s180
      %p182 = pneg %p49
      %p183 = pneg %p46
      %p184 = pneg %p70
      %p185 = pneg %p67
      %p186 = scmp.lt.s32.totalorder %s18, 1
      %s187 = scalar_select %p186, %s18, 1
      %s188 = smul.addr %s187, 2
      %s189 = scalar_lea.vmem %s2, %s188
      %p190 = pneg %p96
      %p191 = pneg %p93
      %p192 = pneg %p124
      %p193 = pneg %p121
      %s194 = smul.u32 8, %s19
      %p195 = scmp.lt.s32.totalorder %s18, 1
      %s196 = scalar_select %p195, %s18, 1
      %p197 = scmp.lt.s32.totalorder %s194, 7
      %s198 = scalar_select %p197, %s194, 7
      %s199 = smul.addr %s198, 2
      %s200 = smul.addr %s196, 16
      %s201 = sadd.s32 %s199, %s200
      %s202 = smul.addr %s201, 4
      %s203 = scalar_lea.vmem %s3, %s202
      %s204 = smul.u32 8, %s19
      %p205 = scmp.lt.s32.totalorder %s18, 1
      %s206 = scalar_select %p205, %s18, 1
      %p207 = scmp.lt.s32.totalorder %s204, 7
      %s208 = scalar_select %p207, %s204, 7
      %s209 = smul.addr %s206, 8
      %s210 = sadd.s32 %s208, %s209
      %s211 = smul.addr %s210, 4
      %s212 = scalar_lea.vmem %s0, %s211
      %s213 = smul.u32 8, %s19
      %p214 = scmp.lt.s32.totalorder %s18, 1
      %s215 = scalar_select %p214, %s18, 1
      %s216 = smul.addr %s215, 2
      %s217 = scalar_lea.vmem %s2, %s216
      %s218 = smul.u32 8, %s19
      %p219 = scmp.lt.s32.totalorder %s18, 1
      %s220 = scalar_select %p219, %s18, 1
      %p221 = scmp.lt.s32.totalorder %s218, 7
      %s222 = scalar_select %p221, %s218, 7
      %s223 = smul.addr %s222, 2
      %s224 = smul.addr %s220, 16
      %s225 = sadd.s32 %s223, %s224
      %s226 = smul.addr %s225, 4
      %s227 = scalar_lea.vmem %s3, %s226
      %s228 = smul.u32 8, %s19
      %v230 = vld [vmem:[%s212] sm:$0xf]
      %v231 = vld [vmem:[%s212 + $0x4] sm:$0xf]
      %v232 = vld [vmem:[%s212 + $0x8] sm:$0xf]
      %v233 = vld [vmem:[%s212 + $0xc] sm:$0xf]
      %v234 = vld [vmem:[%s212 + $0x10] sm:$0xf]
      %v235 = vld [vmem:[%s212 + $0x14] sm:$0xf]
      %v236 = vld [vmem:[%s212 + $0x18] sm:$0xf]
      %v237 = vld [vmem:[%s212 + $0x1c] sm:$0xf]
      %v238 = vld [vmem:[%s1] sm:$0xff]
      %v239 = vld [vmem:[%s1 + $0x8] sm:$0xff]
      %v240 = vld [vmem:[%s1 + $0x10] sm:$0xff]
      %v241 = vld [vmem:[%s1 + $0x18] sm:$0xff]
      %v242 = vld [vmem:[%s217] sm:$0x3]
      %v244 = vlaneseq
      %v245 = vshrl.u32 %v244, 7
      %v246 = vsub.s32 0, %v245
      %v247 = vrot.slane %v242, %v246
      %v248 = vlaneseq
      %v249 = vshrl.u32 %v248, 7
      %v250 = vsub.s32 1, %v249
      %v251 = vrot.slane %v242, %v250
      %v262 = vunpack.c.l.b16 %v230
      %v263 = vunpack.c.l.b16 %v231
      %v264 = vunpack.c.l.b16 %v232
      %v265 = vunpack.c.l.b16 %v233
      %v266 = vunpack.c.l.b16 %v234
      %v267 = vunpack.c.l.b16 %v235
      %v268 = vunpack.c.l.b16 %v236
      %v269 = vunpack.c.l.b16 %v237
      %v270 = vpack.c.b16 %v263, %v262
      %v271 = vpack.c.b16 %v265, %v264
      %v272 = vpack.c.b16 %v267, %v266
      %v273 = vpack.c.b16 %v269, %v268
      %v278 = vunpack.c.l.b16 %v238
      %v279 = vunpack.c.h.b16 %v238
      %v280 = vunpack.c.l.b16 %v239
      %v281 = vunpack.c.h.b16 %v239
      %v282 = vunpack.c.l.b16 %v240
      %v283 = vunpack.c.h.b16 %v240
      %v284 = vunpack.c.l.b16 %v241
      %v285 = vunpack.c.h.b16 %v241
      %v286 = vpack.c.b16 %v280, %v278
      %v287 = vpack.c.b16 %v281, %v279
      %v288 = vpack.c.b16 %v284, %v282
      %v289 = vpack.c.b16 %v285, %v283
      %vm294 = vcmask 261120
      %v296 = vsel %vm294, %v270, 0
      %v299 = vsel %vm294, %v271, 0
      %v302 = vsel %vm294, %v272, 0
      %v305 = vsel %vm294, %v273, 0
      %307 = vmatprep.subr.bf16.mxu0 0
      %308 = vmatpush1.bf16.msra.mxu0 0
      %309 = vmatprep.subr.bf16.mxu0 0
      %310 = vmatpush1.bf16.msra.mxu0 0
      %311 = vmatprep.subr.bf16.mxu0 0
      %312 = vmatpush1.bf16.msra.mxu0 0
      %313 = vmatprep.subr.bf16.mxu0 0
      %314 = vmatpush1.bf16.msra.mxu0 0
      %315 = vmatprep.subr.bf16.mxu0 0
      %316 = vmatpush1.bf16.msra.mxu0 0
      %317 = vmatprep.subr.bf16.mxu0 0
      %318 = vmatpush1.bf16.msra.mxu0 0
      %319 = vmatprep.subr.bf16.mxu0 %v289
      %320 = vmatpush1.bf16.msra.mxu0 %v288
      %321 = vmatprep.subr.bf16.mxu0 %v287
      %322 = vmatpush1.bf16.msra.mxu0 %v286
      %323 = vmatprep.subr.bf16.mxu0 0
      %324 = vmatpush2.bf16.msra.mxu0 0
      %325 = vmatprep.subr.bf16.mxu0 0
      %326 = vmatpush2.bf16.msra.mxu0 0
      %327 = vmatprep.subr.bf16.mxu0 0
      %328 = vmatpush2.bf16.msra.mxu0 0
      %329 = vmatprep.subr.bf16.mxu0 0
      %330 = vmatpush2.bf16.msra.mxu0 0
      %331 = vmatprep.subr.bf16.mxu0 0
      %332 = vmatpush2.bf16.msra.mxu0 0
      %333 = vmatprep.subr.bf16.mxu0 0
      %334 = vmatpush2.bf16.msra.mxu0 0
      %335 = vmatprep.subr.bf16.mxu0 0
      %336 = vmatpush2.bf16.msra.mxu0 0
      %337 = vmatprep.subr.bf16.mxu0 0
      %338 = vmatpush2.bf16.msra.mxu0 0
      %339 = vmatprep.mubr.bf16.mxu0 0
      %340 = vmatmul.mubr.bf16.gmra.mxu0 %v296
      %v341 = vpop.f32.mrf.mxu0
      %v342 = vadd.f32 %v247, %v341
      %v343 = vpop.f32.mrf.mxu0
      %v344 = vadd.f32 %v251, %v343
      %v345 = vpop.f32.mrf.mxu0
      %v346 = vadd.f32 %v247, %v345
      %v347 = vpop.f32.mrf.mxu0
      %v348 = vadd.f32 %v251, %v347
      %349 = vmatprep.mubr.bf16.mxu0 0
      %350 = vmatmul.mubr.bf16.gmra.mxu0 %v299
      %v351 = vpop.f32.mrf.mxu0
      %v352 = vadd.f32 %v247, %v351
      %v353 = vpop.f32.mrf.mxu0
      %v354 = vadd.f32 %v251, %v353
      %v355 = vpop.f32.mrf.mxu0
      %v356 = vadd.f32 %v247, %v355
      %v357 = vpop.f32.mrf.mxu0
      %v358 = vadd.f32 %v251, %v357
      %359 = vmatprep.mubr.bf16.mxu0 0
      %360 = vmatmul.mubr.bf16.gmra.mxu0 %v302
      %v361 = vpop.f32.mrf.mxu0
      %v362 = vadd.f32 %v247, %v361
      %v363 = vpop.f32.mrf.mxu0
      %v364 = vadd.f32 %v251, %v363
      %v365 = vpop.f32.mrf.mxu0
      %v366 = vadd.f32 %v247, %v365
      %v367 = vpop.f32.mrf.mxu0
      %v368 = vadd.f32 %v251, %v367
      %369 = vmatprep.mubr.bf16.mxu0 0
      %370 = vmatmul.mubr.bf16.gmra.mxu0 %v305
      %v371 = vpop.f32.mrf.mxu0
      %v372 = vadd.f32 %v247, %v371
      %v373 = vpop.f32.mrf.mxu0
      %v374 = vadd.f32 %v251, %v373
      %v375 = vpop.f32.mrf.mxu0
      %v376 = vadd.f32 %v247, %v375
      %v377 = vpop.f32.mrf.mxu0
      %v378 = vadd.f32 %v251, %v377
      %379 = vdwg.mxu0
      %v380 = vmax.f32 %v342, 0.0
      %v381 = vmax.f32 %v344, 0.0
      %v382 = vmax.f32 %v346, 0.0
      %v383 = vmax.f32 %v348, 0.0
      %v384 = vmax.f32 %v352, 0.0
      %v385 = vmax.f32 %v354, 0.0
      %v386 = vmax.f32 %v356, 0.0
      %v387 = vmax.f32 %v358, 0.0
      %v388 = vmax.f32 %v362, 0.0
      %v389 = vmax.f32 %v364, 0.0
      %v390 = vmax.f32 %v366, 0.0
      %v391 = vmax.f32 %v368, 0.0
      %v392 = vmax.f32 %v372, 0.0
      %v393 = vmax.f32 %v374, 0.0
      %v394 = vmax.f32 %v376, 0.0
      %v395 = vmax.f32 %v378, 0.0
      %v396 = vpack.c.bf16 %v382, %v380
      %v397 = vpack.c.bf16 %v383, %v381
      %v398 = vpack.c.bf16 %v386, %v384
      %v399 = vpack.c.bf16 %v387, %v385
      %v400 = vpack.c.bf16 %v390, %v388
      %v401 = vpack.c.bf16 %v391, %v389
      %v402 = vpack.c.bf16 %v394, %v392
      %v403 = vpack.c.bf16 %v395, %v393
      %v412 = vunpack.c.l.b16 %v396
      %v413 = vunpack.c.l.b16 %v397
      %v414 = vunpack.c.h.b16 %v396
      %v415 = vunpack.c.h.b16 %v397
      %v416 = vunpack.c.l.b16 %v398
      %v417 = vunpack.c.l.b16 %v399
      %v418 = vunpack.c.h.b16 %v398
      %v419 = vunpack.c.h.b16 %v399
      %v420 = vunpack.c.l.b16 %v400
      %v421 = vunpack.c.l.b16 %v401
      %v422 = vunpack.c.h.b16 %v400
      %v423 = vunpack.c.h.b16 %v401
      %v424 = vunpack.c.l.b16 %v402
      %v425 = vunpack.c.l.b16 %v403
      %v426 = vunpack.c.h.b16 %v402
      %v427 = vunpack.c.h.b16 %v403
      %v428 = vpack.c.b16 %v413, %v412
      %v429 = vpack.c.b16 %v415, %v414
      %v430 = vpack.c.b16 %v417, %v416
      %v431 = vpack.c.b16 %v419, %v418
      %v432 = vpack.c.b16 %v421, %v420
      %v433 = vpack.c.b16 %v423, %v422
      %v434 = vpack.c.b16 %v425, %v424
      %v435 = vpack.c.b16 %v427, %v426
      %vm444 = vcmask 1043456
      %vm445 = vcmask 261124
      %vm446 = vmor %vm445, %vm444
      %447 = vst.msk [vmem:[%s227] sm:$0xff] %vm446, %v428
      %448 = vst.msk [vmem:[%s227 + $0x8] sm:$0xff] %vm446, %v429
      %449 = vst.msk [vmem:[%s227 + $0x10] sm:$0xff] %vm446, %v430
      %450 = vst.msk [vmem:[%s227 + $0x18] sm:$0xff] %vm446, %v431
      %451 = vst.msk [vmem:[%s227 + $0x20] sm:$0xff] %vm446, %v432
      %452 = vst.msk [vmem:[%s227 + $0x28] sm:$0xff] %vm446, %v433
      %453 = vst.msk [vmem:[%s227 + $0x30] sm:$0xff] %vm446, %v434
      %454 = vst.msk [vmem:[%s227 + $0x38] sm:$0xff] %vm446, %v435
      %s455 = smul.u32 8, %s19
      %p456 = scmp.lt.s32.totalorder %s18, 1
      %s457 = scalar_select %p456, %s18, 1
      %p458 = scmp.lt.s32.totalorder %s455, 7
      %s459 = scalar_select %p458, %s455, 7
      %s460 = smul.addr %s459, 2
      %s461 = smul.addr %s457, 16
      %s462 = sadd.s32 %s460, %s461
      %s463 = smul.addr %s462, 4
      %s464 = scalar_lea.vmem %s3, %s463
      // Predicated region
      $region33: #{one_model_forward.20} parent=31 // pred_check
        %p465 = pneg %p121
      $region34: #{one_model_forward.20} parent=31 // pred_check_branch
        %467 = sbr.rel (%p465) target = $region36
      $region35: #{one_model_forward.20} parent=31 // pred_region
        %s468 = smul.u32 8, %s19
      $region36: #{one_model_forward.20} parent=31 // pred_fallthru
        _
    $region32: #{one_model_forward.20} parent=5 // pred_fallthru
      _
    %p469 = scmp.le.s32.totalorder 2, %s9
    // Predicated region
    $region37: #{one_model_forward.20} parent=5 // pred_check
      %p470 = pneg %p469
    $region38: #{one_model_forward.20} parent=5 // pred_check_branch
      %472 = sbr.rel (%p470) target = $region40
    $region39: #{one_model_forward.20} parent=5 // pred_region
      %s473 = ssub.s32 %s9, 2
      // Predicated region
      $region41: #{one_model_forward.20} parent=39 // pred_check
        %p474 = pneg %p127
      $region42: #{one_model_forward.20} parent=39 // pred_check_branch
        %476 = sbr.rel (%p474) target = $region44
      $region43: #{one_model_forward.20} parent=39 // pred_region
        %s477 = smul.u32 8, %s21
        %p478 = scmp.lt.s32.totalorder %s20, 1
        %s479 = scalar_select %p478, %s20, 1
        %p480 = scmp.lt.s32.totalorder %s477, 7
        %s481 = scalar_select %p480, %s477, 7
        %s482 = smul.addr %s481, 2
        %s483 = smul.addr %s479, 16
        %s484 = sadd.s32 %s482, %s483
        %s485 = smul.addr %s484, 4
        %s486 = scalar_lea.vmem %s3, %s485
      $region44: #{one_model_forward.20} parent=39 // pred_fallthru
        _
    $region40: #{one_model_forward.20} parent=5 // pred_fallthru
      _
  $region6: #{one_model_forward.20} parent=0 // loop_footer
    %s13 = sadd.s32 1, %s9
  $region7: #{one_model_forward.20} parent=0 // loop_footer_branch
    %8 = sbr.rel target = $region3
  $region8: #{one_model_forward.20} parent=0 // loop_exit
    _

// kernel: one_model_forward.13
$region0: #{one_model_forward.13}
  #allocation0 [shape = 'u32[]', space=smem, size = 0x4, offset = 0x4, fixed_abs, tag = 'smem constant byte address 0x4 - core index']
  #allocation1 [shape = 'u32[144,128]{1,0:T(1,128)}', space=vmem, size = 0x12000, scoped, tag = 'internal scratch']
  %s0 = inlined_call_operand.vmem [shape: bf16[2,64,32], index: 0, kind: input, shape index: {}]
  %s1 = inlined_call_operand.vmem [shape: bf16[2,64,16], index: 1, kind: input, shape index: {}]
  %s2 = inlined_call_operand.vmem [shape: bf16[32,32], index: 2, kind: input, shape index: {}]
  %s3 = inlined_call_operand.vmem [shape: bf16[16,32], index: 3, kind: input, shape index: {}]
  %s4 = inlined_call_operand.vmem [shape: f32[2,1,32], index: 4, kind: input, shape index: {}]
  %s5 = inlined_call_operand.vmem [shape: bf16[2,64,32], index: 5, kind: output, shape index: {}]
  %s6 = sld [smem:[#allocation0]]
  $region53: #{one_model_forward.13} parent=0
    _
  %s8 = ssub.s32 1, %s6
  %s9 = scalar_select 0, %s8, %s6
  loop: start=0, step=1, limit=4
  $region2: #{one_model_forward.13} parent=0 // loop_pre_header
    _
  $region3: #{one_model_forward.13} parent=0 // loop_header
    %s11 = sphi 0, %s15
    %p12 = scmp.ge.s32.totalorder %s11, 4
    %s18 = sphi 0, %s30
    %s19 = sphi 0, %s26
    %s20 = sphi 0, %s18
    %s21 = sphi 0, %s19
    %s22 = sphi 0, %s20
    %s23 = sphi 0, %s21
    %s35 = sphi 0, %s37
    %s38 = sphi 0, %s35
    %s39 = sphi 0, %s38
    %s55 = sphi 0, %s39
    %s63 = sphi 0, %s65
    %s66 = sphi 0, %s63
    %s67 = sphi 0, %s66
    %s83 = sphi 0, %s67
    %s87 = sphi 0, %s87
    %s89 = sphi 0, %s87
    %s90 = sphi 0, %s89
    %s104 = sphi 0, %s90
    %s108 = sphi 0, %s108
    %s110 = sphi 0, %s108
    %s111 = sphi 0, %s110
    %s125 = sphi 0, %s111
    %s131 = sphi 0, %s133
    %s134 = sphi 0, %s131
    %s135 = sphi 0, %s134
    %s151 = sphi 0, %s135
    %s159 = sphi 0, %s161
    %s162 = sphi 0, %s159
    %s163 = sphi 0, %s162
    %s179 = sphi 0, %s163
  $region4: #{one_model_forward.13} parent=0 // loop_header_branch
    %14 = sbr.rel (%p12) target = $region8
  $region5: #{one_model_forward.13} parent=0 // loop_body
    %s16 = ssub.s32 %s11, 1
    %s17 = ssub.s32 %s11, 2
    %s24 = sadd.s32 1, %s19
    %p25 = scmp.ge.s32.totalorder %s24, 1
    %s26 = scalar_select %p25, 0, %s24
    %s27 = sadd.s32 1, %s18
    %s28 = scalar_select %p25, %s27, %s18
    %p29 = scmp.ge.s32.totalorder %s28, 2
    %s30 = scalar_select %p29, 0, %s28
    %s31 = ssub.s32 %s18, %s30
    %s32 = ssub.s32 %s19, %s26
    %s33 = sor.u32 %s31, %s32
    %p34 = scmp.eq.s32.totalorder %s33, 0
    %s36 = sadd.s32 %s35, 1
    %s37 = scalar_select %p34, %s35, %s36
    %p40 = pneg %p34
    %p41 = scmp.eq.s32.totalorder %s11, 1
    %p42 = por %p40, %p41
    %p43 = scmp.ne.s32.totalorder %s35, %s38
    %p44 = scmp.eq.s32.totalorder %s11, 0
    %p45 = por %p43, %p44
    %p46 = scmp.ne.s32.totalorder %s35, %s38
    %p47 = scmp.eq.s32.totalorder %s16, 1
    %p48 = por %p46, %p47
    %p49 = scmp.ne.s32.totalorder %s38, %s39
    %p50 = scmp.eq.s32.totalorder %s16, 0
    %p51 = por %p49, %p50
    %p52 = scmp.ne.s32.totalorder %s38, %s39
    %p53 = scmp.eq.s32.totalorder %s17, 1
    %p54 = por %p52, %p53
    %p56 = scmp.ne.s32.totalorder %s39, %s55
    %p57 = scmp.eq.s32.totalorder %s17, 0
    %p58 = por %p56, %p57
    %s59 = ssub.s32 %s18, %s30
    %s60 = ssub.s32 %s19, %s26
    %s61 = sor.u32 %s59, %s60
    %p62 = scmp.eq.s32.totalorder %s61, 0
    %s64 = sadd.s32 %s63, 1
    %s65 = scalar_select %p62, %s63, %s64
    %p68 = pneg %p62
    %p69 = scmp.eq.s32.totalorder %s11, 1
    %p70 = por %p68, %p69
    %p71 = scmp.ne.s32.totalorder %s63, %s66
    %p72 = scmp.eq.s32.totalorder %s11, 0
    %p73 = por %p71, %p72
    %p74 = scmp.ne.s32.totalorder %s63, %s66
    %p75 = scmp.eq.s32.totalorder %s16, 1
    %p76 = por %p74, %p75
    %p77 = scmp.ne.s32.totalorder %s66, %s67
    %p78 = scmp.eq.s32.totalorder %s16, 0
    %p79 = por %p77, %p78
    %p80 = scmp.ne.s32.totalorder %s66, %s67
    %p81 = scmp.eq.s32.totalorder %s17, 1
    %p82 = por %p80, %p81
    %p84 = scmp.ne.s32.totalorder %s67, %s83
    %p85 = scmp.eq.s32.totalorder %s17, 0
    %p86 = por %p84, %p85
    %s88 = sadd.s32 %s87, 1
    %p91 = scmp.eq.s32.totalorder %s11, 1
    %p92 = scmp.ne.s32.totalorder %s87, %s89
    %p93 = scmp.eq.s32.totalorder %s11, 0
    %p94 = por %p92, %p93
    %p95 = scmp.ne.s32.totalorder %s87, %s89
    %p96 = scmp.eq.s32.totalorder %s16, 1
    %p97 = por %p95, %p96
    %p98 = scmp.ne.s32.totalorder %s89, %s90
    %p99 = scmp.eq.s32.totalorder %s16, 0
    %p100 = por %p98, %p99
    %p101 = scmp.ne.s32.totalorder %s89, %s90
    %p102 = scmp.eq.s32.totalorder %s17, 1
    %p103 = por %p101, %p102
    %p105 = scmp.ne.s32.totalorder %s90, %s104
    %p106 = scmp.eq.s32.totalorder %s17, 0
    %p107 = por %p105, %p106
    %s109 = sadd.s32 %s108, 1
    %p112 = scmp.eq.s32.totalorder %s11, 1
    %p113 = scmp.ne.s32.totalorder %s108, %s110
    %p114 = scmp.eq.s32.totalorder %s11, 0
    %p115 = por %p113, %p114
    %p116 = scmp.ne.s32.totalorder %s108, %s110
    %p117 = scmp.eq.s32.totalorder %s16, 1
    %p118 = por %p116, %p117
    %p119 = scmp.ne.s32.totalorder %s110, %s111
    %p120 = scmp.eq.s32.totalorder %s16, 0
    %p121 = por %p119, %p120
    %p122 = scmp.ne.s32.totalorder %s110, %s111
    %p123 = scmp.eq.s32.totalorder %s17, 1
    %p124 = por %p122, %p123
    %p126 = scmp.ne.s32.totalorder %s111, %s125
    %p127 = scmp.eq.s32.totalorder %s17, 0
    %p128 = por %p126, %p127
    %s129 = ssub.s32 %s18, %s30
    %p130 = scmp.eq.s32.totalorder %s129, 0
    %s132 = sadd.s32 %s131, 1
    %s133 = scalar_select %p130, %s131, %s132
    %p136 = pneg %p130
    %p137 = scmp.eq.s32.totalorder %s11, 1
    %p138 = por %p136, %p137
    %p139 = scmp.ne.s32.totalorder %s131, %s134
    %p140 = scmp.eq.s32.totalorder %s11, 0
    %p141 = por %p139, %p140
    %p142 = scmp.ne.s32.totalorder %s131, %s134
    %p143 = scmp.eq.s32.totalorder %s16, 1
    %p144 = por %p142, %p143
    %p145 = scmp.ne.s32.totalorder %s134, %s135
    %p146 = scmp.eq.s32.totalorder %s16, 0
    %p147 = por %p145, %p146
    %p148 = scmp.ne.s32.totalorder %s134, %s135
    %p149 = scmp.eq.s32.totalorder %s17, 1
    %p150 = por %p148, %p149
    %p152 = scmp.ne.s32.totalorder %s135, %s151
    %p153 = scmp.eq.s32.totalorder %s17, 0
    %p154 = por %p152, %p153
    %s155 = ssub.s32 %s18, %s30
    %s156 = ssub.s32 %s19, %s26
    %s157 = sor.u32 %s155, %s156
    %p158 = scmp.eq.s32.totalorder %s157, 0
    %s160 = sadd.s32 %s159, 1
    %s161 = scalar_select %p158, %s159, %s160
    %p164 = pneg %p158
    %p165 = scmp.eq.s32.totalorder %s11, 1
    %p166 = por %p164, %p165
    %p167 = scmp.ne.s32.totalorder %s159, %s162
    %p168 = scmp.eq.s32.totalorder %s11, 0
    %p169 = por %p167, %p168
    %p170 = scmp.ne.s32.totalorder %s159, %s162
    %p171 = scmp.eq.s32.totalorder %s16, 1
    %p172 = por %p170, %p171
    %p173 = scmp.ne.s32.totalorder %s162, %s163
    %p174 = scmp.eq.s32.totalorder %s16, 0
    %p175 = por %p173, %p174
    %p176 = scmp.ne.s32.totalorder %s162, %s163
    %p177 = scmp.eq.s32.totalorder %s17, 1
    %p178 = por %p176, %p177
    %p180 = scmp.ne.s32.totalorder %s163, %s179
    %p181 = scmp.eq.s32.totalorder %s17, 0
    %p182 = por %p180, %p181
    %p183 = scmp.le.s32.totalorder 1, %s11
    %p184 = scmp.lt.s32.totalorder %s11, 3
    %p185 = pnand %p183, %p184
    %p186 = pneg %p185
    // Predicated region
    $region9: #{one_model_forward.13} parent=5 // pred_check
      _
    $region10: #{one_model_forward.13} parent=5 // pred_check_branch
      %188 = sbr.rel (%p185) target = $region12
    $region11: #{one_model_forward.13} parent=5 // pred_region
      %s189 = ssub.s32 %s11, 1
      // Predicated region
      $region13: #{one_model_forward.13} parent=11 // pred_check
        %p190 = pneg %p100
      $region14: #{one_model_forward.13} parent=11 // pred_check_branch
        %192 = sbr.rel (%p190) target = $region16
      $region15: #{one_model_forward.13} parent=11 // pred_region
        _
      $region16: #{one_model_forward.13} parent=11 // pred_fallthru
        _
      // Predicated region
      $region17: #{one_model_forward.13} parent=11 // pred_check
        %p193 = pneg %p121
      $region18: #{one_model_forward.13} parent=11 // pred_check_branch
        %195 = sbr.rel (%p193) target = $region20
      $region19: #{one_model_forward.13} parent=11 // pred_region
        _
      $region20: #{one_model_forward.13} parent=11 // pred_fallthru
        _
    $region12: #{one_model_forward.13} parent=5 // pred_fallthru
      _
    %p196 = scmp.lt.s32.totalorder %s11, 2
    // Predicated region
    $region21: #{one_model_forward.13} parent=5 // pred_check
      %p197 = pneg %p196
    $region22: #{one_model_forward.13} parent=5 // pred_check_branch
      %199 = sbr.rel (%p197) target = $region24
    $region23: #{one_model_forward.13} parent=5 // pred_region
      // Predicated region
      $region25: #{one_model_forward.13} parent=23 // pred_check
        %p200 = pneg %p45
      $region26: #{one_model_forward.13} parent=23 // pred_check_branch
        %202 = sbr.rel (%p200) target = $region28
      $region27: #{one_model_forward.13} parent=23 // pred_region
        %s203 = smul.u32 8, %s19
        %p204 = scmp.lt.s32.totalorder %s18, 1
        %s205 = scalar_select %p204, %s18, 1
        %p206 = scmp.lt.s32.totalorder %s203, 7
        %s207 = scalar_select %p206, %s203, 7
        %s208 = smul.addr %s205, 8
        %s209 = sadd.s32 %s207, %s208
        %s210 = smul.addr %s209, 4
        %s211 = scalar_lea.vmem %s0, %s210
        %s212 = smul.u32 8, %s19
      $region28: #{one_model_forward.13} parent=23 // pred_fallthru
        _
      // Predicated region
      $region29: #{one_model_forward.13} parent=23 // pred_check
        %p213 = pneg %p73
      $region30: #{one_model_forward.13} parent=23 // pred_check_branch
        %215 = sbr.rel (%p213) target = $region32
      $region31: #{one_model_forward.13} parent=23 // pred_region
        %s216 = smul.u32 8, %s19
        %p217 = scmp.lt.s32.totalorder %s18, 1
        %s218 = scalar_select %p217, %s18, 1
        %p219 = scmp.lt.s32.totalorder %s216, 7
        %s220 = scalar_select %p219, %s216, 7
        %s221 = smul.addr %s218, 8
        %s222 = sadd.s32 %s220, %s221
        %s223 = smul.addr %s222, 4
        %s224 = scalar_lea.vmem %s1, %s223
        %s225 = smul.u32 8, %s19
      $region32: #{one_model_forward.13} parent=23 // pred_fallthru
        _
      // Predicated region
      $region33: #{one_model_forward.13} parent=23 // pred_check
        %p226 = pneg %p141
      $region34: #{one_model_forward.13} parent=23 // pred_check_branch
        %228 = sbr.rel (%p226) target = $region36
      $region35: #{one_model_forward.13} parent=23 // pred_region
        %p229 = scmp.lt.s32.totalorder %s18, 1
        %s230 = scalar_select %p229, %s18, 1
        %s231 = scalar_lea.vmem %s4, %s230
      $region36: #{one_model_forward.13} parent=23 // pred_fallthru
        _
    $region24: #{one_model_forward.13} parent=5 // pred_fallthru
      _
    %p232 = scmp.le.s32.totalorder 1, %s11
    %p233 = scmp.lt.s32.totalorder %s11, 3
    %p234 = pnand %p232, %p233
    %p235 = pneg %p234
    // Predicated region
    $region37: #{one_model_forward.13} parent=5 // pred_check
      _
    $region38: #{one_model_forward.13} parent=5 // pred_check_branch
      %237 = sbr.rel (%p234) target = $region40
    $region39: #{one_model_forward.13} parent=5 // pred_region
      %s238 = ssub.s32 %s11, 1
      %s239 = smul.u32 8, %s21
      %p240 = scmp.lt.s32.totalorder %s20, 1
      %s241 = scalar_select %p240, %s20, 1
      %p242 = scmp.lt.s32.totalorder %s239, 7
      %s243 = scalar_select %p242, %s239, 7
      %s244 = smul.addr %s241, 8
      %s245 = sadd.s32 %s243, %s244
      %s246 = smul.addr %s245, 4
      %s247 = scalar_lea.vmem %s0, %s246
      %p248 = pneg %p51
      %p249 = pneg %p48
      %s250 = smul.u32 8, %s21
      %p251 = scmp.lt.s32.totalorder %s20, 1
      %s252 = scalar_select %p251, %s20, 1
      %p253 = scmp.lt.s32.totalorder %s250, 7
      %s254 = scalar_select %p253, %s250, 7
      %s255 = smul.addr %s252, 8
      %s256 = sadd.s32 %s254, %s255
      %s257 = smul.addr %s256, 4
      %s258 = scalar_lea.vmem %s1, %s257
      %p259 = pneg %p79
      %p260 = pneg %p76
      %p261 = pneg %p100
      %p262 = pneg %p97
      %p263 = pneg %p121
      %p264 = pneg %p118
      %p265 = scmp.lt.s32.totalorder %s20, 1
      %s266 = scalar_select %p265, %s20, 1
      %s267 = scalar_lea.vmem %s4, %s266
      %p268 = pneg %p147
      %p269 = pneg %p144
      %p270 = pneg %p175
      %p271 = pneg %p172
      %s272 = smul.u32 8, %s21
      %p273 = scmp.lt.s32.totalorder %s20, 1
      %s274 = scalar_select %p273, %s20, 1
      %p275 = scmp.lt.s32.totalorder %s272, 7
      %s276 = scalar_select %p275, %s272, 7
      %s277 = smul.addr %s274, 8
      %s278 = sadd.s32 %s276, %s277
      %s279 = smul.addr %s278, 4
      %s280 = scalar_lea.vmem %s5, %s279
      %s281 = smul.u32 8, %s21
      %p282 = scmp.lt.s32.totalorder %s20, 1
      %s283 = scalar_select %p282, %s20, 1
      %p284 = scmp.lt.s32.totalorder %s281, 7
      %s285 = scalar_select %p284, %s281, 7
      %s286 = smul.addr %s283, 8
      %s287 = sadd.s32 %s285, %s286
      %s288 = smul.addr %s287, 4
      %s289 = scalar_lea.vmem %s0, %s288
      %s290 = smul.u32 8, %s21
      %s291 = smul.u32 8, %s21
      %p292 = scmp.lt.s32.totalorder %s20, 1
      %s293 = scalar_select %p292, %s20, 1
      %p294 = scmp.lt.s32.totalorder %s291, 7
      %s295 = scalar_select %p294, %s291, 7
      %s296 = smul.addr %s293, 8
      %s297 = sadd.s32 %s295, %s296
      %s298 = smul.addr %s297, 4
      %s299 = scalar_lea.vmem %s1, %s298
      %s300 = smul.u32 8, %s21
      %p301 = scmp.lt.s32.totalorder %s20, 1
      %s302 = scalar_select %p301, %s20, 1
      %s303 = scalar_lea.vmem %s4, %s302
      %s304 = smul.u32 8, %s21
      %p305 = scmp.lt.s32.totalorder %s20, 1
      %s306 = scalar_select %p305, %s20, 1
      %p307 = scmp.lt.s32.totalorder %s304, 7
      %s308 = scalar_select %p307, %s304, 7
      %s309 = smul.addr %s306, 8
      %s310 = sadd.s32 %s308, %s309
      %s311 = smul.addr %s310, 4
      %s312 = scalar_lea.vmem %s5, %s311
      %s313 = smul.u32 8, %s21
      %v315 = vld [vmem:[%s289] sm:$0xf]
      %v316 = vld [vmem:[%s289 + $0x4] sm:$0xf]
      %v317 = vld [vmem:[%s289 + $0x8] sm:$0xf]
      %v318 = vld [vmem:[%s289 + $0xc] sm:$0xf]
      %v319 = vld [vmem:[%s289 + $0x10] sm:$0xf]
      %v320 = vld [vmem:[%s289 + $0x14] sm:$0xf]
      %v321 = vld [vmem:[%s289 + $0x18] sm:$0xf]
      %v322 = vld [vmem:[%s289 + $0x1c] sm:$0xf]
      %v323 = vld [vmem:[%s2] sm:$0xf]
      %v324 = vld [vmem:[%s2 + $0x4] sm:$0xf]
      %v325 = vld [vmem:[%s2 + $0x8] sm:$0xf]
      %v326 = vld [vmem:[%s2 + $0xc] sm:$0xf]
      %v327 = vld [vmem:[%s299] sm:$0xf]
      %v328 = vld [vmem:[%s299 + $0x4] sm:$0xf]
      %v329 = vld [vmem:[%s299 + $0x8] sm:$0xf]
      %v330 = vld [vmem:[%s299 + $0xc] sm:$0xf]
      %v331 = vld [vmem:[%s299 + $0x10] sm:$0xf]
      %v332 = vld [vmem:[%s299 + $0x14] sm:$0xf]
      %v333 = vld [vmem:[%s299 + $0x18] sm:$0xf]
      %v334 = vld [vmem:[%s299 + $0x1c] sm:$0xf]
      %v335 = vld [vmem:[%s3] sm:$0xf]
      %v336 = vld [vmem:[%s3 + $0x4] sm:$0xf]
      %v345 = vunpack.c.l.b16 %v327
      %v346 = vunpack.c.l.b16 %v328
      %v347 = vunpack.c.l.b16 %v329
      %v348 = vunpack.c.l.b16 %v330
      %v349 = vunpack.c.l.b16 %v331
      %v350 = vunpack.c.l.b16 %v332
      %v351 = vunpack.c.l.b16 %v333
      %v352 = vunpack.c.l.b16 %v334
      %v353 = vpack.c.b16 %v346, %v345
      %v354 = vpack.c.b16 %v348, %v347
      %v355 = vpack.c.b16 %v350, %v349
      %v356 = vpack.c.b16 %v352, %v351
      %v359 = vunpack.c.l.b16 %v335
      %v360 = vunpack.c.l.b16 %v336
      %v361 = vpack.c.b16 %v360, %v359
      %vm363 = vcmask 130048
      %v365 = vsel %vm363, %v353, 0
      %v368 = vsel %vm363, %v354, 0
      %v371 = vsel %vm363, %v355, 0
      %v374 = vsel %vm363, %v356, 0
      %376 = vmatprep.subr.bf16.mxu0 0
      %377 = vmatpush1.bf16.msra.mxu0 0
      %378 = vmatprep.subr.bf16.mxu0 0
      %379 = vmatpush1.bf16.msra.mxu0 0
      %380 = vmatprep.subr.bf16.mxu0 0
      %381 = vmatpush1.bf16.msra.mxu0 0
      %382 = vmatprep.subr.bf16.mxu0 0
      %383 = vmatpush1.bf16.msra.mxu0 0
      %384 = vmatprep.subr.bf16.mxu0 0
      %385 = vmatpush1.bf16.msra.mxu0 0
      %386 = vmatprep.subr.bf16.mxu0 0
      %387 = vmatpush1.bf16.msra.mxu0 0
      %388 = vmatprep.subr.bf16.mxu0 0
      %389 = vmatpush1.bf16.msra.mxu0 0
      %390 = vmatprep.subr.bf16.mxu0 0
      %391 = vmatpush1.bf16.msra.mxu0 %v361
      %392 = vmatprep.subr.bf16.mxu0 0
      %393 = vmatpush2.bf16.msra.mxu0 0
      %394 = vmatprep.subr.bf16.mxu0 0
      %395 = vmatpush2.bf16.msra.mxu0 0
      %396 = vmatprep.subr.bf16.mxu0 0
      %397 = vmatpush2.bf16.msra.mxu0 0
      %398 = vmatprep.subr.bf16.mxu0 0
      %399 = vmatpush2.bf16.msra.mxu0 0
      %400 = vmatprep.subr.bf16.mxu0 0
      %401 = vmatpush2.bf16.msra.mxu0 0
      %402 = vmatprep.subr.bf16.mxu0 0
      %403 = vmatpush2.bf16.msra.mxu0 0
      %404 = vmatprep.subr.bf16.mxu0 0
      %405 = vmatpush2.bf16.msra.mxu0 0
      %406 = vmatprep.subr.bf16.mxu0 0
      %407 = vmatpush2.bf16.msra.mxu0 0
      %408 = vmatprep.mubr.bf16.mxu0 0
      %409 = vmatmul.mubr.bf16.gmra.mxu0 %v365
      %v410 = vpop.f32.mrf.mxu0
      %v411 = vadd.f32 0.0, %v410
      %v412 = vpop.f32.mrf.mxu0
      %v413 = vpop.f32.mrf.mxu0
      %v414 = vadd.f32 0.0, %v413
      %v415 = vpop.f32.mrf.mxu0
      %416 = vmatprep.mubr.bf16.mxu0 0
      %417 = vmatmul.mubr.bf16.gmra.mxu0 %v368
      %v418 = vpop.f32.mrf.mxu0
      %v419 = vadd.f32 0.0, %v418
      %v420 = vpop.f32.mrf.mxu0
      %v421 = vpop.f32.mrf.mxu0
      %v422 = vadd.f32 0.0, %v421
      %v423 = vpop.f32.mrf.mxu0
      %424 = vmatprep.mubr.bf16.mxu0 0
      %425 = vmatmul.mubr.bf16.gmra.mxu0 %v371
      %v426 = vpop.f32.mrf.mxu0
      %v427 = vadd.f32 0.0, %v426
      %v428 = vpop.f32.mrf.mxu0
      %v429 = vpop.f32.mrf.mxu0
      %v430 = vadd.f32 0.0, %v429
      %v431 = vpop.f32.mrf.mxu0
      %432 = vmatprep.mubr.bf16.mxu0 0
      %433 = vmatmul.mubr.bf16.gmra.mxu0 %v374
      %v434 = vpop.f32.mrf.mxu0
      %v435 = vadd.f32 0.0, %v434
      %v436 = vpop.f32.mrf.mxu0
      %v437 = vpop.f32.mrf.mxu0
      %v438 = vadd.f32 0.0, %v437
      %v439 = vpop.f32.mrf.mxu0
      %440 = vdwg.mxu0
      %v449 = vunpack.c.l.b16 %v315
      %v450 = vunpack.c.l.b16 %v316
      %v451 = vunpack.c.l.b16 %v317
      %v452 = vunpack.c.l.b16 %v318
      %v453 = vunpack.c.l.b16 %v319
      %v454 = vunpack.c.l.b16 %v320
      %v455 = vunpack.c.l.b16 %v321
      %v456 = vunpack.c.l.b16 %v322
      %v457 = vpack.c.b16 %v450, %v449
      %v458 = vpack.c.b16 %v452, %v451
      %v459 = vpack.c.b16 %v454, %v453
      %v460 = vpack.c.b16 %v456, %v455
      %v465 = vunpack.c.l.b16 %v323
      %v466 = vunpack.c.l.b16 %v324
      %v467 = vunpack.c.l.b16 %v325
      %v468 = vunpack.c.l.b16 %v326
      %v469 = vpack.c.b16 %v466, %v465
      %v470 = vpack.c.b16 %v468, %v467
      %vm473 = vcmask 261120
      %v475 = vsel %vm473, %v457, 0
      %v478 = vsel %vm473, %v458, 0
      %v481 = vsel %vm473, %v459, 0
      %v484 = vsel %vm473, %v460, 0
      %486 = vmatprep.subr.bf16.mxu0 0
      %487 = vmatpush1.bf16.msra.mxu0 0
      %488 = vmatprep.subr.bf16.mxu0 0
      %489 = vmatpush1.bf16.msra.mxu0 0
      %490 = vmatprep.subr.bf16.mxu0 0
      %491 = vmatpush1.bf16.msra.mxu0 0
      %492 = vmatprep.subr.bf16.mxu0 0
      %493 = vmatpush1.bf16.msra.mxu0 0
      %494 = vmatprep.subr.bf16.mxu0 0
      %495 = vmatpush1.bf16.msra.mxu0 0
      %496 = vmatprep.subr.bf16.mxu0 0
      %497 = vmatpush1.bf16.msra.mxu0 0
      %498 = vmatprep.subr.bf16.mxu0 0
      %499 = vmatpush1.bf16.msra.mxu0 %v470
      %500 = vmatprep.subr.bf16.mxu0 0
      %501 = vmatpush1.bf16.msra.mxu0 %v469
      %502 = vmatprep.subr.bf16.mxu0 0
      %503 = vmatpush2.bf16.msra.mxu0 0
      %504 = vmatprep.subr.bf16.mxu0 0
      %505 = vmatpush2.bf16.msra.mxu0 0
      %506 = vmatprep.subr.bf16.mxu0 0
      %507 = vmatpush2.bf16.msra.mxu0 0
      %508 = vmatprep.subr.bf16.mxu0 0
      %509 = vmatpush2.bf16.msra.mxu0 0
      %510 = vmatprep.subr.bf16.mxu0 0
      %511 = vmatpush2.bf16.msra.mxu0 0
      %512 = vmatprep.subr.bf16.mxu0 0
      %513 = vmatpush2.bf16.msra.mxu0 0
      %514 = vmatprep.subr.bf16.mxu0 0
      %515 = vmatpush2.bf16.msra.mxu0 0
      %516 = vmatprep.subr.bf16.mxu0 0
      %517 = vmatpush2.bf16.msra.mxu0 0
      %518 = vmatprep.mubr.bf16.mxu0 0
      %519 = vmatmul.mubr.bf16.gmra.mxu0 %v475
      %v520 = vpop.f32.mrf.mxu0
      %v521 = vadd.f32 %v411, %v520
      %v522 = vpop.f32.mrf.mxu0
      %v523 = vpop.f32.mrf.mxu0
      %v524 = vadd.f32 %v414, %v523
      %v525 = vpop.f32.mrf.mxu0
      %526 = vmatprep.mubr.bf16.mxu0 0
      %527 = vmatmul.mubr.bf16.gmra.mxu0 %v478
      %v528 = vpop.f32.mrf.mxu0
      %v529 = vadd.f32 %v419, %v528
      %v530 = vpop.f32.mrf.mxu0
      %v531 = vpop.f32.mrf.mxu0
      %v532 = vadd.f32 %v422, %v531
      %v533 = vpop.f32.mrf.mxu0
      %534 = vmatprep.mubr.bf16.mxu0 0
      %535 = vmatmul.mubr.bf16.gmra.mxu0 %v481
      %v536 = vpop.f32.mrf.mxu0
      %v537 = vadd.f32 %v427, %v536
      %v538 = vpop.f32.mrf.mxu0
      %v539 = vpop.f32.mrf.mxu0
      %v540 = vadd.f32 %v430, %v539
      %v541 = vpop.f32.mrf.mxu0
      %542 = vmatprep.mubr.bf16.mxu0 0
      %543 = vmatmul.mubr.bf16.gmra.mxu0 %v484
      %v544 = vpop.f32.mrf.mxu0
      %v545 = vadd.f32 %v435, %v544
      %v546 = vpop.f32.mrf.mxu0
      %v547 = vpop.f32.mrf.mxu0
      %v548 = vadd.f32 %v438, %v547
      %v549 = vpop.f32.mrf.mxu0
      %550 = vdwg.mxu0
      %v551 = vld [vmem:[%s303] sm:$0x1]
      %v553 = vlaneseq
      %v554 = vshrl.u32 %v553, 7
      %v555 = vsub.s32 0, %v554
      %v556 = vrot.slane %v551, %v555
      %v558 = vadd.f32 %v521, %v556
      %v559 = vadd.f32 %v524, %v556
      %v560 = vadd.f32 %v529, %v556
      %v561 = vadd.f32 %v532, %v556
      %v562 = vadd.f32 %v537, %v556
      %v563 = vadd.f32 %v540, %v556
      %v564 = vadd.f32 %v545, %v556
      %v565 = vadd.f32 %v548, %v556
      %v566 = vmax.f32 %v558, 0.0
      %v567 = vmax.f32 %v559, 0.0
      %v568 = vmax.f32 %v560, 0.0
      %v569 = vmax.f32 %v561, 0.0
      %v570 = vmax.f32 %v562, 0.0
      %v571 = vmax.f32 %v563, 0.0
      %v572 = vmax.f32 %v564, 0.0
      %v573 = vmax.f32 %v565, 0.0
      %v574 = vpack.c.bf16 %v567, %v566
      %v575 = vpack.c.bf16 %v569, %v568
      %v576 = vpack.c.bf16 %v571, %v570
      %v577 = vpack.c.bf16 %v573, %v572
      %v582 = vunpack.c.l.b16 %v574
      %v583 = vunpack.c.h.b16 %v574
      %v584 = vunpack.c.l.b16 %v575
      %v585 = vunpack.c.h.b16 %v575
      %v586 = vunpack.c.l.b16 %v576
      %v587 = vunpack.c.h.b16 %v576
      %v588 = vunpack.c.l.b16 %v577
      %v589 = vunpack.c.h.b16 %v577
      %v590 = vpack.c.b16 %v582, %v582
      %v591 = vpack.c.b16 %v583, %v583
      %v592 = vpack.c.b16 %v584, %v584
      %v593 = vpack.c.b16 %v585, %v585
      %v594 = vpack.c.b16 %v586, %v586
      %v595 = vpack.c.b16 %v587, %v587
      %v596 = vpack.c.b16 %v588, %v588
      %v597 = vpack.c.b16 %v589, %v589
      %vm606 = vcmask 257024
      %607 = vst.msk [vmem:[%s312] sm:$0xf] %vm606, %v590
      %608 = vst.msk [vmem:[%s312 + $0x4] sm:$0xf] %vm606, %v591
      %609 = vst.msk [vmem:[%s312 + $0x8] sm:$0xf] %vm606, %v592
      %610 = vst.msk [vmem:[%s312 + $0xc] sm:$0xf] %vm606, %v593
      %611 = vst.msk [vmem:[%s312 + $0x10] sm:$0xf] %vm606, %v594
      %612 = vst.msk [vmem:[%s312 + $0x14] sm:$0xf] %vm606, %v595
      %613 = vst.msk [vmem:[%s312 + $0x18] sm:$0xf] %vm606, %v596
      %614 = vst.msk [vmem:[%s312 + $0x1c] sm:$0xf] %vm606, %v597
      %s615 = smul.u32 8, %s21
      %p616 = scmp.lt.s32.totalorder %s20, 1
      %s617 = scalar_select %p616, %s20, 1
      %p618 = scmp.lt.s32.totalorder %s615, 7
      %s619 = scalar_select %p618, %s615, 7
      %s620 = smul.addr %s617, 8
      %s621 = sadd.s32 %s619, %s620
      %s622 = smul.addr %s621, 4
      %s623 = scalar_lea.vmem %s5, %s622
      // Predicated region
      $region41: #{one_model_forward.13} parent=39 // pred_check
        %p624 = pneg %p172
      $region42: #{one_model_forward.13} parent=39 // pred_check_branch
        %626 = sbr.rel (%p624) target = $region44
      $region43: #{one_model_forward.13} parent=39 // pred_region
        %s627 = smul.u32 8, %s21
      $region44: #{one_model_forward.13} parent=39 // pred_fallthru
        _
    $region40: #{one_model_forward.13} parent=5 // pred_fallthru
      _
    %p628 = scmp.le.s32.totalorder 2, %s11
    // Predicated region
    $region45: #{one_model_forward.13} parent=5 // pred_check
      %p629 = pneg %p628
    $region46: #{one_model_forward.13} parent=5 // pred_check_branch
      %631 = sbr.rel (%p629) target = $region48
    $region47: #{one_model_forward.13} parent=5 // pred_region
      %s632 = ssub.s32 %s11, 2
      // Predicated region
      $region49: #{one_model_forward.13} parent=47 // pred_check
        %p633 = pneg %p178
      $region50: #{one_model_forward.13} parent=47 // pred_check_branch
        %635 = sbr.rel (%p633) target = $region52
      $region51: #{one_model_forward.13} parent=47 // pred_region
        %s636 = smul.u32 8, %s23
        %p637 = scmp.lt.s32.totalorder %s22, 1
        %s638 = scalar_select %p637, %s22, 1
        %p639 = scmp.lt.s32.totalorder %s636, 7
        %s640 = scalar_select %p639, %s636, 7
        %s641 = smul.addr %s638, 8
        %s642 = sadd.s32 %s640, %s641
        %s643 = smul.addr %s642, 4
        %s644 = scalar_lea.vmem %s5, %s643
      $region52: #{one_model_forward.13} parent=47 // pred_fallthru
        _
    $region48: #{one_model_forward.13} parent=5 // pred_fallthru
      _
  $region6: #{one_model_forward.13} parent=0 // loop_footer
    %s15 = sadd.s32 1, %s11
  $region7: #{one_model_forward.13} parent=0 // loop_footer_branch
    %10 = sbr.rel target = $region3
  $region8: #{one_model_forward.13} parent=0 // loop_exit
    _

// kernel: one_model_forward.18
$region0: #{one_model_forward.18}
  #allocation0 [shape = 'u32[]', space=smem, size = 0x4, offset = 0x4, fixed_abs, tag = 'smem constant byte address 0x4 - core index']
  #allocation1 [shape = 'u32[144,128]{1,0:T(1,128)}', space=vmem, size = 0x12000, scoped, tag = 'internal scratch']
  %s0 = inlined_call_operand.vmem [shape: bf16[2,64,32], index: 0, kind: input, shape index: {}]
  %s1 = inlined_call_operand.vmem [shape: bf16[2,64,32], index: 1, kind: input, shape index: {}]
  %s2 = inlined_call_operand.vmem [shape: bf16[2,64,1], index: 2, kind: input, shape index: {}]
  %s3 = inlined_call_operand.vmem [shape: bf16[32,32], index: 3, kind: input, shape index: {}]
  %s4 = inlined_call_operand.vmem [shape: bf16[32,32], index: 4, kind: input, shape index: {}]
  %s5 = inlined_call_operand.vmem [shape: bf16[1,32], index: 5, kind: input, shape index: {}]
  %s6 = inlined_call_operand.vmem [shape: f32[2,1,32], index: 6, kind: input, shape index: {}]
  %s7 = inlined_call_operand.vmem [shape: bf16[2,64,32], index: 7, kind: output, shape index: {}]
  %s8 = sld [smem:[#allocation0]]
  $region61: #{one_model_forward.18} parent=0
    _
  %s10 = ssub.s32 1, %s8
  %s11 = scalar_select 0, %s10, %s8
  loop: start=0, step=1, limit=4
  $region2: #{one_model_forward.18} parent=0 // loop_pre_header
    _
  $region3: #{one_model_forward.18} parent=0 // loop_header
    %s13 = sphi 0, %s17
    %p14 = scmp.ge.s32.totalorder %s13, 4
    %s20 = sphi 0, %s32
    %s21 = sphi 0, %s28
    %s22 = sphi 0, %s20
    %s23 = sphi 0, %s21
    %s24 = sphi 0, %s22
    %s25 = sphi 0, %s23
    %s37 = sphi 0, %s39
    %s40 = sphi 0, %s37
    %s41 = sphi 0, %s40
    %s57 = sphi 0, %s41
    %s65 = sphi 0, %s67
    %s68 = sphi 0, %s65
    %s69 = sphi 0, %s68
    %s85 = sphi 0, %s69
    %s93 = sphi 0, %s95
    %s96 = sphi 0, %s93
    %s97 = sphi 0, %s96
    %s113 = sphi 0, %s97
    %s117 = sphi 0, %s117
    %s119 = sphi 0, %s117
    %s120 = sphi 0, %s119
    %s134 = sphi 0, %s120
    %s138 = sphi 0, %s138
    %s140 = sphi 0, %s138
    %s141 = sphi 0, %s140
    %s155 = sphi 0, %s141
    %s159 = sphi 0, %s159
    %s161 = sphi 0, %s159
    %s162 = sphi 0, %s161
    %s176 = sphi 0, %s162
    %s182 = sphi 0, %s184
    %s185 = sphi 0, %s182
    %s186 = sphi 0, %s185
    %s202 = sphi 0, %s186
    %s210 = sphi 0, %s212
    %s213 = sphi 0, %s210
    %s214 = sphi 0, %s213
    %s230 = sphi 0, %s214
  $region4: #{one_model_forward.18} parent=0 // loop_header_branch
    %16 = sbr.rel (%p14) target = $region8
  $region5: #{one_model_forward.18} parent=0 // loop_body
    %s18 = ssub.s32 %s13, 1
    %s19 = ssub.s32 %s13, 2
    %s26 = sadd.s32 1, %s21
    %p27 = scmp.ge.s32.totalorder %s26, 1
    %s28 = scalar_select %p27, 0, %s26
    %s29 = sadd.s32 1, %s20
    %s30 = scalar_select %p27, %s29, %s20
    %p31 = scmp.ge.s32.totalorder %s30, 2
    %s32 = scalar_select %p31, 0, %s30
    %s33 = ssub.s32 %s20, %s32
    %s34 = ssub.s32 %s21, %s28
    %s35 = sor.u32 %s33, %s34
    %p36 = scmp.eq.s32.totalorder %s35, 0
    %s38 = sadd.s32 %s37, 1
    %s39 = scalar_select %p36, %s37, %s38
    %p42 = pneg %p36
    %p43 = scmp.eq.s32.totalorder %s13, 1
    %p44 = por %p42, %p43
    %p45 = scmp.ne.s32.totalorder %s37, %s40
    %p46 = scmp.eq.s32.totalorder %s13, 0
    %p47 = por %p45, %p46
    %p48 = scmp.ne.s32.totalorder %s37, %s40
    %p49 = scmp.eq.s32.totalorder %s18, 1
    %p50 = por %p48, %p49
    %p51 = scmp.ne.s32.totalorder %s40, %s41
    %p52 = scmp.eq.s32.totalorder %s18, 0
    %p53 = por %p51, %p52
    %p54 = scmp.ne.s32.totalorder %s40, %s41
    %p55 = scmp.eq.s32.totalorder %s19, 1
    %p56 = por %p54, %p55
    %p58 = scmp.ne.s32.totalorder %s41, %s57
    %p59 = scmp.eq.s32.totalorder %s19, 0
    %p60 = por %p58, %p59
    %s61 = ssub.s32 %s20, %s32
    %s62 = ssub.s32 %s21, %s28
    %s63 = sor.u32 %s61, %s62
    %p64 = scmp.eq.s32.totalorder %s63, 0
    %s66 = sadd.s32 %s65, 1
    %s67 = scalar_select %p64, %s65, %s66
    %p70 = pneg %p64
    %p71 = scmp.eq.s32.totalorder %s13, 1
    %p72 = por %p70, %p71
    %p73 = scmp.ne.s32.totalorder %s65, %s68
    %p74 = scmp.eq.s32.totalorder %s13, 0
    %p75 = por %p73, %p74
    %p76 = scmp.ne.s32.totalorder %s65, %s68
    %p77 = scmp.eq.s32.totalorder %s18, 1
    %p78 = por %p76, %p77
    %p79 = scmp.ne.s32.totalorder %s68, %s69
    %p80 = scmp.eq.s32.totalorder %s18, 0
    %p81 = por %p79, %p80
    %p82 = scmp.ne.s32.totalorder %s68, %s69
    %p83 = scmp.eq.s32.totalorder %s19, 1
    %p84 = por %p82, %p83
    %p86 = scmp.ne.s32.totalorder %s69, %s85
    %p87 = scmp.eq.s32.totalorder %s19, 0
    %p88 = por %p86, %p87
    %s89 = ssub.s32 %s20, %s32
    %s90 = ssub.s32 %s21, %s28
    %s91 = sor.u32 %s89, %s90
    %p92 = scmp.eq.s32.totalorder %s91, 0
    %s94 = sadd.s32 %s93, 1
    %s95 = scalar_select %p92, %s93, %s94
    %p98 = pneg %p92
    %p99 = scmp.eq.s32.totalorder %s13, 1
    %p100 = por %p98, %p99
    %p101 = scmp.ne.s32.totalorder %s93, %s96
    %p102 = scmp.eq.s32.totalorder %s13, 0
    %p103 = por %p101, %p102
    %p104 = scmp.ne.s32.totalorder %s93, %s96
    %p105 = scmp.eq.s32.totalorder %s18, 1
    %p106 = por %p104, %p105
    %p107 = scmp.ne.s32.totalorder %s96, %s97
    %p108 = scmp.eq.s32.totalorder %s18, 0
    %p109 = por %p107, %p108
    %p110 = scmp.ne.s32.totalorder %s96, %s97
    %p111 = scmp.eq.s32.totalorder %s19, 1
    %p112 = por %p110, %p111
    %p114 = scmp.ne.s32.totalorder %s97, %s113
    %p115 = scmp.eq.s32.totalorder %s19, 0
    %p116 = por %p114, %p115
    %s118 = sadd.s32 %s117, 1
    %p121 = scmp.eq.s32.totalorder %s13, 1
    %p122 = scmp.ne.s32.totalorder %s117, %s119
    %p123 = scmp.eq.s32.totalorder %s13, 0
    %p124 = por %p122, %p123
    %p125 = scmp.ne.s32.totalorder %s117, %s119
    %p126 = scmp.eq.s32.totalorder %s18, 1
    %p127 = por %p125, %p126
    %p128 = scmp.ne.s32.totalorder %s119, %s120
    %p129 = scmp.eq.s32.totalorder %s18, 0
    %p130 = por %p128, %p129
    %p131 = scmp.ne.s32.totalorder %s119, %s120
    %p132 = scmp.eq.s32.totalorder %s19, 1
    %p133 = por %p131, %p132
    %p135 = scmp.ne.s32.totalorder %s120, %s134
    %p136 = scmp.eq.s32.totalorder %s19, 0
    %p137 = por %p135, %p136
    %s139 = sadd.s32 %s138, 1
    %p142 = scmp.eq.s32.totalorder %s13, 1
    %p143 = scmp.ne.s32.totalorder %s138, %s140
    %p144 = scmp.eq.s32.totalorder %s13, 0
    %p145 = por %p143, %p144
    %p146 = scmp.ne.s32.totalorder %s138, %s140
    %p147 = scmp.eq.s32.totalorder %s18, 1
    %p148 = por %p146, %p147
    %p149 = scmp.ne.s32.totalorder %s140, %s141
    %p150 = scmp.eq.s32.totalorder %s18, 0
    %p151 = por %p149, %p150
    %p152 = scmp.ne.s32.totalorder %s140, %s141
    %p153 = scmp.eq.s32.totalorder %s19, 1
    %p154 = por %p152, %p153
    %p156 = scmp.ne.s32.totalorder %s141, %s155
    %p157 = scmp.eq.s32.totalorder %s19, 0
    %p158 = por %p156, %p157
    %s160 = sadd.s32 %s159, 1
    %p163 = scmp.eq.s32.totalorder %s13, 1
    %p164 = scmp.ne.s32.totalorder %s159, %s161
    %p165 = scmp.eq.s32.totalorder %s13, 0
    %p166 = por %p164, %p165
    %p167 = scmp.ne.s32.totalorder %s159, %s161
    %p168 = scmp.eq.s32.totalorder %s18, 1
    %p169 = por %p167, %p168
    %p170 = scmp.ne.s32.totalorder %s161, %s162
    %p171 = scmp.eq.s32.totalorder %s18, 0
    %p172 = por %p170, %p171
    %p173 = scmp.ne.s32.totalorder %s161, %s162
    %p174 = scmp.eq.s32.totalorder %s19, 1
    %p175 = por %p173, %p174
    %p177 = scmp.ne.s32.totalorder %s162, %s176
    %p178 = scmp.eq.s32.totalorder %s19, 0
    %p179 = por %p177, %p178
    %s180 = ssub.s32 %s20, %s32
    %p181 = scmp.eq.s32.totalorder %s180, 0
    %s183 = sadd.s32 %s182, 1
    %s184 = scalar_select %p181, %s182, %s183
    %p187 = pneg %p181
    %p188 = scmp.eq.s32.totalorder %s13, 1
    %p189 = por %p187, %p188
    %p190 = scmp.ne.s32.totalorder %s182, %s185
    %p191 = scmp.eq.s32.totalorder %s13, 0
    %p192 = por %p190, %p191
    %p193 = scmp.ne.s32.totalorder %s182, %s185
    %p194 = scmp.eq.s32.totalorder %s18, 1
    %p195 = por %p193, %p194
    %p196 = scmp.ne.s32.totalorder %s185, %s186
    %p197 = scmp.eq.s32.totalorder %s18, 0
    %p198 = por %p196, %p197
    %p199 = scmp.ne.s32.totalorder %s185, %s186
    %p200 = scmp.eq.s32.totalorder %s19, 1
    %p201 = por %p199, %p200
    %p203 = scmp.ne.s32.totalorder %s186, %s202
    %p204 = scmp.eq.s32.totalorder %s19, 0
    %p205 = por %p203, %p204
    %s206 = ssub.s32 %s20, %s32
    %s207 = ssub.s32 %s21, %s28
    %s208 = sor.u32 %s206, %s207
    %p209 = scmp.eq.s32.totalorder %s208, 0
    %s211 = sadd.s32 %s210, 1
    %s212 = scalar_select %p209, %s210, %s211
    %p215 = pneg %p209
    %p216 = scmp.eq.s32.totalorder %s13, 1
    %p217 = por %p215, %p216
    %p218 = scmp.ne.s32.totalorder %s210, %s213
    %p219 = scmp.eq.s32.totalorder %s13, 0
    %p220 = por %p218, %p219
    %p221 = scmp.ne.s32.totalorder %s210, %s213
    %p222 = scmp.eq.s32.totalorder %s18, 1
    %p223 = por %p221, %p222
    %p224 = scmp.ne.s32.totalorder %s213, %s214
    %p225 = scmp.eq.s32.totalorder %s18, 0
    %p226 = por %p224, %p225
    %p227 = scmp.ne.s32.totalorder %s213, %s214
    %p228 = scmp.eq.s32.totalorder %s19, 1
    %p229 = por %p227, %p228
    %p231 = scmp.ne.s32.totalorder %s214, %s230
    %p232 = scmp.eq.s32.totalorder %s19, 0
    %p233 = por %p231, %p232
    %p234 = scmp.le.s32.totalorder 1, %s13
    %p235 = scmp.lt.s32.totalorder %s13, 3
    %p236 = pnand %p234, %p235
    %p237 = pneg %p236
    // Predicated region
    $region9: #{one_model_forward.18} parent=5 // pred_check
      _
    $region10: #{one_model_forward.18} parent=5 // pred_check_branch
      %239 = sbr.rel (%p236) target = $region12
    $region11: #{one_model_forward.18} parent=5 // pred_region
      %s240 = ssub.s32 %s13, 1
      // Predicated region
      $region13: #{one_model_forward.18} parent=11 // pred_check
        %p241 = pneg %p130
      $region14: #{one_model_forward.18} parent=11 // pred_check_branch
        %243 = sbr.rel (%p241) target = $region16
      $region15: #{one_model_forward.18} parent=11 // pred_region
        _
      $region16: #{one_model_forward.18} parent=11 // pred_fallthru
        _
      // Predicated region
      $region17: #{one_model_forward.18} parent=11 // pred_check
        %p244 = pneg %p151
      $region18: #{one_model_forward.18} parent=11 // pred_check_branch
        %246 = sbr.rel (%p244) target = $region20
      $region19: #{one_model_forward.18} parent=11 // pred_region
        _
      $region20: #{one_model_forward.18} parent=11 // pred_fallthru
        _
      // Predicated region
      $region21: #{one_model_forward.18} parent=11 // pred_check
        %p247 = pneg %p172
      $region22: #{one_model_forward.18} parent=11 // pred_check_branch
        %249 = sbr.rel (%p247) target = $region24
      $region23: #{one_model_forward.18} parent=11 // pred_region
        _
      $region24: #{one_model_forward.18} parent=11 // pred_fallthru
        _
    $region12: #{one_model_forward.18} parent=5 // pred_fallthru
      _
    %p250 = scmp.lt.s32.totalorder %s13, 2
    // Predicated region
    $region25: #{one_model_forward.18} parent=5 // pred_check
      %p251 = pneg %p250
    $region26: #{one_model_forward.18} parent=5 // pred_check_branch
      %253 = sbr.rel (%p251) target = $region28
    $region27: #{one_model_forward.18} parent=5 // pred_region
      // Predicated region
      $region29: #{one_model_forward.18} parent=27 // pred_check
        %p254 = pneg %p47
      $region30: #{one_model_forward.18} parent=27 // pred_check_branch
        %256 = sbr.rel (%p254) target = $region32
      $region31: #{one_model_forward.18} parent=27 // pred_region
        %s257 = smul.u32 8, %s21
        %p258 = scmp.lt.s32.totalorder %s20, 1
        %s259 = scalar_select %p258, %s20, 1
        %p260 = scmp.lt.s32.totalorder %s257, 7
        %s261 = scalar_select %p260, %s257, 7
        %s262 = smul.addr %s259, 8
        %s263 = sadd.s32 %s261, %s262
        %s264 = smul.addr %s263, 4
        %s265 = scalar_lea.vmem %s0, %s264
        %s266 = smul.u32 8, %s21
      $region32: #{one_model_forward.18} parent=27 // pred_fallthru
        _
      // Predicated region
      $region33: #{one_model_forward.18} parent=27 // pred_check
        %p267 = pneg %p75
      $region34: #{one_model_forward.18} parent=27 // pred_check_branch
        %269 = sbr.rel (%p267) target = $region36
      $region35: #{one_model_forward.18} parent=27 // pred_region
        %s270 = smul.u32 8, %s21
        %p271 = scmp.lt.s32.totalorder %s20, 1
        %s272 = scalar_select %p271, %s20, 1
        %p273 = scmp.lt.s32.totalorder %s270, 7
        %s274 = scalar_select %p273, %s270, 7
        %s275 = smul.addr %s272, 8
        %s276 = sadd.s32 %s274, %s275
        %s277 = smul.addr %s276, 4
        %s278 = scalar_lea.vmem %s1, %s277
        %s279 = smul.u32 8, %s21
      $region36: #{one_model_forward.18} parent=27 // pred_fallthru
        _
      // Predicated region
      $region37: #{one_model_forward.18} parent=27 // pred_check
        %p280 = pneg %p103
      $region38: #{one_model_forward.18} parent=27 // pred_check_branch
        %282 = sbr.rel (%p280) target = $region40
      $region39: #{one_model_forward.18} parent=27 // pred_region
        %s283 = smul.u32 8, %s21
        %p284 = scmp.lt.s32.totalorder %s20, 1
        %s285 = scalar_select %p284, %s20, 1
        %p286 = scmp.lt.s32.totalorder %s283, 7
        %s287 = scalar_select %p286, %s283, 7
        %s288 = smul.addr %s285, 8
        %s289 = sadd.s32 %s287, %s288
        %s290 = smul.addr %s289, 4
        %s291 = scalar_lea.vmem %s2, %s290
        %s292 = smul.u32 8, %s21
      $region40: #{one_model_forward.18} parent=27 // pred_fallthru
        _
      // Predicated region
      $region41: #{one_model_forward.18} parent=27 // pred_check
        %p293 = pneg %p192
      $region42: #{one_model_forward.18} parent=27 // pred_check_branch
        %295 = sbr.rel (%p293) target = $region44
      $region43: #{one_model_forward.18} parent=27 // pred_region
        %p296 = scmp.lt.s32.totalorder %s20, 1
        %s297 = scalar_select %p296, %s20, 1
        %s298 = scalar_lea.vmem %s6, %s297
      $region44: #{one_model_forward.18} parent=27 // pred_fallthru
        _
    $region28: #{one_model_forward.18} parent=5 // pred_fallthru
      _
    %p299 = scmp.le.s32.totalorder 1, %s13
    %p300 = scmp.lt.s32.totalorder %s13, 3
    %p301 = pnand %p299, %p300
    %p302 = pneg %p301
    // Predicated region
    $region45: #{one_model_forward.18} parent=5 // pred_check
      _
    $region46: #{one_model_forward.18} parent=5 // pred_check_branch
      %304 = sbr.rel (%p301) target = $region48
    $region47: #{one_model_forward.18} parent=5 // pred_region
      %s305 = ssub.s32 %s13, 1
      %s306 = smul.u32 8, %s23
      %p307 = scmp.lt.s32.totalorder %s22, 1
      %s308 = scalar_select %p307, %s22, 1
      %p309 = scmp.lt.s32.totalorder %s306, 7
      %s310 = scalar_select %p309, %s306, 7
      %s311 = smul.addr %s308, 8
      %s312 = sadd.s32 %s310, %s311
      %s313 = smul.addr %s312, 4
      %s314 = scalar_lea.vmem %s0, %s313
      %p315 = pneg %p53
      %p316 = pneg %p50
      %s317 = smul.u32 8, %s23
      %p318 = scmp.lt.s32.totalorder %s22, 1
      %s319 = scalar_select %p318, %s22, 1
      %p320 = scmp.lt.s32.totalorder %s317, 7
      %s321 = scalar_select %p320, %s317, 7
      %s322 = smul.addr %s319, 8
      %s323 = sadd.s32 %s321, %s322
      %s324 = smul.addr %s323, 4
      %s325 = scalar_lea.vmem %s1, %s324
      %p326 = pneg %p81
      %p327 = pneg %p78
      %s328 = smul.u32 8, %s23
      %p329 = scmp.lt.s32.totalorder %s22, 1
      %s330 = scalar_select %p329, %s22, 1
      %p331 = scmp.lt.s32.totalorder %s328, 7
      %s332 = scalar_select %p331, %s328, 7
      %s333 = smul.addr %s330, 8
      %s334 = sadd.s32 %s332, %s333
      %s335 = smul.addr %s334, 4
      %s336 = scalar_lea.vmem %s2, %s335
      %p337 = pneg %p109
      %p338 = pneg %p106
      %p339 = pneg %p130
      %p340 = pneg %p127
      %p341 = pneg %p151
      %p342 = pneg %p148
      %p343 = pneg %p172
      %p344 = pneg %p169
      %p345 = scmp.lt.s32.totalorder %s22, 1
      %s346 = scalar_select %p345, %s22, 1
      %s347 = scalar_lea.vmem %s6, %s346
      %p348 = pneg %p198
      %p349 = pneg %p195
      %p350 = pneg %p226
      %p351 = pneg %p223
      %s352 = smul.u32 8, %s23
      %p353 = scmp.lt.s32.totalorder %s22, 1
      %s354 = scalar_select %p353, %s22, 1
      %p355 = scmp.lt.s32.totalorder %s352, 7
      %s356 = scalar_select %p355, %s352, 7
      %s357 = smul.addr %s354, 8
      %s358 = sadd.s32 %s356, %s357
      %s359 = smul.addr %s358, 4
      %s360 = scalar_lea.vmem %s7, %s359
      %s361 = smul.u32 8, %s23
      %p362 = scmp.lt.s32.totalorder %s22, 1
      %s363 = scalar_select %p362, %s22, 1
      %p364 = scmp.lt.s32.totalorder %s361, 7
      %s365 = scalar_select %p364, %s361, 7
      %s366 = smul.addr %s363, 8
      %s367 = sadd.s32 %s365, %s366
      %s368 = smul.addr %s367, 4
      %s369 = scalar_lea.vmem %s0, %s368
      %s370 = smul.u32 8, %s23
      %s371 = smul.u32 8, %s23
      %p372 = scmp.lt.s32.totalorder %s22, 1
      %s373 = scalar_select %p372, %s22, 1
      %p374 = scmp.lt.s32.totalorder %s371, 7
      %s375 = scalar_select %p374, %s371, 7
      %s376 = smul.addr %s373, 8
      %s377 = sadd.s32 %s375, %s376
      %s378 = smul.addr %s377, 4
      %s379 = scalar_lea.vmem %s1, %s378
      %s380 = smul.u32 8, %s23
      %s381 = smul.u32 8, %s23
      %p382 = scmp.lt.s32.totalorder %s22, 1
      %s383 = scalar_select %p382, %s22, 1
      %p384 = scmp.lt.s32.totalorder %s381, 7
      %s385 = scalar_select %p384, %s381, 7
      %s386 = smul.addr %s383, 8
      %s387 = sadd.s32 %s385, %s386
      %s388 = smul.addr %s387, 4
      %s389 = scalar_lea.vmem %s2, %s388
      %s390 = smul.u32 8, %s23
      %p391 = scmp.lt.s32.totalorder %s22, 1
      %s392 = scalar_select %p391, %s22, 1
      %s393 = scalar_lea.vmem %s6, %s392
      %s394 = smul.u32 8, %s23
      %p395 = scmp.lt.s32.totalorder %s22, 1
      %s396 = scalar_select %p395, %s22, 1
      %p397 = scmp.lt.s32.totalorder %s394, 7
      %s398 = scalar_select %p397, %s394, 7
      %s399 = smul.addr %s396, 8
      %s400 = sadd.s32 %s398, %s399
      %s401 = smul.addr %s400, 4
      %s402 = scalar_lea.vmem %s7, %s401
      %s403 = smul.u32 8, %s23
      %v405 = vld [vmem:[%s369] sm:$0xf]
      %v406 = vld [vmem:[%s369 + $0x4] sm:$0xf]
      %v407 = vld [vmem:[%s369 + $0x8] sm:$0xf]
      %v408 = vld [vmem:[%s369 + $0xc] sm:$0xf]
      %v409 = vld [vmem:[%s369 + $0x10] sm:$0xf]
      %v410 = vld [vmem:[%s369 + $0x14] sm:$0xf]
      %v411 = vld [vmem:[%s369 + $0x18] sm:$0xf]
      %v412 = vld [vmem:[%s369 + $0x1c] sm:$0xf]
      %v413 = vld [vmem:[%s3] sm:$0xf]
      %v414 = vld [vmem:[%s3 + $0x4] sm:$0xf]
      %v415 = vld [vmem:[%s3 + $0x8] sm:$0xf]
      %v416 = vld [vmem:[%s3 + $0xc] sm:$0xf]
      %v417 = vld [vmem:[%s379] sm:$0xf]
      %v418 = vld [vmem:[%s379 + $0x4] sm:$0xf]
      %v419 = vld [vmem:[%s379 + $0x8] sm:$0xf]
      %v420 = vld [vmem:[%s379 + $0xc] sm:$0xf]
      %v421 = vld [vmem:[%s379 + $0x10] sm:$0xf]
      %v422 = vld [vmem:[%s379 + $0x14] sm:$0xf]
      %v423 = vld [vmem:[%s379 + $0x18] sm:$0xf]
      %v424 = vld [vmem:[%s379 + $0x1c] sm:$0xf]
      %v425 = vld [vmem:[%s4] sm:$0xf]
      %v426 = vld [vmem:[%s4 + $0x4] sm:$0xf]
      %v427 = vld [vmem:[%s4 + $0x8] sm:$0xf]
      %v428 = vld [vmem:[%s4 + $0xc] sm:$0xf]
      %v437 = vunpack.c.l.b16 %v417
      %v438 = vunpack.c.l.b16 %v418
      %v439 = vunpack.c.l.b16 %v419
      %v440 = vunpack.c.l.b16 %v420
      %v441 = vunpack.c.l.b16 %v421
      %v442 = vunpack.c.l.b16 %v422
      %v443 = vunpack.c.l.b16 %v423
      %v444 = vunpack.c.l.b16 %v424
      %v445 = vpack.c.b16 %v438, %v437
      %v446 = vpack.c.b16 %v440, %v439
      %v447 = vpack.c.b16 %v442, %v441
      %v448 = vpack.c.b16 %v444, %v443
      %v453 = vunpack.c.l.b16 %v425
      %v454 = vunpack.c.l.b16 %v426
      %v455 = vunpack.c.l.b16 %v427
      %v456 = vunpack.c.l.b16 %v428
      %v457 = vpack.c.b16 %v454, %v453
      %v458 = vpack.c.b16 %v456, %v455
      %vm461 = vcmask 261120
      %v463 = vsel %vm461, %v445, 0
      %v466 = vsel %vm461, %v446, 0
      %v469 = vsel %vm461, %v447, 0
      %v472 = vsel %vm461, %v448, 0
      %474 = vmatprep.subr.bf16.mxu0 0
      %475 = vmatpush1.bf16.msra.mxu0 0
      %476 = vmatprep.subr.bf16.mxu0 0
      %477 = vmatpush1.bf16.msra.mxu0 0
      %478 = vmatprep.subr.bf16.mxu0 0
      %479 = vmatpush1.bf16.msra.mxu0 0
      %480 = vmatprep.subr.bf16.mxu0 0
      %481 = vmatpush1.bf16.msra.mxu0 0
      %482 = vmatprep.subr.bf16.mxu0 0
      %483 = vmatpush1.bf16.msra.mxu0 0
      %484 = vmatprep.subr.bf16.mxu0 0
      %485 = vmatpush1.bf16.msra.mxu0 0
      %486 = vmatprep.subr.bf16.mxu0 0
      %487 = vmatpush1.bf16.msra.mxu0 %v458
      %488 = vmatprep.subr.bf16.mxu0 0
      %489 = vmatpush1.bf16.msra.mxu0 %v457
      %490 = vmatprep.subr.bf16.mxu0 0
      %491 = vmatpush2.bf16.msra.mxu0 0
      %492 = vmatprep.subr.bf16.mxu0 0
      %493 = vmatpush2.bf16.msra.mxu0 0
      %494 = vmatprep.subr.bf16.mxu0 0
      %495 = vmatpush2.bf16.msra.mxu0 0
      %496 = vmatprep.subr.bf16.mxu0 0
      %497 = vmatpush2.bf16.msra.mxu0 0
      %498 = vmatprep.subr.bf16.mxu0 0
      %499 = vmatpush2.bf16.msra.mxu0 0
      %500 = vmatprep.subr.bf16.mxu0 0
      %501 = vmatpush2.bf16.msra.mxu0 0
      %502 = vmatprep.subr.bf16.mxu0 0
      %503 = vmatpush2.bf16.msra.mxu0 0
      %504 = vmatprep.subr.bf16.mxu0 0
      %505 = vmatpush2.bf16.msra.mxu0 0
      %506 = vmatprep.mubr.bf16.mxu0 0
      %507 = vmatmul.mubr.bf16.gmra.mxu0 %v463
      %v508 = vpop.f32.mrf.mxu0
      %v509 = vadd.f32 0.0, %v508
      %v510 = vpop.f32.mrf.mxu0
      %v511 = vpop.f32.mrf.mxu0
      %v512 = vadd.f32 0.0, %v511
      %v513 = vpop.f32.mrf.mxu0
      %514 = vmatprep.mubr.bf16.mxu0 0
      %515 = vmatmul.mubr.bf16.gmra.mxu0 %v466
      %v516 = vpop.f32.mrf.mxu0
      %v517 = vadd.f32 0.0, %v516
      %v518 = vpop.f32.mrf.mxu0
      %v519 = vpop.f32.mrf.mxu0
      %v520 = vadd.f32 0.0, %v519
      %v521 = vpop.f32.mrf.mxu0
      %522 = vmatprep.mubr.bf16.mxu0 0
      %523 = vmatmul.mubr.bf16.gmra.mxu0 %v469
      %v524 = vpop.f32.mrf.mxu0
      %v525 = vadd.f32 0.0, %v524
      %v526 = vpop.f32.mrf.mxu0
      %v527 = vpop.f32.mrf.mxu0
      %v528 = vadd.f32 0.0, %v527
      %v529 = vpop.f32.mrf.mxu0
      %530 = vmatprep.mubr.bf16.mxu0 0
      %531 = vmatmul.mubr.bf16.gmra.mxu0 %v472
      %v532 = vpop.f32.mrf.mxu0
      %v533 = vadd.f32 0.0, %v532
      %v534 = vpop.f32.mrf.mxu0
      %v535 = vpop.f32.mrf.mxu0
      %v536 = vadd.f32 0.0, %v535
      %v537 = vpop.f32.mrf.mxu0
      %538 = vdwg.mxu0
      %v547 = vunpack.c.l.b16 %v405
      %v548 = vunpack.c.l.b16 %v406
      %v549 = vunpack.c.l.b16 %v407
      %v550 = vunpack.c.l.b16 %v408
      %v551 = vunpack.c.l.b16 %v409
      %v552 = vunpack.c.l.b16 %v410
      %v553 = vunpack.c.l.b16 %v411
      %v554 = vunpack.c.l.b16 %v412
      %v555 = vpack.c.b16 %v548, %v547
      %v556 = vpack.c.b16 %v550, %v549
      %v557 = vpack.c.b16 %v552, %v551
      %v558 = vpack.c.b16 %v554, %v553
      %v563 = vunpack.c.l.b16 %v413
      %v564 = vunpack.c.l.b16 %v414
      %v565 = vunpack.c.l.b16 %v415
      %v566 = vunpack.c.l.b16 %v416
      %v567 = vpack.c.b16 %v564, %v563
      %v568 = vpack.c.b16 %v566, %v565
      %v572 = vsel %vm461, %v555, 0
      %v575 = vsel %vm461, %v556, 0
      %v578 = vsel %vm461, %v557, 0
      %v581 = vsel %vm461, %v558, 0
      %583 = vmatprep.subr.bf16.mxu0 0
      %584 = vmatpush1.bf16.msra.mxu0 0
      %585 = vmatprep.subr.bf16.mxu0 0
      %586 = vmatpush1.bf16.msra.mxu0 0
      %587 = vmatprep.subr.bf16.mxu0 0
      %588 = vmatpush1.bf16.msra.mxu0 0
      %589 = vmatprep.subr.bf16.mxu0 0
      %590 = vmatpush1.bf16.msra.mxu0 0
      %591 = vmatprep.subr.bf16.mxu0 0
      %592 = vmatpush1.bf16.msra.mxu0 0
      %593 = vmatprep.subr.bf16.mxu0 0
      %594 = vmatpush1.bf16.msra.mxu0 0
      %595 = vmatprep.subr.bf16.mxu0 0
      %596 = vmatpush1.bf16.msra.mxu0 %v568
      %597 = vmatprep.subr.bf16.mxu0 0
      %598 = vmatpush1.bf16.msra.mxu0 %v567
      %599 = vmatprep.subr.bf16.mxu0 0
      %600 = vmatpush2.bf16.msra.mxu0 0
      %601 = vmatprep.subr.bf16.mxu0 0
      %602 = vmatpush2.bf16.msra.mxu0 0
      %603 = vmatprep.subr.bf16.mxu0 0
      %604 = vmatpush2.bf16.msra.mxu0 0
      %605 = vmatprep.subr.bf16.mxu0 0
      %606 = vmatpush2.bf16.msra.mxu0 0
      %607 = vmatprep.subr.bf16.mxu0 0
      %608 = vmatpush2.bf16.msra.mxu0 0
      %609 = vmatprep.subr.bf16.mxu0 0
      %610 = vmatpush2.bf16.msra.mxu0 0
      %611 = vmatprep.subr.bf16.mxu0 0
      %612 = vmatpush2.bf16.msra.mxu0 0
      %613 = vmatprep.subr.bf16.mxu0 0
      %614 = vmatpush2.bf16.msra.mxu0 0
      %615 = vmatprep.mubr.bf16.mxu0 0
      %616 = vmatmul.mubr.bf16.gmra.mxu0 %v572
      %v617 = vpop.f32.mrf.mxu0
      %v618 = vadd.f32 %v509, %v617
      %v619 = vpop.f32.mrf.mxu0
      %v620 = vpop.f32.mrf.mxu0
      %v621 = vadd.f32 %v512, %v620
      %v622 = vpop.f32.mrf.mxu0
      %623 = vmatprep.mubr.bf16.mxu0 0
      %624 = vmatmul.mubr.bf16.gmra.mxu0 %v575
      %v625 = vpop.f32.mrf.mxu0
      %v626 = vadd.f32 %v517, %v625
      %v627 = vpop.f32.mrf.mxu0
      %v628 = vpop.f32.mrf.mxu0
      %v629 = vadd.f32 %v520, %v628
      %v630 = vpop.f32.mrf.mxu0
      %631 = vmatprep.mubr.bf16.mxu0 0
      %632 = vmatmul.mubr.bf16.gmra.mxu0 %v578
      %v633 = vpop.f32.mrf.mxu0
      %v634 = vadd.f32 %v525, %v633
      %v635 = vpop.f32.mrf.mxu0
      %v636 = vpop.f32.mrf.mxu0
      %v637 = vadd.f32 %v528, %v636
      %v638 = vpop.f32.mrf.mxu0
      %639 = vmatprep.mubr.bf16.mxu0 0
      %640 = vmatmul.mubr.bf16.gmra.mxu0 %v581
      %v641 = vpop.f32.mrf.mxu0
      %v642 = vadd.f32 %v533, %v641
      %v643 = vpop.f32.mrf.mxu0
      %v644 = vpop.f32.mrf.mxu0
      %v645 = vadd.f32 %v536, %v644
      %v646 = vpop.f32.mrf.mxu0
      %647 = vdwg.mxu0
      %v648 = vld [vmem:[%s389] sm:$0xf]
      %v649 = vld [vmem:[%s389 + $0x4] sm:$0xf]
      %v650 = vld [vmem:[%s389 + $0x8] sm:$0xf]
      %v651 = vld [vmem:[%s389 + $0xc] sm:$0xf]
      %v652 = vld [vmem:[%s389 + $0x10] sm:$0xf]
      %v653 = vld [vmem:[%s389 + $0x14] sm:$0xf]
      %v654 = vld [vmem:[%s389 + $0x18] sm:$0xf]
      %v655 = vld [vmem:[%s389 + $0x1c] sm:$0xf]
      %v656 = vld [vmem:[%s5] sm:$0x1]
      %v657 = vunpack.c.l.bf16 %v648
      %v658 = vunpack.c.l.bf16 %v649
      %v659 = vunpack.c.l.bf16 %v650
      %v660 = vunpack.c.l.bf16 %v651
      %v661 = vunpack.c.l.bf16 %v652
      %v662 = vunpack.c.l.bf16 %v653
      %v663 = vunpack.c.l.bf16 %v654
      %v664 = vunpack.c.l.bf16 %v655
      %v665 = vunpack.c.l.bf16 %v656
      %667 = vset.pattern.permute.xlu0 0
      %668 = vperm.xlu0 %667, %v657
      %v669 = vpop.permute.xlu0 %668
      %672 = vset.pattern.permute.xlu0 0
      %673 = vperm.xlu0 %672, %v658
      %v674 = vpop.permute.xlu0 %673
      %677 = vset.pattern.permute.xlu0 0
      %678 = vperm.xlu0 %677, %v659
      %v679 = vpop.permute.xlu0 %678
      %682 = vset.pattern.permute.xlu0 0
      %683 = vperm.xlu0 %682, %v660
      %v684 = vpop.permute.xlu0 %683
      %687 = vset.pattern.permute.xlu0 0
      %688 = vperm.xlu0 %687, %v661
      %v689 = vpop.permute.xlu0 %688
      %692 = vset.pattern.permute.xlu0 0
      %693 = vperm.xlu0 %692, %v662
      %v694 = vpop.permute.xlu0 %693
      %697 = vset.pattern.permute.xlu0 0
      %698 = vperm.xlu0 %697, %v663
      %v699 = vpop.permute.xlu0 %698
      %702 = vset.pattern.permute.xlu0 0
      %703 = vperm.xlu0 %702, %v664
      %v704 = vpop.permute.xlu0 %703
      %v706 = vlaneseq
      %v707 = vshrl.u32 %v706, 7
      %v708 = vsub.s32 0, %v707
      %v709 = vrot.slane %v665, %v708
      %v710 = vmul.f32 %v669, %v709
      %v711 = vmul.f32 %v674, %v709
      %v712 = vmul.f32 %v679, %v709
      %v713 = vmul.f32 %v684, %v709
      %v714 = vmul.f32 %v689, %v709
      %v715 = vmul.f32 %v694, %v709
      %v716 = vmul.f32 %v699, %v709
      %v717 = vmul.f32 %v704, %v709
      %v718 = vadd.f32 %v618, %v710
      %v719 = vadd.f32 %v621, %v711
      %v720 = vadd.f32 %v626, %v712
      %v721 = vadd.f32 %v629, %v713
      %v722 = vadd.f32 %v634, %v714
      %v723 = vadd.f32 %v637, %v715
      %v724 = vadd.f32 %v642, %v716
      %v725 = vadd.f32 %v645, %v717
      %v726 = vld [vmem:[%s393] sm:$0x1]
      %v728 = vlaneseq
      %v729 = vshrl.u32 %v728, 7
      %v730 = vsub.s32 0, %v729
      %v731 = vrot.slane %v726, %v730
      %v733 = vadd.f32 %v718, %v731
      %v734 = vadd.f32 %v719, %v731
      %v735 = vadd.f32 %v720, %v731
      %v736 = vadd.f32 %v721, %v731
      %v737 = vadd.f32 %v722, %v731
      %v738 = vadd.f32 %v723, %v731
      %v739 = vadd.f32 %v724, %v731
      %v740 = vadd.f32 %v725, %v731
      %v741 = vmax.f32 %v733, 0.0
      %v742 = vmax.f32 %v734, 0.0
      %v743 = vmax.f32 %v735, 0.0
      %v744 = vmax.f32 %v736, 0.0
      %v745 = vmax.f32 %v737, 0.0
      %v746 = vmax.f32 %v738, 0.0
      %v747 = vmax.f32 %v739, 0.0
      %v748 = vmax.f32 %v740, 0.0
      %v749 = vpack.c.bf16 %v742, %v741
      %v750 = vpack.c.bf16 %v744, %v743
      %v751 = vpack.c.bf16 %v746, %v745
      %v752 = vpack.c.bf16 %v748, %v747
      %v757 = vunpack.c.l.b16 %v749
      %v758 = vunpack.c.h.b16 %v749
      %v759 = vunpack.c.l.b16 %v750
      %v760 = vunpack.c.h.b16 %v750
      %v761 = vunpack.c.l.b16 %v751
      %v762 = vunpack.c.h.b16 %v751
      %v763 = vunpack.c.l.b16 %v752
      %v764 = vunpack.c.h.b16 %v752
      %v765 = vpack.c.b16 %v757, %v757
      %v766 = vpack.c.b16 %v758, %v758
      %v767 = vpack.c.b16 %v759, %v759
      %v768 = vpack.c.b16 %v760, %v760
      %v769 = vpack.c.b16 %v761, %v761
      %v770 = vpack.c.b16 %v762, %v762
      %v771 = vpack.c.b16 %v763, %v763
      %v772 = vpack.c.b16 %v764, %v764
      %vm781 = vcmask 257024
      %782 = vst.msk [vmem:[%s402] sm:$0xf] %vm781, %v765
      %783 = vst.msk [vmem:[%s402 + $0x4] sm:$0xf] %vm781, %v766
      %784 = vst.msk [vmem:[%s402 + $0x8] sm:$0xf] %vm781, %v767
      %785 = vst.msk [vmem:[%s402 + $0xc] sm:$0xf] %vm781, %v768
      %786 = vst.msk [vmem:[%s402 + $0x10] sm:$0xf] %vm781, %v769
      %787 = vst.msk [vmem:[%s402 + $0x14] sm:$0xf] %vm781, %v770
      %788 = vst.msk [vmem:[%s402 + $0x18] sm:$0xf] %vm781, %v771
      %789 = vst.msk [vmem:[%s402 + $0x1c] sm:$0xf] %vm781, %v772
      %s790 = smul.u32 8, %s23
      %p791 = scmp.lt.s32.totalorder %s22, 1
      %s792 = scalar_select %p791, %s22, 1
      %p793 = scmp.lt.s32.totalorder %s790, 7
      %s794 = scalar_select %p793, %s790, 7
      %s795 = smul.addr %s792, 8
      %s796 = sadd.s32 %s794, %s795
      %s797 = smul.addr %s796, 4
      %s798 = scalar_lea.vmem %s7, %s797
      // Predicated region
      $region49: #{one_model_forward.18} parent=47 // pred_check
        %p799 = pneg %p223
      $region50: #{one_model_forward.18} parent=47 // pred_check_branch
        %801 = sbr.rel (%p799) target = $region52
      $region51: #{one_model_forward.18} parent=47 // pred_region
        %s802 = smul.u32 8, %s23
      $region52: #{one_model_forward.18} parent=47 // pred_fallthru
        _
    $region48: #{one_model_forward.18} parent=5 // pred_fallthru
      _
    %p803 = scmp.le.s32.totalorder 2, %s13
    // Predicated region
    $region53: #{one_model_forward.18} parent=5 // pred_check
      %p804 = pneg %p803
    $region54: #{one_model_forward.18} parent=5 // pred_check_branch
      %806 = sbr.rel (%p804) target = $region56
    $region55: #{one_model_forward.18} parent=5 // pred_region
      %s807 = ssub.s32 %s13, 2
      // Predicated region
      $region57: #{one_model_forward.18} parent=55 // pred_check
        %p808 = pneg %p229
      $region58: #{one_model_forward.18} parent=55 // pred_check_branch
        %810 = sbr.rel (%p808) target = $region60
      $region59: #{one_model_forward.18} parent=55 // pred_region
        %s811 = smul.u32 8, %s25
        %p812 = scmp.lt.s32.totalorder %s24, 1
        %s813 = scalar_select %p812, %s24, 1
        %p814 = scmp.lt.s32.totalorder %s811, 7
        %s815 = scalar_select %p814, %s811, 7
        %s816 = smul.addr %s813, 8
        %s817 = sadd.s32 %s815, %s816
        %s818 = smul.addr %s817, 4
        %s819 = scalar_lea.vmem %s7, %s818
      $region60: #{one_model_forward.18} parent=55 // pred_fallthru
        _
    $region56: #{one_model_forward.18} parent=5 // pred_fallthru
      _
  $region6: #{one_model_forward.18} parent=0 // loop_footer
    %s17 = sadd.s32 1, %s13
  $region7: #{one_model_forward.18} parent=0 // loop_footer_branch
    %12 = sbr.rel target = $region3
  $region8: #{one_model_forward.18} parent=0 // loop_exit
    _

// kernel: one_model_forward.21
$region0: #{one_model_forward.21}
  #allocation0 [shape = 'u32[]', space=smem, size = 0x4, offset = 0x4, fixed_abs, tag = 'smem constant byte address 0x4 - core index']
  #allocation1 [shape = 'u32[144,128]{1,0:T(1,128)}', space=vmem, size = 0x12000, scoped, tag = 'internal scratch']
  %s0 = inlined_call_operand.vmem [shape: bf16[2,64,160], index: 0, kind: input, shape index: {}]
  %s1 = inlined_call_operand.vmem [shape: bf16[160,32], index: 1, kind: input, shape index: {}]
  %s2 = inlined_call_operand.vmem [shape: f32[2,1,32], index: 2, kind: input, shape index: {}]
  %s3 = inlined_call_operand.vmem [shape: bf16[2,64,32], index: 3, kind: output, shape index: {}]
  %s4 = sld [smem:[#allocation0]]
  $region45: #{one_model_forward.21} parent=0
    _
  %s6 = ssub.s32 1, %s4
  %s7 = scalar_select 0, %s6, %s4
  loop: start=0, step=1, limit=4
  $region2: #{one_model_forward.21} parent=0 // loop_pre_header
    _
  $region3: #{one_model_forward.21} parent=0 // loop_header
    %s9 = sphi 0, %s13
    %p10 = scmp.ge.s32.totalorder %s9, 4
    %s16 = sphi 0, %s28
    %s17 = sphi 0, %s24
    %s18 = sphi 0, %s16
    %s19 = sphi 0, %s17
    %s20 = sphi 0, %s18
    %s21 = sphi 0, %s19
    %s33 = sphi 0, %s35
    %s36 = sphi 0, %s33
    %s37 = sphi 0, %s36
    %s53 = sphi 0, %s37
    %s57 = sphi 0, %s57
    %s59 = sphi 0, %s57
    %s60 = sphi 0, %s59
    %s74 = sphi 0, %s60
    %s80 = sphi 0, %s82
    %s83 = sphi 0, %s80
    %s84 = sphi 0, %s83
    %s100 = sphi 0, %s84
    %s108 = sphi 0, %s110
    %s111 = sphi 0, %s108
    %s112 = sphi 0, %s111
    %s128 = sphi 0, %s112
  $region4: #{one_model_forward.21} parent=0 // loop_header_branch
    %12 = sbr.rel (%p10) target = $region8
  $region5: #{one_model_forward.21} parent=0 // loop_body
    %s14 = ssub.s32 %s9, 1
    %s15 = ssub.s32 %s9, 2
    %s22 = sadd.s32 1, %s17
    %p23 = scmp.ge.s32.totalorder %s22, 1
    %s24 = scalar_select %p23, 0, %s22
    %s25 = sadd.s32 1, %s16
    %s26 = scalar_select %p23, %s25, %s16
    %p27 = scmp.ge.s32.totalorder %s26, 2
    %s28 = scalar_select %p27, 0, %s26
    %s29 = ssub.s32 %s16, %s28
    %s30 = ssub.s32 %s17, %s24
    %s31 = sor.u32 %s29, %s30
    %p32 = scmp.eq.s32.totalorder %s31, 0
    %s34 = sadd.s32 %s33, 1
    %s35 = scalar_select %p32, %s33, %s34
    %p38 = pneg %p32
    %p39 = scmp.eq.s32.totalorder %s9, 1
    %p40 = por %p38, %p39
    %p41 = scmp.ne.s32.totalorder %s33, %s36
    %p42 = scmp.eq.s32.totalorder %s9, 0
    %p43 = por %p41, %p42
    %p44 = scmp.ne.s32.totalorder %s33, %s36
    %p45 = scmp.eq.s32.totalorder %s14, 1
    %p46 = por %p44, %p45
    %p47 = scmp.ne.s32.totalorder %s36, %s37
    %p48 = scmp.eq.s32.totalorder %s14, 0
    %p49 = por %p47, %p48
    %p50 = scmp.ne.s32.totalorder %s36, %s37
    %p51 = scmp.eq.s32.totalorder %s15, 1
    %p52 = por %p50, %p51
    %p54 = scmp.ne.s32.totalorder %s37, %s53
    %p55 = scmp.eq.s32.totalorder %s15, 0
    %p56 = por %p54, %p55
    %s58 = sadd.s32 %s57, 1
    %p61 = scmp.eq.s32.totalorder %s9, 1
    %p62 = scmp.ne.s32.totalorder %s57, %s59
    %p63 = scmp.eq.s32.totalorder %s9, 0
    %p64 = por %p62, %p63
    %p65 = scmp.ne.s32.totalorder %s57, %s59
    %p66 = scmp.eq.s32.totalorder %s14, 1
    %p67 = por %p65, %p66
    %p68 = scmp.ne.s32.totalorder %s59, %s60
    %p69 = scmp.eq.s32.totalorder %s14, 0
    %p70 = por %p68, %p69
    %p71 = scmp.ne.s32.totalorder %s59, %s60
    %p72 = scmp.eq.s32.totalorder %s15, 1
    %p73 = por %p71, %p72
    %p75 = scmp.ne.s32.totalorder %s60, %s74
    %p76 = scmp.eq.s32.totalorder %s15, 0
    %p77 = por %p75, %p76
    %s78 = ssub.s32 %s16, %s28
    %p79 = scmp.eq.s32.totalorder %s78, 0
    %s81 = sadd.s32 %s80, 1
    %s82 = scalar_select %p79, %s80, %s81
    %p85 = pneg %p79
    %p86 = scmp.eq.s32.totalorder %s9, 1
    %p87 = por %p85, %p86
    %p88 = scmp.ne.s32.totalorder %s80, %s83
    %p89 = scmp.eq.s32.totalorder %s9, 0
    %p90 = por %p88, %p89
    %p91 = scmp.ne.s32.totalorder %s80, %s83
    %p92 = scmp.eq.s32.totalorder %s14, 1
    %p93 = por %p91, %p92
    %p94 = scmp.ne.s32.totalorder %s83, %s84
    %p95 = scmp.eq.s32.totalorder %s14, 0
    %p96 = por %p94, %p95
    %p97 = scmp.ne.s32.totalorder %s83, %s84
    %p98 = scmp.eq.s32.totalorder %s15, 1
    %p99 = por %p97, %p98
    %p101 = scmp.ne.s32.totalorder %s84, %s100
    %p102 = scmp.eq.s32.totalorder %s15, 0
    %p103 = por %p101, %p102
    %s104 = ssub.s32 %s16, %s28
    %s105 = ssub.s32 %s17, %s24
    %s106 = sor.u32 %s104, %s105
    %p107 = scmp.eq.s32.totalorder %s106, 0
    %s109 = sadd.s32 %s108, 1
    %s110 = scalar_select %p107, %s108, %s109
    %p113 = pneg %p107
    %p114 = scmp.eq.s32.totalorder %s9, 1
    %p115 = por %p113, %p114
    %p116 = scmp.ne.s32.totalorder %s108, %s111
    %p117 = scmp.eq.s32.totalorder %s9, 0
    %p118 = por %p116, %p117
    %p119 = scmp.ne.s32.totalorder %s108, %s111
    %p120 = scmp.eq.s32.totalorder %s14, 1
    %p121 = por %p119, %p120
    %p122 = scmp.ne.s32.totalorder %s111, %s112
    %p123 = scmp.eq.s32.totalorder %s14, 0
    %p124 = por %p122, %p123
    %p125 = scmp.ne.s32.totalorder %s111, %s112
    %p126 = scmp.eq.s32.totalorder %s15, 1
    %p127 = por %p125, %p126
    %p129 = scmp.ne.s32.totalorder %s112, %s128
    %p130 = scmp.eq.s32.totalorder %s15, 0
    %p131 = por %p129, %p130
    %p132 = scmp.le.s32.totalorder 1, %s9
    %p133 = scmp.lt.s32.totalorder %s9, 3
    %p134 = pnand %p132, %p133
    %p135 = pneg %p134
    // Predicated region
    $region9: #{one_model_forward.21} parent=5 // pred_check
      _
    $region10: #{one_model_forward.21} parent=5 // pred_check_branch
      %137 = sbr.rel (%p134) target = $region12
    $region11: #{one_model_forward.21} parent=5 // pred_region
      %s138 = ssub.s32 %s9, 1
      // Predicated region
      $region13: #{one_model_forward.21} parent=11 // pred_check
        %p139 = pneg %p70
      $region14: #{one_model_forward.21} parent=11 // pred_check_branch
        %141 = sbr.rel (%p139) target = $region16
      $region15: #{one_model_forward.21} parent=11 // pred_region
        _
      $region16: #{one_model_forward.21} parent=11 // pred_fallthru
        _
    $region12: #{one_model_forward.21} parent=5 // pred_fallthru
      _
    %p142 = scmp.lt.s32.totalorder %s9, 2
    // Predicated region
    $region17: #{one_model_forward.21} parent=5 // pred_check
      %p143 = pneg %p142
    $region18: #{one_model_forward.21} parent=5 // pred_check_branch
      %145 = sbr.rel (%p143) target = $region20
    $region19: #{one_model_forward.21} parent=5 // pred_region
      // Predicated region
      $region21: #{one_model_forward.21} parent=19 // pred_check
        %p146 = pneg %p43
      $region22: #{one_model_forward.21} parent=19 // pred_check_branch
        %148 = sbr.rel (%p146) target = $region24
      $region23: #{one_model_forward.21} parent=19 // pred_region
        %s149 = smul.u32 8, %s17
        %p150 = scmp.lt.s32.totalorder %s16, 1
        %s151 = scalar_select %p150, %s16, 1
        %p152 = scmp.lt.s32.totalorder %s149, 7
        %s153 = scalar_select %p152, %s149, 7
        %s154 = smul.addr %s153, 2
        %s155 = smul.addr %s151, 16
        %s156 = sadd.s32 %s154, %s155
        %s157 = smul.addr %s156, 4
        %s158 = scalar_lea.vmem %s0, %s157
        %s159 = smul.u32 8, %s17
      $region24: #{one_model_forward.21} parent=19 // pred_fallthru
        _
      // Predicated region
      $region25: #{one_model_forward.21} parent=19 // pred_check
        %p160 = pneg %p90
      $region26: #{one_model_forward.21} parent=19 // pred_check_branch
        %162 = sbr.rel (%p160) target = $region28
      $region27: #{one_model_forward.21} parent=19 // pred_region
        %p163 = scmp.lt.s32.totalorder %s16, 1
        %s164 = scalar_select %p163, %s16, 1
        %s165 = scalar_lea.vmem %s2, %s164
      $region28: #{one_model_forward.21} parent=19 // pred_fallthru
        _
    $region20: #{one_model_forward.21} parent=5 // pred_fallthru
      _
    %p166 = scmp.le.s32.totalorder 1, %s9
    %p167 = scmp.lt.s32.totalorder %s9, 3
    %p168 = pnand %p166, %p167
    %p169 = pneg %p168
    // Predicated region
    $region29: #{one_model_forward.21} parent=5 // pred_check
      _
    $region30: #{one_model_forward.21} parent=5 // pred_check_branch
      %171 = sbr.rel (%p168) target = $region32
    $region31: #{one_model_forward.21} parent=5 // pred_region
      %s172 = ssub.s32 %s9, 1
      %s173 = smul.u32 8, %s19
      %p174 = scmp.lt.s32.totalorder %s18, 1
      %s175 = scalar_select %p174, %s18, 1
      %p176 = scmp.lt.s32.totalorder %s173, 7
      %s177 = scalar_select %p176, %s173, 7
      %s178 = smul.addr %s177, 2
      %s179 = smul.addr %s175, 16
      %s180 = sadd.s32 %s178, %s179
      %s181 = smul.addr %s180, 4
      %s182 = scalar_lea.vmem %s0, %s181
      %p183 = pneg %p49
      %p184 = pneg %p46
      %p185 = pneg %p70
      %p186 = pneg %p67
      %p187 = scmp.lt.s32.totalorder %s18, 1
      %s188 = scalar_select %p187, %s18, 1
      %s189 = scalar_lea.vmem %s2, %s188
      %p190 = pneg %p96
      %p191 = pneg %p93
      %p192 = pneg %p124
      %p193 = pneg %p121
      %s194 = smul.u32 8, %s19
      %p195 = scmp.lt.s32.totalorder %s18, 1
      %s196 = scalar_select %p195, %s18, 1
      %p197 = scmp.lt.s32.totalorder %s194, 7
      %s198 = scalar_select %p197, %s194, 7
      %s199 = smul.addr %s196, 8
      %s200 = sadd.s32 %s198, %s199
      %s201 = smul.addr %s200, 4
      %s202 = scalar_lea.vmem %s3, %s201
      %s203 = smul.u32 8, %s19
      %p204 = scmp.lt.s32.totalorder %s18, 1
      %s205 = scalar_select %p204, %s18, 1
      %p206 = scmp.lt.s32.totalorder %s203, 7
      %s207 = scalar_select %p206, %s203, 7
      %s208 = smul.addr %s207, 2
      %s209 = smul.addr %s205, 16
      %s210 = sadd.s32 %s208, %s209
      %s211 = smul.addr %s210, 4
      %s212 = scalar_lea.vmem %s0, %s211
      %s213 = smul.u32 8, %s19
      %p214 = scmp.lt.s32.totalorder %s18, 1
      %s215 = scalar_select %p214, %s18, 1
      %s216 = scalar_lea.vmem %s2, %s215
      %s217 = smul.u32 8, %s19
      %p218 = scmp.lt.s32.totalorder %s18, 1
      %s219 = scalar_select %p218, %s18, 1
      %p220 = scmp.lt.s32.totalorder %s217, 7
      %s221 = scalar_select %p220, %s217, 7
      %s222 = smul.addr %s219, 8
      %s223 = sadd.s32 %s221, %s222
      %s224 = smul.addr %s223, 4
      %s225 = scalar_lea.vmem %s3, %s224
      %s226 = smul.u32 8, %s19
      %v228 = vld [vmem:[%s212] sm:$0xff]
      %v229 = vld [vmem:[%s212 + $0x8] sm:$0xff]
      %v230 = vld [vmem:[%s212 + $0x10] sm:$0xff]
      %v231 = vld [vmem:[%s212 + $0x18] sm:$0xff]
      %v232 = vld [vmem:[%s212 + $0x20] sm:$0xff]
      %v233 = vld [vmem:[%s212 + $0x28] sm:$0xff]
      %v234 = vld [vmem:[%s212 + $0x30] sm:$0xff]
      %v235 = vld [vmem:[%s212 + $0x38] sm:$0xff]
      %v236 = vld [vmem:[%s1] sm:$0xf]
      %v237 = vld [vmem:[%s1 + $0x4] sm:$0xf]
      %v238 = vld [vmem:[%s1 + $0x8] sm:$0xf]
      %v239 = vld [vmem:[%s1 + $0xc] sm:$0xf]
      %v240 = vld [vmem:[%s1 + $0x10] sm:$0xf]
      %v241 = vld [vmem:[%s1 + $0x14] sm:$0xf]
      %v242 = vld [vmem:[%s1 + $0x18] sm:$0xf]
      %v243 = vld [vmem:[%s1 + $0x1c] sm:$0xf]
      %v244 = vld [vmem:[%s1 + $0x20] sm:$0xf]
      %v245 = vld [vmem:[%s1 + $0x24] sm:$0xf]
      %v246 = vld [vmem:[%s1 + $0x28] sm:$0xf]
      %v247 = vld [vmem:[%s1 + $0x2c] sm:$0xf]
      %v248 = vld [vmem:[%s1 + $0x30] sm:$0xf]
      %v249 = vld [vmem:[%s1 + $0x34] sm:$0xf]
      %v250 = vld [vmem:[%s1 + $0x38] sm:$0xf]
      %v251 = vld [vmem:[%s1 + $0x3c] sm:$0xf]
      %v252 = vld [vmem:[%s1 + $0x40] sm:$0xf]
      %v253 = vld [vmem:[%s1 + $0x44] sm:$0xf]
      %v254 = vld [vmem:[%s1 + $0x48] sm:$0xf]
      %v255 = vld [vmem:[%s1 + $0x4c] sm:$0xf]
      %v256 = vld [vmem:[%s216] sm:$0x1]
      %v258 = vlaneseq
      %v259 = vshrl.u32 %v258, 7
      %v260 = vsub.s32 0, %v259
      %v261 = vrot.slane %v256, %v260
      %v271 = vunpack.c.l.b16 %v228
      %v272 = vunpack.c.h.b16 %v228
      %v273 = vunpack.c.l.b16 %v229
      %v274 = vunpack.c.h.b16 %v229
      %v275 = vunpack.c.l.b16 %v230
      %v276 = vunpack.c.h.b16 %v230
      %v277 = vunpack.c.l.b16 %v231
      %v278 = vunpack.c.h.b16 %v231
      %v279 = vunpack.c.l.b16 %v232
      %v280 = vunpack.c.h.b16 %v232
      %v281 = vunpack.c.l.b16 %v233
      %v282 = vunpack.c.h.b16 %v233
      %v283 = vunpack.c.l.b16 %v234
      %v284 = vunpack.c.h.b16 %v234
      %v285 = vunpack.c.l.b16 %v235
      %v286 = vunpack.c.h.b16 %v235
      %v287 = vpack.c.b16 %v273, %v271
      %v288 = vpack.c.b16 %v274, %v272
      %v289 = vpack.c.b16 %v277, %v275
      %v290 = vpack.c.b16 %v278, %v276
      %v291 = vpack.c.b16 %v281, %v279
      %v292 = vpack.c.b16 %v282, %v280
      %v293 = vpack.c.b16 %v285, %v283
      %v294 = vpack.c.b16 %v286, %v284
      %v319 = vunpack.c.l.b16 %v236
      %v320 = vunpack.c.l.b16 %v237
      %v321 = vunpack.c.l.b16 %v238
      %v322 = vunpack.c.l.b16 %v239
      %v323 = vunpack.c.l.b16 %v240
      %v324 = vunpack.c.l.b16 %v241
      %v325 = vunpack.c.l.b16 %v242
      %v326 = vunpack.c.l.b16 %v243
      %v327 = vunpack.c.l.b16 %v244
      %v328 = vunpack.c.l.b16 %v245
      %v329 = vunpack.c.l.b16 %v246
      %v330 = vunpack.c.l.b16 %v247
      %v331 = vunpack.c.l.b16 %v248
      %v332 = vunpack.c.l.b16 %v249
      %v333 = vunpack.c.l.b16 %v250
      %v334 = vunpack.c.l.b16 %v251
      %v335 = vunpack.c.l.b16 %v252
      %v336 = vunpack.c.l.b16 %v253
      %v337 = vunpack.c.l.b16 %v254
      %v338 = vunpack.c.l.b16 %v255
      %v339 = vpack.c.b16 %v320, %v319
      %v340 = vpack.c.b16 %v322, %v321
      %v341 = vpack.c.b16 %v324, %v323
      %v342 = vpack.c.b16 %v326, %v325
      %v343 = vpack.c.b16 %v328, %v327
      %v344 = vpack.c.b16 %v330, %v329
      %v345 = vpack.c.b16 %v332, %v331
      %v346 = vpack.c.b16 %v334, %v333
      %v347 = vpack.c.b16 %v336, %v335
      %v348 = vpack.c.b16 %v338, %v337
      %vm359 = vcmask 261120
      %v361 = vsel %vm359, %v288, 0
      %v364 = vsel %vm359, %v290, 0
      %v367 = vsel %vm359, %v292, 0
      %v370 = vsel %vm359, %v294, 0
      %372 = vmatprep.subr.bf16.mxu0 0
      %373 = vmatpush1.bf16.msra.mxu0 %v346
      %374 = vmatprep.subr.bf16.mxu0 0
      %375 = vmatpush1.bf16.msra.mxu0 %v345
      %376 = vmatprep.subr.bf16.mxu0 0
      %377 = vmatpush1.bf16.msra.mxu0 %v344
      %378 = vmatprep.subr.bf16.mxu0 0
      %379 = vmatpush1.bf16.msra.mxu0 %v343
      %380 = vmatprep.subr.bf16.mxu0 0
      %381 = vmatpush1.bf16.msra.mxu0 %v342
      %382 = vmatprep.subr.bf16.mxu0 0
      %383 = vmatpush1.bf16.msra.mxu0 %v341
      %384 = vmatprep.subr.bf16.mxu0 0
      %385 = vmatpush1.bf16.msra.mxu0 %v340
      %386 = vmatprep.subr.bf16.mxu0 0
      %387 = vmatpush1.bf16.msra.mxu0 %v339
      %388 = vmatprep.subr.bf16.mxu0 0
      %389 = vmatpush2.bf16.msra.mxu0 0
      %390 = vmatprep.subr.bf16.mxu0 0
      %391 = vmatpush2.bf16.msra.mxu0 0
      %392 = vmatprep.subr.bf16.mxu0 0
      %393 = vmatpush2.bf16.msra.mxu0 0
      %394 = vmatprep.subr.bf16.mxu0 0
      %395 = vmatpush2.bf16.msra.mxu0 0
      %396 = vmatprep.subr.bf16.mxu0 0
      %397 = vmatpush2.bf16.msra.mxu0 0
      %398 = vmatprep.subr.bf16.mxu0 0
      %399 = vmatpush2.bf16.msra.mxu0 0
      %400 = vmatprep.subr.bf16.mxu0 0
      %401 = vmatpush2.bf16.msra.mxu0 %v348
      %402 = vmatprep.subr.bf16.mxu0 0
      %403 = vmatpush2.bf16.msra.mxu0 %v347
      %404 = vmatprep.mubr.bf16.mxu0 %v361
      %405 = vmatmul.mubr.bf16.gmra.mxu0 %v287
      %v406 = vpop.f32.mrf.mxu0
      %v407 = vadd.f32 %v261, %v406
      %v408 = vpop.f32.mrf.mxu0
      %v409 = vpop.f32.mrf.mxu0
      %v410 = vadd.f32 %v261, %v409
      %v411 = vpop.f32.mrf.mxu0
      %412 = vmatprep.mubr.bf16.mxu0 %v364
      %413 = vmatmul.mubr.bf16.gmra.mxu0 %v289
      %v414 = vpop.f32.mrf.mxu0
      %v415 = vadd.f32 %v261, %v414
      %v416 = vpop.f32.mrf.mxu0
      %v417 = vpop.f32.mrf.mxu0
      %v418 = vadd.f32 %v261, %v417
      %v419 = vpop.f32.mrf.mxu0
      %420 = vmatprep.mubr.bf16.mxu0 %v367
      %421 = vmatmul.mubr.bf16.gmra.mxu0 %v291
      %v422 = vpop.f32.mrf.mxu0
      %v423 = vadd.f32 %v261, %v422
      %v424 = vpop.f32.mrf.mxu0
      %v425 = vpop.f32.mrf.mxu0
      %v426 = vadd.f32 %v261, %v425
      %v427 = vpop.f32.mrf.mxu0
      %428 = vmatprep.mubr.bf16.mxu0 %v370
      %429 = vmatmul.mubr.bf16.gmra.mxu0 %v293
      %v430 = vpop.f32.mrf.mxu0
      %v431 = vadd.f32 %v261, %v430
      %v432 = vpop.f32.mrf.mxu0
      %v433 = vpop.f32.mrf.mxu0
      %v434 = vadd.f32 %v261, %v433
      %v435 = vpop.f32.mrf.mxu0
      %436 = vdwg.mxu0
      %v437 = vmax.f32 %v407, 0.0
      %v438 = vmax.f32 %v410, 0.0
      %v439 = vmax.f32 %v415, 0.0
      %v440 = vmax.f32 %v418, 0.0
      %v441 = vmax.f32 %v423, 0.0
      %v442 = vmax.f32 %v426, 0.0
      %v443 = vmax.f32 %v431, 0.0
      %v444 = vmax.f32 %v434, 0.0
      %v445 = vpack.c.bf16 %v438, %v437
      %v446 = vpack.c.bf16 %v440, %v439
      %v447 = vpack.c.bf16 %v442, %v441
      %v448 = vpack.c.bf16 %v444, %v443
      %v453 = vunpack.c.l.b16 %v445
      %v454 = vunpack.c.h.b16 %v445
      %v455 = vunpack.c.l.b16 %v446
      %v456 = vunpack.c.h.b16 %v446
      %v457 = vunpack.c.l.b16 %v447
      %v458 = vunpack.c.h.b16 %v447
      %v459 = vunpack.c.l.b16 %v448
      %v460 = vunpack.c.h.b16 %v448
      %v461 = vpack.c.b16 %v453, %v453
      %v462 = vpack.c.b16 %v454, %v454
      %v463 = vpack.c.b16 %v455, %v455
      %v464 = vpack.c.b16 %v456, %v456
      %v465 = vpack.c.b16 %v457, %v457
      %v466 = vpack.c.b16 %v458, %v458
      %v467 = vpack.c.b16 %v459, %v459
      %v468 = vpack.c.b16 %v460, %v460
      %vm477 = vcmask 257024
      %478 = vst.msk [vmem:[%s225] sm:$0xf] %vm477, %v461
      %479 = vst.msk [vmem:[%s225 + $0x4] sm:$0xf] %vm477, %v462
      %480 = vst.msk [vmem:[%s225 + $0x8] sm:$0xf] %vm477, %v463
      %481 = vst.msk [vmem:[%s225 + $0xc] sm:$0xf] %vm477, %v464
      %482 = vst.msk [vmem:[%s225 + $0x10] sm:$0xf] %vm477, %v465
      %483 = vst.msk [vmem:[%s225 + $0x14] sm:$0xf] %vm477, %v466
      %484 = vst.msk [vmem:[%s225 + $0x18] sm:$0xf] %vm477, %v467
      %485 = vst.msk [vmem:[%s225 + $0x1c] sm:$0xf] %vm477, %v468
      %s486 = smul.u32 8, %s19
      %p487 = scmp.lt.s32.totalorder %s18, 1
      %s488 = scalar_select %p487, %s18, 1
      %p489 = scmp.lt.s32.totalorder %s486, 7
      %s490 = scalar_select %p489, %s486, 7
      %s491 = smul.addr %s488, 8
      %s492 = sadd.s32 %s490, %s491
      %s493 = smul.addr %s492, 4
      %s494 = scalar_lea.vmem %s3, %s493
      // Predicated region
      $region33: #{one_model_forward.21} parent=31 // pred_check
        %p495 = pneg %p121
      $region34: #{one_model_forward.21} parent=31 // pred_check_branch
        %497 = sbr.rel (%p495) target = $region36
      $region35: #{one_model_forward.21} parent=31 // pred_region
        %s498 = smul.u32 8, %s19
      $region36: #{one_model_forward.21} parent=31 // pred_fallthru
        _
    $region32: #{one_model_forward.21} parent=5 // pred_fallthru
      _
    %p499 = scmp.le.s32.totalorder 2, %s9
    // Predicated region
    $region37: #{one_model_forward.21} parent=5 // pred_check
      %p500 = pneg %p499
    $region38: #{one_model_forward.21} parent=5 // pred_check_branch
      %502 = sbr.rel (%p500) target = $region40
    $region39: #{one_model_forward.21} parent=5 // pred_region
      %s503 = ssub.s32 %s9, 2
      // Predicated region
      $region41: #{one_model_forward.21} parent=39 // pred_check
        %p504 = pneg %p127
      $region42: #{one_model_forward.21} parent=39 // pred_check_branch
        %506 = sbr.rel (%p504) target = $region44
      $region43: #{one_model_forward.21} parent=39 // pred_region
        %s507 = smul.u32 8, %s21
        %p508 = scmp.lt.s32.totalorder %s20, 1
        %s509 = scalar_select %p508, %s20, 1
        %p510 = scmp.lt.s32.totalorder %s507, 7
        %s511 = scalar_select %p510, %s507, 7
        %s512 = smul.addr %s509, 8
        %s513 = sadd.s32 %s511, %s512
        %s514 = smul.addr %s513, 4
        %s515 = scalar_lea.vmem %s3, %s514
      $region44: #{one_model_forward.21} parent=39 // pred_fallthru
        _
    $region40: #{one_model_forward.21} parent=5 // pred_fallthru
      _
  $region6: #{one_model_forward.21} parent=0 // loop_footer
    %s13 = sadd.s32 1, %s9
  $region7: #{one_model_forward.21} parent=0 // loop_footer_branch
    %8 = sbr.rel target = $region3
  $region8: #{one_model_forward.21} parent=0 // loop_exit
    _

// kernel: one_model_forward.22
$region0: #{one_model_forward.22}
  #allocation0 [shape = 'u32[]', space=smem, size = 0x4, offset = 0x4, fixed_abs, tag = 'smem constant byte address 0x4 - core index']
  #allocation1 [shape = 'u32[144,128]{1,0:T(1,128)}', space=vmem, size = 0x12000, scoped, tag = 'internal scratch']
  %s0 = inlined_call_operand.vmem [shape: bf16[2,80,96], index: 0, kind: input, shape index: {}]
  %s1 = inlined_call_operand.vmem [shape: bf16[3,96,32], index: 1, kind: input, shape index: {}]
  %s2 = inlined_call_operand.vmem [shape: f32[1,32], index: 2, kind: input, shape index: {}]
  %s3 = inlined_call_operand.vmem [shape: bf16[2,64,32], index: 3, kind: output, shape index: {}]
  %s4 = sld [smem:[#allocation0]]
  $region45: #{one_model_forward.22} parent=0
    _
  %s6 = ssub.s32 1, %s4
  %s7 = scalar_select 0, %s6, %s4
  loop: start=0, step=1, limit=4
  $region2: #{one_model_forward.22} parent=0 // loop_pre_header
    _
  $region3: #{one_model_forward.22} parent=0 // loop_header
    %s9 = sphi 0, %s13
    %p10 = scmp.ge.s32.totalorder %s9, 4
    %s19 = sphi 0, %s21
    %s22 = sphi 0, %s19
    %s23 = sphi 0, %s22
    %s39 = sphi 0, %s23
    %s43 = sphi 0, %s43
    %s45 = sphi 0, %s43
    %s46 = sphi 0, %s45
    %s60 = sphi 0, %s46
    %s64 = sphi 0, %s64
    %s66 = sphi 0, %s64
    %s67 = sphi 0, %s66
    %s81 = sphi 0, %s67
    %s87 = sphi 0, %s89
    %s90 = sphi 0, %s87
    %s91 = sphi 0, %s90
    %s107 = sphi 0, %s91
  $region4: #{one_model_forward.22} parent=0 // loop_header_branch
    %12 = sbr.rel (%p10) target = $region8
  $region5: #{one_model_forward.22} parent=0 // loop_body
    %s14 = ssub.s32 %s9, 1
    %s15 = ssub.s32 %s9, 2
    %s16 = sadd.s32 %s9, 1
    %s17 = ssub.s32 %s9, %s16
    %p18 = scmp.eq.s32.totalorder %s17, 0
    %s20 = sadd.s32 %s19, 1
    %s21 = scalar_select %p18, %s19, %s20
    %p24 = pneg %p18
    %p25 = scmp.eq.s32.totalorder %s9, 1
    %p26 = por %p24, %p25
    %p27 = scmp.ne.s32.totalorder %s19, %s22
    %p28 = scmp.eq.s32.totalorder %s9, 0
    %p29 = por %p27, %p28
    %p30 = scmp.ne.s32.totalorder %s19, %s22
    %p31 = scmp.eq.s32.totalorder %s14, 1
    %p32 = por %p30, %p31
    %p33 = scmp.ne.s32.totalorder %s22, %s23
    %p34 = scmp.eq.s32.totalorder %s14, 0
    %p35 = por %p33, %p34
    %p36 = scmp.ne.s32.totalorder %s22, %s23
    %p37 = scmp.eq.s32.totalorder %s15, 1
    %p38 = por %p36, %p37
    %p40 = scmp.ne.s32.totalorder %s23, %s39
    %p41 = scmp.eq.s32.totalorder %s15, 0
    %p42 = por %p40, %p41
    %s44 = sadd.s32 %s43, 1
    %p47 = scmp.eq.s32.totalorder %s9, 1
    %p48 = scmp.ne.s32.totalorder %s43, %s45
    %p49 = scmp.eq.s32.totalorder %s9, 0
    %p50 = por %p48, %p49
    %p51 = scmp.ne.s32.totalorder %s43, %s45
    %p52 = scmp.eq.s32.totalorder %s14, 1
    %p53 = por %p51, %p52
    %p54 = scmp.ne.s32.totalorder %s45, %s46
    %p55 = scmp.eq.s32.totalorder %s14, 0
    %p56 = por %p54, %p55
    %p57 = scmp.ne.s32.totalorder %s45, %s46
    %p58 = scmp.eq.s32.totalorder %s15, 1
    %p59 = por %p57, %p58
    %p61 = scmp.ne.s32.totalorder %s46, %s60
    %p62 = scmp.eq.s32.totalorder %s15, 0
    %p63 = por %p61, %p62
    %s65 = sadd.s32 %s64, 1
    %p68 = scmp.eq.s32.totalorder %s9, 1
    %p69 = scmp.ne.s32.totalorder %s64, %s66
    %p70 = scmp.eq.s32.totalorder %s9, 0
    %p71 = por %p69, %p70
    %p72 = scmp.ne.s32.totalorder %s64, %s66
    %p73 = scmp.eq.s32.totalorder %s14, 1
    %p74 = por %p72, %p73
    %p75 = scmp.ne.s32.totalorder %s66, %s67
    %p76 = scmp.eq.s32.totalorder %s14, 0
    %p77 = por %p75, %p76
    %p78 = scmp.ne.s32.totalorder %s66, %s67
    %p79 = scmp.eq.s32.totalorder %s15, 1
    %p80 = por %p78, %p79
    %p82 = scmp.ne.s32.totalorder %s67, %s81
    %p83 = scmp.eq.s32.totalorder %s15, 0
    %p84 = por %p82, %p83
    %s85 = ssub.s32 %s9, %s16
    %p86 = scmp.eq.s32.totalorder %s85, 0
    %s88 = sadd.s32 %s87, 1
    %s89 = scalar_select %p86, %s87, %s88
    %p92 = pneg %p86
    %p93 = scmp.eq.s32.totalorder %s9, 1
    %p94 = por %p92, %p93
    %p95 = scmp.ne.s32.totalorder %s87, %s90
    %p96 = scmp.eq.s32.totalorder %s9, 0
    %p97 = por %p95, %p96
    %p98 = scmp.ne.s32.totalorder %s87, %s90
    %p99 = scmp.eq.s32.totalorder %s14, 1
    %p100 = por %p98, %p99
    %p101 = scmp.ne.s32.totalorder %s90, %s91
    %p102 = scmp.eq.s32.totalorder %s14, 0
    %p103 = por %p101, %p102
    %p104 = scmp.ne.s32.totalorder %s90, %s91
    %p105 = scmp.eq.s32.totalorder %s15, 1
    %p106 = por %p104, %p105
    %p108 = scmp.ne.s32.totalorder %s91, %s107
    %p109 = scmp.eq.s32.totalorder %s15, 0
    %p110 = por %p108, %p109
    %p111 = scmp.le.s32.totalorder 1, %s9
    %p112 = scmp.lt.s32.totalorder %s9, 3
    %p113 = pnand %p111, %p112
    %p114 = pneg %p113
    // Predicated region
    $region9: #{one_model_forward.22} parent=5 // pred_check
      _
    $region10: #{one_model_forward.22} parent=5 // pred_check_branch
      %116 = sbr.rel (%p113) target = $region12
    $region11: #{one_model_forward.22} parent=5 // pred_region
      %s117 = ssub.s32 %s9, 1
      // Predicated region
      $region13: #{one_model_forward.22} parent=11 // pred_check
        %p118 = pneg %p56
      $region14: #{one_model_forward.22} parent=11 // pred_check_branch
        %120 = sbr.rel (%p118) target = $region16
      $region15: #{one_model_forward.22} parent=11 // pred_region
        _
      $region16: #{one_model_forward.22} parent=11 // pred_fallthru
        _
      // Predicated region
      $region17: #{one_model_forward.22} parent=11 // pred_check
        %p121 = pneg %p77
      $region18: #{one_model_forward.22} parent=11 // pred_check_branch
        %123 = sbr.rel (%p121) target = $region20
      $region19: #{one_model_forward.22} parent=11 // pred_region
        _
      $region20: #{one_model_forward.22} parent=11 // pred_fallthru
        _
    $region12: #{one_model_forward.22} parent=5 // pred_fallthru
      _
    %p124 = scmp.lt.s32.totalorder %s9, 2
    // Predicated region
    $region21: #{one_model_forward.22} parent=5 // pred_check
      %p125 = pneg %p124
    $region22: #{one_model_forward.22} parent=5 // pred_check_branch
      %127 = sbr.rel (%p125) target = $region24
    $region23: #{one_model_forward.22} parent=5 // pred_region
      // Predicated region
      $region25: #{one_model_forward.22} parent=23 // pred_check
        %p128 = pneg %p29
      $region26: #{one_model_forward.22} parent=23 // pred_check_branch
        %130 = sbr.rel (%p128) target = $region28
      $region27: #{one_model_forward.22} parent=23 // pred_region
        %p131 = scmp.lt.s32.totalorder %s9, 1
        %s132 = scalar_select %p131, %s9, 1
        %s133 = smul.addr %s132, 10
        %s134 = smul.addr %s133, 4
        %s135 = scalar_lea.vmem %s0, %s134
      $region28: #{one_model_forward.22} parent=23 // pred_fallthru
        _
    $region24: #{one_model_forward.22} parent=5 // pred_fallthru
      _
    %p136 = scmp.le.s32.totalorder 1, %s9
    %p137 = scmp.lt.s32.totalorder %s9, 3
    %p138 = pnand %p136, %p137
    %p139 = pneg %p138
    // Predicated region
    $region29: #{one_model_forward.22} parent=5 // pred_check
      _
    $region30: #{one_model_forward.22} parent=5 // pred_check_branch
      %141 = sbr.rel (%p138) target = $region32
    $region31: #{one_model_forward.22} parent=5 // pred_region
      %s142 = ssub.s32 %s9, 1
      %p143 = scmp.lt.s32.totalorder %s14, 1
      %s144 = scalar_select %p143, %s14, 1
      %s145 = smul.addr %s144, 10
      %s146 = smul.addr %s145, 4
      %s147 = scalar_lea.vmem %s0, %s146
      %p148 = pneg %p35
      %p149 = pneg %p32
      %p150 = pneg %p56
      %p151 = pneg %p53
      %p152 = pneg %p77
      %p153 = pneg %p74
      %p154 = pneg %p103
      %p155 = pneg %p100
      %p156 = scmp.lt.s32.totalorder %s14, 1
      %s157 = scalar_select %p156, %s14, 1
      %s158 = smul.addr %s157, 8
      %s159 = smul.addr %s158, 4
      %s160 = scalar_lea.vmem %s3, %s159
      %p161 = scmp.lt.s32.totalorder %s14, 1
      %s162 = scalar_select %p161, %s14, 1
      %s163 = smul.addr %s162, 10
      %s164 = smul.addr %s163, 4
      %s165 = scalar_lea.vmem %s0, %s164
      %p166 = scmp.lt.s32.totalorder %s14, 1
      %s167 = scalar_select %p166, %s14, 1
      %s168 = smul.addr %s167, 8
      %s169 = smul.addr %s168, 4
      %s170 = scalar_lea.vmem %s3, %s169
      %v172 = vld [vmem:[%s165] sm:$0xf]
      %v173 = vld [vmem:[%s165 + $0x4] sm:$0xf]
      %v174 = vld [vmem:[%s165 + $0x8] sm:$0xf]
      %v175 = vld [vmem:[%s165 + $0xc] sm:$0xf]
      %v176 = vld [vmem:[%s165 + $0x10] sm:$0xf]
      %v177 = vld [vmem:[%s165 + $0x14] sm:$0xf]
      %v178 = vld [vmem:[%s165 + $0x18] sm:$0xf]
      %v179 = vld [vmem:[%s165 + $0x1c] sm:$0xf]
      %v180 = vld [vmem:[%s1] sm:$0xf]
      %v181 = vld [vmem:[%s1 + $0x4] sm:$0xf]
      %v182 = vld [vmem:[%s1 + $0x8] sm:$0xf]
      %v183 = vld [vmem:[%s1 + $0xc] sm:$0xf]
      %v184 = vld [vmem:[%s1 + $0x10] sm:$0xf]
      %v185 = vld [vmem:[%s1 + $0x14] sm:$0xf]
      %v186 = vld [vmem:[%s1 + $0x18] sm:$0xf]
      %v187 = vld [vmem:[%s1 + $0x1c] sm:$0xf]
      %v188 = vld [vmem:[%s1 + $0x20] sm:$0xf]
      %v189 = vld [vmem:[%s1 + $0x24] sm:$0xf]
      %v190 = vld [vmem:[%s1 + $0x28] sm:$0xf]
      %v191 = vld [vmem:[%s1 + $0x2c] sm:$0xf]
      %v192 = vld [vmem:[%s165 + $0x20] sm:$0xf]
      %s193 = scalar_lea.vmem %s1, 48
      %v194 = vld [vmem:[%s193] sm:$0xf]
      %v195 = vld [vmem:[%s193 + $0x4] sm:$0xf]
      %v196 = vld [vmem:[%s193 + $0x8] sm:$0xf]
      %v197 = vld [vmem:[%s193 + $0xc] sm:$0xf]
      %v198 = vld [vmem:[%s193 + $0x10] sm:$0xf]
      %v199 = vld [vmem:[%s193 + $0x14] sm:$0xf]
      %v200 = vld [vmem:[%s193 + $0x18] sm:$0xf]
      %v201 = vld [vmem:[%s193 + $0x1c] sm:$0xf]
      %v202 = vld [vmem:[%s193 + $0x20] sm:$0xf]
      %v203 = vld [vmem:[%s193 + $0x24] sm:$0xf]
      %v204 = vld [vmem:[%s193 + $0x28] sm:$0xf]
      %v205 = vld [vmem:[%s193 + $0x2c] sm:$0xf]
      %v214 = vunpack.c.l.b16 %v173
      %v215 = vunpack.c.l.b16 %v174
      %v216 = vunpack.c.l.b16 %v175
      %v217 = vunpack.c.l.b16 %v176
      %v218 = vunpack.c.l.b16 %v177
      %v219 = vunpack.c.l.b16 %v178
      %v220 = vunpack.c.l.b16 %v179
      %v221 = vunpack.c.l.b16 %v192
      %v222 = vpack.c.b16 %v215, %v214
      %v223 = vpack.c.b16 %v217, %v216
      %v224 = vpack.c.b16 %v219, %v218
      %v225 = vpack.c.b16 %v221, %v220
      %v238 = vunpack.c.l.b16 %v194
      %v239 = vunpack.c.l.b16 %v195
      %v240 = vunpack.c.l.b16 %v196
      %v241 = vunpack.c.l.b16 %v197
      %v242 = vunpack.c.l.b16 %v198
      %v243 = vunpack.c.l.b16 %v199
      %v244 = vunpack.c.l.b16 %v200
      %v245 = vunpack.c.l.b16 %v201
      %v246 = vunpack.c.l.b16 %v202
      %v247 = vunpack.c.l.b16 %v203
      %v248 = vunpack.c.l.b16 %v204
      %v249 = vunpack.c.l.b16 %v205
      %v250 = vpack.c.b16 %v239, %v238
      %v251 = vpack.c.b16 %v241, %v240
      %v252 = vpack.c.b16 %v243, %v242
      %v253 = vpack.c.b16 %v245, %v244
      %v254 = vpack.c.b16 %v247, %v246
      %v255 = vpack.c.b16 %v249, %v248
      %vm262 = vcmask 785408
      %v264 = vsel %vm262, %v222, 0
      %v267 = vsel %vm262, %v223, 0
      %v270 = vsel %vm262, %v224, 0
      %v273 = vsel %vm262, %v225, 0
      %275 = vmatprep.subr.bf16.mxu0 0
      %276 = vmatpush1.bf16.msra.mxu0 0
      %277 = vmatprep.subr.bf16.mxu0 0
      %278 = vmatpush1.bf16.msra.mxu0 0
      %279 = vmatprep.subr.bf16.mxu0 0
      %280 = vmatpush1.bf16.msra.mxu0 %v255
      %281 = vmatprep.subr.bf16.mxu0 0
      %282 = vmatpush1.bf16.msra.mxu0 %v254
      %283 = vmatprep.subr.bf16.mxu0 0
      %284 = vmatpush1.bf16.msra.mxu0 %v253
      %285 = vmatprep.subr.bf16.mxu0 0
      %286 = vmatpush1.bf16.msra.mxu0 %v252
      %287 = vmatprep.subr.bf16.mxu0 0
      %288 = vmatpush1.bf16.msra.mxu0 %v251
      %289 = vmatprep.subr.bf16.mxu0 0
      %290 = vmatpush1.bf16.msra.mxu0 %v250
      %291 = vmatprep.subr.bf16.mxu0 0
      %292 = vmatpush2.bf16.msra.mxu0 0
      %293 = vmatprep.subr.bf16.mxu0 0
      %294 = vmatpush2.bf16.msra.mxu0 0
      %295 = vmatprep.subr.bf16.mxu0 0
      %296 = vmatpush2.bf16.msra.mxu0 0
      %297 = vmatprep.subr.bf16.mxu0 0
      %298 = vmatpush2.bf16.msra.mxu0 0
      %299 = vmatprep.subr.bf16.mxu0 0
      %300 = vmatpush2.bf16.msra.mxu0 0
      %301 = vmatprep.subr.bf16.mxu0 0
      %302 = vmatpush2.bf16.msra.mxu0 0
      %303 = vmatprep.subr.bf16.mxu0 0
      %304 = vmatpush2.bf16.msra.mxu0 0
      %305 = vmatprep.subr.bf16.mxu0 0
      %306 = vmatpush2.bf16.msra.mxu0 0
      %307 = vmatprep.mubr.bf16.mxu0 0
      %308 = vmatmul.mubr.bf16.gmra.mxu0 %v264
      %v309 = vpop.f32.mrf.mxu0
      %v310 = vadd.f32 0.0, %v309
      %v311 = vpop.f32.mrf.mxu0
      %v312 = vpop.f32.mrf.mxu0
      %v313 = vadd.f32 0.0, %v312
      %v314 = vpop.f32.mrf.mxu0
      %315 = vmatprep.mubr.bf16.mxu0 0
      %316 = vmatmul.mubr.bf16.gmra.mxu0 %v267
      %v317 = vpop.f32.mrf.mxu0
      %v318 = vadd.f32 0.0, %v317
      %v319 = vpop.f32.mrf.mxu0
      %v320 = vpop.f32.mrf.mxu0
      %v321 = vadd.f32 0.0, %v320
      %v322 = vpop.f32.mrf.mxu0
      %323 = vmatprep.mubr.bf16.mxu0 0
      %324 = vmatmul.mubr.bf16.gmra.mxu0 %v270
      %v325 = vpop.f32.mrf.mxu0
      %v326 = vadd.f32 0.0, %v325
      %v327 = vpop.f32.mrf.mxu0
      %v328 = vpop.f32.mrf.mxu0
      %v329 = vadd.f32 0.0, %v328
      %v330 = vpop.f32.mrf.mxu0
      %331 = vmatprep.mubr.bf16.mxu0 0
      %332 = vmatmul.mubr.bf16.gmra.mxu0 %v273
      %v333 = vpop.f32.mrf.mxu0
      %v334 = vadd.f32 0.0, %v333
      %v335 = vpop.f32.mrf.mxu0
      %v336 = vpop.f32.mrf.mxu0
      %v337 = vadd.f32 0.0, %v336
      %v338 = vpop.f32.mrf.mxu0
      %339 = vdwg.mxu0
      %v341 = vunpack.c.l.b16 %v172
      %v342 = vpack.c.b16 %v214, %v341
      %v343 = vpack.c.b16 %v216, %v215
      %v344 = vpack.c.b16 %v218, %v217
      %v345 = vpack.c.b16 %v220, %v219
      %v358 = vunpack.c.l.b16 %v180
      %v359 = vunpack.c.l.b16 %v181
      %v360 = vunpack.c.l.b16 %v182
      %v361 = vunpack.c.l.b16 %v183
      %v362 = vunpack.c.l.b16 %v184
      %v363 = vunpack.c.l.b16 %v185
      %v364 = vunpack.c.l.b16 %v186
      %v365 = vunpack.c.l.b16 %v187
      %v366 = vunpack.c.l.b16 %v188
      %v367 = vunpack.c.l.b16 %v189
      %v368 = vunpack.c.l.b16 %v190
      %v369 = vunpack.c.l.b16 %v191
      %v370 = vpack.c.b16 %v359, %v358
      %v371 = vpack.c.b16 %v361, %v360
      %v372 = vpack.c.b16 %v363, %v362
      %v373 = vpack.c.b16 %v365, %v364
      %v374 = vpack.c.b16 %v367, %v366
      %v375 = vpack.c.b16 %v369, %v368
      %v383 = vsel %vm262, %v342, 0
      %v386 = vsel %vm262, %v343, 0
      %v389 = vsel %vm262, %v344, 0
      %v392 = vsel %vm262, %v345, 0
      %394 = vmatprep.subr.bf16.mxu0 0
      %395 = vmatpush1.bf16.msra.mxu0 0
      %396 = vmatprep.subr.bf16.mxu0 0
      %397 = vmatpush1.bf16.msra.mxu0 0
      %398 = vmatprep.subr.bf16.mxu0 0
      %399 = vmatpush1.bf16.msra.mxu0 %v375
      %400 = vmatprep.subr.bf16.mxu0 0
      %401 = vmatpush1.bf16.msra.mxu0 %v374
      %402 = vmatprep.subr.bf16.mxu0 0
      %403 = vmatpush1.bf16.msra.mxu0 %v373
      %404 = vmatprep.subr.bf16.mxu0 0
      %405 = vmatpush1.bf16.msra.mxu0 %v372
      %406 = vmatprep.subr.bf16.mxu0 0
      %407 = vmatpush1.bf16.msra.mxu0 %v371
      %408 = vmatprep.subr.bf16.mxu0 0
      %409 = vmatpush1.bf16.msra.mxu0 %v370
      %410 = vmatprep.subr.bf16.mxu0 0
      %411 = vmatpush2.bf16.msra.mxu0 0
      %412 = vmatprep.subr.bf16.mxu0 0
      %413 = vmatpush2.bf16.msra.mxu0 0
      %414 = vmatprep.subr.bf16.mxu0 0
      %415 = vmatpush2.bf16.msra.mxu0 0
      %416 = vmatprep.subr.bf16.mxu0 0
      %417 = vmatpush2.bf16.msra.mxu0 0
      %418 = vmatprep.subr.bf16.mxu0 0
      %419 = vmatpush2.bf16.msra.mxu0 0
      %420 = vmatprep.subr.bf16.mxu0 0
      %421 = vmatpush2.bf16.msra.mxu0 0
      %422 = vmatprep.subr.bf16.mxu0 0
      %423 = vmatpush2.bf16.msra.mxu0 0
      %424 = vmatprep.subr.bf16.mxu0 0
      %425 = vmatpush2.bf16.msra.mxu0 0
      %426 = vmatprep.mubr.bf16.mxu0 0
      %427 = vmatmul.mubr.bf16.gmra.mxu0 %v383
      %v428 = vpop.f32.mrf.mxu0
      %v429 = vadd.f32 %v310, %v428
      %v430 = vpop.f32.mrf.mxu0
      %v431 = vpop.f32.mrf.mxu0
      %v432 = vadd.f32 %v313, %v431
      %v433 = vpop.f32.mrf.mxu0
      %434 = vmatprep.mubr.bf16.mxu0 0
      %435 = vmatmul.mubr.bf16.gmra.mxu0 %v386
      %v436 = vpop.f32.mrf.mxu0
      %v437 = vadd.f32 %v318, %v436
      %v438 = vpop.f32.mrf.mxu0
      %v439 = vpop.f32.mrf.mxu0
      %v440 = vadd.f32 %v321, %v439
      %v441 = vpop.f32.mrf.mxu0
      %442 = vmatprep.mubr.bf16.mxu0 0
      %443 = vmatmul.mubr.bf16.gmra.mxu0 %v389
      %v444 = vpop.f32.mrf.mxu0
      %v445 = vadd.f32 %v326, %v444
      %v446 = vpop.f32.mrf.mxu0
      %v447 = vpop.f32.mrf.mxu0
      %v448 = vadd.f32 %v329, %v447
      %v449 = vpop.f32.mrf.mxu0
      %450 = vmatprep.mubr.bf16.mxu0 0
      %451 = vmatmul.mubr.bf16.gmra.mxu0 %v392
      %v452 = vpop.f32.mrf.mxu0
      %v453 = vadd.f32 %v334, %v452
      %v454 = vpop.f32.mrf.mxu0
      %v455 = vpop.f32.mrf.mxu0
      %v456 = vadd.f32 %v337, %v455
      %v457 = vpop.f32.mrf.mxu0
      %458 = vdwg.mxu0
      %v459 = vld [vmem:[%s165 + $0x8] sm:$0xf]
      %v460 = vld [vmem:[%s165 + $0xc] sm:$0xf]
      %v461 = vld [vmem:[%s165 + $0x10] sm:$0xf]
      %v462 = vld [vmem:[%s165 + $0x14] sm:$0xf]
      %v463 = vld [vmem:[%s165 + $0x18] sm:$0xf]
      %v464 = vld [vmem:[%s165 + $0x1c] sm:$0xf]
      %v465 = vld [vmem:[%s165 + $0x20] sm:$0xf]
      %v466 = vld [vmem:[%s165 + $0x24] sm:$0xf]
      %s467 = scalar_lea.vmem %s1, 96
      %v468 = vld [vmem:[%s467] sm:$0xf]
      %v469 = vld [vmem:[%s467 + $0x4] sm:$0xf]
      %v470 = vld [vmem:[%s467 + $0x8] sm:$0xf]
      %v471 = vld [vmem:[%s467 + $0xc] sm:$0xf]
      %v472 = vld [vmem:[%s467 + $0x10] sm:$0xf]
      %v473 = vld [vmem:[%s467 + $0x14] sm:$0xf]
      %v474 = vld [vmem:[%s467 + $0x18] sm:$0xf]
      %v475 = vld [vmem:[%s467 + $0x1c] sm:$0xf]
      %v476 = vld [vmem:[%s467 + $0x20] sm:$0xf]
      %v477 = vld [vmem:[%s467 + $0x24] sm:$0xf]
      %v478 = vld [vmem:[%s467 + $0x28] sm:$0xf]
      %v479 = vld [vmem:[%s467 + $0x2c] sm:$0xf]
      %v488 = vunpack.c.l.b16 %v459
      %v489 = vunpack.c.l.b16 %v460
      %v490 = vunpack.c.l.b16 %v461
      %v491 = vunpack.c.l.b16 %v462
      %v492 = vunpack.c.l.b16 %v463
      %v493 = vunpack.c.l.b16 %v464
      %v494 = vunpack.c.l.b16 %v465
      %v495 = vunpack.c.l.b16 %v466
      %v496 = vpack.c.b16 %v489, %v488
      %v497 = vpack.c.b16 %v491, %v490
      %v498 = vpack.c.b16 %v493, %v492
      %v499 = vpack.c.b16 %v495, %v494
      %v512 = vunpack.c.l.b16 %v468
      %v513 = vunpack.c.l.b16 %v469
      %v514 = vunpack.c.l.b16 %v470
      %v515 = vunpack.c.l.b16 %v471
      %v516 = vunpack.c.l.b16 %v472
      %v517 = vunpack.c.l.b16 %v473
      %v518 = vunpack.c.l.b16 %v474
      %v519 = vunpack.c.l.b16 %v475
      %v520 = vunpack.c.l.b16 %v476
      %v521 = vunpack.c.l.b16 %v477
      %v522 = vunpack.c.l.b16 %v478
      %v523 = vunpack.c.l.b16 %v479
      %v524 = vpack.c.b16 %v513, %v512
      %v525 = vpack.c.b16 %v515, %v514
      %v526 = vpack.c.b16 %v517, %v516
      %v527 = vpack.c.b16 %v519, %v518
      %v528 = vpack.c.b16 %v521, %v520
      %v529 = vpack.c.b16 %v523, %v522
      %v537 = vsel %vm262, %v496, 0
      %v540 = vsel %vm262, %v497, 0
      %v543 = vsel %vm262, %v498, 0
      %v546 = vsel %vm262, %v499, 0
      %548 = vmatprep.subr.bf16.mxu0 0
      %549 = vmatpush1.bf16.msra.mxu0 0
      %550 = vmatprep.subr.bf16.mxu0 0
      %551 = vmatpush1.bf16.msra.mxu0 0
      %552 = vmatprep.subr.bf16.mxu0 0
      %553 = vmatpush1.bf16.msra.mxu0 %v529
      %554 = vmatprep.subr.bf16.mxu0 0
      %555 = vmatpush1.bf16.msra.mxu0 %v528
      %556 = vmatprep.subr.bf16.mxu0 0
      %557 = vmatpush1.bf16.msra.mxu0 %v527
      %558 = vmatprep.subr.bf16.mxu0 0
      %559 = vmatpush1.bf16.msra.mxu0 %v526
      %560 = vmatprep.subr.bf16.mxu0 0
      %561 = vmatpush1.bf16.msra.mxu0 %v525
      %562 = vmatprep.subr.bf16.mxu0 0
      %563 = vmatpush1.bf16.msra.mxu0 %v524
      %564 = vmatprep.subr.bf16.mxu0 0
      %565 = vmatpush2.bf16.msra.mxu0 0
      %566 = vmatprep.subr.bf16.mxu0 0
      %567 = vmatpush2.bf16.msra.mxu0 0
      %568 = vmatprep.subr.bf16.mxu0 0
      %569 = vmatpush2.bf16.msra.mxu0 0
      %570 = vmatprep.subr.bf16.mxu0 0
      %571 = vmatpush2.bf16.msra.mxu0 0
      %572 = vmatprep.subr.bf16.mxu0 0
      %573 = vmatpush2.bf16.msra.mxu0 0
      %574 = vmatprep.subr.bf16.mxu0 0
      %575 = vmatpush2.bf16.msra.mxu0 0
      %576 = vmatprep.subr.bf16.mxu0 0
      %577 = vmatpush2.bf16.msra.mxu0 0
      %578 = vmatprep.subr.bf16.mxu0 0
      %579 = vmatpush2.bf16.msra.mxu0 0
      %580 = vmatprep.mubr.bf16.mxu0 0
      %581 = vmatmul.mubr.bf16.gmra.mxu0 %v537
      %v582 = vpop.f32.mrf.mxu0
      %v583 = vadd.f32 0.0, %v582
      %v584 = vpop.f32.mrf.mxu0
      %v585 = vpop.f32.mrf.mxu0
      %v586 = vadd.f32 0.0, %v585
      %v587 = vpop.f32.mrf.mxu0
      %588 = vmatprep.mubr.bf16.mxu0 0
      %589 = vmatmul.mubr.bf16.gmra.mxu0 %v540
      %v590 = vpop.f32.mrf.mxu0
      %v591 = vadd.f32 0.0, %v590
      %v592 = vpop.f32.mrf.mxu0
      %v593 = vpop.f32.mrf.mxu0
      %v594 = vadd.f32 0.0, %v593
      %v595 = vpop.f32.mrf.mxu0
      %596 = vmatprep.mubr.bf16.mxu0 0
      %597 = vmatmul.mubr.bf16.gmra.mxu0 %v543
      %v598 = vpop.f32.mrf.mxu0
      %v599 = vadd.f32 0.0, %v598
      %v600 = vpop.f32.mrf.mxu0
      %v601 = vpop.f32.mrf.mxu0
      %v602 = vadd.f32 0.0, %v601
      %v603 = vpop.f32.mrf.mxu0
      %604 = vmatprep.mubr.bf16.mxu0 0
      %605 = vmatmul.mubr.bf16.gmra.mxu0 %v546
      %v606 = vpop.f32.mrf.mxu0
      %v607 = vadd.f32 0.0, %v606
      %v608 = vpop.f32.mrf.mxu0
      %v609 = vpop.f32.mrf.mxu0
      %v610 = vadd.f32 0.0, %v609
      %v611 = vpop.f32.mrf.mxu0
      %612 = vdwg.mxu0
      %v613 = vadd.f32 %v429, %v583
      %v614 = vadd.f32 %v432, %v586
      %v615 = vadd.f32 %v437, %v591
      %v616 = vadd.f32 %v440, %v594
      %v617 = vadd.f32 %v445, %v599
      %v618 = vadd.f32 %v448, %v602
      %v619 = vadd.f32 %v453, %v607
      %v620 = vadd.f32 %v456, %v610
      %v621 = vld [vmem:[%s2] sm:$0x1]
      %v623 = vlaneseq
      %v624 = vshrl.u32 %v623, 7
      %v625 = vsub.s32 0, %v624
      %v626 = vrot.slane %v621, %v625
      %v628 = vadd.f32 %v613, %v626
      %v629 = vadd.f32 %v614, %v626
      %v630 = vadd.f32 %v615, %v626
      %v631 = vadd.f32 %v616, %v626
      %v632 = vadd.f32 %v617, %v626
      %v633 = vadd.f32 %v618, %v626
      %v634 = vadd.f32 %v619, %v626
      %v635 = vadd.f32 %v620, %v626
      %v636 = vmax.f32 %v628, 0.0
      %v637 = vmax.f32 %v629, 0.0
      %v638 = vmax.f32 %v630, 0.0
      %v639 = vmax.f32 %v631, 0.0
      %v640 = vmax.f32 %v632, 0.0
      %v641 = vmax.f32 %v633, 0.0
      %v642 = vmax.f32 %v634, 0.0
      %v643 = vmax.f32 %v635, 0.0
      %v644 = vpack.c.bf16 %v637, %v636
      %v645 = vpack.c.bf16 %v639, %v638
      %v646 = vpack.c.bf16 %v641, %v640
      %v647 = vpack.c.bf16 %v643, %v642
      %v652 = vunpack.c.l.b16 %v644
      %v653 = vunpack.c.h.b16 %v644
      %v654 = vunpack.c.l.b16 %v645
      %v655 = vunpack.c.h.b16 %v645
      %v656 = vunpack.c.l.b16 %v646
      %v657 = vunpack.c.h.b16 %v646
      %v658 = vunpack.c.l.b16 %v647
      %v659 = vunpack.c.h.b16 %v647
      %v660 = vpack.c.b16 %v652, %v652
      %v661 = vpack.c.b16 %v653, %v653
      %v662 = vpack.c.b16 %v654, %v654
      %v663 = vpack.c.b16 %v655, %v655
      %v664 = vpack.c.b16 %v656, %v656
      %v665 = vpack.c.b16 %v657, %v657
      %v666 = vpack.c.b16 %v658, %v658
      %v667 = vpack.c.b16 %v659, %v659
      %vm676 = vcmask 257024
      %677 = vst.msk [vmem:[%s170] sm:$0xf] %vm676, %v660
      %678 = vst.msk [vmem:[%s170 + $0x4] sm:$0xf] %vm676, %v661
      %679 = vst.msk [vmem:[%s170 + $0x8] sm:$0xf] %vm676, %v662
      %680 = vst.msk [vmem:[%s170 + $0xc] sm:$0xf] %vm676, %v663
      %681 = vst.msk [vmem:[%s170 + $0x10] sm:$0xf] %vm676, %v664
      %682 = vst.msk [vmem:[%s170 + $0x14] sm:$0xf] %vm676, %v665
      %683 = vst.msk [vmem:[%s170 + $0x18] sm:$0xf] %vm676, %v666
      %684 = vst.msk [vmem:[%s170 + $0x1c] sm:$0xf] %vm676, %v667
      %p685 = scmp.lt.s32.totalorder %s14, 1
      %s686 = scalar_select %p685, %s14, 1
      %s687 = smul.addr %s686, 8
      %s688 = smul.addr %s687, 4
      %s689 = scalar_lea.vmem %s3, %s688
      // Predicated region
      $region33: #{one_model_forward.22} parent=31 // pred_check
        %p690 = pneg %p100
      $region34: #{one_model_forward.22} parent=31 // pred_check_branch
        %692 = sbr.rel (%p690) target = $region36
      $region35: #{one_model_forward.22} parent=31 // pred_region
        _
      $region36: #{one_model_forward.22} parent=31 // pred_fallthru
        _
    $region32: #{one_model_forward.22} parent=5 // pred_fallthru
      _
    %p693 = scmp.le.s32.totalorder 2, %s9
    // Predicated region
    $region37: #{one_model_forward.22} parent=5 // pred_check
      %p694 = pneg %p693
    $region38: #{one_model_forward.22} parent=5 // pred_check_branch
      %696 = sbr.rel (%p694) target = $region40
    $region39: #{one_model_forward.22} parent=5 // pred_region
      %s697 = ssub.s32 %s9, 2
      // Predicated region
      $region41: #{one_model_forward.22} parent=39 // pred_check
        %p698 = pneg %p106
      $region42: #{one_model_forward.22} parent=39 // pred_check_branch
        %700 = sbr.rel (%p698) target = $region44
      $region43: #{one_model_forward.22} parent=39 // pred_region
        %p701 = scmp.lt.s32.totalorder %s15, 1
        %s702 = scalar_select %p701, %s15, 1
        %s703 = smul.addr %s702, 8
        %s704 = smul.addr %s703, 4
        %s705 = scalar_lea.vmem %s3, %s704
      $region44: #{one_model_forward.22} parent=39 // pred_fallthru
        _
    $region40: #{one_model_forward.22} parent=5 // pred_fallthru
      _
  $region6: #{one_model_forward.22} parent=0 // loop_footer
    %s13 = sadd.s32 1, %s9
  $region7: #{one_model_forward.22} parent=0 // loop_footer_branch
    %8 = sbr.rel target = $region3
  $region8: #{one_model_forward.22} parent=0 // loop_exit
    _

// kernel: one_model_forward.23
$region0: #{one_model_forward.23}
  #allocation0 [shape = 'u32[]', space=smem, size = 0x4, offset = 0x4, fixed_abs, tag = 'smem constant byte address 0x4 - core index']
  #allocation1 [shape = 'u32[144,128]{1,0:T(1,128)}', space=vmem, size = 0x12000, scoped, tag = 'internal scratch']
  %s0 = inlined_call_operand.vmem [shape: bf16[2,80,96], index: 0, kind: input, shape index: {}]
  %s1 = inlined_call_operand.vmem [shape: bf16[3,96,32], index: 1, kind: input, shape index: {}]
  %s2 = inlined_call_operand.vmem [shape: f32[1,32], index: 2, kind: input, shape index: {}]
  %s3 = inlined_call_operand.vmem [shape: bf16[2,64,32], index: 3, kind: input, shape index: {}]
  %s4 = inlined_call_operand.vmem [shape: bf16[2,64,32], index: 4, kind: output, shape index: {}]
  %s5 = sld [smem:[#allocation0]]
  $region49: #{one_model_forward.23} parent=0
    _
  %s7 = ssub.s32 1, %s5
  %s8 = scalar_select 0, %s7, %s5
  loop: start=0, step=1, limit=4
  $region2: #{one_model_forward.23} parent=0 // loop_pre_header
    _
  $region3: #{one_model_forward.23} parent=0 // loop_header
    %s10 = sphi 0, %s14
    %p11 = scmp.ge.s32.totalorder %s10, 4
    %s20 = sphi 0, %s22
    %s23 = sphi 0, %s20
    %s24 = sphi 0, %s23
    %s40 = sphi 0, %s24
    %s44 = sphi 0, %s44
    %s46 = sphi 0, %s44
    %s47 = sphi 0, %s46
    %s61 = sphi 0, %s47
    %s65 = sphi 0, %s65
    %s67 = sphi 0, %s65
    %s68 = sphi 0, %s67
    %s82 = sphi 0, %s68
    %s88 = sphi 0, %s90
    %s91 = sphi 0, %s88
    %s92 = sphi 0, %s91
    %s108 = sphi 0, %s92
    %s114 = sphi 0, %s116
    %s117 = sphi 0, %s114
    %s118 = sphi 0, %s117
    %s134 = sphi 0, %s118
  $region4: #{one_model_forward.23} parent=0 // loop_header_branch
    %13 = sbr.rel (%p11) target = $region8
  $region5: #{one_model_forward.23} parent=0 // loop_body
    %s15 = ssub.s32 %s10, 1
    %s16 = ssub.s32 %s10, 2
    %s17 = sadd.s32 %s10, 1
    %s18 = ssub.s32 %s10, %s17
    %p19 = scmp.eq.s32.totalorder %s18, 0
    %s21 = sadd.s32 %s20, 1
    %s22 = scalar_select %p19, %s20, %s21
    %p25 = pneg %p19
    %p26 = scmp.eq.s32.totalorder %s10, 1
    %p27 = por %p25, %p26
    %p28 = scmp.ne.s32.totalorder %s20, %s23
    %p29 = scmp.eq.s32.totalorder %s10, 0
    %p30 = por %p28, %p29
    %p31 = scmp.ne.s32.totalorder %s20, %s23
    %p32 = scmp.eq.s32.totalorder %s15, 1
    %p33 = por %p31, %p32
    %p34 = scmp.ne.s32.totalorder %s23, %s24
    %p35 = scmp.eq.s32.totalorder %s15, 0
    %p36 = por %p34, %p35
    %p37 = scmp.ne.s32.totalorder %s23, %s24
    %p38 = scmp.eq.s32.totalorder %s16, 1
    %p39 = por %p37, %p38
    %p41 = scmp.ne.s32.totalorder %s24, %s40
    %p42 = scmp.eq.s32.totalorder %s16, 0
    %p43 = por %p41, %p42
    %s45 = sadd.s32 %s44, 1
    %p48 = scmp.eq.s32.totalorder %s10, 1
    %p49 = scmp.ne.s32.totalorder %s44, %s46
    %p50 = scmp.eq.s32.totalorder %s10, 0
    %p51 = por %p49, %p50
    %p52 = scmp.ne.s32.totalorder %s44, %s46
    %p53 = scmp.eq.s32.totalorder %s15, 1
    %p54 = por %p52, %p53
    %p55 = scmp.ne.s32.totalorder %s46, %s47
    %p56 = scmp.eq.s32.totalorder %s15, 0
    %p57 = por %p55, %p56
    %p58 = scmp.ne.s32.totalorder %s46, %s47
    %p59 = scmp.eq.s32.totalorder %s16, 1
    %p60 = por %p58, %p59
    %p62 = scmp.ne.s32.totalorder %s47, %s61
    %p63 = scmp.eq.s32.totalorder %s16, 0
    %p64 = por %p62, %p63
    %s66 = sadd.s32 %s65, 1
    %p69 = scmp.eq.s32.totalorder %s10, 1
    %p70 = scmp.ne.s32.totalorder %s65, %s67
    %p71 = scmp.eq.s32.totalorder %s10, 0
    %p72 = por %p70, %p71
    %p73 = scmp.ne.s32.totalorder %s65, %s67
    %p74 = scmp.eq.s32.totalorder %s15, 1
    %p75 = por %p73, %p74
    %p76 = scmp.ne.s32.totalorder %s67, %s68
    %p77 = scmp.eq.s32.totalorder %s15, 0
    %p78 = por %p76, %p77
    %p79 = scmp.ne.s32.totalorder %s67, %s68
    %p80 = scmp.eq.s32.totalorder %s16, 1
    %p81 = por %p79, %p80
    %p83 = scmp.ne.s32.totalorder %s68, %s82
    %p84 = scmp.eq.s32.totalorder %s16, 0
    %p85 = por %p83, %p84
    %s86 = ssub.s32 %s10, %s17
    %p87 = scmp.eq.s32.totalorder %s86, 0
    %s89 = sadd.s32 %s88, 1
    %s90 = scalar_select %p87, %s88, %s89
    %p93 = pneg %p87
    %p94 = scmp.eq.s32.totalorder %s10, 1
    %p95 = por %p93, %p94
    %p96 = scmp.ne.s32.totalorder %s88, %s91
    %p97 = scmp.eq.s32.totalorder %s10, 0
    %p98 = por %p96, %p97
    %p99 = scmp.ne.s32.totalorder %s88, %s91
    %p100 = scmp.eq.s32.totalorder %s15, 1
    %p101 = por %p99, %p100
    %p102 = scmp.ne.s32.totalorder %s91, %s92
    %p103 = scmp.eq.s32.totalorder %s15, 0
    %p104 = por %p102, %p103
    %p105 = scmp.ne.s32.totalorder %s91, %s92
    %p106 = scmp.eq.s32.totalorder %s16, 1
    %p107 = por %p105, %p106
    %p109 = scmp.ne.s32.totalorder %s92, %s108
    %p110 = scmp.eq.s32.totalorder %s16, 0
    %p111 = por %p109, %p110
    %s112 = ssub.s32 %s10, %s17
    %p113 = scmp.eq.s32.totalorder %s112, 0
    %s115 = sadd.s32 %s114, 1
    %s116 = scalar_select %p113, %s114, %s115
    %p119 = pneg %p113
    %p120 = scmp.eq.s32.totalorder %s10, 1
    %p121 = por %p119, %p120
    %p122 = scmp.ne.s32.totalorder %s114, %s117
    %p123 = scmp.eq.s32.totalorder %s10, 0
    %p124 = por %p122, %p123
    %p125 = scmp.ne.s32.totalorder %s114, %s117
    %p126 = scmp.eq.s32.totalorder %s15, 1
    %p127 = por %p125, %p126
    %p128 = scmp.ne.s32.totalorder %s117, %s118
    %p129 = scmp.eq.s32.totalorder %s15, 0
    %p130 = por %p128, %p129
    %p131 = scmp.ne.s32.totalorder %s117, %s118
    %p132 = scmp.eq.s32.totalorder %s16, 1
    %p133 = por %p131, %p132
    %p135 = scmp.ne.s32.totalorder %s118, %s134
    %p136 = scmp.eq.s32.totalorder %s16, 0
    %p137 = por %p135, %p136
    %p138 = scmp.le.s32.totalorder 1, %s10
    %p139 = scmp.lt.s32.totalorder %s10, 3
    %p140 = pnand %p138, %p139
    %p141 = pneg %p140
    // Predicated region
    $region9: #{one_model_forward.23} parent=5 // pred_check
      _
    $region10: #{one_model_forward.23} parent=5 // pred_check_branch
      %143 = sbr.rel (%p140) target = $region12
    $region11: #{one_model_forward.23} parent=5 // pred_region
      %s144 = ssub.s32 %s10, 1
      // Predicated region
      $region13: #{one_model_forward.23} parent=11 // pred_check
        %p145 = pneg %p57
      $region14: #{one_model_forward.23} parent=11 // pred_check_branch
        %147 = sbr.rel (%p145) target = $region16
      $region15: #{one_model_forward.23} parent=11 // pred_region
        _
      $region16: #{one_model_forward.23} parent=11 // pred_fallthru
        _
      // Predicated region
      $region17: #{one_model_forward.23} parent=11 // pred_check
        %p148 = pneg %p78
      $region18: #{one_model_forward.23} parent=11 // pred_check_branch
        %150 = sbr.rel (%p148) target = $region20
      $region19: #{one_model_forward.23} parent=11 // pred_region
        _
      $region20: #{one_model_forward.23} parent=11 // pred_fallthru
        _
    $region12: #{one_model_forward.23} parent=5 // pred_fallthru
      _
    %p151 = scmp.lt.s32.totalorder %s10, 2
    // Predicated region
    $region21: #{one_model_forward.23} parent=5 // pred_check
      %p152 = pneg %p151
    $region22: #{one_model_forward.23} parent=5 // pred_check_branch
      %154 = sbr.rel (%p152) target = $region24
    $region23: #{one_model_forward.23} parent=5 // pred_region
      // Predicated region
      $region25: #{one_model_forward.23} parent=23 // pred_check
        %p155 = pneg %p30
      $region26: #{one_model_forward.23} parent=23 // pred_check_branch
        %157 = sbr.rel (%p155) target = $region28
      $region27: #{one_model_forward.23} parent=23 // pred_region
        %p158 = scmp.lt.s32.totalorder %s10, 1
        %s159 = scalar_select %p158, %s10, 1
        %s160 = smul.addr %s159, 10
        %s161 = smul.addr %s160, 4
        %s162 = scalar_lea.vmem %s0, %s161
      $region28: #{one_model_forward.23} parent=23 // pred_fallthru
        _
      // Predicated region
      $region29: #{one_model_forward.23} parent=23 // pred_check
        %p163 = pneg %p98
      $region30: #{one_model_forward.23} parent=23 // pred_check_branch
        %165 = sbr.rel (%p163) target = $region32
      $region31: #{one_model_forward.23} parent=23 // pred_region
        %p166 = scmp.lt.s32.totalorder %s10, 1
        %s167 = scalar_select %p166, %s10, 1
        %s168 = smul.addr %s167, 8
        %s169 = smul.addr %s168, 4
        %s170 = scalar_lea.vmem %s3, %s169
      $region32: #{one_model_forward.23} parent=23 // pred_fallthru
        _
    $region24: #{one_model_forward.23} parent=5 // pred_fallthru
      _
    %p171 = scmp.le.s32.totalorder 1, %s10
    %p172 = scmp.lt.s32.totalorder %s10, 3
    %p173 = pnand %p171, %p172
    %p174 = pneg %p173
    // Predicated region
    $region33: #{one_model_forward.23} parent=5 // pred_check
      _
    $region34: #{one_model_forward.23} parent=5 // pred_check_branch
      %176 = sbr.rel (%p173) target = $region36
    $region35: #{one_model_forward.23} parent=5 // pred_region
      %s177 = ssub.s32 %s10, 1
      %p178 = scmp.lt.s32.totalorder %s15, 1
      %s179 = scalar_select %p178, %s15, 1
      %s180 = smul.addr %s179, 10
      %s181 = smul.addr %s180, 4
      %s182 = scalar_lea.vmem %s0, %s181
      %p183 = pneg %p36
      %p184 = pneg %p33
      %p185 = pneg %p57
      %p186 = pneg %p54
      %p187 = pneg %p78
      %p188 = pneg %p75
      %p189 = scmp.lt.s32.totalorder %s15, 1
      %s190 = scalar_select %p189, %s15, 1
      %s191 = smul.addr %s190, 8
      %s192 = smul.addr %s191, 4
      %s193 = scalar_lea.vmem %s3, %s192
      %p194 = pneg %p104
      %p195 = pneg %p101
      %p196 = pneg %p130
      %p197 = pneg %p127
      %p198 = scmp.lt.s32.totalorder %s15, 1
      %s199 = scalar_select %p198, %s15, 1
      %s200 = smul.addr %s199, 8
      %s201 = smul.addr %s200, 4
      %s202 = scalar_lea.vmem %s4, %s201
      %p203 = scmp.lt.s32.totalorder %s15, 1
      %s204 = scalar_select %p203, %s15, 1
      %s205 = smul.addr %s204, 10
      %s206 = smul.addr %s205, 4
      %s207 = scalar_lea.vmem %s0, %s206
      %p208 = scmp.lt.s32.totalorder %s15, 1
      %s209 = scalar_select %p208, %s15, 1
      %s210 = smul.addr %s209, 8
      %s211 = smul.addr %s210, 4
      %s212 = scalar_lea.vmem %s3, %s211
      %p213 = scmp.lt.s32.totalorder %s15, 1
      %s214 = scalar_select %p213, %s15, 1
      %s215 = smul.addr %s214, 8
      %s216 = smul.addr %s215, 4
      %s217 = scalar_lea.vmem %s4, %s216
      %v219 = vld [vmem:[%s207] sm:$0xf]
      %v220 = vld [vmem:[%s207 + $0x4] sm:$0xf]
      %v221 = vld [vmem:[%s207 + $0x8] sm:$0xf]
      %v222 = vld [vmem:[%s207 + $0xc] sm:$0xf]
      %v223 = vld [vmem:[%s207 + $0x10] sm:$0xf]
      %v224 = vld [vmem:[%s207 + $0x14] sm:$0xf]
      %v225 = vld [vmem:[%s207 + $0x18] sm:$0xf]
      %v226 = vld [vmem:[%s207 + $0x1c] sm:$0xf]
      %v227 = vld [vmem:[%s1] sm:$0xf]
      %v228 = vld [vmem:[%s1 + $0x4] sm:$0xf]
      %v229 = vld [vmem:[%s1 + $0x8] sm:$0xf]
      %v230 = vld [vmem:[%s1 + $0xc] sm:$0xf]
      %v231 = vld [vmem:[%s1 + $0x10] sm:$0xf]
      %v232 = vld [vmem:[%s1 + $0x14] sm:$0xf]
      %v233 = vld [vmem:[%s1 + $0x18] sm:$0xf]
      %v234 = vld [vmem:[%s1 + $0x1c] sm:$0xf]
      %v235 = vld [vmem:[%s1 + $0x20] sm:$0xf]
      %v236 = vld [vmem:[%s1 + $0x24] sm:$0xf]
      %v237 = vld [vmem:[%s1 + $0x28] sm:$0xf]
      %v238 = vld [vmem:[%s1 + $0x2c] sm:$0xf]
      %v239 = vld [vmem:[%s207 + $0x20] sm:$0xf]
      %s240 = scalar_lea.vmem %s1, 48
      %v241 = vld [vmem:[%s240] sm:$0xf]
      %v242 = vld [vmem:[%s240 + $0x4] sm:$0xf]
      %v243 = vld [vmem:[%s240 + $0x8] sm:$0xf]
      %v244 = vld [vmem:[%s240 + $0xc] sm:$0xf]
      %v245 = vld [vmem:[%s240 + $0x10] sm:$0xf]
      %v246 = vld [vmem:[%s240 + $0x14] sm:$0xf]
      %v247 = vld [vmem:[%s240 + $0x18] sm:$0xf]
      %v248 = vld [vmem:[%s240 + $0x1c] sm:$0xf]
      %v249 = vld [vmem:[%s240 + $0x20] sm:$0xf]
      %v250 = vld [vmem:[%s240 + $0x24] sm:$0xf]
      %v251 = vld [vmem:[%s240 + $0x28] sm:$0xf]
      %v252 = vld [vmem:[%s240 + $0x2c] sm:$0xf]
      %v261 = vunpack.c.l.b16 %v220
      %v262 = vunpack.c.l.b16 %v221
      %v263 = vunpack.c.l.b16 %v222
      %v264 = vunpack.c.l.b16 %v223
      %v265 = vunpack.c.l.b16 %v224
      %v266 = vunpack.c.l.b16 %v225
      %v267 = vunpack.c.l.b16 %v226
      %v268 = vunpack.c.l.b16 %v239
      %v269 = vpack.c.b16 %v262, %v261
      %v270 = vpack.c.b16 %v264, %v263
      %v271 = vpack.c.b16 %v266, %v265
      %v272 = vpack.c.b16 %v268, %v267
      %v285 = vunpack.c.l.b16 %v241
      %v286 = vunpack.c.l.b16 %v242
      %v287 = vunpack.c.l.b16 %v243
      %v288 = vunpack.c.l.b16 %v244
      %v289 = vunpack.c.l.b16 %v245
      %v290 = vunpack.c.l.b16 %v246
      %v291 = vunpack.c.l.b16 %v247
      %v292 = vunpack.c.l.b16 %v248
      %v293 = vunpack.c.l.b16 %v249
      %v294 = vunpack.c.l.b16 %v250
      %v295 = vunpack.c.l.b16 %v251
      %v296 = vunpack.c.l.b16 %v252
      %v297 = vpack.c.b16 %v286, %v285
      %v298 = vpack.c.b16 %v288, %v287
      %v299 = vpack.c.b16 %v290, %v289
      %v300 = vpack.c.b16 %v292, %v291
      %v301 = vpack.c.b16 %v294, %v293
      %v302 = vpack.c.b16 %v296, %v295
      %vm309 = vcmask 785408
      %v311 = vsel %vm309, %v269, 0
      %v314 = vsel %vm309, %v270, 0
      %v317 = vsel %vm309, %v271, 0
      %v320 = vsel %vm309, %v272, 0
      %322 = vmatprep.subr.bf16.mxu0 0
      %323 = vmatpush1.bf16.msra.mxu0 0
      %324 = vmatprep.subr.bf16.mxu0 0
      %325 = vmatpush1.bf16.msra.mxu0 0
      %326 = vmatprep.subr.bf16.mxu0 0
      %327 = vmatpush1.bf16.msra.mxu0 %v302
      %328 = vmatprep.subr.bf16.mxu0 0
      %329 = vmatpush1.bf16.msra.mxu0 %v301
      %330 = vmatprep.subr.bf16.mxu0 0
      %331 = vmatpush1.bf16.msra.mxu0 %v300
      %332 = vmatprep.subr.bf16.mxu0 0
      %333 = vmatpush1.bf16.msra.mxu0 %v299
      %334 = vmatprep.subr.bf16.mxu0 0
      %335 = vmatpush1.bf16.msra.mxu0 %v298
      %336 = vmatprep.subr.bf16.mxu0 0
      %337 = vmatpush1.bf16.msra.mxu0 %v297
      %338 = vmatprep.subr.bf16.mxu0 0
      %339 = vmatpush2.bf16.msra.mxu0 0
      %340 = vmatprep.subr.bf16.mxu0 0
      %341 = vmatpush2.bf16.msra.mxu0 0
      %342 = vmatprep.subr.bf16.mxu0 0
      %343 = vmatpush2.bf16.msra.mxu0 0
      %344 = vmatprep.subr.bf16.mxu0 0
      %345 = vmatpush2.bf16.msra.mxu0 0
      %346 = vmatprep.subr.bf16.mxu0 0
      %347 = vmatpush2.bf16.msra.mxu0 0
      %348 = vmatprep.subr.bf16.mxu0 0
      %349 = vmatpush2.bf16.msra.mxu0 0
      %350 = vmatprep.subr.bf16.mxu0 0
      %351 = vmatpush2.bf16.msra.mxu0 0
      %352 = vmatprep.subr.bf16.mxu0 0
      %353 = vmatpush2.bf16.msra.mxu0 0
      %354 = vmatprep.mubr.bf16.mxu0 0
      %355 = vmatmul.mubr.bf16.gmra.mxu0 %v311
      %v356 = vpop.f32.mrf.mxu0
      %v357 = vadd.f32 0.0, %v356
      %v358 = vpop.f32.mrf.mxu0
      %v359 = vpop.f32.mrf.mxu0
      %v360 = vadd.f32 0.0, %v359
      %v361 = vpop.f32.mrf.mxu0
      %362 = vmatprep.mubr.bf16.mxu0 0
      %363 = vmatmul.mubr.bf16.gmra.mxu0 %v314
      %v364 = vpop.f32.mrf.mxu0
      %v365 = vadd.f32 0.0, %v364
      %v366 = vpop.f32.mrf.mxu0
      %v367 = vpop.f32.mrf.mxu0
      %v368 = vadd.f32 0.0, %v367
      %v369 = vpop.f32.mrf.mxu0
      %370 = vmatprep.mubr.bf16.mxu0 0
      %371 = vmatmul.mubr.bf16.gmra.mxu0 %v317
      %v372 = vpop.f32.mrf.mxu0
      %v373 = vadd.f32 0.0, %v372
      %v374 = vpop.f32.mrf.mxu0
      %v375 = vpop.f32.mrf.mxu0
      %v376 = vadd.f32 0.0, %v375
      %v377 = vpop.f32.mrf.mxu0
      %378 = vmatprep.mubr.bf16.mxu0 0
      %379 = vmatmul.mubr.bf16.gmra.mxu0 %v320
      %v380 = vpop.f32.mrf.mxu0
      %v381 = vadd.f32 0.0, %v380
      %v382 = vpop.f32.mrf.mxu0
      %v383 = vpop.f32.mrf.mxu0
      %v384 = vadd.f32 0.0, %v383
      %v385 = vpop.f32.mrf.mxu0
      %386 = vdwg.mxu0
      %v388 = vunpack.c.l.b16 %v219
      %v389 = vpack.c.b16 %v261, %v388
      %v390 = vpack.c.b16 %v263, %v262
      %v391 = vpack.c.b16 %v265, %v264
      %v392 = vpack.c.b16 %v267, %v266
      %v405 = vunpack.c.l.b16 %v227
      %v406 = vunpack.c.l.b16 %v228
      %v407 = vunpack.c.l.b16 %v229
      %v408 = vunpack.c.l.b16 %v230
      %v409 = vunpack.c.l.b16 %v231
      %v410 = vunpack.c.l.b16 %v232
      %v411 = vunpack.c.l.b16 %v233
      %v412 = vunpack.c.l.b16 %v234
      %v413 = vunpack.c.l.b16 %v235
      %v414 = vunpack.c.l.b16 %v236
      %v415 = vunpack.c.l.b16 %v237
      %v416 = vunpack.c.l.b16 %v238
      %v417 = vpack.c.b16 %v406, %v405
      %v418 = vpack.c.b16 %v408, %v407
      %v419 = vpack.c.b16 %v410, %v409
      %v420 = vpack.c.b16 %v412, %v411
      %v421 = vpack.c.b16 %v414, %v413
      %v422 = vpack.c.b16 %v416, %v415
      %v430 = vsel %vm309, %v389, 0
      %v433 = vsel %vm309, %v390, 0
      %v436 = vsel %vm309, %v391, 0
      %v439 = vsel %vm309, %v392, 0
      %441 = vmatprep.subr.bf16.mxu0 0
      %442 = vmatpush1.bf16.msra.mxu0 0
      %443 = vmatprep.subr.bf16.mxu0 0
      %444 = vmatpush1.bf16.msra.mxu0 0
      %445 = vmatprep.subr.bf16.mxu0 0
      %446 = vmatpush1.bf16.msra.mxu0 %v422
      %447 = vmatprep.subr.bf16.mxu0 0
      %448 = vmatpush1.bf16.msra.mxu0 %v421
      %449 = vmatprep.subr.bf16.mxu0 0
      %450 = vmatpush1.bf16.msra.mxu0 %v420
      %451 = vmatprep.subr.bf16.mxu0 0
      %452 = vmatpush1.bf16.msra.mxu0 %v419
      %453 = vmatprep.subr.bf16.mxu0 0
      %454 = vmatpush1.bf16.msra.mxu0 %v418
      %455 = vmatprep.subr.bf16.mxu0 0
      %456 = vmatpush1.bf16.msra.mxu0 %v417
      %457 = vmatprep.subr.bf16.mxu0 0
      %458 = vmatpush2.bf16.msra.mxu0 0
      %459 = vmatprep.subr.bf16.mxu0 0
      %460 = vmatpush2.bf16.msra.mxu0 0
      %461 = vmatprep.subr.bf16.mxu0 0
      %462 = vmatpush2.bf16.msra.mxu0 0
      %463 = vmatprep.subr.bf16.mxu0 0
      %464 = vmatpush2.bf16.msra.mxu0 0
      %465 = vmatprep.subr.bf16.mxu0 0
      %466 = vmatpush2.bf16.msra.mxu0 0
      %467 = vmatprep.subr.bf16.mxu0 0
      %468 = vmatpush2.bf16.msra.mxu0 0
      %469 = vmatprep.subr.bf16.mxu0 0
      %470 = vmatpush2.bf16.msra.mxu0 0
      %471 = vmatprep.subr.bf16.mxu0 0
      %472 = vmatpush2.bf16.msra.mxu0 0
      %473 = vmatprep.mubr.bf16.mxu0 0
      %474 = vmatmul.mubr.bf16.gmra.mxu0 %v430
      %v475 = vpop.f32.mrf.mxu0
      %v476 = vadd.f32 %v357, %v475
      %v477 = vpop.f32.mrf.mxu0
      %v478 = vpop.f32.mrf.mxu0
      %v479 = vadd.f32 %v360, %v478
      %v480 = vpop.f32.mrf.mxu0
      %481 = vmatprep.mubr.bf16.mxu0 0
      %482 = vmatmul.mubr.bf16.gmra.mxu0 %v433
      %v483 = vpop.f32.mrf.mxu0
      %v484 = vadd.f32 %v365, %v483
      %v485 = vpop.f32.mrf.mxu0
      %v486 = vpop.f32.mrf.mxu0
      %v487 = vadd.f32 %v368, %v486
      %v488 = vpop.f32.mrf.mxu0
      %489 = vmatprep.mubr.bf16.mxu0 0
      %490 = vmatmul.mubr.bf16.gmra.mxu0 %v436
      %v491 = vpop.f32.mrf.mxu0
      %v492 = vadd.f32 %v373, %v491
      %v493 = vpop.f32.mrf.mxu0
      %v494 = vpop.f32.mrf.mxu0
      %v495 = vadd.f32 %v376, %v494
      %v496 = vpop.f32.mrf.mxu0
      %497 = vmatprep.mubr.bf16.mxu0 0
      %498 = vmatmul.mubr.bf16.gmra.mxu0 %v439
      %v499 = vpop.f32.mrf.mxu0
      %v500 = vadd.f32 %v381, %v499
      %v501 = vpop.f32.mrf.mxu0
      %v502 = vpop.f32.mrf.mxu0
      %v503 = vadd.f32 %v384, %v502
      %v504 = vpop.f32.mrf.mxu0
      %505 = vdwg.mxu0
      %v506 = vld [vmem:[%s207 + $0x8] sm:$0xf]
      %v507 = vld [vmem:[%s207 + $0xc] sm:$0xf]
      %v508 = vld [vmem:[%s207 + $0x10] sm:$0xf]
      %v509 = vld [vmem:[%s207 + $0x14] sm:$0xf]
      %v510 = vld [vmem:[%s207 + $0x18] sm:$0xf]
      %v511 = vld [vmem:[%s207 + $0x1c] sm:$0xf]
      %v512 = vld [vmem:[%s207 + $0x20] sm:$0xf]
      %v513 = vld [vmem:[%s207 + $0x24] sm:$0xf]
      %s514 = scalar_lea.vmem %s1, 96
      %v515 = vld [vmem:[%s514] sm:$0xf]
      %v516 = vld [vmem:[%s514 + $0x4] sm:$0xf]
      %v517 = vld [vmem:[%s514 + $0x8] sm:$0xf]
      %v518 = vld [vmem:[%s514 + $0xc] sm:$0xf]
      %v519 = vld [vmem:[%s514 + $0x10] sm:$0xf]
      %v520 = vld [vmem:[%s514 + $0x14] sm:$0xf]
      %v521 = vld [vmem:[%s514 + $0x18] sm:$0xf]
      %v522 = vld [vmem:[%s514 + $0x1c] sm:$0xf]
      %v523 = vld [vmem:[%s514 + $0x20] sm:$0xf]
      %v524 = vld [vmem:[%s514 + $0x24] sm:$0xf]
      %v525 = vld [vmem:[%s514 + $0x28] sm:$0xf]
      %v526 = vld [vmem:[%s514 + $0x2c] sm:$0xf]
      %v535 = vunpack.c.l.b16 %v506
      %v536 = vunpack.c.l.b16 %v507
      %v537 = vunpack.c.l.b16 %v508
      %v538 = vunpack.c.l.b16 %v509
      %v539 = vunpack.c.l.b16 %v510
      %v540 = vunpack.c.l.b16 %v511
      %v541 = vunpack.c.l.b16 %v512
      %v542 = vunpack.c.l.b16 %v513
      %v543 = vpack.c.b16 %v536, %v535
      %v544 = vpack.c.b16 %v538, %v537
      %v545 = vpack.c.b16 %v540, %v539
      %v546 = vpack.c.b16 %v542, %v541
      %v559 = vunpack.c.l.b16 %v515
      %v560 = vunpack.c.l.b16 %v516
      %v561 = vunpack.c.l.b16 %v517
      %v562 = vunpack.c.l.b16 %v518
      %v563 = vunpack.c.l.b16 %v519
      %v564 = vunpack.c.l.b16 %v520
      %v565 = vunpack.c.l.b16 %v521
      %v566 = vunpack.c.l.b16 %v522
      %v567 = vunpack.c.l.b16 %v523
      %v568 = vunpack.c.l.b16 %v524
      %v569 = vunpack.c.l.b16 %v525
      %v570 = vunpack.c.l.b16 %v526
      %v571 = vpack.c.b16 %v560, %v559
      %v572 = vpack.c.b16 %v562, %v561
      %v573 = vpack.c.b16 %v564, %v563
      %v574 = vpack.c.b16 %v566, %v565
      %v575 = vpack.c.b16 %v568, %v567
      %v576 = vpack.c.b16 %v570, %v569
      %v584 = vsel %vm309, %v543, 0
      %v587 = vsel %vm309, %v544, 0
      %v590 = vsel %vm309, %v545, 0
      %v593 = vsel %vm309, %v546, 0
      %595 = vmatprep.subr.bf16.mxu0 0
      %596 = vmatpush1.bf16.msra.mxu0 0
      %597 = vmatprep.subr.bf16.mxu0 0
      %598 = vmatpush1.bf16.msra.mxu0 0
      %599 = vmatprep.subr.bf16.mxu0 0
      %600 = vmatpush1.bf16.msra.mxu0 %v576
      %601 = vmatprep.subr.bf16.mxu0 0
      %602 = vmatpush1.bf16.msra.mxu0 %v575
      %603 = vmatprep.subr.bf16.mxu0 0
      %604 = vmatpush1.bf16.msra.mxu0 %v574
      %605 = vmatprep.subr.bf16.mxu0 0
      %606 = vmatpush1.bf16.msra.mxu0 %v573
      %607 = vmatprep.subr.bf16.mxu0 0
      %608 = vmatpush1.bf16.msra.mxu0 %v572
      %609 = vmatprep.subr.bf16.mxu0 0
      %610 = vmatpush1.bf16.msra.mxu0 %v571
      %611 = vmatprep.subr.bf16.mxu0 0
      %612 = vmatpush2.bf16.msra.mxu0 0
      %613 = vmatprep.subr.bf16.mxu0 0
      %614 = vmatpush2.bf16.msra.mxu0 0
      %615 = vmatprep.subr.bf16.mxu0 0
      %616 = vmatpush2.bf16.msra.mxu0 0
      %617 = vmatprep.subr.bf16.mxu0 0
      %618 = vmatpush2.bf16.msra.mxu0 0
      %619 = vmatprep.subr.bf16.mxu0 0
      %620 = vmatpush2.bf16.msra.mxu0 0
      %621 = vmatprep.subr.bf16.mxu0 0
      %622 = vmatpush2.bf16.msra.mxu0 0
      %623 = vmatprep.subr.bf16.mxu0 0
      %624 = vmatpush2.bf16.msra.mxu0 0
      %625 = vmatprep.subr.bf16.mxu0 0
      %626 = vmatpush2.bf16.msra.mxu0 0
      %627 = vmatprep.mubr.bf16.mxu0 0
      %628 = vmatmul.mubr.bf16.gmra.mxu0 %v584
      %v629 = vpop.f32.mrf.mxu0
      %v630 = vadd.f32 0.0, %v629
      %v631 = vpop.f32.mrf.mxu0
      %v632 = vpop.f32.mrf.mxu0
      %v633 = vadd.f32 0.0, %v632
      %v634 = vpop.f32.mrf.mxu0
      %635 = vmatprep.mubr.bf16.mxu0 0
      %636 = vmatmul.mubr.bf16.gmra.mxu0 %v587
      %v637 = vpop.f32.mrf.mxu0
      %v638 = vadd.f32 0.0, %v637
      %v639 = vpop.f32.mrf.mxu0
      %v640 = vpop.f32.mrf.mxu0
      %v641 = vadd.f32 0.0, %v640
      %v642 = vpop.f32.mrf.mxu0
      %643 = vmatprep.mubr.bf16.mxu0 0
      %644 = vmatmul.mubr.bf16.gmra.mxu0 %v590
      %v645 = vpop.f32.mrf.mxu0
      %v646 = vadd.f32 0.0, %v645
      %v647 = vpop.f32.mrf.mxu0
      %v648 = vpop.f32.mrf.mxu0
      %v649 = vadd.f32 0.0, %v648
      %v650 = vpop.f32.mrf.mxu0
      %651 = vmatprep.mubr.bf16.mxu0 0
      %652 = vmatmul.mubr.bf16.gmra.mxu0 %v593
      %v653 = vpop.f32.mrf.mxu0
      %v654 = vadd.f32 0.0, %v653
      %v655 = vpop.f32.mrf.mxu0
      %v656 = vpop.f32.mrf.mxu0
      %v657 = vadd.f32 0.0, %v656
      %v658 = vpop.f32.mrf.mxu0
      %659 = vdwg.mxu0
      %v660 = vadd.f32 %v476, %v630
      %v661 = vadd.f32 %v479, %v633
      %v662 = vadd.f32 %v484, %v638
      %v663 = vadd.f32 %v487, %v641
      %v664 = vadd.f32 %v492, %v646
      %v665 = vadd.f32 %v495, %v649
      %v666 = vadd.f32 %v500, %v654
      %v667 = vadd.f32 %v503, %v657
      %v668 = vld [vmem:[%s2] sm:$0x1]
      %v670 = vlaneseq
      %v671 = vshrl.u32 %v670, 7
      %v672 = vsub.s32 0, %v671
      %v673 = vrot.slane %v668, %v672
      %v675 = vadd.f32 %v660, %v673
      %v676 = vadd.f32 %v661, %v673
      %v677 = vadd.f32 %v662, %v673
      %v678 = vadd.f32 %v663, %v673
      %v679 = vadd.f32 %v664, %v673
      %v680 = vadd.f32 %v665, %v673
      %v681 = vadd.f32 %v666, %v673
      %v682 = vadd.f32 %v667, %v673
      %v683 = vmax.f32 %v675, 0.0
      %v684 = vmax.f32 %v676, 0.0
      %v685 = vmax.f32 %v677, 0.0
      %v686 = vmax.f32 %v678, 0.0
      %v687 = vmax.f32 %v679, 0.0
      %v688 = vmax.f32 %v680, 0.0
      %v689 = vmax.f32 %v681, 0.0
      %v690 = vmax.f32 %v682, 0.0
      %v691 = vld [vmem:[%s212] sm:$0xf]
      %v692 = vld [vmem:[%s212 + $0x4] sm:$0xf]
      %v693 = vld [vmem:[%s212 + $0x8] sm:$0xf]
      %v694 = vld [vmem:[%s212 + $0xc] sm:$0xf]
      %v695 = vld [vmem:[%s212 + $0x10] sm:$0xf]
      %v696 = vld [vmem:[%s212 + $0x14] sm:$0xf]
      %v697 = vld [vmem:[%s212 + $0x18] sm:$0xf]
      %v698 = vld [vmem:[%s212 + $0x1c] sm:$0xf]
      %v699 = vunpack.c.l.bf16 %v691
      %v700 = vunpack.c.l.bf16 %v692
      %v701 = vunpack.c.l.bf16 %v693
      %v702 = vunpack.c.l.bf16 %v694
      %v703 = vunpack.c.l.bf16 %v695
      %v704 = vunpack.c.l.bf16 %v696
      %v705 = vunpack.c.l.bf16 %v697
      %v706 = vunpack.c.l.bf16 %v698
      %v707 = vadd.f32 %v683, %v699
      %v708 = vadd.f32 %v684, %v700
      %v709 = vadd.f32 %v685, %v701
      %v710 = vadd.f32 %v686, %v702
      %v711 = vadd.f32 %v687, %v703
      %v712 = vadd.f32 %v688, %v704
      %v713 = vadd.f32 %v689, %v705
      %v714 = vadd.f32 %v690, %v706
      %v715 = vpack.c.bf16 %v708, %v707
      %v716 = vpack.c.bf16 %v710, %v709
      %v717 = vpack.c.bf16 %v712, %v711
      %v718 = vpack.c.bf16 %v714, %v713
      %v723 = vunpack.c.l.b16 %v715
      %v724 = vunpack.c.h.b16 %v715
      %v725 = vunpack.c.l.b16 %v716
      %v726 = vunpack.c.h.b16 %v716
      %v727 = vunpack.c.l.b16 %v717
      %v728 = vunpack.c.h.b16 %v717
      %v729 = vunpack.c.l.b16 %v718
      %v730 = vunpack.c.h.b16 %v718
      %v731 = vpack.c.b16 %v723, %v723
      %v732 = vpack.c.b16 %v724, %v724
      %v733 = vpack.c.b16 %v725, %v725
      %v734 = vpack.c.b16 %v726, %v726
      %v735 = vpack.c.b16 %v727, %v727
      %v736 = vpack.c.b16 %v728, %v728
      %v737 = vpack.c.b16 %v729, %v729
      %v738 = vpack.c.b16 %v730, %v730
      %vm747 = vcmask 257024
      %748 = vst.msk [vmem:[%s217] sm:$0xf] %vm747, %v731
      %749 = vst.msk [vmem:[%s217 + $0x4] sm:$0xf] %vm747, %v732
      %750 = vst.msk [vmem:[%s217 + $0x8] sm:$0xf] %vm747, %v733
      %751 = vst.msk [vmem:[%s217 + $0xc] sm:$0xf] %vm747, %v734
      %752 = vst.msk [vmem:[%s217 + $0x10] sm:$0xf] %vm747, %v735
      %753 = vst.msk [vmem:[%s217 + $0x14] sm:$0xf] %vm747, %v736
      %754 = vst.msk [vmem:[%s217 + $0x18] sm:$0xf] %vm747, %v737
      %755 = vst.msk [vmem:[%s217 + $0x1c] sm:$0xf] %vm747, %v738
      %p756 = scmp.lt.s32.totalorder %s15, 1
      %s757 = scalar_select %p756, %s15, 1
      %s758 = smul.addr %s757, 8
      %s759 = smul.addr %s758, 4
      %s760 = scalar_lea.vmem %s4, %s759
      // Predicated region
      $region37: #{one_model_forward.23} parent=35 // pred_check
        %p761 = pneg %p127
      $region38: #{one_model_forward.23} parent=35 // pred_check_branch
        %763 = sbr.rel (%p761) target = $region40
      $region39: #{one_model_forward.23} parent=35 // pred_region
        _
      $region40: #{one_model_forward.23} parent=35 // pred_fallthru
        _
    $region36: #{one_model_forward.23} parent=5 // pred_fallthru
      _
    %p764 = scmp.le.s32.totalorder 2, %s10
    // Predicated region
    $region41: #{one_model_forward.23} parent=5 // pred_check
      %p765 = pneg %p764
    $region42: #{one_model_forward.23} parent=5 // pred_check_branch
      %767 = sbr.rel (%p765) target = $region44
    $region43: #{one_model_forward.23} parent=5 // pred_region
      %s768 = ssub.s32 %s10, 2
      // Predicated region
      $region45: #{one_model_forward.23} parent=43 // pred_check
        %p769 = pneg %p133
      $region46: #{one_model_forward.23} parent=43 // pred_check_branch
        %771 = sbr.rel (%p769) target = $region48
      $region47: #{one_model_forward.23} parent=43 // pred_region
        %p772 = scmp.lt.s32.totalorder %s16, 1
        %s773 = scalar_select %p772, %s16, 1
        %s774 = smul.addr %s773, 8
        %s775 = smul.addr %s774, 4
        %s776 = scalar_lea.vmem %s4, %s775
      $region48: #{one_model_forward.23} parent=43 // pred_fallthru
        _
    $region44: #{one_model_forward.23} parent=5 // pred_fallthru
      _
  $region6: #{one_model_forward.23} parent=0 // loop_footer
    %s14 = sadd.s32 1, %s10
  $region7: #{one_model_forward.23} parent=0 // loop_footer_branch
    %9 = sbr.rel target = $region3
  $region8: #{one_model_forward.23} parent=0 // loop_exit
    _

// kernel: one_model_forward.19
$region0: #{one_model_forward.19}
  #allocation0 [shape = 'u32[]', space=smem, size = 0x4, offset = 0x4, fixed_abs, tag = 'smem constant byte address 0x4 - core index']
  #allocation1 [shape = 'u32[144,128]{1,0:T(1,128)}', space=vmem, size = 0x12000, scoped, tag = 'internal scratch']
  %s0 = inlined_call_operand.vmem [shape: bf16[2,64,32], index: 0, kind: input, shape index: {}]
  %s1 = inlined_call_operand.vmem [shape: bf16[32,16], index: 1, kind: input, shape index: {}]
  %s2 = inlined_call_operand.vmem [shape: f32[2,1,16], index: 2, kind: input, shape index: {}]
  %s3 = inlined_call_operand.vmem [shape: f32[2,64,16], index: 3, kind: output, shape index: {}]
  %s4 = sld [smem:[#allocation0]]
  $region45: #{one_model_forward.19} parent=0
    _
  %s6 = ssub.s32 1, %s4
  %s7 = scalar_select 0, %s6, %s4
  loop: start=0, step=1, limit=4
  $region2: #{one_model_forward.19} parent=0 // loop_pre_header
    _
  $region3: #{one_model_forward.19} parent=0 // loop_header
    %s9 = sphi 0, %s13
    %p10 = scmp.ge.s32.totalorder %s9, 4
    %s16 = sphi 0, %s28
    %s17 = sphi 0, %s24
    %s18 = sphi 0, %s16
    %s19 = sphi 0, %s17
    %s20 = sphi 0, %s18
    %s21 = sphi 0, %s19
    %s33 = sphi 0, %s35
    %s36 = sphi 0, %s33
    %s37 = sphi 0, %s36
    %s53 = sphi 0, %s37
    %s57 = sphi 0, %s57
    %s59 = sphi 0, %s57
    %s60 = sphi 0, %s59
    %s74 = sphi 0, %s60
    %s80 = sphi 0, %s82
    %s83 = sphi 0, %s80
    %s84 = sphi 0, %s83
    %s100 = sphi 0, %s84
    %s108 = sphi 0, %s110
    %s111 = sphi 0, %s108
    %s112 = sphi 0, %s111
    %s128 = sphi 0, %s112
  $region4: #{one_model_forward.19} parent=0 // loop_header_branch
    %12 = sbr.rel (%p10) target = $region8
  $region5: #{one_model_forward.19} parent=0 // loop_body
    %s14 = ssub.s32 %s9, 1
    %s15 = ssub.s32 %s9, 2
    %s22 = sadd.s32 1, %s17
    %p23 = scmp.ge.s32.totalorder %s22, 1
    %s24 = scalar_select %p23, 0, %s22
    %s25 = sadd.s32 1, %s16
    %s26 = scalar_select %p23, %s25, %s16
    %p27 = scmp.ge.s32.totalorder %s26, 2
    %s28 = scalar_select %p27, 0, %s26
    %s29 = ssub.s32 %s16, %s28
    %s30 = ssub.s32 %s17, %s24
    %s31 = sor.u32 %s29, %s30
    %p32 = scmp.eq.s32.totalorder %s31, 0
    %s34 = sadd.s32 %s33, 1
    %s35 = scalar_select %p32, %s33, %s34
    %p38 = pneg %p32
    %p39 = scmp.eq.s32.totalorder %s9, 1
    %p40 = por %p38, %p39
    %p41 = scmp.ne.s32.totalorder %s33, %s36
    %p42 = scmp.eq.s32.totalorder %s9, 0
    %p43 = por %p41, %p42
    %p44 = scmp.ne.s32.totalorder %s33, %s36
    %p45 = scmp.eq.s32.totalorder %s14, 1
    %p46 = por %p44, %p45
    %p47 = scmp.ne.s32.totalorder %s36, %s37
    %p48 = scmp.eq.s32.totalorder %s14, 0
    %p49 = por %p47, %p48
    %p50 = scmp.ne.s32.totalorder %s36, %s37
    %p51 = scmp.eq.s32.totalorder %s15, 1
    %p52 = por %p50, %p51
    %p54 = scmp.ne.s32.totalorder %s37, %s53
    %p55 = scmp.eq.s32.totalorder %s15, 0
    %p56 = por %p54, %p55
    %s58 = sadd.s32 %s57, 1
    %p61 = scmp.eq.s32.totalorder %s9, 1
    %p62 = scmp.ne.s32.totalorder %s57, %s59
    %p63 = scmp.eq.s32.totalorder %s9, 0
    %p64 = por %p62, %p63
    %p65 = scmp.ne.s32.totalorder %s57, %s59
    %p66 = scmp.eq.s32.totalorder %s14, 1
    %p67 = por %p65, %p66
    %p68 = scmp.ne.s32.totalorder %s59, %s60
    %p69 = scmp.eq.s32.totalorder %s14, 0
    %p70 = por %p68, %p69
    %p71 = scmp.ne.s32.totalorder %s59, %s60
    %p72 = scmp.eq.s32.totalorder %s15, 1
    %p73 = por %p71, %p72
    %p75 = scmp.ne.s32.totalorder %s60, %s74
    %p76 = scmp.eq.s32.totalorder %s15, 0
    %p77 = por %p75, %p76
    %s78 = ssub.s32 %s16, %s28
    %p79 = scmp.eq.s32.totalorder %s78, 0
    %s81 = sadd.s32 %s80, 1
    %s82 = scalar_select %p79, %s80, %s81
    %p85 = pneg %p79
    %p86 = scmp.eq.s32.totalorder %s9, 1
    %p87 = por %p85, %p86
    %p88 = scmp.ne.s32.totalorder %s80, %s83
    %p89 = scmp.eq.s32.totalorder %s9, 0
    %p90 = por %p88, %p89
    %p91 = scmp.ne.s32.totalorder %s80, %s83
    %p92 = scmp.eq.s32.totalorder %s14, 1
    %p93 = por %p91, %p92
    %p94 = scmp.ne.s32.totalorder %s83, %s84
    %p95 = scmp.eq.s32.totalorder %s14, 0
    %p96 = por %p94, %p95
    %p97 = scmp.ne.s32.totalorder %s83, %s84
    %p98 = scmp.eq.s32.totalorder %s15, 1
    %p99 = por %p97, %p98
    %p101 = scmp.ne.s32.totalorder %s84, %s100
    %p102 = scmp.eq.s32.totalorder %s15, 0
    %p103 = por %p101, %p102
    %s104 = ssub.s32 %s16, %s28
    %s105 = ssub.s32 %s17, %s24
    %s106 = sor.u32 %s104, %s105
    %p107 = scmp.eq.s32.totalorder %s106, 0
    %s109 = sadd.s32 %s108, 1
    %s110 = scalar_select %p107, %s108, %s109
    %p113 = pneg %p107
    %p114 = scmp.eq.s32.totalorder %s9, 1
    %p115 = por %p113, %p114
    %p116 = scmp.ne.s32.totalorder %s108, %s111
    %p117 = scmp.eq.s32.totalorder %s9, 0
    %p118 = por %p116, %p117
    %p119 = scmp.ne.s32.totalorder %s108, %s111
    %p120 = scmp.eq.s32.totalorder %s14, 1
    %p121 = por %p119, %p120
    %p122 = scmp.ne.s32.totalorder %s111, %s112
    %p123 = scmp.eq.s32.totalorder %s14, 0
    %p124 = por %p122, %p123
    %p125 = scmp.ne.s32.totalorder %s111, %s112
    %p126 = scmp.eq.s32.totalorder %s15, 1
    %p127 = por %p125, %p126
    %p129 = scmp.ne.s32.totalorder %s112, %s128
    %p130 = scmp.eq.s32.totalorder %s15, 0
    %p131 = por %p129, %p130
    %p132 = scmp.le.s32.totalorder 1, %s9
    %p133 = scmp.lt.s32.totalorder %s9, 3
    %p134 = pnand %p132, %p133
    %p135 = pneg %p134
    // Predicated region
    $region9: #{one_model_forward.19} parent=5 // pred_check
      _
    $region10: #{one_model_forward.19} parent=5 // pred_check_branch
      %137 = sbr.rel (%p134) target = $region12
    $region11: #{one_model_forward.19} parent=5 // pred_region
      %s138 = ssub.s32 %s9, 1
      // Predicated region
      $region13: #{one_model_forward.19} parent=11 // pred_check
        %p139 = pneg %p70
      $region14: #{one_model_forward.19} parent=11 // pred_check_branch
        %141 = sbr.rel (%p139) target = $region16
      $region15: #{one_model_forward.19} parent=11 // pred_region
        _
      $region16: #{one_model_forward.19} parent=11 // pred_fallthru
        _
    $region12: #{one_model_forward.19} parent=5 // pred_fallthru
      _
    %p142 = scmp.lt.s32.totalorder %s9, 2
    // Predicated region
    $region17: #{one_model_forward.19} parent=5 // pred_check
      %p143 = pneg %p142
    $region18: #{one_model_forward.19} parent=5 // pred_check_branch
      %145 = sbr.rel (%p143) target = $region20
    $region19: #{one_model_forward.19} parent=5 // pred_region
      // Predicated region
      $region21: #{one_model_forward.19} parent=19 // pred_check
        %p146 = pneg %p43
      $region22: #{one_model_forward.19} parent=19 // pred_check_branch
        %148 = sbr.rel (%p146) target = $region24
      $region23: #{one_model_forward.19} parent=19 // pred_region
        %s149 = smul.u32 8, %s17
        %p150 = scmp.lt.s32.totalorder %s16, 1
        %s151 = scalar_select %p150, %s16, 1
        %p152 = scmp.lt.s32.totalorder %s149, 7
        %s153 = scalar_select %p152, %s149, 7
        %s154 = smul.addr %s151, 8
        %s155 = sadd.s32 %s153, %s154
        %s156 = smul.addr %s155, 4
        %s157 = scalar_lea.vmem %s0, %s156
        %s158 = smul.u32 8, %s17
      $region24: #{one_model_forward.19} parent=19 // pred_fallthru
        _
      // Predicated region
      $region25: #{one_model_forward.19} parent=19 // pred_check
        %p159 = pneg %p90
      $region26: #{one_model_forward.19} parent=19 // pred_check_branch
        %161 = sbr.rel (%p159) target = $region28
      $region27: #{one_model_forward.19} parent=19 // pred_region
        %p162 = scmp.lt.s32.totalorder %s16, 1
        %s163 = scalar_select %p162, %s16, 1
        %s164 = scalar_lea.vmem %s2, %s163
      $region28: #{one_model_forward.19} parent=19 // pred_fallthru
        _
    $region20: #{one_model_forward.19} parent=5 // pred_fallthru
      _
    %p165 = scmp.le.s32.totalorder 1, %s9
    %p166 = scmp.lt.s32.totalorder %s9, 3
    %p167 = pnand %p165, %p166
    %p168 = pneg %p167
    // Predicated region
    $region29: #{one_model_forward.19} parent=5 // pred_check
      _
    $region30: #{one_model_forward.19} parent=5 // pred_check_branch
      %170 = sbr.rel (%p167) target = $region32
    $region31: #{one_model_forward.19} parent=5 // pred_region
      %s171 = ssub.s32 %s9, 1
      %s172 = smul.u32 8, %s19
      %p173 = scmp.lt.s32.totalorder %s18, 1
      %s174 = scalar_select %p173, %s18, 1
      %p175 = scmp.lt.s32.totalorder %s172, 7
      %s176 = scalar_select %p175, %s172, 7
      %s177 = smul.addr %s174, 8
      %s178 = sadd.s32 %s176, %s177
      %s179 = smul.addr %s178, 4
      %s180 = scalar_lea.vmem %s0, %s179
      %p181 = pneg %p49
      %p182 = pneg %p46
      %p183 = pneg %p70
      %p184 = pneg %p67
      %p185 = scmp.lt.s32.totalorder %s18, 1
      %s186 = scalar_select %p185, %s18, 1
      %s187 = scalar_lea.vmem %s2, %s186
      %p188 = pneg %p96
      %p189 = pneg %p93
      %p190 = pneg %p124
      %p191 = pneg %p121
      %s192 = smul.u32 8, %s19
      %p193 = scmp.lt.s32.totalorder %s18, 1
      %s194 = scalar_select %p193, %s18, 1
      %p195 = scmp.lt.s32.totalorder %s192, 7
      %s196 = scalar_select %p195, %s192, 7
      %s197 = smul.addr %s194, 8
      %s198 = sadd.s32 %s196, %s197
      %s199 = smul.addr %s198, 8
      %s200 = scalar_lea.vmem %s3, %s199
      %s201 = smul.u32 8, %s19
      %p202 = scmp.lt.s32.totalorder %s18, 1
      %s203 = scalar_select %p202, %s18, 1
      %p204 = scmp.lt.s32.totalorder %s201, 7
      %s205 = scalar_select %p204, %s201, 7
      %s206 = smul.addr %s203, 8
      %s207 = sadd.s32 %s205, %s206
      %s208 = smul.addr %s207, 4
      %s209 = scalar_lea.vmem %s0, %s208
      %s210 = smul.u32 8, %s19
      %p211 = scmp.lt.s32.totalorder %s18, 1
      %s212 = scalar_select %p211, %s18, 1
      %s213 = scalar_lea.vmem %s2, %s212
      %s214 = smul.u32 8, %s19
      %p215 = scmp.lt.s32.totalorder %s18, 1
      %s216 = scalar_select %p215, %s18, 1
      %p217 = scmp.lt.s32.totalorder %s214, 7
      %s218 = scalar_select %p217, %s214, 7
      %s219 = smul.addr %s216, 8
      %s220 = sadd.s32 %s218, %s219
      %s221 = smul.addr %s220, 8
      %s222 = scalar_lea.vmem %s3, %s221
      %s223 = smul.u32 8, %s19
      %v225 = vld [vmem:[%s209] sm:$0xf]
      %v226 = vld [vmem:[%s209 + $0x4] sm:$0xf]
      %v227 = vld [vmem:[%s209 + $0x8] sm:$0xf]
      %v228 = vld [vmem:[%s209 + $0xc] sm:$0xf]
      %v229 = vld [vmem:[%s209 + $0x10] sm:$0xf]
      %v230 = vld [vmem:[%s209 + $0x14] sm:$0xf]
      %v231 = vld [vmem:[%s209 + $0x18] sm:$0xf]
      %v232 = vld [vmem:[%s209 + $0x1c] sm:$0xf]
      %v233 = vld [vmem:[%s1] sm:$0xf]
      %v234 = vld [vmem:[%s1 + $0x4] sm:$0xf]
      %v235 = vld [vmem:[%s1 + $0x8] sm:$0xf]
      %v236 = vld [vmem:[%s1 + $0xc] sm:$0xf]
      %v237 = vld [vmem:[%s213] sm:$0x1]
      %v239 = vlaneseq
      %v240 = vshrl.u32 %v239, 7
      %v241 = vsub.s32 0, %v240
      %v242 = vrot.slane %v237, %v241
      %v252 = vunpack.c.l.b16 %v225
      %v253 = vunpack.c.l.b16 %v226
      %v254 = vunpack.c.l.b16 %v227
      %v255 = vunpack.c.l.b16 %v228
      %v256 = vunpack.c.l.b16 %v229
      %v257 = vunpack.c.l.b16 %v230
      %v258 = vunpack.c.l.b16 %v231
      %v259 = vunpack.c.l.b16 %v232
      %v260 = vpack.c.b16 %v253, %v252
      %v261 = vpack.c.b16 %v255, %v254
      %v262 = vpack.c.b16 %v257, %v256
      %v263 = vpack.c.b16 %v259, %v258
      %v268 = vunpack.c.l.b16 %v233
      %v269 = vunpack.c.l.b16 %v234
      %v270 = vunpack.c.l.b16 %v235
      %v271 = vunpack.c.l.b16 %v236
      %v272 = vpack.c.b16 %v269, %v268
      %v273 = vpack.c.b16 %v271, %v270
      %vm276 = vcmask 261120
      %v278 = vsel %vm276, %v260, 0
      %v281 = vsel %vm276, %v261, 0
      %v284 = vsel %vm276, %v262, 0
      %v287 = vsel %vm276, %v263, 0
      %289 = vmatprep.subr.bf16.mxu0 0
      %290 = vmatpush1.bf16.msra.mxu0 0
      %291 = vmatprep.subr.bf16.mxu0 0
      %292 = vmatpush1.bf16.msra.mxu0 0
      %293 = vmatprep.subr.bf16.mxu0 0
      %294 = vmatpush1.bf16.msra.mxu0 0
      %295 = vmatprep.subr.bf16.mxu0 0
      %296 = vmatpush1.bf16.msra.mxu0 0
      %297 = vmatprep.subr.bf16.mxu0 0
      %298 = vmatpush1.bf16.msra.mxu0 0
      %299 = vmatprep.subr.bf16.mxu0 0
      %300 = vmatpush1.bf16.msra.mxu0 0
      %301 = vmatprep.subr.bf16.mxu0 0
      %302 = vmatpush1.bf16.msra.mxu0 %v273
      %303 = vmatprep.subr.bf16.mxu0 0
      %304 = vmatpush1.bf16.msra.mxu0 %v272
      %305 = vmatprep.subr.bf16.mxu0 0
      %306 = vmatpush2.bf16.msra.mxu0 0
      %307 = vmatprep.subr.bf16.mxu0 0
      %308 = vmatpush2.bf16.msra.mxu0 0
      %309 = vmatprep.subr.bf16.mxu0 0
      %310 = vmatpush2.bf16.msra.mxu0 0
      %311 = vmatprep.subr.bf16.mxu0 0
      %312 = vmatpush2.bf16.msra.mxu0 0
      %313 = vmatprep.subr.bf16.mxu0 0
      %314 = vmatpush2.bf16.msra.mxu0 0
      %315 = vmatprep.subr.bf16.mxu0 0
      %316 = vmatpush2.bf16.msra.mxu0 0
      %317 = vmatprep.subr.bf16.mxu0 0
      %318 = vmatpush2.bf16.msra.mxu0 0
      %319 = vmatprep.subr.bf16.mxu0 0
      %320 = vmatpush2.bf16.msra.mxu0 0
      %321 = vmatprep.mubr.bf16.mxu0 0
      %322 = vmatmul.mubr.bf16.gmra.mxu0 %v278
      %v323 = vpop.f32.mrf.mxu0
      %v324 = vadd.f32 %v242, %v323
      %v325 = vpop.f32.mrf.mxu0
      %v326 = vpop.f32.mrf.mxu0
      %v327 = vadd.f32 %v242, %v326
      %v328 = vpop.f32.mrf.mxu0
      %329 = vmatprep.mubr.bf16.mxu0 0
      %330 = vmatmul.mubr.bf16.gmra.mxu0 %v281
      %v331 = vpop.f32.mrf.mxu0
      %v332 = vadd.f32 %v242, %v331
      %v333 = vpop.f32.mrf.mxu0
      %v334 = vpop.f32.mrf.mxu0
      %v335 = vadd.f32 %v242, %v334
      %v336 = vpop.f32.mrf.mxu0
      %337 = vmatprep.mubr.bf16.mxu0 0
      %338 = vmatmul.mubr.bf16.gmra.mxu0 %v284
      %v339 = vpop.f32.mrf.mxu0
      %v340 = vadd.f32 %v242, %v339
      %v341 = vpop.f32.mrf.mxu0
      %v342 = vpop.f32.mrf.mxu0
      %v343 = vadd.f32 %v242, %v342
      %v344 = vpop.f32.mrf.mxu0
      %345 = vmatprep.mubr.bf16.mxu0 0
      %346 = vmatmul.mubr.bf16.gmra.mxu0 %v287
      %v347 = vpop.f32.mrf.mxu0
      %v348 = vadd.f32 %v242, %v347
      %v349 = vpop.f32.mrf.mxu0
      %v350 = vpop.f32.mrf.mxu0
      %v351 = vadd.f32 %v242, %v350
      %v352 = vpop.f32.mrf.mxu0
      %353 = vdwg.mxu0
      %vm354 = vcmask 130048
      %355 = vst.msk [vmem:[%s222] sm:$0xff] %vm354, %v324
      %356 = vst.msk [vmem:[%s222 + $0x8] sm:$0xff] %vm354, %v327
      %357 = vst.msk [vmem:[%s222 + $0x10] sm:$0xff] %vm354, %v332
      %358 = vst.msk [vmem:[%s222 + $0x18] sm:$0xff] %vm354, %v335
      %359 = vst.msk [vmem:[%s222 + $0x20] sm:$0xff] %vm354, %v340
      %360 = vst.msk [vmem:[%s222 + $0x28] sm:$0xff] %vm354, %v343
      %361 = vst.msk [vmem:[%s222 + $0x30] sm:$0xff] %vm354, %v348
      %362 = vst.msk [vmem:[%s222 + $0x38] sm:$0xff] %vm354, %v351
      %s363 = smul.u32 8, %s19
      %p364 = scmp.lt.s32.totalorder %s18, 1
      %s365 = scalar_select %p364, %s18, 1
      %p366 = scmp.lt.s32.totalorder %s363, 7
      %s367 = scalar_select %p366, %s363, 7
      %s368 = smul.addr %s365, 8
      %s369 = sadd.s32 %s367, %s368
      %s370 = smul.addr %s369, 8
      %s371 = scalar_lea.vmem %s3, %s370
      // Predicated region
      $region33: #{one_model_forward.19} parent=31 // pred_check
        %p372 = pneg %p121
      $region34: #{one_model_forward.19} parent=31 // pred_check_branch
        %374 = sbr.rel (%p372) target = $region36
      $region35: #{one_model_forward.19} parent=31 // pred_region
        %s375 = smul.u32 8, %s19
      $region36: #{one_model_forward.19} parent=31 // pred_fallthru
        _
    $region32: #{one_model_forward.19} parent=5 // pred_fallthru
      _
    %p376 = scmp.le.s32.totalorder 2, %s9
    // Predicated region
    $region37: #{one_model_forward.19} parent=5 // pred_check
      %p377 = pneg %p376
    $region38: #{one_model_forward.19} parent=5 // pred_check_branch
      %379 = sbr.rel (%p377) target = $region40
    $region39: #{one_model_forward.19} parent=5 // pred_region
      %s380 = ssub.s32 %s9, 2
      // Predicated region
      $region41: #{one_model_forward.19} parent=39 // pred_check
        %p381 = pneg %p127
      $region42: #{one_model_forward.19} parent=39 // pred_check_branch
        %383 = sbr.rel (%p381) target = $region44
      $region43: #{one_model_forward.19} parent=39 // pred_region
        %s384 = smul.u32 8, %s21
        %p385 = scmp.lt.s32.totalorder %s20, 1
        %s386 = scalar_select %p385, %s20, 1
        %p387 = scmp.lt.s32.totalorder %s384, 7
        %s388 = scalar_select %p387, %s384, 7
        %s389 = smul.addr %s386, 8
        %s390 = sadd.s32 %s388, %s389
        %s391 = smul.addr %s390, 8
        %s392 = scalar_lea.vmem %s3, %s391
      $region44: #{one_model_forward.19} parent=39 // pred_fallthru
        _
    $region40: #{one_model_forward.19} parent=5 // pred_fallthru
      _
  $region6: #{one_model_forward.19} parent=0 // loop_footer
    %s13 = sadd.s32 1, %s9
  $region7: #{one_model_forward.19} parent=0 // loop_footer_branch
    %8 = sbr.rel target = $region3
  $region8: #{one_model_forward.19} parent=0 // loop_exit
    _

// kernel: one_model_forward.24
$region0: #{one_model_forward.24}
  #allocation0 [shape = 'u32[]', space=smem, size = 0x4, offset = 0x4, fixed_abs, tag = 'smem constant byte address 0x4 - core index']
  #allocation1 [shape = 'u32[144,128]{1,0:T(1,128)}', space=vmem, size = 0x12000, scoped, tag = 'internal scratch']
  %s0 = inlined_call_operand.vmem [shape: bf16[2,80,96], index: 0, kind: input, shape index: {}]
  %s1 = inlined_call_operand.vmem [shape: bf16[3,96,32], index: 1, kind: input, shape index: {}]
  %s2 = inlined_call_operand.vmem [shape: f32[1,32], index: 2, kind: input, shape index: {}]
  %s3 = inlined_call_operand.vmem [shape: bf16[32,2], index: 3, kind: input, shape index: {}]
  %s4 = inlined_call_operand.vmem [shape: f32[1,2], index: 4, kind: input, shape index: {}]
  %s5 = inlined_call_operand.vmem [shape: f32[2,64,2], index: 5, kind: output, shape index: {}]
  %s6 = sld [smem:[#allocation0]]
  $region53: #{one_model_forward.24} parent=0
    _
  %s8 = ssub.s32 1, %s6
  %s9 = scalar_select 0, %s8, %s6
  loop: start=0, step=1, limit=4
  $region2: #{one_model_forward.24} parent=0 // loop_pre_header
    _
  $region3: #{one_model_forward.24} parent=0 // loop_header
    %s11 = sphi 0, %s15
    %p12 = scmp.ge.s32.totalorder %s11, 4
    %s21 = sphi 0, %s23
    %s24 = sphi 0, %s21
    %s25 = sphi 0, %s24
    %s41 = sphi 0, %s25
    %s45 = sphi 0, %s45
    %s47 = sphi 0, %s45
    %s48 = sphi 0, %s47
    %s62 = sphi 0, %s48
    %s66 = sphi 0, %s66
    %s68 = sphi 0, %s66
    %s69 = sphi 0, %s68
    %s83 = sphi 0, %s69
    %s87 = sphi 0, %s87
    %s89 = sphi 0, %s87
    %s90 = sphi 0, %s89
    %s104 = sphi 0, %s90
    %s108 = sphi 0, %s108
    %s110 = sphi 0, %s108
    %s111 = sphi 0, %s110
    %s125 = sphi 0, %s111
    %s131 = sphi 0, %s133
    %s134 = sphi 0, %s131
    %s135 = sphi 0, %s134
    %s151 = sphi 0, %s135
  $region4: #{one_model_forward.24} parent=0 // loop_header_branch
    %14 = sbr.rel (%p12) target = $region8
  $region5: #{one_model_forward.24} parent=0 // loop_body
    %s16 = ssub.s32 %s11, 1
    %s17 = ssub.s32 %s11, 2
    %s18 = sadd.s32 %s11, 1
    %s19 = ssub.s32 %s11, %s18
    %p20 = scmp.eq.s32.totalorder %s19, 0
    %s22 = sadd.s32 %s21, 1
    %s23 = scalar_select %p20, %s21, %s22
    %p26 = pneg %p20
    %p27 = scmp.eq.s32.totalorder %s11, 1
    %p28 = por %p26, %p27
    %p29 = scmp.ne.s32.totalorder %s21, %s24
    %p30 = scmp.eq.s32.totalorder %s11, 0
    %p31 = por %p29, %p30
    %p32 = scmp.ne.s32.totalorder %s21, %s24
    %p33 = scmp.eq.s32.totalorder %s16, 1
    %p34 = por %p32, %p33
    %p35 = scmp.ne.s32.totalorder %s24, %s25
    %p36 = scmp.eq.s32.totalorder %s16, 0
    %p37 = por %p35, %p36
    %p38 = scmp.ne.s32.totalorder %s24, %s25
    %p39 = scmp.eq.s32.totalorder %s17, 1
    %p40 = por %p38, %p39
    %p42 = scmp.ne.s32.totalorder %s25, %s41
    %p43 = scmp.eq.s32.totalorder %s17, 0
    %p44 = por %p42, %p43
    %s46 = sadd.s32 %s45, 1
    %p49 = scmp.eq.s32.totalorder %s11, 1
    %p50 = scmp.ne.s32.totalorder %s45, %s47
    %p51 = scmp.eq.s32.totalorder %s11, 0
    %p52 = por %p50, %p51
    %p53 = scmp.ne.s32.totalorder %s45, %s47
    %p54 = scmp.eq.s32.totalorder %s16, 1
    %p55 = por %p53, %p54
    %p56 = scmp.ne.s32.totalorder %s47, %s48
    %p57 = scmp.eq.s32.totalorder %s16, 0
    %p58 = por %p56, %p57
    %p59 = scmp.ne.s32.totalorder %s47, %s48
    %p60 = scmp.eq.s32.totalorder %s17, 1
    %p61 = por %p59, %p60
    %p63 = scmp.ne.s32.totalorder %s48, %s62
    %p64 = scmp.eq.s32.totalorder %s17, 0
    %p65 = por %p63, %p64
    %s67 = sadd.s32 %s66, 1
    %p70 = scmp.eq.s32.totalorder %s11, 1
    %p71 = scmp.ne.s32.totalorder %s66, %s68
    %p72 = scmp.eq.s32.totalorder %s11, 0
    %p73 = por %p71, %p72
    %p74 = scmp.ne.s32.totalorder %s66, %s68
    %p75 = scmp.eq.s32.totalorder %s16, 1
    %p76 = por %p74, %p75
    %p77 = scmp.ne.s32.totalorder %s68, %s69
    %p78 = scmp.eq.s32.totalorder %s16, 0
    %p79 = por %p77, %p78
    %p80 = scmp.ne.s32.totalorder %s68, %s69
    %p81 = scmp.eq.s32.totalorder %s17, 1
    %p82 = por %p80, %p81
    %p84 = scmp.ne.s32.totalorder %s69, %s83
    %p85 = scmp.eq.s32.totalorder %s17, 0
    %p86 = por %p84, %p85
    %s88 = sadd.s32 %s87, 1
    %p91 = scmp.eq.s32.totalorder %s11, 1
    %p92 = scmp.ne.s32.totalorder %s87, %s89
    %p93 = scmp.eq.s32.totalorder %s11, 0
    %p94 = por %p92, %p93
    %p95 = scmp.ne.s32.totalorder %s87, %s89
    %p96 = scmp.eq.s32.totalorder %s16, 1
    %p97 = por %p95, %p96
    %p98 = scmp.ne.s32.totalorder %s89, %s90
    %p99 = scmp.eq.s32.totalorder %s16, 0
    %p100 = por %p98, %p99
    %p101 = scmp.ne.s32.totalorder %s89, %s90
    %p102 = scmp.eq.s32.totalorder %s17, 1
    %p103 = por %p101, %p102
    %p105 = scmp.ne.s32.totalorder %s90, %s104
    %p106 = scmp.eq.s32.totalorder %s17, 0
    %p107 = por %p105, %p106
    %s109 = sadd.s32 %s108, 1
    %p112 = scmp.eq.s32.totalorder %s11, 1
    %p113 = scmp.ne.s32.totalorder %s108, %s110
    %p114 = scmp.eq.s32.totalorder %s11, 0
    %p115 = por %p113, %p114
    %p116 = scmp.ne.s32.totalorder %s108, %s110
    %p117 = scmp.eq.s32.totalorder %s16, 1
    %p118 = por %p116, %p117
    %p119 = scmp.ne.s32.totalorder %s110, %s111
    %p120 = scmp.eq.s32.totalorder %s16, 0
    %p121 = por %p119, %p120
    %p122 = scmp.ne.s32.totalorder %s110, %s111
    %p123 = scmp.eq.s32.totalorder %s17, 1
    %p124 = por %p122, %p123
    %p126 = scmp.ne.s32.totalorder %s111, %s125
    %p127 = scmp.eq.s32.totalorder %s17, 0
    %p128 = por %p126, %p127
    %s129 = ssub.s32 %s11, %s18
    %p130 = scmp.eq.s32.totalorder %s129, 0
    %s132 = sadd.s32 %s131, 1
    %s133 = scalar_select %p130, %s131, %s132
    %p136 = pneg %p130
    %p137 = scmp.eq.s32.totalorder %s11, 1
    %p138 = por %p136, %p137
    %p139 = scmp.ne.s32.totalorder %s131, %s134
    %p140 = scmp.eq.s32.totalorder %s11, 0
    %p141 = por %p139, %p140
    %p142 = scmp.ne.s32.totalorder %s131, %s134
    %p143 = scmp.eq.s32.totalorder %s16, 1
    %p144 = por %p142, %p143
    %p145 = scmp.ne.s32.totalorder %s134, %s135
    %p146 = scmp.eq.s32.totalorder %s16, 0
    %p147 = por %p145, %p146
    %p148 = scmp.ne.s32.totalorder %s134, %s135
    %p149 = scmp.eq.s32.totalorder %s17, 1
    %p150 = por %p148, %p149
    %p152 = scmp.ne.s32.totalorder %s135, %s151
    %p153 = scmp.eq.s32.totalorder %s17, 0
    %p154 = por %p152, %p153
    %p155 = scmp.le.s32.totalorder 1, %s11
    %p156 = scmp.lt.s32.totalorder %s11, 3
    %p157 = pnand %p155, %p156
    %p158 = pneg %p157
    // Predicated region
    $region9: #{one_model_forward.24} parent=5 // pred_check
      _
    $region10: #{one_model_forward.24} parent=5 // pred_check_branch
      %160 = sbr.rel (%p157) target = $region12
    $region11: #{one_model_forward.24} parent=5 // pred_region
      %s161 = ssub.s32 %s11, 1
      // Predicated region
      $region13: #{one_model_forward.24} parent=11 // pred_check
        %p162 = pneg %p58
      $region14: #{one_model_forward.24} parent=11 // pred_check_branch
        %164 = sbr.rel (%p162) target = $region16
      $region15: #{one_model_forward.24} parent=11 // pred_region
        _
      $region16: #{one_model_forward.24} parent=11 // pred_fallthru
        _
      // Predicated region
      $region17: #{one_model_forward.24} parent=11 // pred_check
        %p165 = pneg %p79
      $region18: #{one_model_forward.24} parent=11 // pred_check_branch
        %167 = sbr.rel (%p165) target = $region20
      $region19: #{one_model_forward.24} parent=11 // pred_region
        _
      $region20: #{one_model_forward.24} parent=11 // pred_fallthru
        _
      // Predicated region
      $region21: #{one_model_forward.24} parent=11 // pred_check
        %p168 = pneg %p100
      $region22: #{one_model_forward.24} parent=11 // pred_check_branch
        %170 = sbr.rel (%p168) target = $region24
      $region23: #{one_model_forward.24} parent=11 // pred_region
        _
      $region24: #{one_model_forward.24} parent=11 // pred_fallthru
        _
      // Predicated region
      $region25: #{one_model_forward.24} parent=11 // pred_check
        %p171 = pneg %p121
      $region26: #{one_model_forward.24} parent=11 // pred_check_branch
        %173 = sbr.rel (%p171) target = $region28
      $region27: #{one_model_forward.24} parent=11 // pred_region
        _
      $region28: #{one_model_forward.24} parent=11 // pred_fallthru
        _
    $region12: #{one_model_forward.24} parent=5 // pred_fallthru
      _
    %p174 = scmp.lt.s32.totalorder %s11, 2
    // Predicated region
    $region29: #{one_model_forward.24} parent=5 // pred_check
      %p175 = pneg %p174
    $region30: #{one_model_forward.24} parent=5 // pred_check_branch
      %177 = sbr.rel (%p175) target = $region32
    $region31: #{one_model_forward.24} parent=5 // pred_region
      // Predicated region
      $region33: #{one_model_forward.24} parent=31 // pred_check
        %p178 = pneg %p31
      $region34: #{one_model_forward.24} parent=31 // pred_check_branch
        %180 = sbr.rel (%p178) target = $region36
      $region35: #{one_model_forward.24} parent=31 // pred_region
        %p181 = scmp.lt.s32.totalorder %s11, 1
        %s182 = scalar_select %p181, %s11, 1
        %s183 = smul.addr %s182, 10
        %s184 = smul.addr %s183, 4
        %s185 = scalar_lea.vmem %s0, %s184
      $region36: #{one_model_forward.24} parent=31 // pred_fallthru
        _
    $region32: #{one_model_forward.24} parent=5 // pred_fallthru
      _
    %p186 = scmp.le.s32.totalorder 1, %s11
    %p187 = scmp.lt.s32.totalorder %s11, 3
    %p188 = pnand %p186, %p187
    %p189 = pneg %p188
    // Predicated region
    $region37: #{one_model_forward.24} parent=5 // pred_check
      _
    $region38: #{one_model_forward.24} parent=5 // pred_check_branch
      %191 = sbr.rel (%p188) target = $region40
    $region39: #{one_model_forward.24} parent=5 // pred_region
      %s192 = ssub.s32 %s11, 1
      %p193 = scmp.lt.s32.totalorder %s16, 1
      %s194 = scalar_select %p193, %s16, 1
      %s195 = smul.addr %s194, 10
      %s196 = smul.addr %s195, 4
      %s197 = scalar_lea.vmem %s0, %s196
      %p198 = pneg %p37
      %p199 = pneg %p34
      %p200 = pneg %p58
      %p201 = pneg %p55
      %p202 = pneg %p79
      %p203 = pneg %p76
      %p204 = pneg %p100
      %p205 = pneg %p97
      %p206 = pneg %p121
      %p207 = pneg %p118
      %p208 = pneg %p147
      %p209 = pneg %p144
      %p210 = scmp.lt.s32.totalorder %s16, 1
      %s211 = scalar_select %p210, %s16, 1
      %s212 = smul.addr %s211, 8
      %s213 = smul.addr %s212, 8
      %s214 = scalar_lea.vmem %s5, %s213
      %p215 = scmp.lt.s32.totalorder %s16, 1
      %s216 = scalar_select %p215, %s16, 1
      %s217 = smul.addr %s216, 10
      %s218 = smul.addr %s217, 4
      %s219 = scalar_lea.vmem %s0, %s218
      %p220 = scmp.lt.s32.totalorder %s16, 1
      %s221 = scalar_select %p220, %s16, 1
      %s222 = smul.addr %s221, 8
      %s223 = smul.addr %s222, 8
      %s224 = scalar_lea.vmem %s5, %s223
      %v226 = vld [vmem:[%s219] sm:$0xf]
      %v227 = vld [vmem:[%s219 + $0x4] sm:$0xf]
      %v228 = vld [vmem:[%s219 + $0x8] sm:$0xf]
      %v229 = vld [vmem:[%s219 + $0xc] sm:$0xf]
      %v230 = vld [vmem:[%s219 + $0x10] sm:$0xf]
      %v231 = vld [vmem:[%s219 + $0x14] sm:$0xf]
      %v232 = vld [vmem:[%s219 + $0x18] sm:$0xf]
      %v233 = vld [vmem:[%s219 + $0x1c] sm:$0xf]
      %v234 = vld [vmem:[%s1] sm:$0xf]
      %v235 = vld [vmem:[%s1 + $0x4] sm:$0xf]
      %v236 = vld [vmem:[%s1 + $0x8] sm:$0xf]
      %v237 = vld [vmem:[%s1 + $0xc] sm:$0xf]
      %v238 = vld [vmem:[%s1 + $0x10] sm:$0xf]
      %v239 = vld [vmem:[%s1 + $0x14] sm:$0xf]
      %v240 = vld [vmem:[%s1 + $0x18] sm:$0xf]
      %v241 = vld [vmem:[%s1 + $0x1c] sm:$0xf]
      %v242 = vld [vmem:[%s1 + $0x20] sm:$0xf]
      %v243 = vld [vmem:[%s1 + $0x24] sm:$0xf]
      %v244 = vld [vmem:[%s1 + $0x28] sm:$0xf]
      %v245 = vld [vmem:[%s1 + $0x2c] sm:$0xf]
      %v246 = vld [vmem:[%s219 + $0x20] sm:$0xf]
      %s247 = scalar_lea.vmem %s1, 48
      %v248 = vld [vmem:[%s247] sm:$0xf]
      %v249 = vld [vmem:[%s247 + $0x4] sm:$0xf]
      %v250 = vld [vmem:[%s247 + $0x8] sm:$0xf]
      %v251 = vld [vmem:[%s247 + $0xc] sm:$0xf]
      %v252 = vld [vmem:[%s247 + $0x10] sm:$0xf]
      %v253 = vld [vmem:[%s247 + $0x14] sm:$0xf]
      %v254 = vld [vmem:[%s247 + $0x18] sm:$0xf]
      %v255 = vld [vmem:[%s247 + $0x1c] sm:$0xf]
      %v256 = vld [vmem:[%s247 + $0x20] sm:$0xf]
      %v257 = vld [vmem:[%s247 + $0x24] sm:$0xf]
      %v258 = vld [vmem:[%s247 + $0x28] sm:$0xf]
      %v259 = vld [vmem:[%s247 + $0x2c] sm:$0xf]
      %v268 = vunpack.c.l.b16 %v227
      %v269 = vunpack.c.l.b16 %v228
      %v270 = vunpack.c.l.b16 %v229
      %v271 = vunpack.c.l.b16 %v230
      %v272 = vunpack.c.l.b16 %v231
      %v273 = vunpack.c.l.b16 %v232
      %v274 = vunpack.c.l.b16 %v233
      %v275 = vunpack.c.l.b16 %v246
      %v276 = vpack.c.b16 %v269, %v268
      %v277 = vpack.c.b16 %v271, %v270
      %v278 = vpack.c.b16 %v273, %v272
      %v279 = vpack.c.b16 %v275, %v274
      %v292 = vunpack.c.l.b16 %v248
      %v293 = vunpack.c.l.b16 %v249
      %v294 = vunpack.c.l.b16 %v250
      %v295 = vunpack.c.l.b16 %v251
      %v296 = vunpack.c.l.b16 %v252
      %v297 = vunpack.c.l.b16 %v253
      %v298 = vunpack.c.l.b16 %v254
      %v299 = vunpack.c.l.b16 %v255
      %v300 = vunpack.c.l.b16 %v256
      %v301 = vunpack.c.l.b16 %v257
      %v302 = vunpack.c.l.b16 %v258
      %v303 = vunpack.c.l.b16 %v259
      %v304 = vpack.c.b16 %v293, %v292
      %v305 = vpack.c.b16 %v295, %v294
      %v306 = vpack.c.b16 %v297, %v296
      %v307 = vpack.c.b16 %v299, %v298
      %v308 = vpack.c.b16 %v301, %v300
      %v309 = vpack.c.b16 %v303, %v302
      %vm316 = vcmask 785408
      %v318 = vsel %vm316, %v276, 0
      %v321 = vsel %vm316, %v277, 0
      %v324 = vsel %vm316, %v278, 0
      %v327 = vsel %vm316, %v279, 0
      %329 = vmatprep.subr.bf16.mxu0 0
      %330 = vmatpush1.bf16.msra.mxu0 0
      %331 = vmatprep.subr.bf16.mxu0 0
      %332 = vmatpush1.bf16.msra.mxu0 0
      %333 = vmatprep.subr.bf16.mxu0 0
      %334 = vmatpush1.bf16.msra.mxu0 %v309
      %335 = vmatprep.subr.bf16.mxu0 0
      %336 = vmatpush1.bf16.msra.mxu0 %v308
      %337 = vmatprep.subr.bf16.mxu0 0
      %338 = vmatpush1.bf16.msra.mxu0 %v307
      %339 = vmatprep.subr.bf16.mxu0 0
      %340 = vmatpush1.bf16.msra.mxu0 %v306
      %341 = vmatprep.subr.bf16.mxu0 0
      %342 = vmatpush1.bf16.msra.mxu0 %v305
      %343 = vmatprep.subr.bf16.mxu0 0
      %344 = vmatpush1.bf16.msra.mxu0 %v304
      %345 = vmatprep.subr.bf16.mxu0 0
      %346 = vmatpush2.bf16.msra.mxu0 0
      %347 = vmatprep.subr.bf16.mxu0 0
      %348 = vmatpush2.bf16.msra.mxu0 0
      %349 = vmatprep.subr.bf16.mxu0 0
      %350 = vmatpush2.bf16.msra.mxu0 0
      %351 = vmatprep.subr.bf16.mxu0 0
      %352 = vmatpush2.bf16.msra.mxu0 0
      %353 = vmatprep.subr.bf16.mxu0 0
      %354 = vmatpush2.bf16.msra.mxu0 0
      %355 = vmatprep.subr.bf16.mxu0 0
      %356 = vmatpush2.bf16.msra.mxu0 0
      %357 = vmatprep.subr.bf16.mxu0 0
      %358 = vmatpush2.bf16.msra.mxu0 0
      %359 = vmatprep.subr.bf16.mxu0 0
      %360 = vmatpush2.bf16.msra.mxu0 0
      %361 = vmatprep.mubr.bf16.mxu0 0
      %362 = vmatmul.mubr.bf16.gmra.mxu0 %v318
      %v363 = vpop.f32.mrf.mxu0
      %v364 = vadd.f32 0.0, %v363
      %v365 = vpop.f32.mrf.mxu0
      %v366 = vpop.f32.mrf.mxu0
      %v367 = vadd.f32 0.0, %v366
      %v368 = vpop.f32.mrf.mxu0
      %369 = vmatprep.mubr.bf16.mxu0 0
      %370 = vmatmul.mubr.bf16.gmra.mxu0 %v321
      %v371 = vpop.f32.mrf.mxu0
      %v372 = vadd.f32 0.0, %v371
      %v373 = vpop.f32.mrf.mxu0
      %v374 = vpop.f32.mrf.mxu0
      %v375 = vadd.f32 0.0, %v374
      %v376 = vpop.f32.mrf.mxu0
      %377 = vmatprep.mubr.bf16.mxu0 0
      %378 = vmatmul.mubr.bf16.gmra.mxu0 %v324
      %v379 = vpop.f32.mrf.mxu0
      %v380 = vadd.f32 0.0, %v379
      %v381 = vpop.f32.mrf.mxu0
      %v382 = vpop.f32.mrf.mxu0
      %v383 = vadd.f32 0.0, %v382
      %v384 = vpop.f32.mrf.mxu0
      %385 = vmatprep.mubr.bf16.mxu0 0
      %386 = vmatmul.mubr.bf16.gmra.mxu0 %v327
      %v387 = vpop.f32.mrf.mxu0
      %v388 = vadd.f32 0.0, %v387
      %v389 = vpop.f32.mrf.mxu0
      %v390 = vpop.f32.mrf.mxu0
      %v391 = vadd.f32 0.0, %v390
      %v392 = vpop.f32.mrf.mxu0
      %393 = vdwg.mxu0
      %v395 = vunpack.c.l.b16 %v226
      %v396 = vpack.c.b16 %v268, %v395
      %v397 = vpack.c.b16 %v270, %v269
      %v398 = vpack.c.b16 %v272, %v271
      %v399 = vpack.c.b16 %v274, %v273
      %v412 = vunpack.c.l.b16 %v234
      %v413 = vunpack.c.l.b16 %v235
      %v414 = vunpack.c.l.b16 %v236
      %v415 = vunpack.c.l.b16 %v237
      %v416 = vunpack.c.l.b16 %v238
      %v417 = vunpack.c.l.b16 %v239
      %v418 = vunpack.c.l.b16 %v240
      %v419 = vunpack.c.l.b16 %v241
      %v420 = vunpack.c.l.b16 %v242
      %v421 = vunpack.c.l.b16 %v243
      %v422 = vunpack.c.l.b16 %v244
      %v423 = vunpack.c.l.b16 %v245
      %v424 = vpack.c.b16 %v413, %v412
      %v425 = vpack.c.b16 %v415, %v414
      %v426 = vpack.c.b16 %v417, %v416
      %v427 = vpack.c.b16 %v419, %v418
      %v428 = vpack.c.b16 %v421, %v420
      %v429 = vpack.c.b16 %v423, %v422
      %v437 = vsel %vm316, %v396, 0
      %v440 = vsel %vm316, %v397, 0
      %v443 = vsel %vm316, %v398, 0
      %v446 = vsel %vm316, %v399, 0
      %448 = vmatprep.subr.bf16.mxu0 0
      %449 = vmatpush1.bf16.msra.mxu0 0
      %450 = vmatprep.subr.bf16.mxu0 0
      %451 = vmatpush1.bf16.msra.mxu0 0
      %452 = vmatprep.subr.bf16.mxu0 0
      %453 = vmatpush1.bf16.msra.mxu0 %v429
      %454 = vmatprep.subr.bf16.mxu0 0
      %455 = vmatpush1.bf16.msra.mxu0 %v428
      %456 = vmatprep.subr.bf16.mxu0 0
      %457 = vmatpush1.bf16.msra.mxu0 %v427
      %458 = vmatprep.subr.bf16.mxu0 0
      %459 = vmatpush1.bf16.msra.mxu0 %v426
      %460 = vmatprep.subr.bf16.mxu0 0
      %461 = vmatpush1.bf16.msra.mxu0 %v425
      %462 = vmatprep.subr.bf16.mxu0 0
      %463 = vmatpush1.bf16.msra.mxu0 %v424
      %464 = vmatprep.subr.bf16.mxu0 0
      %465 = vmatpush2.bf16.msra.mxu0 0
      %466 = vmatprep.subr.bf16.mxu0 0
      %467 = vmatpush2.bf16.msra.mxu0 0
      %468 = vmatprep.subr.bf16.mxu0 0
      %469 = vmatpush2.bf16.msra.mxu0 0
      %470 = vmatprep.subr.bf16.mxu0 0
      %471 = vmatpush2.bf16.msra.mxu0 0
      %472 = vmatprep.subr.bf16.mxu0 0
      %473 = vmatpush2.bf16.msra.mxu0 0
      %474 = vmatprep.subr.bf16.mxu0 0
      %475 = vmatpush2.bf16.msra.mxu0 0
      %476 = vmatprep.subr.bf16.mxu0 0
      %477 = vmatpush2.bf16.msra.mxu0 0
      %478 = vmatprep.subr.bf16.mxu0 0
      %479 = vmatpush2.bf16.msra.mxu0 0
      %480 = vmatprep.mubr.bf16.mxu0 0
      %481 = vmatmul.mubr.bf16.gmra.mxu0 %v437
      %v482 = vpop.f32.mrf.mxu0
      %v483 = vadd.f32 %v364, %v482
      %v484 = vpop.f32.mrf.mxu0
      %v485 = vpop.f32.mrf.mxu0
      %v486 = vadd.f32 %v367, %v485
      %v487 = vpop.f32.mrf.mxu0
      %488 = vmatprep.mubr.bf16.mxu0 0
      %489 = vmatmul.mubr.bf16.gmra.mxu0 %v440
      %v490 = vpop.f32.mrf.mxu0
      %v491 = vadd.f32 %v372, %v490
      %v492 = vpop.f32.mrf.mxu0
      %v493 = vpop.f32.mrf.mxu0
      %v494 = vadd.f32 %v375, %v493
      %v495 = vpop.f32.mrf.mxu0
      %496 = vmatprep.mubr.bf16.mxu0 0
      %497 = vmatmul.mubr.bf16.gmra.mxu0 %v443
      %v498 = vpop.f32.mrf.mxu0
      %v499 = vadd.f32 %v380, %v498
      %v500 = vpop.f32.mrf.mxu0
      %v501 = vpop.f32.mrf.mxu0
      %v502 = vadd.f32 %v383, %v501
      %v503 = vpop.f32.mrf.mxu0
      %504 = vmatprep.mubr.bf16.mxu0 0
      %505 = vmatmul.mubr.bf16.gmra.mxu0 %v446
      %v506 = vpop.f32.mrf.mxu0
      %v507 = vadd.f32 %v388, %v506
      %v508 = vpop.f32.mrf.mxu0
      %v509 = vpop.f32.mrf.mxu0
      %v510 = vadd.f32 %v391, %v509
      %v511 = vpop.f32.mrf.mxu0
      %512 = vdwg.mxu0
      %v513 = vld [vmem:[%s219 + $0x8] sm:$0xf]
      %v514 = vld [vmem:[%s219 + $0xc] sm:$0xf]
      %v515 = vld [vmem:[%s219 + $0x10] sm:$0xf]
      %v516 = vld [vmem:[%s219 + $0x14] sm:$0xf]
      %v517 = vld [vmem:[%s219 + $0x18] sm:$0xf]
      %v518 = vld [vmem:[%s219 + $0x1c] sm:$0xf]
      %v519 = vld [vmem:[%s219 + $0x20] sm:$0xf]
      %v520 = vld [vmem:[%s219 + $0x24] sm:$0xf]
      %s521 = scalar_lea.vmem %s1, 96
      %v522 = vld [vmem:[%s521] sm:$0xf]
      %v523 = vld [vmem:[%s521 + $0x4] sm:$0xf]
      %v524 = vld [vmem:[%s521 + $0x8] sm:$0xf]
      %v525 = vld [vmem:[%s521 + $0xc] sm:$0xf]
      %v526 = vld [vmem:[%s521 + $0x10] sm:$0xf]
      %v527 = vld [vmem:[%s521 + $0x14] sm:$0xf]
      %v528 = vld [vmem:[%s521 + $0x18] sm:$0xf]
      %v529 = vld [vmem:[%s521 + $0x1c] sm:$0xf]
      %v530 = vld [vmem:[%s521 + $0x20] sm:$0xf]
      %v531 = vld [vmem:[%s521 + $0x24] sm:$0xf]
      %v532 = vld [vmem:[%s521 + $0x28] sm:$0xf]
      %v533 = vld [vmem:[%s521 + $0x2c] sm:$0xf]
      %v542 = vunpack.c.l.b16 %v513
      %v543 = vunpack.c.l.b16 %v514
      %v544 = vunpack.c.l.b16 %v515
      %v545 = vunpack.c.l.b16 %v516
      %v546 = vunpack.c.l.b16 %v517
      %v547 = vunpack.c.l.b16 %v518
      %v548 = vunpack.c.l.b16 %v519
      %v549 = vunpack.c.l.b16 %v520
      %v550 = vpack.c.b16 %v543, %v542
      %v551 = vpack.c.b16 %v545, %v544
      %v552 = vpack.c.b16 %v547, %v546
      %v553 = vpack.c.b16 %v549, %v548
      %v566 = vunpack.c.l.b16 %v522
      %v567 = vunpack.c.l.b16 %v523
      %v568 = vunpack.c.l.b16 %v524
      %v569 = vunpack.c.l.b16 %v525
      %v570 = vunpack.c.l.b16 %v526
      %v571 = vunpack.c.l.b16 %v527
      %v572 = vunpack.c.l.b16 %v528
      %v573 = vunpack.c.l.b16 %v529
      %v574 = vunpack.c.l.b16 %v530
      %v575 = vunpack.c.l.b16 %v531
      %v576 = vunpack.c.l.b16 %v532
      %v577 = vunpack.c.l.b16 %v533
      %v578 = vpack.c.b16 %v567, %v566
      %v579 = vpack.c.b16 %v569, %v568
      %v580 = vpack.c.b16 %v571, %v570
      %v581 = vpack.c.b16 %v573, %v572
      %v582 = vpack.c.b16 %v575, %v574
      %v583 = vpack.c.b16 %v577, %v576
      %v591 = vsel %vm316, %v550, 0
      %v594 = vsel %vm316, %v551, 0
      %v597 = vsel %vm316, %v552, 0
      %v600 = vsel %vm316, %v553, 0
      %602 = vmatprep.subr.bf16.mxu0 0
      %603 = vmatpush1.bf16.msra.mxu0 0
      %604 = vmatprep.subr.bf16.mxu0 0
      %605 = vmatpush1.bf16.msra.mxu0 0
      %606 = vmatprep.subr.bf16.mxu0 0
      %607 = vmatpush1.bf16.msra.mxu0 %v583
      %608 = vmatprep.subr.bf16.mxu0 0
      %609 = vmatpush1.bf16.msra.mxu0 %v582
      %610 = vmatprep.subr.bf16.mxu0 0
      %611 = vmatpush1.bf16.msra.mxu0 %v581
      %612 = vmatprep.subr.bf16.mxu0 0
      %613 = vmatpush1.bf16.msra.mxu0 %v580
      %614 = vmatprep.subr.bf16.mxu0 0
      %615 = vmatpush1.bf16.msra.mxu0 %v579
      %616 = vmatprep.subr.bf16.mxu0 0
      %617 = vmatpush1.bf16.msra.mxu0 %v578
      %618 = vmatprep.subr.bf16.mxu0 0
      %619 = vmatpush2.bf16.msra.mxu0 0
      %620 = vmatprep.subr.bf16.mxu0 0
      %621 = vmatpush2.bf16.msra.mxu0 0
      %622 = vmatprep.subr.bf16.mxu0 0
      %623 = vmatpush2.bf16.msra.mxu0 0
      %624 = vmatprep.subr.bf16.mxu0 0
      %625 = vmatpush2.bf16.msra.mxu0 0
      %626 = vmatprep.subr.bf16.mxu0 0
      %627 = vmatpush2.bf16.msra.mxu0 0
      %628 = vmatprep.subr.bf16.mxu0 0
      %629 = vmatpush2.bf16.msra.mxu0 0
      %630 = vmatprep.subr.bf16.mxu0 0
      %631 = vmatpush2.bf16.msra.mxu0 0
      %632 = vmatprep.subr.bf16.mxu0 0
      %633 = vmatpush2.bf16.msra.mxu0 0
      %634 = vmatprep.mubr.bf16.mxu0 0
      %635 = vmatmul.mubr.bf16.gmra.mxu0 %v591
      %v636 = vpop.f32.mrf.mxu0
      %v637 = vadd.f32 0.0, %v636
      %v638 = vpop.f32.mrf.mxu0
      %v639 = vpop.f32.mrf.mxu0
      %v640 = vadd.f32 0.0, %v639
      %v641 = vpop.f32.mrf.mxu0
      %642 = vmatprep.mubr.bf16.mxu0 0
      %643 = vmatmul.mubr.bf16.gmra.mxu0 %v594
      %v644 = vpop.f32.mrf.mxu0
      %v645 = vadd.f32 0.0, %v644
      %v646 = vpop.f32.mrf.mxu0
      %v647 = vpop.f32.mrf.mxu0
      %v648 = vadd.f32 0.0, %v647
      %v649 = vpop.f32.mrf.mxu0
      %650 = vmatprep.mubr.bf16.mxu0 0
      %651 = vmatmul.mubr.bf16.gmra.mxu0 %v597
      %v652 = vpop.f32.mrf.mxu0
      %v653 = vadd.f32 0.0, %v652
      %v654 = vpop.f32.mrf.mxu0
      %v655 = vpop.f32.mrf.mxu0
      %v656 = vadd.f32 0.0, %v655
      %v657 = vpop.f32.mrf.mxu0
      %658 = vmatprep.mubr.bf16.mxu0 0
      %659 = vmatmul.mubr.bf16.gmra.mxu0 %v600
      %v660 = vpop.f32.mrf.mxu0
      %v661 = vadd.f32 0.0, %v660
      %v662 = vpop.f32.mrf.mxu0
      %v663 = vpop.f32.mrf.mxu0
      %v664 = vadd.f32 0.0, %v663
      %v665 = vpop.f32.mrf.mxu0
      %666 = vdwg.mxu0
      %v667 = vadd.f32 %v483, %v637
      %v668 = vadd.f32 %v486, %v640
      %v669 = vadd.f32 %v491, %v645
      %v670 = vadd.f32 %v494, %v648
      %v671 = vadd.f32 %v499, %v653
      %v672 = vadd.f32 %v502, %v656
      %v673 = vadd.f32 %v507, %v661
      %v674 = vadd.f32 %v510, %v664
      %v675 = vld [vmem:[%s2] sm:$0x1]
      %v677 = vlaneseq
      %v678 = vshrl.u32 %v677, 7
      %v679 = vsub.s32 0, %v678
      %v680 = vrot.slane %v675, %v679
      %v682 = vadd.f32 %v667, %v680
      %v683 = vadd.f32 %v668, %v680
      %v684 = vadd.f32 %v669, %v680
      %v685 = vadd.f32 %v670, %v680
      %v686 = vadd.f32 %v671, %v680
      %v687 = vadd.f32 %v672, %v680
      %v688 = vadd.f32 %v673, %v680
      %v689 = vadd.f32 %v674, %v680
      %v690 = vmax.f32 %v682, 0.0
      %v691 = vmax.f32 %v683, 0.0
      %v692 = vmax.f32 %v684, 0.0
      %v693 = vmax.f32 %v685, 0.0
      %v694 = vmax.f32 %v686, 0.0
      %v695 = vmax.f32 %v687, 0.0
      %v696 = vmax.f32 %v688, 0.0
      %v697 = vmax.f32 %v689, 0.0
      %v698 = vpack.c.bf16 %v691, %v690
      %v699 = vpack.c.bf16 %v693, %v692
      %v700 = vpack.c.bf16 %v695, %v694
      %v701 = vpack.c.bf16 %v697, %v696
      %v702 = vld [vmem:[%s3] sm:$0xf]
      %v703 = vld [vmem:[%s3 + $0x4] sm:$0xf]
      %v704 = vld [vmem:[%s3 + $0x8] sm:$0xf]
      %v705 = vld [vmem:[%s3 + $0xc] sm:$0xf]
      %v706 = vld [vmem:[%s4] sm:$0x1]
      %v708 = vlaneseq
      %v709 = vshrl.u32 %v708, 7
      %v710 = vsub.s32 0, %v709
      %v711 = vrot.slane %v706, %v710
      %v717 = vunpack.c.l.b16 %v702
      %v718 = vunpack.c.l.b16 %v703
      %v719 = vunpack.c.l.b16 %v704
      %v720 = vunpack.c.l.b16 %v705
      %v721 = vpack.c.b16 %v718, %v717
      %v722 = vpack.c.b16 %v720, %v719
      %vm725 = vcmask 261120
      %v727 = vsel %vm725, %v698, 0
      %v730 = vsel %vm725, %v699, 0
      %v733 = vsel %vm725, %v700, 0
      %v736 = vsel %vm725, %v701, 0
      %738 = vmatprep.subr.bf16.mxu0 0
      %739 = vmatpush1.bf16.msra.mxu0 0
      %740 = vmatprep.subr.bf16.mxu0 0
      %741 = vmatpush1.bf16.msra.mxu0 0
      %742 = vmatprep.subr.bf16.mxu0 0
      %743 = vmatpush1.bf16.msra.mxu0 0
      %744 = vmatprep.subr.bf16.mxu0 0
      %745 = vmatpush1.bf16.msra.mxu0 0
      %746 = vmatprep.subr.bf16.mxu0 0
      %747 = vmatpush1.bf16.msra.mxu0 0
      %748 = vmatprep.subr.bf16.mxu0 0
      %749 = vmatpush1.bf16.msra.mxu0 0
      %750 = vmatprep.subr.bf16.mxu0 0
      %751 = vmatpush1.bf16.msra.mxu0 %v722
      %752 = vmatprep.subr.bf16.mxu0 0
      %753 = vmatpush1.bf16.msra.mxu0 %v721
      %754 = vmatprep.subr.bf16.mxu0 0
      %755 = vmatpush2.bf16.msra.mxu0 0
      %756 = vmatprep.subr.bf16.mxu0 0
      %757 = vmatpush2.bf16.msra.mxu0 0
      %758 = vmatprep.subr.bf16.mxu0 0
      %759 = vmatpush2.bf16.msra.mxu0 0
      %760 = vmatprep.subr.bf16.mxu0 0
      %761 = vmatpush2.bf16.msra.mxu0 0
      %762 = vmatprep.subr.bf16.mxu0 0
      %763 = vmatpush2.bf16.msra.mxu0 0
      %764 = vmatprep.subr.bf16.mxu0 0
      %765 = vmatpush2.bf16.msra.mxu0 0
      %766 = vmatprep.subr.bf16.mxu0 0
      %767 = vmatpush2.bf16.msra.mxu0 0
      %768 = vmatprep.subr.bf16.mxu0 0
      %769 = vmatpush2.bf16.msra.mxu0 0
      %770 = vmatprep.mubr.bf16.mxu0 0
      %771 = vmatmul.mubr.bf16.gmra.mxu0 %v727
      %v772 = vpop.f32.mrf.mxu0
      %v773 = vadd.f32 %v711, %v772
      %v774 = vpop.f32.mrf.mxu0
      %v775 = vpop.f32.mrf.mxu0
      %v776 = vadd.f32 %v711, %v775
      %v777 = vpop.f32.mrf.mxu0
      %778 = vmatprep.mubr.bf16.mxu0 0
      %779 = vmatmul.mubr.bf16.gmra.mxu0 %v730
      %v780 = vpop.f32.mrf.mxu0
      %v781 = vadd.f32 %v711, %v780
      %v782 = vpop.f32.mrf.mxu0
      %v783 = vpop.f32.mrf.mxu0
      %v784 = vadd.f32 %v711, %v783
      %v785 = vpop.f32.mrf.mxu0
      %786 = vmatprep.mubr.bf16.mxu0 0
      %787 = vmatmul.mubr.bf16.gmra.mxu0 %v733
      %v788 = vpop.f32.mrf.mxu0
      %v789 = vadd.f32 %v711, %v788
      %v790 = vpop.f32.mrf.mxu0
      %v791 = vpop.f32.mrf.mxu0
      %v792 = vadd.f32 %v711, %v791
      %v793 = vpop.f32.mrf.mxu0
      %794 = vmatprep.mubr.bf16.mxu0 0
      %795 = vmatmul.mubr.bf16.gmra.mxu0 %v736
      %v796 = vpop.f32.mrf.mxu0
      %v797 = vadd.f32 %v711, %v796
      %v798 = vpop.f32.mrf.mxu0
      %v799 = vpop.f32.mrf.mxu0
      %v800 = vadd.f32 %v711, %v799
      %v801 = vpop.f32.mrf.mxu0
      %802 = vdwg.mxu0
      %vm803 = vcmask 15360
      %804 = vst.msk [vmem:[%s224] sm:$0xff] %vm803, %v773
      %805 = vst.msk [vmem:[%s224 + $0x8] sm:$0xff] %vm803, %v776
      %806 = vst.msk [vmem:[%s224 + $0x10] sm:$0xff] %vm803, %v781
      %807 = vst.msk [vmem:[%s224 + $0x18] sm:$0xff] %vm803, %v784
      %808 = vst.msk [vmem:[%s224 + $0x20] sm:$0xff] %vm803, %v789
      %809 = vst.msk [vmem:[%s224 + $0x28] sm:$0xff] %vm803, %v792
      %810 = vst.msk [vmem:[%s224 + $0x30] sm:$0xff] %vm803, %v797
      %811 = vst.msk [vmem:[%s224 + $0x38] sm:$0xff] %vm803, %v800
      %p812 = scmp.lt.s32.totalorder %s16, 1
      %s813 = scalar_select %p812, %s16, 1
      %s814 = smul.addr %s813, 8
      %s815 = smul.addr %s814, 8
      %s816 = scalar_lea.vmem %s5, %s815
      // Predicated region
      $region41: #{one_model_forward.24} parent=39 // pred_check
        %p817 = pneg %p144
      $region42: #{one_model_forward.24} parent=39 // pred_check_branch
        %819 = sbr.rel (%p817) target = $region44
      $region43: #{one_model_forward.24} parent=39 // pred_region
        _
      $region44: #{one_model_forward.24} parent=39 // pred_fallthru
        _
    $region40: #{one_model_forward.24} parent=5 // pred_fallthru
      _
    %p820 = scmp.le.s32.totalorder 2, %s11
    // Predicated region
    $region45: #{one_model_forward.24} parent=5 // pred_check
      %p821 = pneg %p820
    $region46: #{one_model_forward.24} parent=5 // pred_check_branch
      %823 = sbr.rel (%p821) target = $region48
    $region47: #{one_model_forward.24} parent=5 // pred_region
      %s824 = ssub.s32 %s11, 2
      // Predicated region
      $region49: #{one_model_forward.24} parent=47 // pred_check
        %p825 = pneg %p150
      $region50: #{one_model_forward.24} parent=47 // pred_check_branch
        %827 = sbr.rel (%p825) target = $region52
      $region51: #{one_model_forward.24} parent=47 // pred_region
        %p828 = scmp.lt.s32.totalorder %s17, 1
        %s829 = scalar_select %p828, %s17, 1
        %s830 = smul.addr %s829, 8
        %s831 = smul.addr %s830, 8
        %s832 = scalar_lea.vmem %s5, %s831
      $region52: #{one_model_forward.24} parent=47 // pred_fallthru
        _
    $region48: #{one_model_forward.24} parent=5 // pred_fallthru
      _
  $region6: #{one_model_forward.24} parent=0 // loop_footer
    %s15 = sadd.s32 1, %s11
  $region7: #{one_model_forward.24} parent=0 // loop_footer_branch
    %10 = sbr.rel target = $region3
  $region8: #{one_model_forward.24} parent=0 // loop_exit
    _

// kernel: squeeze.25
$region0: #{squeeze.25}
  %s0 = inlined_call_operand.vmem [shape: s32[2,64], index: 0, kind: input, shape index: {}]
  %s1 = inlined_call_operand.hbm [shape: s32[2,8,8], index: 1, kind: output, shape index: {}]
  $region1: #{squeeze.25} parent=0
    #allocation0 [shape = 'u8[8192]{0}', space=vmem, size = 0x2000, scoped, tag = 'operand span for operand 1']
    #allocation1 [shape = 's32[1]{0}', space=sflag, size = 0x4, scoped, tag = 'scoped memory for squeeze.25']
    #allocation2 [shape = 'u8[4096]{0}', space=vmem, size = 0x1000, scoped, tag = 'scoped mem for input reshape']
    %2 = vsyncpa [#allocation1], 0
    %s4 = sshll.u32 1, 2
    %s5 = ssub.s32 %s4, 1
    %v6 = vld [vmem:[%s0] sm:%s5]
    %7 = vst [vmem:[#allocation2] sm:%s5] %v6
    %v8 = vld [vmem:[#allocation2] sm:$0x3]
    %vm9 = vcmask 64512
    %10 = vst.msk [vmem:[#allocation0] ss:$8 sm:$0x3] %vm9, %v8
    %v11 = vld [vmem:[#allocation2] sm:$0x3]
    %12 = vrot.lane.b32.xlu0 %v11, 120
    %v13 = vpop.permute.xlu0 %12
    %vm14 = vcmask 64512
    %s15 = scalar_lea.vmem [#allocation0], 1
    %16 = vst.msk [vmem:[%s15] ss:$8 sm:$0x3] %vm14, %v13
    %v17 = vld [vmem:[#allocation2] sm:$0x3]
    %18 = vrot.lane.b32.xlu0 %v17, 112
    %v19 = vpop.permute.xlu0 %18
    %vm20 = vcmask 64512
    %s21 = scalar_lea.vmem [#allocation0], 2
    %22 = vst.msk [vmem:[%s21] ss:$8 sm:$0x3] %vm20, %v19
    %v23 = vld [vmem:[#allocation2] sm:$0x3]
    %24 = vrot.lane.b32.xlu0 %v23, 104
    %v25 = vpop.permute.xlu0 %24
    %vm26 = vcmask 64512
    %s27 = scalar_lea.vmem [#allocation0], 3
    %28 = vst.msk [vmem:[%s27] ss:$8 sm:$0x3] %vm26, %v25
    %v29 = vld [vmem:[#allocation2] sm:$0x3]
    %30 = vrot.lane.b32.xlu0 %v29, 96
    %v31 = vpop.permute.xlu0 %30
    %vm32 = vcmask 64512
    %s33 = scalar_lea.vmem [#allocation0], 4
    %34 = vst.msk [vmem:[%s33] ss:$8 sm:$0x3] %vm32, %v31
    %v35 = vld [vmem:[#allocation2] sm:$0x3]
    %36 = vrot.lane.b32.xlu0 %v35, 88
    %v37 = vpop.permute.xlu0 %36
    %vm38 = vcmask 64512
    %s39 = scalar_lea.vmem [#allocation0], 5
    %40 = vst.msk [vmem:[%s39] ss:$8 sm:$0x3] %vm38, %v37
    %v41 = vld [vmem:[#allocation2] sm:$0x3]
    %42 = vrot.lane.b32.xlu0 %v41, 80
    %v43 = vpop.permute.xlu0 %42
    %vm44 = vcmask 64512
    %s45 = scalar_lea.vmem [#allocation0], 6
    %46 = vst.msk [vmem:[%s45] ss:$8 sm:$0x3] %vm44, %v43
    %v47 = vld [vmem:[#allocation2] sm:$0x3]
    %48 = vrot.lane.b32.xlu0 %v47, 72
    %v49 = vpop.permute.xlu0 %48
    %vm50 = vcmask 64512
    %s51 = scalar_lea.vmem [#allocation0], 7
    %52 = vst.msk [vmem:[%s51] ss:$8 sm:$0x3] %vm50, %v49
    %s54 = ssub.s32 256, 256
    %55 = vsyncadd [#allocation1], %s54
    %s57 = sshll.u32 [#allocation0], 4
    %s58 = int_to_ptr.vmem [resolvable:$true] %s57
    %60 = dma.vmem_to_hbm [thread:$0]  %s58, 256, %s1, [#allocation1]
    %61 = dma.done [#allocation1], 256
    %62 = vsyncpa [#allocation1], 1

// kernel: one_model_forward.16
$region0: #{one_model_forward.16}
  #allocation0 [shape = 'u32[]', space=smem, size = 0x4, offset = 0x4, fixed_abs, tag = 'smem constant byte address 0x4 - core index']
  #allocation1 [shape = 'u32[144,128]{1,0:T(1,128)}', space=vmem, size = 0x12000, scoped, tag = 'internal scratch']
  #allocation2 [shape = 'f32[16,16]{1,0:T(8,128)}', space=vmem, size = 0x2000, scoped, tag = 'scratch operand']
  #allocation3 [shape = 'f32[16,16]{1,0:T(8,128)}', space=vmem, size = 0x2000, scoped, tag = 'scratch operand']
  %s0 = inlined_call_operand.vmem [shape: f32[2,64,16], index: 0, kind: input, shape index: {}]
  %s1 = inlined_call_operand.vmem [shape: f32[2,64,16], index: 1, kind: input, shape index: {}]
  %s2 = inlined_call_operand.vmem [shape: f32[2,1,1], index: 2, kind: output, shape index: {}]
  %s3 = sld [smem:[#allocation0]]
  $region49: #{one_model_forward.16} parent=0
    _
  %s5 = ssub.s32 1, %s3
  %s6 = scalar_select 0, %s5, %s3
  loop: start=0, step=1, limit=4
  $region2: #{one_model_forward.16} parent=0 // loop_pre_header
    _
  $region3: #{one_model_forward.16} parent=0 // loop_header
    %s8 = sphi 0, %s12
    %p9 = scmp.ge.s32.totalorder %s8, 4
    %s15 = sphi 0, %s27
    %s16 = sphi 0, %s23
    %s17 = sphi 0, %s15
    %s18 = sphi 0, %s16
    %s19 = sphi 0, %s17
    %s20 = sphi 0, %s18
    %s32 = sphi 0, %s34
    %s35 = sphi 0, %s32
    %s36 = sphi 0, %s35
    %s52 = sphi 0, %s36
    %s60 = sphi 0, %s62
    %s63 = sphi 0, %s60
    %s64 = sphi 0, %s63
    %s80 = sphi 0, %s64
    %s86 = sphi 0, %s88
    %s89 = sphi 0, %s86
    %s90 = sphi 0, %s89
    %s106 = sphi 0, %s90
  $region4: #{one_model_forward.16} parent=0 // loop_header_branch
    %11 = sbr.rel (%p9) target = $region8
  $region5: #{one_model_forward.16} parent=0 // loop_body
    %s13 = ssub.s32 %s8, 1
    %s14 = ssub.s32 %s8, 2
    %s21 = sadd.s32 1, %s16
    %p22 = scmp.ge.s32.totalorder %s21, 1
    %s23 = scalar_select %p22, 0, %s21
    %s24 = sadd.s32 1, %s15
    %s25 = scalar_select %p22, %s24, %s15
    %p26 = scmp.ge.s32.totalorder %s25, 2
    %s27 = scalar_select %p26, 0, %s25
    %s28 = ssub.s32 %s15, %s27
    %s29 = ssub.s32 %s16, %s23
    %s30 = sor.u32 %s28, %s29
    %p31 = scmp.eq.s32.totalorder %s30, 0
    %s33 = sadd.s32 %s32, 1
    %s34 = scalar_select %p31, %s32, %s33
    %p37 = pneg %p31
    %p38 = scmp.eq.s32.totalorder %s8, 1
    %p39 = por %p37, %p38
    %p40 = scmp.ne.s32.totalorder %s32, %s35
    %p41 = scmp.eq.s32.totalorder %s8, 0
    %p42 = por %p40, %p41
    %p43 = scmp.ne.s32.totalorder %s32, %s35
    %p44 = scmp.eq.s32.totalorder %s13, 1
    %p45 = por %p43, %p44
    %p46 = scmp.ne.s32.totalorder %s35, %s36
    %p47 = scmp.eq.s32.totalorder %s13, 0
    %p48 = por %p46, %p47
    %p49 = scmp.ne.s32.totalorder %s35, %s36
    %p50 = scmp.eq.s32.totalorder %s14, 1
    %p51 = por %p49, %p50
    %p53 = scmp.ne.s32.totalorder %s36, %s52
    %p54 = scmp.eq.s32.totalorder %s14, 0
    %p55 = por %p53, %p54
    %s56 = ssub.s32 %s15, %s27
    %s57 = ssub.s32 %s16, %s23
    %s58 = sor.u32 %s56, %s57
    %p59 = scmp.eq.s32.totalorder %s58, 0
    %s61 = sadd.s32 %s60, 1
    %s62 = scalar_select %p59, %s60, %s61
    %p65 = pneg %p59
    %p66 = scmp.eq.s32.totalorder %s8, 1
    %p67 = por %p65, %p66
    %p68 = scmp.ne.s32.totalorder %s60, %s63
    %p69 = scmp.eq.s32.totalorder %s8, 0
    %p70 = por %p68, %p69
    %p71 = scmp.ne.s32.totalorder %s60, %s63
    %p72 = scmp.eq.s32.totalorder %s13, 1
    %p73 = por %p71, %p72
    %p74 = scmp.ne.s32.totalorder %s63, %s64
    %p75 = scmp.eq.s32.totalorder %s13, 0
    %p76 = por %p74, %p75
    %p77 = scmp.ne.s32.totalorder %s63, %s64
    %p78 = scmp.eq.s32.totalorder %s14, 1
    %p79 = por %p77, %p78
    %p81 = scmp.ne.s32.totalorder %s64, %s80
    %p82 = scmp.eq.s32.totalorder %s14, 0
    %p83 = por %p81, %p82
    %s84 = ssub.s32 %s15, %s27
    %p85 = scmp.eq.s32.totalorder %s84, 0
    %s87 = sadd.s32 %s86, 1
    %s88 = scalar_select %p85, %s86, %s87
    %p91 = pneg %p85
    %p92 = scmp.eq.s32.totalorder %s8, 1
    %p93 = por %p91, %p92
    %p94 = scmp.ne.s32.totalorder %s86, %s89
    %p95 = scmp.eq.s32.totalorder %s8, 0
    %p96 = por %p94, %p95
    %p97 = scmp.ne.s32.totalorder %s86, %s89
    %p98 = scmp.eq.s32.totalorder %s13, 1
    %p99 = por %p97, %p98
    %p100 = scmp.ne.s32.totalorder %s89, %s90
    %p101 = scmp.eq.s32.totalorder %s13, 0
    %p102 = por %p100, %p101
    %p103 = scmp.ne.s32.totalorder %s89, %s90
    %p104 = scmp.eq.s32.totalorder %s14, 1
    %p105 = por %p103, %p104
    %p107 = scmp.ne.s32.totalorder %s90, %s106
    %p108 = scmp.eq.s32.totalorder %s14, 0
    %p109 = por %p107, %p108
    %p110 = scmp.le.s32.totalorder 1, %s8
    %p111 = scmp.lt.s32.totalorder %s8, 3
    %p112 = pnand %p110, %p111
    %p113 = pneg %p112
    // Predicated region
    $region9: #{one_model_forward.16} parent=5 // pred_check
      _
    $region10: #{one_model_forward.16} parent=5 // pred_check_branch
      %115 = sbr.rel (%p112) target = $region12
    $region11: #{one_model_forward.16} parent=5 // pred_region
      %s116 = ssub.s32 %s8, 1
    $region12: #{one_model_forward.16} parent=5 // pred_fallthru
      _
    %p117 = scmp.lt.s32.totalorder %s8, 2
    // Predicated region
    $region13: #{one_model_forward.16} parent=5 // pred_check
      %p118 = pneg %p117
    $region14: #{one_model_forward.16} parent=5 // pred_check_branch
      %120 = sbr.rel (%p118) target = $region16
    $region15: #{one_model_forward.16} parent=5 // pred_region
      // Predicated region
      $region17: #{one_model_forward.16} parent=15 // pred_check
        %p121 = pneg %p42
      $region18: #{one_model_forward.16} parent=15 // pred_check_branch
        %123 = sbr.rel (%p121) target = $region20
      $region19: #{one_model_forward.16} parent=15 // pred_region
        %s124 = smul.u32 8, %s16
        %p125 = scmp.lt.s32.totalorder %s15, 1
        %s126 = scalar_select %p125, %s15, 1
        %p127 = scmp.lt.s32.totalorder %s124, 7
        %s128 = scalar_select %p127, %s124, 7
        %s129 = smul.addr %s126, 8
        %s130 = sadd.s32 %s128, %s129
        %s131 = smul.addr %s130, 8
        %s132 = scalar_lea.vmem %s0, %s131
        %s133 = smul.u32 8, %s16
      $region20: #{one_model_forward.16} parent=15 // pred_fallthru
        _
      // Predicated region
      $region21: #{one_model_forward.16} parent=15 // pred_check
        %p134 = pneg %p70
      $region22: #{one_model_forward.16} parent=15 // pred_check_branch
        %136 = sbr.rel (%p134) target = $region24
      $region23: #{one_model_forward.16} parent=15 // pred_region
        %s137 = smul.u32 8, %s16
        %p138 = scmp.lt.s32.totalorder %s15, 1
        %s139 = scalar_select %p138, %s15, 1
        %p140 = scmp.lt.s32.totalorder %s137, 7
        %s141 = scalar_select %p140, %s137, 7
        %s142 = smul.addr %s139, 8
        %s143 = sadd.s32 %s141, %s142
        %s144 = smul.addr %s143, 8
        %s145 = scalar_lea.vmem %s1, %s144
        %s146 = smul.u32 8, %s16
      $region24: #{one_model_forward.16} parent=15 // pred_fallthru
        _
    $region16: #{one_model_forward.16} parent=5 // pred_fallthru
      _
    %p147 = scmp.le.s32.totalorder 1, %s8
    %p148 = scmp.lt.s32.totalorder %s8, 3
    %p149 = pnand %p147, %p148
    %p150 = pneg %p149
    // Predicated region
    $region25: #{one_model_forward.16} parent=5 // pred_check
      _
    $region26: #{one_model_forward.16} parent=5 // pred_check_branch
      %152 = sbr.rel (%p149) target = $region28
    $region27: #{one_model_forward.16} parent=5 // pred_region
      %s153 = ssub.s32 %s8, 1
      %s154 = smul.u32 8, %s18
      %p155 = scmp.lt.s32.totalorder %s17, 1
      %s156 = scalar_select %p155, %s17, 1
      %p157 = scmp.lt.s32.totalorder %s154, 7
      %s158 = scalar_select %p157, %s154, 7
      %s159 = smul.addr %s156, 8
      %s160 = sadd.s32 %s158, %s159
      %s161 = smul.addr %s160, 8
      %s162 = scalar_lea.vmem %s0, %s161
      %p163 = pneg %p48
      %p164 = pneg %p45
      %s165 = smul.u32 8, %s18
      %p166 = scmp.lt.s32.totalorder %s17, 1
      %s167 = scalar_select %p166, %s17, 1
      %p168 = scmp.lt.s32.totalorder %s165, 7
      %s169 = scalar_select %p168, %s165, 7
      %s170 = smul.addr %s167, 8
      %s171 = sadd.s32 %s169, %s170
      %s172 = smul.addr %s171, 8
      %s173 = scalar_lea.vmem %s1, %s172
      %p174 = pneg %p76
      %p175 = pneg %p73
      %p176 = pneg %p102
      %p177 = pneg %p99
      %p178 = scmp.lt.s32.totalorder %s17, 1
      %s179 = scalar_select %p178, %s17, 1
      %s180 = scalar_lea.vmem %s2, %s179
      %s181 = smul.u32 8, %s18
      %p182 = scmp.lt.s32.totalorder %s17, 1
      %s183 = scalar_select %p182, %s17, 1
      %p184 = scmp.lt.s32.totalorder %s181, 7
      %s185 = scalar_select %p184, %s181, 7
      %s186 = smul.addr %s183, 8
      %s187 = sadd.s32 %s185, %s186
      %s188 = smul.addr %s187, 8
      %s189 = scalar_lea.vmem %s0, %s188
      %s190 = smul.u32 8, %s18
      %s191 = smul.u32 8, %s18
      %p192 = scmp.lt.s32.totalorder %s17, 1
      %s193 = scalar_select %p192, %s17, 1
      %p194 = scmp.lt.s32.totalorder %s191, 7
      %s195 = scalar_select %p194, %s191, 7
      %s196 = smul.addr %s193, 8
      %s197 = sadd.s32 %s195, %s196
      %s198 = smul.addr %s197, 8
      %s199 = scalar_lea.vmem %s1, %s198
      %s200 = smul.u32 8, %s18
      %p201 = scmp.lt.s32.totalorder %s17, 1
      %s202 = scalar_select %p201, %s17, 1
      %s203 = scalar_lea.vmem %s2, %s202
      %p204 = scmp.eq.s32.totalorder %s18, 0
      // Predicated region
      $region29: #{one_model_forward.16} parent=27 // pred_check
        %p205 = pneg %p204
      $region30: #{one_model_forward.16} parent=27 // pred_check_branch
        %207 = sbr.rel (%p205) target = $region32
      $region31: #{one_model_forward.16} parent=27 // pred_region
        %vm208 = vcmask 130048
        %209 = vst.msk [vmem:[#allocation2] sm:$0xff] %vm208, 0.0
        %210 = vst.msk [vmem:[#allocation2 + $0x8] sm:$0xff] %vm208, 0.0
        %211 = vst.msk [vmem:[#allocation3] sm:$0xff] %vm208, 0.0
        %212 = vst.msk [vmem:[#allocation3 + $0x8] sm:$0xff] %vm208, 0.0
      $region32: #{one_model_forward.16} parent=27 // pred_fallthru
        _
      %v213 = vld [vmem:[#allocation2] sm:$0xff]
      %v214 = vld [vmem:[#allocation2 + $0x8] sm:$0xff]
      %v215 = vld [vmem:[%s189] sm:$0xff]
      %v216 = vld [vmem:[%s189 + $0x8] sm:$0xff]
      %v217 = vld [vmem:[%s189 + $0x10] sm:$0xff]
      %v218 = vld [vmem:[%s189 + $0x18] sm:$0xff]
      %v219 = vld [vmem:[%s189 + $0x20] sm:$0xff]
      %v220 = vld [vmem:[%s189 + $0x28] sm:$0xff]
      %v221 = vld [vmem:[%s189 + $0x30] sm:$0xff]
      %v222 = vld [vmem:[%s189 + $0x38] sm:$0xff]
      %223 = vxpose.xlu0.b32.start [1/16] %v215, 128
      %224 = vxpose.xlu0.b32.cont [2/16] %v216, 128
      %225 = vxpose.xlu0.b32.cont [3/16] %v217, 128
      %226 = vxpose.xlu0.b32.cont [4/16] %v218, 128
      %227 = vxpose.xlu0.b32.cont [5/16] %v219, 128
      %228 = vxpose.xlu0.b32.cont [6/16] %v220, 128
      %229 = vxpose.xlu0.b32.cont [7/16] %v221, 128
      %230 = vxpose.xlu0.b32.cont [8/16] %v222, 128
      %231 = vxpose.xlu0.b32.cont [9/16] 0.0, 128
      %232 = vxpose.xlu0.b32.cont [10/16] 0.0, 128
      %233 = vxpose.xlu0.b32.cont [11/16] 0.0, 128
      %234 = vxpose.xlu0.b32.cont [12/16] 0.0, 128
      %235 = vxpose.xlu0.b32.cont [13/16] 0.0, 128
      %236 = vxpose.xlu0.b32.cont [14/16] 0.0, 128
      %237 = vxpose.xlu0.b32.cont [15/16] 0.0, 128
      %238 = vxpose.xlu0.b32.end [16/16] 0.0, 128
      %v239 = vpop.trf.xlu0
      %v240 = vpop.trf.xlu0
      %v241 = vpop.trf.xlu0
      %v242 = vpop.trf.xlu0
      %v243 = vpop.trf.xlu0
      %v244 = vpop.trf.xlu0
      %v245 = vpop.trf.xlu0
      %v246 = vpop.trf.xlu0
      %v247 = vpop.trf.xlu0
      %v248 = vpop.trf.xlu0
      %v249 = vpop.trf.xlu0
      %v250 = vpop.trf.xlu0
      %v251 = vpop.trf.xlu0
      %v252 = vpop.trf.xlu0
      %v253 = vpop.trf.xlu0
      %v254 = vpop.trf.xlu0
      %vm255 = vcmask 523264
      %v257 = vsel %vm255, %v239, 0
      %v260 = vsel %vm255, %v240, 0
      %262 = vmatprep.subr.mxu0 0.0
      %263 = vmatpush1.msra.mxu0 0.0
      %264 = vmatprep.subr.mxu0 0.0
      %265 = vmatpush1.msra.mxu0 0.0
      %266 = vmatprep.subr.mxu0 0.0
      %267 = vmatpush1.msra.mxu0 0.0
      %268 = vmatprep.subr.mxu0 0.0
      %269 = vmatpush1.msra.mxu0 0.0
      %270 = vmatprep.subr.mxu0 0.0
      %271 = vmatpush1.msra.mxu0 0.0
      %272 = vmatprep.subr.mxu0 0.0
      %273 = vmatpush1.msra.mxu0 0.0
      %274 = vmatprep.subr.mxu0 0.0
      %275 = vmatpush1.msra.mxu0 0.0
      %276 = vmatprep.subr.mxu0 0.0
      %277 = vmatpush1.msra.mxu0 0.0
      %278 = vmatprep.subr.mxu0 0.0
      %279 = vmatpush1.msra.mxu0 %v222
      %280 = vmatprep.subr.mxu0 0.0
      %281 = vmatpush1.msra.mxu0 %v221
      %282 = vmatprep.subr.mxu0 0.0
      %283 = vmatpush1.msra.mxu0 %v220
      %284 = vmatprep.subr.mxu0 0.0
      %285 = vmatpush1.msra.mxu0 %v219
      %286 = vmatprep.subr.mxu0 0.0
      %287 = vmatpush1.msra.mxu0 %v218
      %288 = vmatprep.subr.mxu0 0.0
      %289 = vmatpush1.msra.mxu0 %v217
      %290 = vmatprep.subr.mxu0 0.0
      %291 = vmatpush1.msra.mxu0 %v216
      %292 = vmatprep.subr.mxu0 0.0
      %293 = vmatpush1.msra.mxu0 %v215
      %294 = vmatprep.subr.mxu0 0.0
      %295 = vmatpush2.msra.mxu0 0.0
      %296 = vmatprep.subr.mxu0 0.0
      %297 = vmatpush2.msra.mxu0 0.0
      %298 = vmatprep.subr.mxu0 0.0
      %299 = vmatpush2.msra.mxu0 0.0
      %300 = vmatprep.subr.mxu0 0.0
      %301 = vmatpush2.msra.mxu0 0.0
      %302 = vmatprep.subr.mxu0 0.0
      %303 = vmatpush2.msra.mxu0 0.0
      %304 = vmatprep.subr.mxu0 0.0
      %305 = vmatpush2.msra.mxu0 0.0
      %306 = vmatprep.subr.mxu0 0.0
      %307 = vmatpush2.msra.mxu0 0.0
      %308 = vmatprep.subr.mxu0 0.0
      %309 = vmatpush2.msra.mxu0 0.0
      %310 = vmatprep.subr.mxu0 0.0
      %311 = vmatpush2.msra.mxu0 0.0
      %312 = vmatprep.subr.mxu0 0.0
      %313 = vmatpush2.msra.mxu0 0.0
      %314 = vmatprep.subr.mxu0 0.0
      %315 = vmatpush2.msra.mxu0 0.0
      %316 = vmatprep.subr.mxu0 0.0
      %317 = vmatpush2.msra.mxu0 0.0
      %318 = vmatprep.subr.mxu0 0.0
      %319 = vmatpush2.msra.mxu0 0.0
      %320 = vmatprep.subr.mxu0 0.0
      %321 = vmatpush2.msra.mxu0 0.0
      %322 = vmatprep.subr.mxu0 0.0
      %323 = vmatpush2.msra.mxu0 0.0
      %324 = vmatprep.subr.mxu0 0.0
      %325 = vmatpush2.msra.mxu0 0.0
      %326 = vmatprep.mubr.f32.mxu0 0.0
      %327 = vmatmul.mubr.f32.gmra.mxu0 %v257
      %v328 = vpop.f32.mrf.mxu0
      %v329 = vadd.f32 0.0, %v328
      %v330 = vpop.f32.mrf.mxu0
      %331 = vmatprep.mubr.f32.mxu0 0.0
      %332 = vmatmul.mubr.f32.gmra.mxu0 %v260
      %v333 = vpop.f32.mrf.mxu0
      %v334 = vadd.f32 0.0, %v333
      %v335 = vpop.f32.mrf.mxu0
      %336 = vdwg.mxu0
      %v337 = vadd.f32 %v213, %v329
      %v338 = vadd.f32 %v214, %v334
      %vm339 = vcmask 130048
      %340 = vst.msk [vmem:[#allocation2] sm:$0xff] %vm339, %v337
      %341 = vst.msk [vmem:[#allocation2 + $0x8] sm:$0xff] %vm339, %v338
      %v342 = vld [vmem:[#allocation3] sm:$0xff]
      %v343 = vld [vmem:[#allocation3 + $0x8] sm:$0xff]
      %v344 = vld [vmem:[%s199] sm:$0xff]
      %v345 = vld [vmem:[%s199 + $0x8] sm:$0xff]
      %v346 = vld [vmem:[%s199 + $0x10] sm:$0xff]
      %v347 = vld [vmem:[%s199 + $0x18] sm:$0xff]
      %v348 = vld [vmem:[%s199 + $0x20] sm:$0xff]
      %v349 = vld [vmem:[%s199 + $0x28] sm:$0xff]
      %v350 = vld [vmem:[%s199 + $0x30] sm:$0xff]
      %v351 = vld [vmem:[%s199 + $0x38] sm:$0xff]
      %352 = vxpose.xlu0.b32.start [1/16] %v344, 128
      %353 = vxpose.xlu0.b32.cont [2/16] %v345, 128
      %354 = vxpose.xlu0.b32.cont [3/16] %v346, 128
      %355 = vxpose.xlu0.b32.cont [4/16] %v347, 128
      %356 = vxpose.xlu0.b32.cont [5/16] %v348, 128
      %357 = vxpose.xlu0.b32.cont [6/16] %v349, 128
      %358 = vxpose.xlu0.b32.cont [7/16] %v350, 128
      %359 = vxpose.xlu0.b32.cont [8/16] %v351, 128
      %360 = vxpose.xlu0.b32.cont [9/16] 0.0, 128
      %361 = vxpose.xlu0.b32.cont [10/16] 0.0, 128
      %362 = vxpose.xlu0.b32.cont [11/16] 0.0, 128
      %363 = vxpose.xlu0.b32.cont [12/16] 0.0, 128
      %364 = vxpose.xlu0.b32.cont [13/16] 0.0, 128
      %365 = vxpose.xlu0.b32.cont [14/16] 0.0, 128
      %366 = vxpose.xlu0.b32.cont [15/16] 0.0, 128
      %367 = vxpose.xlu0.b32.end [16/16] 0.0, 128
      %v368 = vpop.trf.xlu0
      %v369 = vpop.trf.xlu0
      %v370 = vpop.trf.xlu0
      %v371 = vpop.trf.xlu0
      %v372 = vpop.trf.xlu0
      %v373 = vpop.trf.xlu0
      %v374 = vpop.trf.xlu0
      %v375 = vpop.trf.xlu0
      %v376 = vpop.trf.xlu0
      %v377 = vpop.trf.xlu0
      %v378 = vpop.trf.xlu0
      %v379 = vpop.trf.xlu0
      %v380 = vpop.trf.xlu0
      %v381 = vpop.trf.xlu0
      %v382 = vpop.trf.xlu0
      %v383 = vpop.trf.xlu0
      %v385 = vsel %vm255, %v368, 0
      %v388 = vsel %vm255, %v369, 0
      %390 = vmatprep.subr.mxu0 0.0
      %391 = vmatpush1.msra.mxu0 0.0
      %392 = vmatprep.subr.mxu0 0.0
      %393 = vmatpush1.msra.mxu0 0.0
      %394 = vmatprep.subr.mxu0 0.0
      %395 = vmatpush1.msra.mxu0 0.0
      %396 = vmatprep.subr.mxu0 0.0
      %397 = vmatpush1.msra.mxu0 0.0
      %398 = vmatprep.subr.mxu0 0.0
      %399 = vmatpush1.msra.mxu0 0.0
      %400 = vmatprep.subr.mxu0 0.0
      %401 = vmatpush1.msra.mxu0 0.0
      %402 = vmatprep.subr.mxu0 0.0
      %403 = vmatpush1.msra.mxu0 0.0
      %404 = vmatprep.subr.mxu0 0.0
      %405 = vmatpush1.msra.mxu0 0.0
      %406 = vmatprep.subr.mxu0 0.0
      %407 = vmatpush1.msra.mxu0 %v351
      %408 = vmatprep.subr.mxu0 0.0
      %409 = vmatpush1.msra.mxu0 %v350
      %410 = vmatprep.subr.mxu0 0.0
      %411 = vmatpush1.msra.mxu0 %v349
      %412 = vmatprep.subr.mxu0 0.0
      %413 = vmatpush1.msra.mxu0 %v348
      %414 = vmatprep.subr.mxu0 0.0
      %415 = vmatpush1.msra.mxu0 %v347
      %416 = vmatprep.subr.mxu0 0.0
      %417 = vmatpush1.msra.mxu0 %v346
      %418 = vmatprep.subr.mxu0 0.0
      %419 = vmatpush1.msra.mxu0 %v345
      %420 = vmatprep.subr.mxu0 0.0
      %421 = vmatpush1.msra.mxu0 %v344
      %422 = vmatprep.subr.mxu0 0.0
      %423 = vmatpush2.msra.mxu0 0.0
      %424 = vmatprep.subr.mxu0 0.0
      %425 = vmatpush2.msra.mxu0 0.0
      %426 = vmatprep.subr.mxu0 0.0
      %427 = vmatpush2.msra.mxu0 0.0
      %428 = vmatprep.subr.mxu0 0.0
      %429 = vmatpush2.msra.mxu0 0.0
      %430 = vmatprep.subr.mxu0 0.0
      %431 = vmatpush2.msra.mxu0 0.0
      %432 = vmatprep.subr.mxu0 0.0
      %433 = vmatpush2.msra.mxu0 0.0
      %434 = vmatprep.subr.mxu0 0.0
      %435 = vmatpush2.msra.mxu0 0.0
      %436 = vmatprep.subr.mxu0 0.0
      %437 = vmatpush2.msra.mxu0 0.0
      %438 = vmatprep.subr.mxu0 0.0
      %439 = vmatpush2.msra.mxu0 0.0
      %440 = vmatprep.subr.mxu0 0.0
      %441 = vmatpush2.msra.mxu0 0.0
      %442 = vmatprep.subr.mxu0 0.0
      %443 = vmatpush2.msra.mxu0 0.0
      %444 = vmatprep.subr.mxu0 0.0
      %445 = vmatpush2.msra.mxu0 0.0
      %446 = vmatprep.subr.mxu0 0.0
      %447 = vmatpush2.msra.mxu0 0.0
      %448 = vmatprep.subr.mxu0 0.0
      %449 = vmatpush2.msra.mxu0 0.0
      %450 = vmatprep.subr.mxu0 0.0
      %451 = vmatpush2.msra.mxu0 0.0
      %452 = vmatprep.subr.mxu0 0.0
      %453 = vmatpush2.msra.mxu0 0.0
      %454 = vmatprep.mubr.f32.mxu0 0.0
      %455 = vmatmul.mubr.f32.gmra.mxu0 %v385
      %v456 = vpop.f32.mrf.mxu0
      %v457 = vadd.f32 0.0, %v456
      %v458 = vpop.f32.mrf.mxu0
      %459 = vmatprep.mubr.f32.mxu0 0.0
      %460 = vmatmul.mubr.f32.gmra.mxu0 %v388
      %v461 = vpop.f32.mrf.mxu0
      %v462 = vadd.f32 0.0, %v461
      %v463 = vpop.f32.mrf.mxu0
      %464 = vdwg.mxu0
      %v465 = vadd.f32 %v342, %v457
      %v466 = vadd.f32 %v343, %v462
      %467 = vst.msk [vmem:[#allocation3] sm:$0xff] %vm339, %v465
      %468 = vst.msk [vmem:[#allocation3 + $0x8] sm:$0xff] %vm339, %v466
      // Predicated region
      $region33: #{one_model_forward.16} parent=27 // pred_check
        %p469 = pneg %p204
      $region34: #{one_model_forward.16} parent=27 // pred_check_branch
        %471 = sbr.rel (%p469) target = $region36
      $region35: #{one_model_forward.16} parent=27 // pred_region
        %v472 = vlaneseq
        %v473 = vshrl.u32 %v472, 7
        %v474 = vadd.s32 %v473, 8
        %v475 = vlaneseq
        %v476 = vand.u32 %v475, 127
        %vm477 = vcmp.eq.s32.totalorder %v473, %v476
        %vm478 = vcmp.eq.s32.totalorder %v474, %v476
        %v479 = vsel %vm477, 1, 0
        %v480 = vsel %vm478, 1, 0
        %v481 = vcvt.s32.f32 %v479
        %v482 = vcvt.s32.f32 %v480
        %v483 = vld [vmem:[#allocation2] sm:$0xff]
        %v484 = vld [vmem:[#allocation2 + $0x8] sm:$0xff]
        %v485 = vmul.f32 %v483, %v481
        %v486 = vmul.f32 %v484, %v482
        %v487 = vsel %vm339, %v485, 0.0
        %488 = vadd.xlane.f32.xlu0 %v487
        %v489 = vpop.xlane.xlu0 %488
        %v490 = vsel %vm339, %v486, 0.0
        %491 = vadd.xlane.f32.xlu0 %v490
        %v492 = vpop.xlane.xlu0 %491
        %v493 = vrsqrt.pop %v489
        %v494 = vmul.f32 %v489, %v493
        %vm495 = vcmp.eq.f32.partialorder %v489, inf
        %v496 = vsel %vm495, %v489, %v494
        %vm497 = vcmp.eq.f32.partialorder %v489, 0.0
        %v498 = vand.u32 %v489, 2147483648
        %v499 = vsel %vm497, %v498, %v496
        %v500 = vrsqrt.pop %v492
        %v501 = vmul.f32 %v492, %v500
        %vm502 = vcmp.eq.f32.partialorder %v492, inf
        %v503 = vsel %vm502, %v492, %v501
        %vm504 = vcmp.eq.f32.partialorder %v492, 0.0
        %v505 = vand.u32 %v492, 2147483648
        %v506 = vsel %vm504, %v505, %v503
        %v507 = vadd.f32 %v487, %v490
        %v508 = vrot.slane %v507, 4
        %v509 = vadd.f32 %v507, %v508
        %v510 = vrot.slane %v509, 2
        %v511 = vadd.f32 %v509, %v510
        %v512 = vrot.slane %v511, 1
        %v513 = vadd.f32 %v511, %v512
        %v514 = vrsqrt.pop %v513
        %v515 = vmul.f32 %v513, %v514
        %vm516 = vcmp.eq.f32.partialorder %v513, inf
        %v517 = vsel %vm516, %v513, %v515
        %vm518 = vcmp.eq.f32.partialorder %v513, 0.0
        %v519 = vand.u32 %v513, 2147483648
        %v520 = vsel %vm518, %v519, %v517
        %v521 = vmul.f32 %v499, %v520
        %v522 = vmul.f32 %v506, %v520
        %v523 = vadd.f32 %v521, 1e-07
        %v524 = vadd.f32 %v522, 1e-07
        %v525 = vrcp.pop %v523
        %v526 = vmul.f32 %v483, %v525
        %v527 = vrcp.pop %v524
        %v528 = vmul.f32 %v484, %v527
        %v529 = vld [vmem:[#allocation3] sm:$0xff]
        %v530 = vld [vmem:[#allocation3 + $0x8] sm:$0xff]
        %v531 = vmul.f32 %v529, %v481
        %v532 = vmul.f32 %v530, %v482
        %v533 = vsel %vm339, %v531, 0.0
        %534 = vadd.xlane.f32.xlu0 %v533
        %v535 = vpop.xlane.xlu0 %534
        %v536 = vsel %vm339, %v532, 0.0
        %537 = vadd.xlane.f32.xlu0 %v536
        %v538 = vpop.xlane.xlu0 %537
        %v539 = vrsqrt.pop %v535
        %v540 = vmul.f32 %v535, %v539
        %vm541 = vcmp.eq.f32.partialorder %v535, inf
        %v542 = vsel %vm541, %v535, %v540
        %vm543 = vcmp.eq.f32.partialorder %v535, 0.0
        %v544 = vand.u32 %v535, 2147483648
        %v545 = vsel %vm543, %v544, %v542
        %v546 = vrsqrt.pop %v538
        %v547 = vmul.f32 %v538, %v546
        %vm548 = vcmp.eq.f32.partialorder %v538, inf
        %v549 = vsel %vm548, %v538, %v547
        %vm550 = vcmp.eq.f32.partialorder %v538, 0.0
        %v551 = vand.u32 %v538, 2147483648
        %v552 = vsel %vm550, %v551, %v549
        %v553 = vadd.f32 %v533, %v536
        %v554 = vrot.slane %v553, 4
        %v555 = vadd.f32 %v553, %v554
        %v556 = vrot.slane %v555, 2
        %v557 = vadd.f32 %v555, %v556
        %v558 = vrot.slane %v557, 1
        %v559 = vadd.f32 %v557, %v558
        %v560 = vrsqrt.pop %v559
        %v561 = vmul.f32 %v559, %v560
        %vm562 = vcmp.eq.f32.partialorder %v559, inf
        %v563 = vsel %vm562, %v559, %v561
        %vm564 = vcmp.eq.f32.partialorder %v559, 0.0
        %v565 = vand.u32 %v559, 2147483648
        %v566 = vsel %vm564, %v565, %v563
        %v567 = vmul.f32 %v545, %v566
        %v568 = vmul.f32 %v552, %v566
        %v569 = vadd.f32 %v567, 1e-07
        %v570 = vadd.f32 %v568, 1e-07
        %v571 = vrcp.pop %v569
        %v572 = vmul.f32 %v529, %v571
        %v573 = vrcp.pop %v570
        %v574 = vmul.f32 %v530, %v573
        %v575 = vsub.f32 %v526, %v572
        %v576 = vsub.f32 %v528, %v574
        %v577 = vmul.f32 %v575, %v575
        %v578 = vmul.f32 %v576, %v576
        %v579 = vsel %vm339, %v577, 0.0
        %v580 = vsel %vm339, %v578, 0.0
        %v581 = vadd.f32 %v579, %v580
        %582 = vadd.xlane.f32.xlu0 %v581
        %v583 = vpop.xlane.xlu0 %582
        %v584 = vrot.slane %v583, 4
        %v585 = vadd.f32 %v583, %v584
        %v586 = vrot.slane %v585, 2
        %v587 = vadd.f32 %v585, %v586
        %v588 = vrot.slane %v587, 1
        %v589 = vadd.f32 %v587, %v588
        %s590 = vtos %v589
        %v591 = vstv %s590
        %v592 = vrsqrt.pop %v591
        %v593 = vmul.f32 %v591, %v592
        %vm594 = vcmp.eq.f32.partialorder %v591, inf
        %v595 = vsel %vm594, %v591, %v593
        %vm596 = vcmp.eq.f32.partialorder %v591, 0.0
        %v597 = vand.u32 %v591, 2147483648
        %v598 = vsel %vm596, %v597, %v595
        %vm599 = vcmask 0
        %600 = vst.msk [vmem:[%s203] sm:$0x1] %vm599, %v598
      $region36: #{one_model_forward.16} parent=27 // pred_fallthru
        _
      %p601 = scmp.lt.s32.totalorder %s17, 1
      %s602 = scalar_select %p601, %s17, 1
      %s603 = scalar_lea.vmem %s2, %s602
      // Predicated region
      $region37: #{one_model_forward.16} parent=27 // pred_check
        %p604 = pneg %p99
      $region38: #{one_model_forward.16} parent=27 // pred_check_branch
        %606 = sbr.rel (%p604) target = $region40
      $region39: #{one_model_forward.16} parent=27 // pred_region
        _
      $region40: #{one_model_forward.16} parent=27 // pred_fallthru
        _
    $region28: #{one_model_forward.16} parent=5 // pred_fallthru
      _
    %p607 = scmp.le.s32.totalorder 2, %s8
    // Predicated region
    $region41: #{one_model_forward.16} parent=5 // pred_check
      %p608 = pneg %p607
    $region42: #{one_model_forward.16} parent=5 // pred_check_branch
      %610 = sbr.rel (%p608) target = $region44
    $region43: #{one_model_forward.16} parent=5 // pred_region
      %s611 = ssub.s32 %s8, 2
      // Predicated region
      $region45: #{one_model_forward.16} parent=43 // pred_check
        %p612 = pneg %p105
      $region46: #{one_model_forward.16} parent=43 // pred_check_branch
        %614 = sbr.rel (%p612) target = $region48
      $region47: #{one_model_forward.16} parent=43 // pred_region
        %p615 = scmp.lt.s32.totalorder %s19, 1
        %s616 = scalar_select %p615, %s19, 1
        %s617 = scalar_lea.vmem %s2, %s616
      $region48: #{one_model_forward.16} parent=43 // pred_fallthru
        _
    $region44: #{one_model_forward.16} parent=5 // pred_fallthru
      _
  $region6: #{one_model_forward.16} parent=0 // loop_footer
    %s12 = sadd.s32 1, %s8
  $region7: #{one_model_forward.16} parent=0 // loop_footer_branch
    %7 = sbr.rel target = $region3
  $region8: #{one_model_forward.16} parent=0 // loop_exit
    _

// kernel: one_model_forward.25
$region0: #{one_model_forward.25}
  #allocation0 [shape = 'u32[]', space=smem, size = 0x4, offset = 0x4, fixed_abs, tag = 'smem constant byte address 0x4 - core index']
  #allocation1 [shape = 'u32[144,128]{1,0:T(1,128)}', space=vmem, size = 0x12000, scoped, tag = 'internal scratch']
  %s0 = inlined_call_operand.vmem [shape: f32[2], index: 0, kind: input, shape index: {}]
  %s1 = inlined_call_operand.vmem [shape: f32[2], index: 1, kind: input, shape index: {}]
  %s2 = inlined_call_operand.vmem [shape: f32[2], index: 2, kind: input, shape index: {}]
  %s3 = inlined_call_operand.vmem [shape: f32[2,64,2], index: 3, kind: input, shape index: {}]
  %s4 = inlined_call_operand.vmem [shape: f32[2,64,16], index: 4, kind: input, shape index: {}]
  %s5 = inlined_call_operand.vmem [shape: s32[2,64,1], index: 5, kind: output, shape index: {}]
  %s6 = sld [smem:[#allocation0]]
  $region65: #{one_model_forward.25} parent=0
    _
  %s8 = ssub.s32 1, %s6
  %s9 = scalar_select 0, %s8, %s6
  $region1: #{one_model_forward.25} parent=0
    #allocation2 [shape = 'u8[512]{0}', space=smem, size = 0x200, scoped, tag = 'input window, operand 0, single buffered']
    #allocation3 [shape = 's32[2]{0}', space=sflag, size = 0x8, scoped, tag = 'scoped memory for one_model_forward.25']
    #allocation4 [shape = 'u8[512]{0}', space=smem, size = 0x200, scoped, tag = 'input window, operand 1, single buffered']
    #allocation5 [shape = 's32[1]{0}', space=sflag, size = 0x4, scoped, tag = 'scoped memory for one_model_forward.25']
    #allocation6 [shape = 'u8[512]{0}', space=smem, size = 0x200, scoped, tag = 'input window, operand 2, single buffered']
    %10 = vsyncpa [#allocation3], 0
    %11 = vsyncpa [#allocation5], 0
    loop: start=0, step=1, limit=4
    $region2: #{one_model_forward.25} parent=1 // loop_pre_header
      _
    $region3: #{one_model_forward.25} parent=1 // loop_header
      %s13 = sphi 0, %s17
      %p14 = scmp.ge.s32.totalorder %s13, 4
      %s20 = sphi 0, %s32
      %s21 = sphi 0, %s28
      %s22 = sphi 0, %s20
      %s23 = sphi 0, %s21
      %s24 = sphi 0, %s22
      %s25 = sphi 0, %s23
      %s33 = sphi 0, %s33
      %s35 = sphi 0, %s33
      %s36 = sphi 0, %s35
      %s50 = sphi 0, %s36
      %s54 = sphi 0, %s54
      %s56 = sphi 0, %s54
      %s57 = sphi 0, %s56
      %s71 = sphi 0, %s57
      %s75 = sphi 0, %s75
      %s77 = sphi 0, %s75
      %s78 = sphi 0, %s77
      %s92 = sphi 0, %s78
      %s100 = sphi 0, %s102
      %s103 = sphi 0, %s100
      %s104 = sphi 0, %s103
      %s120 = sphi 0, %s104
      %s128 = sphi 0, %s130
      %s131 = sphi 0, %s128
      %s132 = sphi 0, %s131
      %s148 = sphi 0, %s132
      %s156 = sphi 0, %s158
      %s159 = sphi 0, %s156
      %s160 = sphi 0, %s159
      %s176 = sphi 0, %s160
    $region4: #{one_model_forward.25} parent=1 // loop_header_branch
      %16 = sbr.rel (%p14) target = $region8
    $region5: #{one_model_forward.25} parent=1 // loop_body
      %s18 = ssub.s32 %s13, 1
      %s19 = ssub.s32 %s13, 2
      %s26 = sadd.s32 1, %s21
      %p27 = scmp.ge.s32.totalorder %s26, 1
      %s28 = scalar_select %p27, 0, %s26
      %s29 = sadd.s32 1, %s20
      %s30 = scalar_select %p27, %s29, %s20
      %p31 = scmp.ge.s32.totalorder %s30, 2
      %s32 = scalar_select %p31, 0, %s30
      %s34 = sadd.s32 %s33, 1
      %p37 = scmp.eq.s32.totalorder %s13, 1
      %p38 = scmp.ne.s32.totalorder %s33, %s35
      %p39 = scmp.eq.s32.totalorder %s13, 0
      %p40 = por %p38, %p39
      %p41 = scmp.ne.s32.totalorder %s33, %s35
      %p42 = scmp.eq.s32.totalorder %s18, 1
      %p43 = por %p41, %p42
      %p44 = scmp.ne.s32.totalorder %s35, %s36
      %p45 = scmp.eq.s32.totalorder %s18, 0
      %p46 = por %p44, %p45
      %p47 = scmp.ne.s32.totalorder %s35, %s36
      %p48 = scmp.eq.s32.totalorder %s19, 1
      %p49 = por %p47, %p48
      %p51 = scmp.ne.s32.totalorder %s36, %s50
      %p52 = scmp.eq.s32.totalorder %s19, 0
      %p53 = por %p51, %p52
      %s55 = sadd.s32 %s54, 1
      %p58 = scmp.eq.s32.totalorder %s13, 1
      %p59 = scmp.ne.s32.totalorder %s54, %s56
      %p60 = scmp.eq.s32.totalorder %s13, 0
      %p61 = por %p59, %p60
      %p62 = scmp.ne.s32.totalorder %s54, %s56
      %p63 = scmp.eq.s32.totalorder %s18, 1
      %p64 = por %p62, %p63
      %p65 = scmp.ne.s32.totalorder %s56, %s57
      %p66 = scmp.eq.s32.totalorder %s18, 0
      %p67 = por %p65, %p66
      %p68 = scmp.ne.s32.totalorder %s56, %s57
      %p69 = scmp.eq.s32.totalorder %s19, 1
      %p70 = por %p68, %p69
      %p72 = scmp.ne.s32.totalorder %s57, %s71
      %p73 = scmp.eq.s32.totalorder %s19, 0
      %p74 = por %p72, %p73
      %s76 = sadd.s32 %s75, 1
      %p79 = scmp.eq.s32.totalorder %s13, 1
      %p80 = scmp.ne.s32.totalorder %s75, %s77
      %p81 = scmp.eq.s32.totalorder %s13, 0
      %p82 = por %p80, %p81
      %p83 = scmp.ne.s32.totalorder %s75, %s77
      %p84 = scmp.eq.s32.totalorder %s18, 1
      %p85 = por %p83, %p84
      %p86 = scmp.ne.s32.totalorder %s77, %s78
      %p87 = scmp.eq.s32.totalorder %s18, 0
      %p88 = por %p86, %p87
      %p89 = scmp.ne.s32.totalorder %s77, %s78
      %p90 = scmp.eq.s32.totalorder %s19, 1
      %p91 = por %p89, %p90
      %p93 = scmp.ne.s32.totalorder %s78, %s92
      %p94 = scmp.eq.s32.totalorder %s19, 0
      %p95 = por %p93, %p94
      %s96 = ssub.s32 %s20, %s32
      %s97 = ssub.s32 %s21, %s28
      %s98 = sor.u32 %s96, %s97
      %p99 = scmp.eq.s32.totalorder %s98, 0
      %s101 = sadd.s32 %s100, 1
      %s102 = scalar_select %p99, %s100, %s101
      %p105 = pneg %p99
      %p106 = scmp.eq.s32.totalorder %s13, 1
      %p107 = por %p105, %p106
      %p108 = scmp.ne.s32.totalorder %s100, %s103
      %p109 = scmp.eq.s32.totalorder %s13, 0
      %p110 = por %p108, %p109
      %p111 = scmp.ne.s32.totalorder %s100, %s103
      %p112 = scmp.eq.s32.totalorder %s18, 1
      %p113 = por %p111, %p112
      %p114 = scmp.ne.s32.totalorder %s103, %s104
      %p115 = scmp.eq.s32.totalorder %s18, 0
      %p116 = por %p114, %p115
      %p117 = scmp.ne.s32.totalorder %s103, %s104
      %p118 = scmp.eq.s32.totalorder %s19, 1
      %p119 = por %p117, %p118
      %p121 = scmp.ne.s32.totalorder %s104, %s120
      %p122 = scmp.eq.s32.totalorder %s19, 0
      %p123 = por %p121, %p122
      %s124 = ssub.s32 %s20, %s32
      %s125 = ssub.s32 %s21, %s28
      %s126 = sor.u32 %s124, %s125
      %p127 = scmp.eq.s32.totalorder %s126, 0
      %s129 = sadd.s32 %s128, 1
      %s130 = scalar_select %p127, %s128, %s129
      %p133 = pneg %p127
      %p134 = scmp.eq.s32.totalorder %s13, 1
      %p135 = por %p133, %p134
      %p136 = scmp.ne.s32.totalorder %s128, %s131
      %p137 = scmp.eq.s32.totalorder %s13, 0
      %p138 = por %p136, %p137
      %p139 = scmp.ne.s32.totalorder %s128, %s131
      %p140 = scmp.eq.s32.totalorder %s18, 1
      %p141 = por %p139, %p140
      %p142 = scmp.ne.s32.totalorder %s131, %s132
      %p143 = scmp.eq.s32.totalorder %s18, 0
      %p144 = por %p142, %p143
      %p145 = scmp.ne.s32.totalorder %s131, %s132
      %p146 = scmp.eq.s32.totalorder %s19, 1
      %p147 = por %p145, %p146
      %p149 = scmp.ne.s32.totalorder %s132, %s148
      %p150 = scmp.eq.s32.totalorder %s19, 0
      %p151 = por %p149, %p150
      %s152 = ssub.s32 %s20, %s32
      %s153 = ssub.s32 %s21, %s28
      %s154 = sor.u32 %s152, %s153
      %p155 = scmp.eq.s32.totalorder %s154, 0
      %s157 = sadd.s32 %s156, 1
      %s158 = scalar_select %p155, %s156, %s157
      %p161 = pneg %p155
      %p162 = scmp.eq.s32.totalorder %s13, 1
      %p163 = por %p161, %p162
      %p164 = scmp.ne.s32.totalorder %s156, %s159
      %p165 = scmp.eq.s32.totalorder %s13, 0
      %p166 = por %p164, %p165
      %p167 = scmp.ne.s32.totalorder %s156, %s159
      %p168 = scmp.eq.s32.totalorder %s18, 1
      %p169 = por %p167, %p168
      %p170 = scmp.ne.s32.totalorder %s159, %s160
      %p171 = scmp.eq.s32.totalorder %s18, 0
      %p172 = por %p170, %p171
      %p173 = scmp.ne.s32.totalorder %s159, %s160
      %p174 = scmp.eq.s32.totalorder %s19, 1
      %p175 = por %p173, %p174
      %p177 = scmp.ne.s32.totalorder %s160, %s176
      %p178 = scmp.eq.s32.totalorder %s19, 0
      %p179 = por %p177, %p178
      %p180 = scmp.le.s32.totalorder 1, %s13
      %p181 = scmp.lt.s32.totalorder %s13, 3
      %p182 = pnand %p180, %p181
      %p183 = pneg %p182
      // Predicated region
      $region9: #{one_model_forward.25} parent=5 // pred_check
        _
      $region10: #{one_model_forward.25} parent=5 // pred_check_branch
        %185 = sbr.rel (%p182) target = $region12
      $region11: #{one_model_forward.25} parent=5 // pred_region
        %s186 = ssub.s32 %s13, 1
        // Predicated region
        $region13: #{one_model_forward.25} parent=11 // pred_check
          %p187 = pneg %p46
        $region14: #{one_model_forward.25} parent=11 // pred_check_branch
          %189 = sbr.rel (%p187) target = $region16
        $region15: #{one_model_forward.25} parent=11 // pred_region
          %s191 = ssub.s32 16, 16
          %192 = vsyncadd [#allocation3], %s191
          %s194 = sshll.u32 %s0, 4
          %s195 = int_to_ptr.vmem [resolvable:$true] %s194
          %197 = dma.vmem_to_smem %s195, 16, [#allocation2], [#allocation3]
        $region16: #{one_model_forward.25} parent=11 // pred_fallthru
          _
        // Predicated region
        $region17: #{one_model_forward.25} parent=11 // pred_check
          %p198 = pneg %p67
        $region18: #{one_model_forward.25} parent=11 // pred_check_branch
          %200 = sbr.rel (%p198) target = $region20
        $region19: #{one_model_forward.25} parent=11 // pred_region
          %s202 = ssub.s32 16, 16
          %203 = vsyncadd [#allocation5], %s202
          %s205 = sshll.u32 %s1, 4
          %s206 = int_to_ptr.vmem [resolvable:$true] %s205
          %208 = dma.vmem_to_smem %s206, 16, [#allocation4], [#allocation5]
        $region20: #{one_model_forward.25} parent=11 // pred_fallthru
          _
        // Predicated region
        $region21: #{one_model_forward.25} parent=11 // pred_check
          %p209 = pneg %p88
        $region22: #{one_model_forward.25} parent=11 // pred_check_branch
          %211 = sbr.rel (%p209) target = $region24
        $region23: #{one_model_forward.25} parent=11 // pred_region
          %s213 = ssub.s32 16, 16
          %214 = vsyncadd [#allocation5], %s213
          %s216 = sshll.u32 %s2, 4
          %s217 = int_to_ptr.vmem [resolvable:$true] %s216
          %219 = dma.vmem_to_smem %s217, 16, [#allocation6], [#allocation5]
        $region24: #{one_model_forward.25} parent=11 // pred_fallthru
          _
      $region12: #{one_model_forward.25} parent=5 // pred_fallthru
        _
      %p220 = scmp.lt.s32.totalorder %s13, 2
      // Predicated region
      $region25: #{one_model_forward.25} parent=5 // pred_check
        %p221 = pneg %p220
      $region26: #{one_model_forward.25} parent=5 // pred_check_branch
        %223 = sbr.rel (%p221) target = $region28
      $region27: #{one_model_forward.25} parent=5 // pred_region
        // Predicated region
        $region29: #{one_model_forward.25} parent=27 // pred_check
          %p224 = pneg %p110
        $region30: #{one_model_forward.25} parent=27 // pred_check_branch
          %226 = sbr.rel (%p224) target = $region32
        $region31: #{one_model_forward.25} parent=27 // pred_region
          %s227 = smul.u32 8, %s21
          %p228 = scmp.lt.s32.totalorder %s20, 1
          %s229 = scalar_select %p228, %s20, 1
          %p230 = scmp.lt.s32.totalorder %s227, 7
          %s231 = scalar_select %p230, %s227, 7
          %s232 = smul.addr %s229, 8
          %s233 = sadd.s32 %s231, %s232
          %s234 = smul.addr %s233, 8
          %s235 = scalar_lea.vmem %s3, %s234
          %s236 = smul.u32 8, %s21
        $region32: #{one_model_forward.25} parent=27 // pred_fallthru
          _
        // Predicated region
        $region33: #{one_model_forward.25} parent=27 // pred_check
          %p237 = pneg %p138
        $region34: #{one_model_forward.25} parent=27 // pred_check_branch
          %239 = sbr.rel (%p237) target = $region36
        $region35: #{one_model_forward.25} parent=27 // pred_region
          %s240 = smul.u32 8, %s21
          %p241 = scmp.lt.s32.totalorder %s20, 1
          %s242 = scalar_select %p241, %s20, 1
          %p243 = scmp.lt.s32.totalorder %s240, 7
          %s244 = scalar_select %p243, %s240, 7
          %s245 = smul.addr %s242, 8
          %s246 = sadd.s32 %s244, %s245
          %s247 = smul.addr %s246, 8
          %s248 = scalar_lea.vmem %s4, %s247
          %s249 = smul.u32 8, %s21
        $region36: #{one_model_forward.25} parent=27 // pred_fallthru
          _
      $region28: #{one_model_forward.25} parent=5 // pred_fallthru
        _
      %p250 = scmp.le.s32.totalorder 1, %s13
      %p251 = scmp.lt.s32.totalorder %s13, 3
      %p252 = pnand %p250, %p251
      %p253 = pneg %p252
      // Predicated region
      $region37: #{one_model_forward.25} parent=5 // pred_check
        _
      $region38: #{one_model_forward.25} parent=5 // pred_check_branch
        %255 = sbr.rel (%p252) target = $region40
      $region39: #{one_model_forward.25} parent=5 // pred_region
        %s256 = ssub.s32 %s13, 1
        // Predicated region
        $region41: #{one_model_forward.25} parent=39 // pred_check
          %p257 = pneg %p46
        $region42: #{one_model_forward.25} parent=39 // pred_check_branch
          %259 = sbr.rel (%p257) target = $region44
        $region43: #{one_model_forward.25} parent=39 // pred_region
          %260 = dma.done [#allocation3], 16
        $region44: #{one_model_forward.25} parent=39 // pred_fallthru
          _
        // Predicated region
        $region45: #{one_model_forward.25} parent=39 // pred_check
          %p261 = pneg %p67
        $region46: #{one_model_forward.25} parent=39 // pred_check_branch
          %263 = sbr.rel (%p261) target = $region48
        $region47: #{one_model_forward.25} parent=39 // pred_region
          %264 = dma.done [#allocation5], 16
        $region48: #{one_model_forward.25} parent=39 // pred_fallthru
          _
        // Predicated region
        $region49: #{one_model_forward.25} parent=39 // pred_check
          %p265 = pneg %p88
        $region50: #{one_model_forward.25} parent=39 // pred_check_branch
          %267 = sbr.rel (%p265) target = $region52
        $region51: #{one_model_forward.25} parent=39 // pred_region
          %268 = dma.done [#allocation5], 16
        $region52: #{one_model_forward.25} parent=39 // pred_fallthru
          _
        %269 = sfence
        %p270 = pneg %p46
        %p271 = pneg %p43
        %p272 = pneg %p67
        %p273 = pneg %p64
        %p274 = pneg %p88
        %p275 = pneg %p85
        %s276 = smul.u32 8, %s23
        %p277 = scmp.lt.s32.totalorder %s22, 1
        %s278 = scalar_select %p277, %s22, 1
        %p279 = scmp.lt.s32.totalorder %s276, 7
        %s280 = scalar_select %p279, %s276, 7
        %s281 = smul.addr %s278, 8
        %s282 = sadd.s32 %s280, %s281
        %s283 = smul.addr %s282, 8
        %s284 = scalar_lea.vmem %s3, %s283
        %p285 = pneg %p116
        %p286 = pneg %p113
        %s287 = smul.u32 8, %s23
        %p288 = scmp.lt.s32.totalorder %s22, 1
        %s289 = scalar_select %p288, %s22, 1
        %p290 = scmp.lt.s32.totalorder %s287, 7
        %s291 = scalar_select %p290, %s287, 7
        %s292 = smul.addr %s289, 8
        %s293 = sadd.s32 %s291, %s292
        %s294 = smul.addr %s293, 8
        %s295 = scalar_lea.vmem %s4, %s294
        %p296 = pneg %p144
        %p297 = pneg %p141
        %p298 = pneg %p172
        %p299 = pneg %p169
        %s300 = smul.u32 8, %s23
        %p301 = scmp.lt.s32.totalorder %s22, 1
        %s302 = scalar_select %p301, %s22, 1
        %p303 = scmp.lt.s32.totalorder %s300, 7
        %s304 = scalar_select %p303, %s300, 7
        %s305 = smul.addr %s302, 8
        %s306 = sadd.s32 %s304, %s305
        %s307 = smul.addr %s306, 8
        %s308 = scalar_lea.vmem %s5, %s307
        %s309 = smul.u32 8, %s23
        %p310 = scmp.lt.s32.totalorder %s22, 1
        %s311 = scalar_select %p310, %s22, 1
        %p312 = scmp.lt.s32.totalorder %s309, 7
        %s313 = scalar_select %p312, %s309, 7
        %s314 = smul.addr %s311, 8
        %s315 = sadd.s32 %s313, %s314
        %s316 = smul.addr %s315, 8
        %s317 = scalar_lea.vmem %s3, %s316
        %s318 = smul.u32 8, %s23
        %s319 = smul.u32 8, %s23
        %p320 = scmp.lt.s32.totalorder %s22, 1
        %s321 = scalar_select %p320, %s22, 1
        %p322 = scmp.lt.s32.totalorder %s319, 7
        %s323 = scalar_select %p322, %s319, 7
        %s324 = smul.addr %s321, 8
        %s325 = sadd.s32 %s323, %s324
        %s326 = smul.addr %s325, 8
        %s327 = scalar_lea.vmem %s4, %s326
        %s328 = smul.u32 8, %s23
        %s329 = smul.u32 8, %s23
        %p330 = scmp.lt.s32.totalorder %s22, 1
        %s331 = scalar_select %p330, %s22, 1
        %p332 = scmp.lt.s32.totalorder %s329, 7
        %s333 = scalar_select %p332, %s329, 7
        %s334 = smul.addr %s331, 8
        %s335 = sadd.s32 %s333, %s334
        %s336 = smul.addr %s335, 8
        %s337 = scalar_lea.vmem %s5, %s336
        %s338 = smul.u32 8, %s23
        %v339 = vld [vmem:[%s317] sm:$0xff]
        %v340 = vld [vmem:[%s317 + $0x8] sm:$0xff]
        %v341 = vld [vmem:[%s317 + $0x10] sm:$0xff]
        %v342 = vld [vmem:[%s317 + $0x18] sm:$0xff]
        %v343 = vld [vmem:[%s317 + $0x20] sm:$0xff]
        %v344 = vld [vmem:[%s317 + $0x28] sm:$0xff]
        %v345 = vld [vmem:[%s317 + $0x30] sm:$0xff]
        %v346 = vld [vmem:[%s317 + $0x38] sm:$0xff]
        %vm347 = vcmask 15360
        %v348 = vsel %vm347, %v339, -inf
        %349 = vmax.xlane.f32.xlu0 %v348
        %v350 = vpop.xlane.xlu0 %349
        %v351 = vsel %vm347, %v340, -inf
        %352 = vmax.xlane.f32.xlu0 %v351
        %v353 = vpop.xlane.xlu0 %352
        %v354 = vsel %vm347, %v341, -inf
        %355 = vmax.xlane.f32.xlu0 %v354
        %v356 = vpop.xlane.xlu0 %355
        %v357 = vsel %vm347, %v342, -inf
        %358 = vmax.xlane.f32.xlu0 %v357
        %v359 = vpop.xlane.xlu0 %358
        %v360 = vsel %vm347, %v343, -inf
        %361 = vmax.xlane.f32.xlu0 %v360
        %v362 = vpop.xlane.xlu0 %361
        %v363 = vsel %vm347, %v344, -inf
        %364 = vmax.xlane.f32.xlu0 %v363
        %v365 = vpop.xlane.xlu0 %364
        %v366 = vsel %vm347, %v345, -inf
        %367 = vmax.xlane.f32.xlu0 %v366
        %v368 = vpop.xlane.xlu0 %367
        %v369 = vsel %vm347, %v346, -inf
        %370 = vmax.xlane.f32.xlu0 %v369
        %v371 = vpop.xlane.xlu0 %370
        %v372 = vsub.f32 %v339, %v350
        %v373 = vsub.f32 %v340, %v353
        %v374 = vsub.f32 %v341, %v356
        %v375 = vsub.f32 %v342, %v359
        %v376 = vsub.f32 %v343, %v362
        %v377 = vsub.f32 %v344, %v365
        %v378 = vsub.f32 %v345, %v368
        %v379 = vsub.f32 %v346, %v371
        %v380 = vmul.f32 %v372, 1.442695
        %v381 = vpow.pop %v380
        %v382 = vmul.f32 %v373, 1.442695
        %v383 = vpow.pop %v382
        %v384 = vmul.f32 %v374, 1.442695
        %v385 = vpow.pop %v384
        %v386 = vmul.f32 %v375, 1.442695
        %v387 = vpow.pop %v386
        %v388 = vmul.f32 %v376, 1.442695
        %v389 = vpow.pop %v388
        %v390 = vmul.f32 %v377, 1.442695
        %v391 = vpow.pop %v390
        %v392 = vmul.f32 %v378, 1.442695
        %v393 = vpow.pop %v392
        %v394 = vmul.f32 %v379, 1.442695
        %v395 = vpow.pop %v394
        %v396 = vsel %vm347, %v381, 0.0
        %397 = vadd.xlane.f32.xlu0 %v396
        %v398 = vpop.xlane.xlu0 %397
        %v399 = vsel %vm347, %v383, 0.0
        %400 = vadd.xlane.f32.xlu0 %v399
        %v401 = vpop.xlane.xlu0 %400
        %v402 = vsel %vm347, %v385, 0.0
        %403 = vadd.xlane.f32.xlu0 %v402
        %v404 = vpop.xlane.xlu0 %403
        %v405 = vsel %vm347, %v387, 0.0
        %406 = vadd.xlane.f32.xlu0 %v405
        %v407 = vpop.xlane.xlu0 %406
        %v408 = vsel %vm347, %v389, 0.0
        %409 = vadd.xlane.f32.xlu0 %v408
        %v410 = vpop.xlane.xlu0 %409
        %v411 = vsel %vm347, %v391, 0.0
        %412 = vadd.xlane.f32.xlu0 %v411
        %v413 = vpop.xlane.xlu0 %412
        %v414 = vsel %vm347, %v393, 0.0
        %415 = vadd.xlane.f32.xlu0 %v414
        %v416 = vpop.xlane.xlu0 %415
        %v417 = vsel %vm347, %v395, 0.0
        %418 = vadd.xlane.f32.xlu0 %v417
        %v419 = vpop.xlane.xlu0 %418
        %v420 = vrcp.pop %v398
        %v421 = vmul.f32 %v381, %v420
        %v422 = vrcp.pop %v401
        %v423 = vmul.f32 %v383, %v422
        %v424 = vrcp.pop %v404
        %v425 = vmul.f32 %v385, %v424
        %v426 = vrcp.pop %v407
        %v427 = vmul.f32 %v387, %v426
        %v428 = vrcp.pop %v410
        %v429 = vmul.f32 %v389, %v428
        %v430 = vrcp.pop %v413
        %v431 = vmul.f32 %v391, %v430
        %v432 = vrcp.pop %v416
        %v433 = vmul.f32 %v393, %v432
        %v434 = vrcp.pop %v419
        %v435 = vmul.f32 %v395, %v434
        %v436 = vld [vmem:[%s327] sm:$0xff]
        %v437 = vld [vmem:[%s327 + $0x8] sm:$0xff]
        %v438 = vld [vmem:[%s327 + $0x10] sm:$0xff]
        %v439 = vld [vmem:[%s327 + $0x18] sm:$0xff]
        %v440 = vld [vmem:[%s327 + $0x20] sm:$0xff]
        %v441 = vld [vmem:[%s327 + $0x28] sm:$0xff]
        %v442 = vld [vmem:[%s327 + $0x30] sm:$0xff]
        %v443 = vld [vmem:[%s327 + $0x38] sm:$0xff]
        %vm444 = vcmask 130048
        %v445 = vsel %vm444, %v436, -inf
        %446 = vmax.xlane.f32.xlu0 %v445
        %v447 = vpop.xlane.xlu0 %446
        %v448 = vsel %vm444, %v437, -inf
        %449 = vmax.xlane.f32.xlu0 %v448
        %v450 = vpop.xlane.xlu0 %449
        %v451 = vsel %vm444, %v438, -inf
        %452 = vmax.xlane.f32.xlu0 %v451
        %v453 = vpop.xlane.xlu0 %452
        %v454 = vsel %vm444, %v439, -inf
        %455 = vmax.xlane.f32.xlu0 %v454
        %v456 = vpop.xlane.xlu0 %455
        %v457 = vsel %vm444, %v440, -inf
        %458 = vmax.xlane.f32.xlu0 %v457
        %v459 = vpop.xlane.xlu0 %458
        %v460 = vsel %vm444, %v441, -inf
        %461 = vmax.xlane.f32.xlu0 %v460
        %v462 = vpop.xlane.xlu0 %461
        %v463 = vsel %vm444, %v442, -inf
        %464 = vmax.xlane.f32.xlu0 %v463
        %v465 = vpop.xlane.xlu0 %464
        %v466 = vsel %vm444, %v443, -inf
        %467 = vmax.xlane.f32.xlu0 %v466
        %v468 = vpop.xlane.xlu0 %467
        %v469 = vsub.f32 %v436, %v447
        %v470 = vsub.f32 %v437, %v450
        %v471 = vsub.f32 %v438, %v453
        %v472 = vsub.f32 %v439, %v456
        %v473 = vsub.f32 %v440, %v459
        %v474 = vsub.f32 %v441, %v462
        %v475 = vsub.f32 %v442, %v465
        %v476 = vsub.f32 %v443, %v468
        %v477 = vmul.f32 %v469, 1.442695
        %v478 = vpow.pop %v477
        %v479 = vmul.f32 %v470, 1.442695
        %v480 = vpow.pop %v479
        %v481 = vmul.f32 %v471, 1.442695
        %v482 = vpow.pop %v481
        %v483 = vmul.f32 %v472, 1.442695
        %v484 = vpow.pop %v483
        %v485 = vmul.f32 %v473, 1.442695
        %v486 = vpow.pop %v485
        %v487 = vmul.f32 %v474, 1.442695
        %v488 = vpow.pop %v487
        %v489 = vmul.f32 %v475, 1.442695
        %v490 = vpow.pop %v489
        %v491 = vmul.f32 %v476, 1.442695
        %v492 = vpow.pop %v491
        %v493 = vsel %vm444, %v478, 0.0
        %494 = vadd.xlane.f32.xlu0 %v493
        %v495 = vpop.xlane.xlu0 %494
        %v496 = vsel %vm444, %v480, 0.0
        %497 = vadd.xlane.f32.xlu0 %v496
        %v498 = vpop.xlane.xlu0 %497
        %v499 = vsel %vm444, %v482, 0.0
        %500 = vadd.xlane.f32.xlu0 %v499
        %v501 = vpop.xlane.xlu0 %500
        %v502 = vsel %vm444, %v484, 0.0
        %503 = vadd.xlane.f32.xlu0 %v502
        %v504 = vpop.xlane.xlu0 %503
        %v505 = vsel %vm444, %v486, 0.0
        %506 = vadd.xlane.f32.xlu0 %v505
        %v507 = vpop.xlane.xlu0 %506
        %v508 = vsel %vm444, %v488, 0.0
        %509 = vadd.xlane.f32.xlu0 %v508
        %v510 = vpop.xlane.xlu0 %509
        %v511 = vsel %vm444, %v490, 0.0
        %512 = vadd.xlane.f32.xlu0 %v511
        %v513 = vpop.xlane.xlu0 %512
        %v514 = vsel %vm444, %v492, 0.0
        %515 = vadd.xlane.f32.xlu0 %v514
        %v516 = vpop.xlane.xlu0 %515
        %v517 = vrcp.pop %v495
        %v518 = vmul.f32 %v478, %v517
        %v519 = vrcp.pop %v498
        %v520 = vmul.f32 %v480, %v519
        %v521 = vrcp.pop %v501
        %v522 = vmul.f32 %v482, %v521
        %v523 = vrcp.pop %v504
        %v524 = vmul.f32 %v484, %v523
        %v525 = vrcp.pop %v507
        %v526 = vmul.f32 %v486, %v525
        %v527 = vrcp.pop %v510
        %v528 = vmul.f32 %v488, %v527
        %v529 = vrcp.pop %v513
        %v530 = vmul.f32 %v490, %v529
        %v531 = vrcp.pop %v516
        %v532 = vmul.f32 %v492, %v531
        %541 = vrot.lane.b32.xlu0 %v518, 127
        %v542 = vpop.permute.xlu0 %541
        %543 = vrot.lane.b32.xlu0 %v520, 127
        %v544 = vpop.permute.xlu0 %543
        %545 = vrot.lane.b32.xlu0 %v522, 127
        %v546 = vpop.permute.xlu0 %545
        %547 = vrot.lane.b32.xlu0 %v524, 127
        %v548 = vpop.permute.xlu0 %547
        %549 = vrot.lane.b32.xlu0 %v526, 127
        %v550 = vpop.permute.xlu0 %549
        %551 = vrot.lane.b32.xlu0 %v528, 127
        %v552 = vpop.permute.xlu0 %551
        %553 = vrot.lane.b32.xlu0 %v530, 127
        %v554 = vpop.permute.xlu0 %553
        %555 = vrot.lane.b32.xlu0 %v532, 127
        %v556 = vpop.permute.xlu0 %555
        %vm565 = vcmask 121856
        %v566 = vsel %vm565, %v542, 0.0
        %567 = vadd.xlane.f32.xlu0 %v566
        %v568 = vpop.xlane.xlu0 %567
        %v569 = vsel %vm565, %v544, 0.0
        %570 = vadd.xlane.f32.xlu0 %v569
        %v571 = vpop.xlane.xlu0 %570
        %v572 = vsel %vm565, %v546, 0.0
        %573 = vadd.xlane.f32.xlu0 %v572
        %v574 = vpop.xlane.xlu0 %573
        %v575 = vsel %vm565, %v548, 0.0
        %576 = vadd.xlane.f32.xlu0 %v575
        %v577 = vpop.xlane.xlu0 %576
        %v578 = vsel %vm565, %v550, 0.0
        %579 = vadd.xlane.f32.xlu0 %v578
        %v580 = vpop.xlane.xlu0 %579
        %v581 = vsel %vm565, %v552, 0.0
        %582 = vadd.xlane.f32.xlu0 %v581
        %v583 = vpop.xlane.xlu0 %582
        %v584 = vsel %vm565, %v554, 0.0
        %585 = vadd.xlane.f32.xlu0 %v584
        %v586 = vpop.xlane.xlu0 %585
        %v587 = vsel %vm565, %v556, 0.0
        %588 = vadd.xlane.f32.xlu0 %v587
        %v589 = vpop.xlane.xlu0 %588
        %s590 = sld [smem:[#allocation6 + %s22]]
        %s591 = sld [smem:[#allocation2]]
        %s592 = sld [smem:[#allocation2 + $0x1]]
        %s593 = sld [smem:[#allocation4]]
        %s594 = sld [smem:[#allocation4 + $0x1]]
        %v595 = vstv %s591
        %v596 = vmul.f32 %v595, %v421
        %v597 = vmul.f32 %v595, %v423
        %v598 = vmul.f32 %v595, %v425
        %v599 = vmul.f32 %v595, %v427
        %v600 = vmul.f32 %v595, %v429
        %v601 = vmul.f32 %v595, %v431
        %v602 = vmul.f32 %v595, %v433
        %v603 = vmul.f32 %v595, %v435
        %s604 = smul.f32 %s592, %s590
        %v605 = vstv %s604
        %v606 = vadd.f32 %v596, %v605
        %v607 = vadd.f32 %v597, %v605
        %v608 = vadd.f32 %v598, %v605
        %v609 = vadd.f32 %v599, %v605
        %v610 = vadd.f32 %v600, %v605
        %v611 = vadd.f32 %v601, %v605
        %v612 = vadd.f32 %v602, %v605
        %v613 = vadd.f32 %v603, %v605
        %v614 = vstv %s593
        %v615 = vmul.f32 %v614, %v606
        %v616 = vmul.f32 %v614, %v607
        %v617 = vmul.f32 %v614, %v608
        %v618 = vmul.f32 %v614, %v609
        %v619 = vmul.f32 %v614, %v610
        %v620 = vmul.f32 %v614, %v611
        %v621 = vmul.f32 %v614, %v612
        %v622 = vmul.f32 %v614, %v613
        %v623 = vstv %s594
        %v624 = vmul.f32 %v623, %v568
        %v625 = vmul.f32 %v623, %v571
        %v626 = vmul.f32 %v623, %v574
        %v627 = vmul.f32 %v623, %v577
        %v628 = vmul.f32 %v623, %v580
        %v629 = vmul.f32 %v623, %v583
        %v630 = vmul.f32 %v623, %v586
        %v631 = vmul.f32 %v623, %v589
        %v632 = vadd.f32 %v615, %v624
        %v633 = vadd.f32 %v616, %v625
        %v634 = vadd.f32 %v617, %v626
        %v635 = vadd.f32 %v618, %v627
        %v636 = vadd.f32 %v619, %v628
        %v637 = vadd.f32 %v620, %v629
        %v638 = vadd.f32 %v621, %v630
        %v639 = vadd.f32 %v622, %v631
        %648 = vrot.lane.b32.xlu0 %v632, 1
        %v649 = vpop.permute.xlu0 %648
        %650 = vrot.lane.b32.xlu0 %v633, 1
        %v651 = vpop.permute.xlu0 %650
        %652 = vrot.lane.b32.xlu0 %v634, 1
        %v653 = vpop.permute.xlu0 %652
        %654 = vrot.lane.b32.xlu0 %v635, 1
        %v655 = vpop.permute.xlu0 %654
        %656 = vrot.lane.b32.xlu0 %v636, 1
        %v657 = vpop.permute.xlu0 %656
        %658 = vrot.lane.b32.xlu0 %v637, 1
        %v659 = vpop.permute.xlu0 %658
        %660 = vrot.lane.b32.xlu0 %v638, 1
        %v661 = vpop.permute.xlu0 %660
        %662 = vrot.lane.b32.xlu0 %v639, 1
        %v663 = vpop.permute.xlu0 %662
        %vm672 = vcmp.gt.f32.partialorder %v606, %v649
        %vm673 = vcmp.gt.f32.partialorder %v607, %v651
        %vm674 = vcmp.gt.f32.partialorder %v608, %v653
        %vm675 = vcmp.gt.f32.partialorder %v609, %v655
        %vm676 = vcmp.gt.f32.partialorder %v610, %v657
        %vm677 = vcmp.gt.f32.partialorder %v611, %v659
        %vm678 = vcmp.gt.f32.partialorder %v612, %v661
        %vm679 = vcmp.gt.f32.partialorder %v613, %v663
        %v680 = vsel %vm672, 1, 0
        %v681 = vsel %vm673, 1, 0
        %v682 = vsel %vm674, 1, 0
        %v683 = vsel %vm675, 1, 0
        %v684 = vsel %vm676, 1, 0
        %v685 = vsel %vm677, 1, 0
        %v686 = vsel %vm678, 1, 0
        %v687 = vsel %vm679, 1, 0
        %688 = vrot.lane.b32.xlu0 %v680, 127
        %v689 = vpop.permute.xlu0 %688
        %690 = vrot.lane.b32.xlu0 %v681, 127
        %v691 = vpop.permute.xlu0 %690
        %692 = vrot.lane.b32.xlu0 %v682, 127
        %v693 = vpop.permute.xlu0 %692
        %694 = vrot.lane.b32.xlu0 %v683, 127
        %v695 = vpop.permute.xlu0 %694
        %696 = vrot.lane.b32.xlu0 %v684, 127
        %v697 = vpop.permute.xlu0 %696
        %698 = vrot.lane.b32.xlu0 %v685, 127
        %v699 = vpop.permute.xlu0 %698
        %700 = vrot.lane.b32.xlu0 %v686, 127
        %v701 = vpop.permute.xlu0 %700
        %702 = vrot.lane.b32.xlu0 %v687, 127
        %v703 = vpop.permute.xlu0 %702
        %vm704 = vcmask 7168
        %705 = vst.msk [vmem:[%s337] sm:$0xff] %vm704, %v689
        %706 = vst.msk [vmem:[%s337 + $0x8] sm:$0xff] %vm704, %v691
        %707 = vst.msk [vmem:[%s337 + $0x10] sm:$0xff] %vm704, %v693
        %708 = vst.msk [vmem:[%s337 + $0x18] sm:$0xff] %vm704, %v695
        %709 = vst.msk [vmem:[%s337 + $0x20] sm:$0xff] %vm704, %v697
        %710 = vst.msk [vmem:[%s337 + $0x28] sm:$0xff] %vm704, %v699
        %711 = vst.msk [vmem:[%s337 + $0x30] sm:$0xff] %vm704, %v701
        %712 = vst.msk [vmem:[%s337 + $0x38] sm:$0xff] %vm704, %v703
        %s713 = smul.u32 8, %s23
        %p714 = scmp.lt.s32.totalorder %s22, 1
        %s715 = scalar_select %p714, %s22, 1
        %p716 = scmp.lt.s32.totalorder %s713, 7
        %s717 = scalar_select %p716, %s713, 7
        %s718 = smul.addr %s715, 8
        %s719 = sadd.s32 %s717, %s718
        %s720 = smul.addr %s719, 8
        %s721 = scalar_lea.vmem %s5, %s720
        // Predicated region
        $region53: #{one_model_forward.25} parent=39 // pred_check
          %p722 = pneg %p169
        $region54: #{one_model_forward.25} parent=39 // pred_check_branch
          %724 = sbr.rel (%p722) target = $region56
        $region55: #{one_model_forward.25} parent=39 // pred_region
          %s725 = smul.u32 8, %s23
        $region56: #{one_model_forward.25} parent=39 // pred_fallthru
          _
      $region40: #{one_model_forward.25} parent=5 // pred_fallthru
        _
      %p726 = scmp.le.s32.totalorder 2, %s13
      // Predicated region
      $region57: #{one_model_forward.25} parent=5 // pred_check
        %p727 = pneg %p726
      $region58: #{one_model_forward.25} parent=5 // pred_check_branch
        %729 = sbr.rel (%p727) target = $region60
      $region59: #{one_model_forward.25} parent=5 // pred_region
        %s730 = ssub.s32 %s13, 2
        // Predicated region
        $region61: #{one_model_forward.25} parent=59 // pred_check
          %p731 = pneg %p175
        $region62: #{one_model_forward.25} parent=59 // pred_check_branch
          %733 = sbr.rel (%p731) target = $region64
        $region63: #{one_model_forward.25} parent=59 // pred_region
          %s734 = smul.u32 8, %s25
          %p735 = scmp.lt.s32.totalorder %s24, 1
          %s736 = scalar_select %p735, %s24, 1
          %p737 = scmp.lt.s32.totalorder %s734, 7
          %s738 = scalar_select %p737, %s734, 7
          %s739 = smul.addr %s736, 8
          %s740 = sadd.s32 %s738, %s739
          %s741 = smul.addr %s740, 8
          %s742 = scalar_lea.vmem %s5, %s741
        $region64: #{one_model_forward.25} parent=59 // pred_fallthru
          _
      $region60: #{one_model_forward.25} parent=5 // pred_fallthru
        _
    $region6: #{one_model_forward.25} parent=1 // loop_footer
      %s17 = sadd.s32 1, %s13
    $region7: #{one_model_forward.25} parent=1 // loop_footer_branch
      %12 = sbr.rel target = $region3
    $region8: #{one_model_forward.25} parent=1 // loop_exit
      _
    %743 = vsyncpa [#allocation3], 1
    %s744 = scalar_lea.sflag [#allocation3], 1
    %745 = vsyncpa %s744, 1
    %746 = vsyncpa [#allocation5], 1

</llo_original>
